<compile_context>
chip_gen: v7x
topology: tpu7x:2x2x1
jax: 0.10.0
libtpu: 0.0.40
codegen_flags: <defaults>
</compile_context>

<pallas_src>
import math

import numpy as np
import jax
import jax.numpy as jnp
from jax.experimental import pallas as pl
from jax.experimental.pallas import tpu as pltpu

EPS_BN = 1e-5
LRELU_SLOPE = 0.2
K9 = 9           # kernel size of the residual block's conv
HALF9 = K9 // 2  # circular padding


# --------------------------------------------------------------------------
# Pallas kernel: one grid step == one virtual-batch group of size `bg`.
# --------------------------------------------------------------------------
def _disc_head_kernel(x_ref, wb_ref, w1_ref, w9_ref, bn_ref, o_ref):
    bg, C, L = x_ref.shape
    inv_n = 1.0 / float(bg * L)
    inv_sqrt2 = 1.0 / math.sqrt(2.0)

    def bn_lrelu(t, g, be):
        # BatchNormLocal over (group batch, L) per channel: one-pass statistics
        # folded into a per-channel scale/shift, then LeakyReLU(0.2).
        # NOTE: E[x^2]-E[x]^2 can cancel if |mean| >> std; fine at these scales.
        s = jnp.sum(t, axis=2, keepdims=True)            # (bg, C, 1)  lane reduce
        ss = jnp.sum(t * t, axis=2, keepdims=True)
        s = jnp.sum(s, axis=0, keepdims=True)            # (1, C, 1)
        ss = jnp.sum(ss, axis=0, keepdims=True)
        mean = s * inv_n
        var = ss * inv_n - mean * mean
        scale = g * jax.lax.rsqrt(var + EPS_BN)           # (1, C, 1)
        shift = be - mean * scale
        t = t * scale + shift
        return jnp.maximum(t, LRELU_SLOPE * t)

    def bcast_w(w2d):
        # (C, C) -> (bg, C, C): weights replicated so the channel matmul is a clean
        # batched dot ('boc,bcl->bol'), avoiding any output transpose / relayout.
        return jnp.broadcast_to(w2d[None], (bg, C, C))

    x = x_ref[...]                                        # (bg, C, L) f32

    # ---- block 1: SpectralConv1d(k=1) == batched channel matmul --------------
    # conv bias b1 dropped: a per-channel constant is cancelled by the BN mean.
    h = jnp.einsum('boc,bcl->bol', bcast_w(w1_ref[...]), x,
                   preferred_element_type=jnp.float32)
    h = bn_lrelu(h, bn_ref[0:1], bn_ref[1:2])             # (bg, C, L)

    # ---- residual block: circular k=9 conv as 9 accumulating matmuls ---------
    # Tap k needs roll(h, HALF9 - k) along L (circular padding).  L == 128 == one
    # lane tile, so pltpu.roll is a per-sample XLU lane rotation; no sample bleed
    # and no (9C, bg*L) intermediate is ever materialized.
    y = jnp.einsum('boc,bcl->bol', bcast_w(w9_ref[HALF9]), h,
                   preferred_element_type=jnp.float32)    # centre tap (shift 0)
    for k in range(K9):
        if k == HALF9:
            continue
        hk = pltpu.roll(h, shift=(HALF9 - k) % L, axis=2)
        y = y + jnp.einsum('boc,bcl->bol', bcast_w(w9_ref[k]), hk,
                           preferred_element_type=jnp.float32)
    y = bn_lrelu(y, bn_ref[2:3], bn_ref[3:4])

    hres = (y + h) * inv_sqrt2                            # ResidualBlock: (fn(x)+x)/sqrt(2)

    # ---- folded cls conv + conditioning projection (VPU path, no M=1 matmuls) -
    # out[b, l] = w_eff[b, :] . hres[b, :, l] + b_eff[b]
    wb = wb_ref[...]                                      # (bg, C+1)
    weff = wb[:, :C]                                      # (bg, C)
    beff = wb[:, C:]                                      # (bg, 1)
    out = jnp.sum(hres * weff[:, :, None], axis=1) + beff  # (bg, L)
    o_ref[...] = out.astype(o_ref.dtype)                  # single lane-dense store


# --------------------------------------------------------------------------
# Wrapper
# --------------------------------------------------------------------------
def disc_head_forward(x, c, packed_params, *, virtual_bs=8):
    B, C, L = x.shape
    G = int(np.ceil(B / virtual_bs))
    assert B % G == 0, "B must split evenly into virtual-batch groups"
    bg = B // G

    (w1, w9k, bn, wcls2d, bcls, wmap, bmap) = packed_params
    cmap_dim = wcls2d.shape[0]

    # Fold cls (1x1 conv to cmap_dim) + conditioning projection into per-sample
    # channel weights / scalar bias (tiny plain-JAX glue; removes all (cmap_dim, L)
    # work and the lane-sparse `c` input from the kernel):
    #   w_eff = (cmapper(c) @ W_cls) / sqrt(cmap_dim),  b_eff = cmapper(c) @ b_cls / sqrt(cmap_dim)
    # TODO(synk): only the c_dim > 0 branch is implemented (the c_dim == 0 branch
    # skips the conditioning projection and uses cmap_dim = 1).
    hp = jax.lax.Precision.HIGHEST
    scale = 1.0 / math.sqrt(float(cmap_dim))
    cmap = jnp.einsum('bd,md->bm', c, wmap, precision=hp) + bmap[None, :]   # (B, cmap_dim)
    w_eff = jnp.einsum('bm,mc->bc', cmap, wcls2d, precision=hp) * scale     # (B, C)
    b_eff = (jnp.einsum('bm,m->b', cmap, bcls, precision=hp) * scale)[:, None]
    wb_eff = jnp.concatenate([w_eff, b_eff], axis=1)                        # (B, C+1)

    out2d = pl.pallas_call(
        _disc_head_kernel,
        out_shape=jax.ShapeDtypeStruct((B, L), x.dtype),
        grid=(G,),                                        # one step per BN group
        in_specs=[
            pl.BlockSpec((bg, C, L), lambda g: (g, 0, 0)),     # x        (grid-varying)
            pl.BlockSpec((bg, C + 1), lambda g: (g, 0)),       # folded cls/cond params
            pl.BlockSpec((C, C), lambda g: (0, 0)),            # w1       (const)
            pl.BlockSpec((K9, C, C), lambda g: (0, 0, 0)),     # w9 taps  (const)
            pl.BlockSpec((4, C, 1), lambda g: (0, 0, 0)),      # BN affine (const)
        ],
        out_specs=pl.BlockSpec((bg, L), lambda g: (g, 0)),     # lane-dense (bg, L)
        compiler_params=pltpu.CompilerParams(
            # "parallel" so the group axis can shard across v7x's two TensorCores;
            # explicit VMEM limit (working set here is well under 1 MiB).
            dimension_semantics=("parallel",),
            vmem_limit_bytes=32 * 1024 * 1024,
        ),
    )(x, wb_eff, w1, w9k, bn)

    return out2d[:, None, :]                              # (B, 1, L)


# --------------------------------------------------------------------------
# Deterministic synthetic parameters (glue, plain JAX)
# --------------------------------------------------------------------------
def _spectral_normalize(w, key, n_iter=1, eps=1e-12):
    """One power iteration (dim=0), matching torch SpectralNorm semantics."""
    out_dim = w.shape[0]
    w_mat = w.reshape(out_dim, -1)
    u = jax.random.normal(key, (out_dim,), jnp.float32)
    u = u / (jnp.linalg.norm(u) + eps)
    v = None
    for _ in range(n_iter):
        v = w_mat.T @ u
        v = v / (jnp.linalg.norm(v) + eps)
        u = w_mat @ v
        u = u / (jnp.linalg.norm(u) + eps)
    sigma = u @ (w_mat @ v)
    return w / sigma


def init_params(key, C, cond_dim, cmap_dim):
    ks = jax.random.split(key, 10)
    # SpectralConv1d(C, C, k=1)
    w1 = jax.random.normal(ks[0], (C, C, 1), jnp.float32) / math.sqrt(C)
    b1 = 0.01 * jax.random.normal(ks[1], (C,), jnp.float32)
    w1 = _spectral_normalize(w1, ks[2])
    # SpectralConv1d(C, C, k=9)
    w9 = jax.random.normal(ks[3], (C, C, K9), jnp.float32) / math.sqrt(C * K9)
    b9 = 0.01 * jax.random.normal(ks[4], (C,), jnp.float32)
    w9 = _spectral_normalize(w9, ks[5])
    # BatchNormLocal affine params (PyTorch init: ones / zeros)
    g1, be1 = jnp.ones((C,), jnp.float32), jnp.zeros((C,), jnp.float32)
    g2, be2 = jnp.ones((C,), jnp.float32), jnp.zeros((C,), jnp.float32)
    # cls: SpectralConv1d(C, cmap_dim, k=1)
    wcls = jax.random.normal(ks[6], (cmap_dim, C, 1), jnp.float32) / math.sqrt(C)
    bcls = 0.01 * jax.random.normal(ks[7], (cmap_dim,), jnp.float32)
    wcls = _spectral_normalize(wcls, ks[8])
    # cmapper FullyConnectedLayer (StyleGAN): effective weight gain 1/sqrt(in), bias 0
    wmap = jax.random.normal(ks[9], (cmap_dim, cond_dim), jnp.float32) / math.sqrt(cond_dim)
    bmap = jnp.zeros((cmap_dim,), jnp.float32)
    return (w1, b1, g1, be1, w9, b9, g2, be2, wcls, bcls, wmap, bmap)


def pack_params(raw):
    """Reshape raw params into the layouts the kernel / wrapper expect."""
    (w1, b1, g1, be1, w9, b9, g2, be2, wcls, bcls, wmap, bmap) = raw
    # b1 / b9 are intentionally dropped: a per-channel constant added before
    # BatchNormLocal is cancelled exactly by the mean subtraction.
    del b1, b9
    w9k = jnp.transpose(w9, (2, 0, 1))                          # (K9, C, C); w9k[k] == w9[:, :, k]
    bn = jnp.stack([g1, be1, g2, be2], axis=0)[:, :, None]      # (4, C, 1)
    return (w1[:, :, 0], w9k, bn, wcls[:, :, 0], bcls, wmap, bmap)


# --------------------------------------------------------------------------
# Pure-JAX reference (mirrors the PyTorch forward) for a sanity check
# --------------------------------------------------------------------------
def forward_ref(x, c, raw, *, virtual_bs=8, cmap_dim=64):
    (w1, b1, g1, be1, w9, b9, g2, be2, wcls, bcls, wmap, bmap) = raw
    hp = jax.lax.Precision.HIGHEST

    def conv_k(xx, w, b):
        K = w.shape[-1]
        p = K // 2
        out = jnp.zeros((xx.shape[0], w.shape[0], xx.shape[2]), jnp.float32)
        for k in range(K):
            xk = jnp.roll(xx, p - k, axis=-1)
            out = out + jnp.einsum('oc,bcl->bol', w[:, :, k], xk, precision=hp)
        return out + b[None, :, None]

    def bn(xx, g, be):
        B, C, L = xx.shape
        G = int(np.ceil(B / virtual_bs))
        xg = xx.reshape(G, -1, C, L)
        mean = xg.mean(axis=(1, 3), keepdims=True)
        var = xg.var(axis=(1, 3), keepdims=True)
        xg = (xg - mean) / jnp.sqrt(var + EPS_BN)
        xg = xg * g[None, :, None] + be[None, :, None]
        return xg.reshape(B, C, L)

    def lrelu(v):
        return jnp.where(v >= 0, v, LRELU_SLOPE * v)

    h = lrelu(bn(conv_k(x, w1, b1), g1, be1))
    y = lrelu(bn(conv_k(h, w9, b9), g2, be2))
    h2 = (y + h) / math.sqrt(2.0)
    out = jnp.einsum('oc,bcl->bol', wcls[:, :, 0], h2, precision=hp) + bcls[None, :, None]
    cmap = (jnp.einsum('bd,md->bm', c, wmap, precision=hp) + bmap)[:, :, None]
    return (out * cmap).sum(1, keepdims=True) * (1.0 / math.sqrt(cmap_dim))


# --------------------------------------------------------------------------
if __name__ == "__main__":
    # Small shapes consistent with DiscHead.forward: x (B, C, L), c (B, cond_dim).
    # B = 16 with virtual_bs = 8 -> 2 virtual-batch groups -> 2 "parallel" grid steps.
    B, C, L = 16, 16, 128
    cond_dim, cmap_dim = 8, 64
    virtual_bs = 8

    key = jax.random.PRNGKey(0)
    kx, kc, kp = jax.random.split(key, 3)
    x = jax.random.normal(kx, (B, C, L), jnp.float32)
    c = jax.random.normal(kc, (B, cond_dim), jnp.float32)

    raw = init_params(kp, C, cond_dim, cmap_dim)
    packed = pack_params(raw)

    out = disc_head_forward(x, c, packed, virtual_bs=virtual_bs)
    out = jax.block_until_ready(out)

    ref = forward_ref(x, c, raw, virtual_bs=virtual_bs, cmap_dim=cmap_dim)
    assert out.shape == (B, 1, L)
    np.testing.assert_allclose(np.asarray(out), np.asarray(ref), rtol=5e-3, atol=5e-3)
    print("KERNEL_OK")
</pallas_src>

<mosaic_0001>
module attributes {stable_mosaic.version = 11 : i64} {
  func.func @_disc_head_kernel(%arg0: i32, %arg1: memref<8x16x128xf32, #tpu.memory_space<vmem>>, %arg2: memref<8x17xf32, #tpu.memory_space<vmem>>, %arg3: memref<16x16xf32, #tpu.memory_space<vmem>>, %arg4: memref<9x16x16xf32, #tpu.memory_space<vmem>>, %arg5: memref<4x16x1xf32, #tpu.memory_space<vmem>>, %arg6: memref<8x128xf32, #tpu.memory_space<vmem>>) attributes {dimension_semantics = [#tpu.dimension_semantics<parallel>], iteration_bounds = array<i64: 2>, scalar_prefetch = 0 : i64, scratch_operands = 0 : i64, tpu.core_type = #tpu.core_type<tc>, window_params = [{transform_indices = @transform_0, window_bounds = array<i64: 8, 16, 128>}, {transform_indices = @transform_1, window_bounds = array<i64: 8, 17>}, {pipeline_mode = #tpu.pipeline_mode<synchronous>, transform_indices = @transform_2, window_bounds = array<i64: 16, 16>}, {pipeline_mode = #tpu.pipeline_mode<synchronous>, transform_indices = @transform_3, window_bounds = array<i64: 9, 16, 16>}, {pipeline_mode = #tpu.pipeline_mode<synchronous>, transform_indices = @transform_4, window_bounds = array<i64: 4, 16, 1>}, {transform_indices = @transform_5, window_bounds = array<i64: 8, 128>}]} {
    %c0 = arith.constant 0 : index
    %c0_0 = arith.constant 0 : index
    %c0_1 = arith.constant 0 : index
    %0 = vector.load %arg1[%c0, %c0_0, %c0_1] : memref<8x16x128xf32, #tpu.memory_space<vmem>>, vector<8x16x128xf32>
    %c0_2 = arith.constant 0 : index
    %c0_3 = arith.constant 0 : index
    %1 = vector.load %arg3[%c0_2, %c0_3] : memref<16x16xf32, #tpu.memory_space<vmem>>, vector<16x16xf32>
    %2 = vector.shape_cast %1 : vector<16x16xf32> to vector<1x16x16xf32>
    %3 = vector.shape_cast %2 : vector<1x16x16xf32> to vector<1x16x16xf32>
    %4 = vector.broadcast %3 : vector<1x16x16xf32> to vector<8x16x16xf32>
    "tpu.trace_start"() <{level = 10 : i32, message = "boc,bcl->bol"}> : () -> ()
    %cst = arith.constant dense<0.000000e+00> : vector<8x16x128xf32>
    %5 = tpu.matmul %4, %0, %cst {dimension_numbers = #tpu.dot_dimension_numbers<[2], [1], [1], [2], [0, 0, 0, 1, 1, 2], [0], [0]>} : vector<8x16x16xf32>, vector<8x16x128xf32>, vector<8x16x128xf32> -> vector<8x16x128xf32>
    "tpu.trace_stop"() : () -> ()
    %c0_4 = arith.constant 0 : index
    %c0_5 = arith.constant 0 : index
    %c0_6 = arith.constant 0 : index
    %6 = vector.load %arg5[%c0_4, %c0_5, %c0_6] : memref<4x16x1xf32, #tpu.memory_space<vmem>>, vector<1x16x1xf32>
    %c1 = arith.constant 1 : index
    %c0_7 = arith.constant 0 : index
    %c0_8 = arith.constant 0 : index
    %7 = vector.load %arg5[%c1, %c0_7, %c0_8] : memref<4x16x1xf32, #tpu.memory_space<vmem>>, vector<1x16x1xf32>
    %cst_9 = arith.constant dense<0.000000e+00> : vector<8x16xf32>
    %8 = vector.multi_reduction <add>, %5, %cst_9 [2] : vector<8x16x128xf32> to vector<8x16xf32>
    %9 = vector.shape_cast %8 : vector<8x16xf32> to vector<8x16x1xf32>
    %10 = arith.mulf %5, %5 : vector<8x16x128xf32>
    %cst_10 = arith.constant dense<0.000000e+00> : vector<8x16xf32>
    %11 = vector.multi_reduction <add>, %10, %cst_10 [2] : vector<8x16x128xf32> to vector<8x16xf32>
    %12 = vector.shape_cast %11 : vector<8x16xf32> to vector<8x16x1xf32>
    %cst_11 = arith.constant dense<0.000000e+00> : vector<16x1xf32>
    %13 = vector.multi_reduction <add>, %9, %cst_11 [0] : vector<8x16x1xf32> to vector<16x1xf32>
    %14 = vector.shape_cast %13 : vector<16x1xf32> to vector<1x16x1xf32>
    %cst_12 = arith.constant dense<0.000000e+00> : vector<16x1xf32>
    %15 = vector.multi_reduction <add>, %12, %cst_12 [0] : vector<8x16x1xf32> to vector<16x1xf32>
    %16 = vector.shape_cast %15 : vector<16x1xf32> to vector<1x16x1xf32>
    %cst_13 = arith.constant 9.765625E-4 : f32
    %17 = vector.broadcast %cst_13 : f32 to vector<1x16x1xf32>
    %18 = arith.mulf %14, %17 : vector<1x16x1xf32>
    %cst_14 = arith.constant 9.765625E-4 : f32
    %19 = vector.broadcast %cst_14 : f32 to vector<1x16x1xf32>
    %20 = arith.mulf %16, %19 : vector<1x16x1xf32>
    %21 = arith.mulf %18, %18 : vector<1x16x1xf32>
    %22 = arith.subf %20, %21 : vector<1x16x1xf32>
    %cst_15 = arith.constant 9.99999974E-6 : f32
    %23 = vector.broadcast %cst_15 : f32 to vector<1x16x1xf32>
    %24 = arith.addf %22, %23 : vector<1x16x1xf32>
    %25 = math.rsqrt %24 : vector<1x16x1xf32>
    %26 = arith.mulf %6, %25 : vector<1x16x1xf32>
    %27 = arith.mulf %18, %26 : vector<1x16x1xf32>
    %28 = arith.subf %7, %27 : vector<1x16x1xf32>
    %29 = vector.broadcast %26 : vector<1x16x1xf32> to vector<8x16x128xf32>
    %30 = arith.mulf %5, %29 : vector<8x16x128xf32>
    %31 = vector.broadcast %28 : vector<1x16x1xf32> to vector<8x16x128xf32>
    %32 = arith.addf %30, %31 : vector<8x16x128xf32>
    %cst_16 = arith.constant 2.000000e-01 : f32
    %33 = vector.broadcast %cst_16 : f32 to vector<8x16x128xf32>
    %34 = arith.mulf %33, %32 : vector<8x16x128xf32>
    %35 = arith.maximumf %32, %34 : vector<8x16x128xf32>
    %c4 = arith.constant 4 : index
    %c0_17 = arith.constant 0 : index
    %c0_18 = arith.constant 0 : index
    %36 = vector.load %arg4[%c4, %c0_17, %c0_18] : memref<9x16x16xf32, #tpu.memory_space<vmem>>, vector<1x16x16xf32>
    %37 = vector.shape_cast %36 : vector<1x16x16xf32> to vector<16x16xf32>
    %38 = vector.shape_cast %37 : vector<16x16xf32> to vector<1x16x16xf32>
    %39 = vector.shape_cast %38 : vector<1x16x16xf32> to vector<1x16x16xf32>
    %40 = vector.broadcast %39 : vector<1x16x16xf32> to vector<8x16x16xf32>
    "tpu.trace_start"() <{level = 10 : i32, message = "boc,bcl->bol"}> : () -> ()
    %cst_19 = arith.constant dense<0.000000e+00> : vector<8x16x128xf32>
    %41 = tpu.matmul %40, %35, %cst_19 {dimension_numbers = #tpu.dot_dimension_numbers<[2], [1], [1], [2], [0, 0, 0, 1, 1, 2], [0], [0]>} : vector<8x16x16xf32>, vector<8x16x128xf32>, vector<8x16x128xf32> -> vector<8x16x128xf32>
    %c4_i32 = arith.constant 4 : i32
    "tpu.trace_stop"() : () -> ()
    %42 = tpu.dynamic_rotate %35 by %c4_i32 dim 2 : vector<8x16x128xf32>, i32 -> vector<8x16x128xf32>
    %c0_20 = arith.constant 0 : index
    %c0_21 = arith.constant 0 : index
    %c0_22 = arith.constant 0 : index
    %43 = vector.load %arg4[%c0_20, %c0_21, %c0_22] : memref<9x16x16xf32, #tpu.memory_space<vmem>>, vector<1x16x16xf32>
    %44 = vector.shape_cast %43 : vector<1x16x16xf32> to vector<16x16xf32>
    %45 = vector.shape_cast %44 : vector<16x16xf32> to vector<1x16x16xf32>
    %46 = vector.shape_cast %45 : vector<1x16x16xf32> to vector<1x16x16xf32>
    %47 = vector.broadcast %46 : vector<1x16x16xf32> to vector<8x16x16xf32>
    "tpu.trace_start"() <{level = 10 : i32, message = "boc,bcl->bol"}> : () -> ()
    %cst_23 = arith.constant dense<0.000000e+00> : vector<8x16x128xf32>
    %48 = tpu.matmul %47, %42, %cst_23 {dimension_numbers = #tpu.dot_dimension_numbers<[2], [1], [1], [2], [0, 0, 0, 1, 1, 2], [0], [0]>} : vector<8x16x16xf32>, vector<8x16x128xf32>, vector<8x16x128xf32> -> vector<8x16x128xf32>
    "tpu.trace_stop"() : () -> ()
    %49 = arith.addf %41, %48 : vector<8x16x128xf32>
    %c3_i32 = arith.constant 3 : i32
    %50 = tpu.dynamic_rotate %35 by %c3_i32 dim 2 : vector<8x16x128xf32>, i32 -> vector<8x16x128xf32>
    %c1_24 = arith.constant 1 : index
    %c0_25 = arith.constant 0 : index
    %c0_26 = arith.constant 0 : index
    %51 = vector.load %arg4[%c1_24, %c0_25, %c0_26] : memref<9x16x16xf32, #tpu.memory_space<vmem>>, vector<1x16x16xf32>
    %52 = vector.shape_cast %51 : vector<1x16x16xf32> to vector<16x16xf32>
    %53 = vector.shape_cast %52 : vector<16x16xf32> to vector<1x16x16xf32>
    %54 = vector.shape_cast %53 : vector<1x16x16xf32> to vector<1x16x16xf32>
    %55 = vector.broadcast %54 : vector<1x16x16xf32> to vector<8x16x16xf32>
    "tpu.trace_start"() <{level = 10 : i32, message = "boc,bcl->bol"}> : () -> ()
    %cst_27 = arith.constant dense<0.000000e+00> : vector<8x16x128xf32>
    %56 = tpu.matmul %55, %50, %cst_27 {dimension_numbers = #tpu.dot_dimension_numbers<[2], [1], [1], [2], [0, 0, 0, 1, 1, 2], [0], [0]>} : vector<8x16x16xf32>, vector<8x16x128xf32>, vector<8x16x128xf32> -> vector<8x16x128xf32>
    "tpu.trace_stop"() : () -> ()
    %57 = arith.addf %49, %56 : vector<8x16x128xf32>
    %c2_i32 = arith.constant 2 : i32
    %58 = tpu.dynamic_rotate %35 by %c2_i32 dim 2 : vector<8x16x128xf32>, i32 -> vector<8x16x128xf32>
    %c2 = arith.constant 2 : index
    %c0_28 = arith.constant 0 : index
    %c0_29 = arith.constant 0 : index
    %59 = vector.load %arg4[%c2, %c0_28, %c0_29] : memref<9x16x16xf32, #tpu.memory_space<vmem>>, vector<1x16x16xf32>
    %60 = vector.shape_cast %59 : vector<1x16x16xf32> to vector<16x16xf32>
    %61 = vector.shape_cast %60 : vector<16x16xf32> to vector<1x16x16xf32>
    %62 = vector.shape_cast %61 : vector<1x16x16xf32> to vector<1x16x16xf32>
    %63 = vector.broadcast %62 : vector<1x16x16xf32> to vector<8x16x16xf32>
    "tpu.trace_start"() <{level = 10 : i32, message = "boc,bcl->bol"}> : () -> ()
    %cst_30 = arith.constant dense<0.000000e+00> : vector<8x16x128xf32>
    %64 = tpu.matmul %63, %58, %cst_30 {dimension_numbers = #tpu.dot_dimension_numbers<[2], [1], [1], [2], [0, 0, 0, 1, 1, 2], [0], [0]>} : vector<8x16x16xf32>, vector<8x16x128xf32>, vector<8x16x128xf32> -> vector<8x16x128xf32>
    "tpu.trace_stop"() : () -> ()
    %65 = arith.addf %57, %64 : vector<8x16x128xf32>
    %c1_i32 = arith.constant 1 : i32
    %66 = tpu.dynamic_rotate %35 by %c1_i32 dim 2 : vector<8x16x128xf32>, i32 -> vector<8x16x128xf32>
    %c3 = arith.constant 3 : index
    %c0_31 = arith.constant 0 : index
    %c0_32 = arith.constant 0 : index
    %67 = vector.load %arg4[%c3, %c0_31, %c0_32] : memref<9x16x16xf32, #tpu.memory_space<vmem>>, vector<1x16x16xf32>
    %68 = vector.shape_cast %67 : vector<1x16x16xf32> to vector<16x16xf32>
    %69 = vector.shape_cast %68 : vector<16x16xf32> to vector<1x16x16xf32>
    %70 = vector.shape_cast %69 : vector<1x16x16xf32> to vector<1x16x16xf32>
    %71 = vector.broadcast %70 : vector<1x16x16xf32> to vector<8x16x16xf32>
    "tpu.trace_start"() <{level = 10 : i32, message = "boc,bcl->bol"}> : () -> ()
    %cst_33 = arith.constant dense<0.000000e+00> : vector<8x16x128xf32>
    %72 = tpu.matmul %71, %66, %cst_33 {dimension_numbers = #tpu.dot_dimension_numbers<[2], [1], [1], [2], [0, 0, 0, 1, 1, 2], [0], [0]>} : vector<8x16x16xf32>, vector<8x16x128xf32>, vector<8x16x128xf32> -> vector<8x16x128xf32>
    "tpu.trace_stop"() : () -> ()
    %73 = arith.addf %65, %72 : vector<8x16x128xf32>
    %c127_i32 = arith.constant 127 : i32
    %74 = tpu.dynamic_rotate %35 by %c127_i32 dim 2 : vector<8x16x128xf32>, i32 -> vector<8x16x128xf32>
    %c5 = arith.constant 5 : index
    %c0_34 = arith.constant 0 : index
    %c0_35 = arith.constant 0 : index
    %75 = vector.load %arg4[%c5, %c0_34, %c0_35] : memref<9x16x16xf32, #tpu.memory_space<vmem>>, vector<1x16x16xf32>
    %76 = vector.shape_cast %75 : vector<1x16x16xf32> to vector<16x16xf32>
    %77 = vector.shape_cast %76 : vector<16x16xf32> to vector<1x16x16xf32>
    %78 = vector.shape_cast %77 : vector<1x16x16xf32> to vector<1x16x16xf32>
    %79 = vector.broadcast %78 : vector<1x16x16xf32> to vector<8x16x16xf32>
    "tpu.trace_start"() <{level = 10 : i32, message = "boc,bcl->bol"}> : () -> ()
    %cst_36 = arith.constant dense<0.000000e+00> : vector<8x16x128xf32>
    %80 = tpu.matmul %79, %74, %cst_36 {dimension_numbers = #tpu.dot_dimension_numbers<[2], [1], [1], [2], [0, 0, 0, 1, 1, 2], [0], [0]>} : vector<8x16x16xf32>, vector<8x16x128xf32>, vector<8x16x128xf32> -> vector<8x16x128xf32>
    "tpu.trace_stop"() : () -> ()
    %81 = arith.addf %73, %80 : vector<8x16x128xf32>
    %c126_i32 = arith.constant 126 : i32
    %82 = tpu.dynamic_rotate %35 by %c126_i32 dim 2 : vector<8x16x128xf32>, i32 -> vector<8x16x128xf32>
    %c6 = arith.constant 6 : index
    %c0_37 = arith.constant 0 : index
    %c0_38 = arith.constant 0 : index
    %83 = vector.load %arg4[%c6, %c0_37, %c0_38] : memref<9x16x16xf32, #tpu.memory_space<vmem>>, vector<1x16x16xf32>
    %84 = vector.shape_cast %83 : vector<1x16x16xf32> to vector<16x16xf32>
    %85 = vector.shape_cast %84 : vector<16x16xf32> to vector<1x16x16xf32>
    %86 = vector.shape_cast %85 : vector<1x16x16xf32> to vector<1x16x16xf32>
    %87 = vector.broadcast %86 : vector<1x16x16xf32> to vector<8x16x16xf32>
    "tpu.trace_start"() <{level = 10 : i32, message = "boc,bcl->bol"}> : () -> ()
    %cst_39 = arith.constant dense<0.000000e+00> : vector<8x16x128xf32>
    %88 = tpu.matmul %87, %82, %cst_39 {dimension_numbers = #tpu.dot_dimension_numbers<[2], [1], [1], [2], [0, 0, 0, 1, 1, 2], [0], [0]>} : vector<8x16x16xf32>, vector<8x16x128xf32>, vector<8x16x128xf32> -> vector<8x16x128xf32>
    "tpu.trace_stop"() : () -> ()
    %89 = arith.addf %81, %88 : vector<8x16x128xf32>
    %c125_i32 = arith.constant 125 : i32
    %90 = tpu.dynamic_rotate %35 by %c125_i32 dim 2 : vector<8x16x128xf32>, i32 -> vector<8x16x128xf32>
    %c7 = arith.constant 7 : index
    %c0_40 = arith.constant 0 : index
    %c0_41 = arith.constant 0 : index
    %91 = vector.load %arg4[%c7, %c0_40, %c0_41] : memref<9x16x16xf32, #tpu.memory_space<vmem>>, vector<1x16x16xf32>
    %92 = vector.shape_cast %91 : vector<1x16x16xf32> to vector<16x16xf32>
    %93 = vector.shape_cast %92 : vector<16x16xf32> to vector<1x16x16xf32>
    %94 = vector.shape_cast %93 : vector<1x16x16xf32> to vector<1x16x16xf32>
    %95 = vector.broadcast %94 : vector<1x16x16xf32> to vector<8x16x16xf32>
    "tpu.trace_start"() <{level = 10 : i32, message = "boc,bcl->bol"}> : () -> ()
    %cst_42 = arith.constant dense<0.000000e+00> : vector<8x16x128xf32>
    %96 = tpu.matmul %95, %90, %cst_42 {dimension_numbers = #tpu.dot_dimension_numbers<[2], [1], [1], [2], [0, 0, 0, 1, 1, 2], [0], [0]>} : vector<8x16x16xf32>, vector<8x16x128xf32>, vector<8x16x128xf32> -> vector<8x16x128xf32>
    "tpu.trace_stop"() : () -> ()
    %97 = arith.addf %89, %96 : vector<8x16x128xf32>
    %c124_i32 = arith.constant 124 : i32
    %98 = tpu.dynamic_rotate %35 by %c124_i32 dim 2 : vector<8x16x128xf32>, i32 -> vector<8x16x128xf32>
    %c8 = arith.constant 8 : index
    %c0_43 = arith.constant 0 : index
    %c0_44 = arith.constant 0 : index
    %99 = vector.load %arg4[%c8, %c0_43, %c0_44] : memref<9x16x16xf32, #tpu.memory_space<vmem>>, vector<1x16x16xf32>
    %100 = vector.shape_cast %99 : vector<1x16x16xf32> to vector<16x16xf32>
    %101 = vector.shape_cast %100 : vector<16x16xf32> to vector<1x16x16xf32>
    %102 = vector.shape_cast %101 : vector<1x16x16xf32> to vector<1x16x16xf32>
    %103 = vector.broadcast %102 : vector<1x16x16xf32> to vector<8x16x16xf32>
    "tpu.trace_start"() <{level = 10 : i32, message = "boc,bcl->bol"}> : () -> ()
    %cst_45 = arith.constant dense<0.000000e+00> : vector<8x16x128xf32>
    %104 = tpu.matmul %103, %98, %cst_45 {dimension_numbers = #tpu.dot_dimension_numbers<[2], [1], [1], [2], [0, 0, 0, 1, 1, 2], [0], [0]>} : vector<8x16x16xf32>, vector<8x16x128xf32>, vector<8x16x128xf32> -> vector<8x16x128xf32>
    "tpu.trace_stop"() : () -> ()
    %105 = arith.addf %97, %104 : vector<8x16x128xf32>
    %c2_46 = arith.constant 2 : index
    %c0_47 = arith.constant 0 : index
    %c0_48 = arith.constant 0 : index
    %106 = vector.load %arg5[%c2_46, %c0_47, %c0_48] : memref<4x16x1xf32, #tpu.memory_space<vmem>>, vector<1x16x1xf32>
    %c3_49 = arith.constant 3 : index
    %c0_50 = arith.constant 0 : index
    %c0_51 = arith.constant 0 : index
    %107 = vector.load %arg5[%c3_49, %c0_50, %c0_51] : memref<4x16x1xf32, #tpu.memory_space<vmem>>, vector<1x16x1xf32>
    %cst_52 = arith.constant dense<0.000000e+00> : vector<8x16xf32>
    %108 = vector.multi_reduction <add>, %105, %cst_52 [2] : vector<8x16x128xf32> to vector<8x16xf32>
    %109 = vector.shape_cast %108 : vector<8x16xf32> to vector<8x16x1xf32>
    %110 = arith.mulf %105, %105 : vector<8x16x128xf32>
    %cst_53 = arith.constant dense<0.000000e+00> : vector<8x16xf32>
    %111 = vector.multi_reduction <add>, %110, %cst_53 [2] : vector<8x16x128xf32> to vector<8x16xf32>
    %112 = vector.shape_cast %111 : vector<8x16xf32> to vector<8x16x1xf32>
    %cst_54 = arith.constant dense<0.000000e+00> : vector<16x1xf32>
    %113 = vector.multi_reduction <add>, %109, %cst_54 [0] : vector<8x16x1xf32> to vector<16x1xf32>
    %114 = vector.shape_cast %113 : vector<16x1xf32> to vector<1x16x1xf32>
    %cst_55 = arith.constant dense<0.000000e+00> : vector<16x1xf32>
    %115 = vector.multi_reduction <add>, %112, %cst_55 [0] : vector<8x16x1xf32> to vector<16x1xf32>
    %116 = vector.shape_cast %115 : vector<16x1xf32> to vector<1x16x1xf32>
    %cst_56 = arith.constant 9.765625E-4 : f32
    %117 = vector.broadcast %cst_56 : f32 to vector<1x16x1xf32>
    %118 = arith.mulf %114, %117 : vector<1x16x1xf32>
    %cst_57 = arith.constant 9.765625E-4 : f32
    %119 = vector.broadcast %cst_57 : f32 to vector<1x16x1xf32>
    %120 = arith.mulf %116, %119 : vector<1x16x1xf32>
    %121 = arith.mulf %118, %118 : vector<1x16x1xf32>
    %122 = arith.subf %120, %121 : vector<1x16x1xf32>
    %cst_58 = arith.constant 9.99999974E-6 : f32
    %123 = vector.broadcast %cst_58 : f32 to vector<1x16x1xf32>
    %124 = arith.addf %122, %123 : vector<1x16x1xf32>
    %125 = math.rsqrt %124 : vector<1x16x1xf32>
    %126 = arith.mulf %106, %125 : vector<1x16x1xf32>
    %127 = arith.mulf %118, %126 : vector<1x16x1xf32>
    %128 = arith.subf %107, %127 : vector<1x16x1xf32>
    %129 = vector.broadcast %126 : vector<1x16x1xf32> to vector<8x16x128xf32>
    %130 = arith.mulf %105, %129 : vector<8x16x128xf32>
    %131 = vector.broadcast %128 : vector<1x16x1xf32> to vector<8x16x128xf32>
    %132 = arith.addf %130, %131 : vector<8x16x128xf32>
    %cst_59 = arith.constant 2.000000e-01 : f32
    %133 = vector.broadcast %cst_59 : f32 to vector<8x16x128xf32>
    %134 = arith.mulf %133, %132 : vector<8x16x128xf32>
    %135 = arith.maximumf %132, %134 : vector<8x16x128xf32>
    %136 = arith.addf %135, %35 : vector<8x16x128xf32>
    %cst_60 = arith.constant 0.707106769 : f32
    %137 = vector.broadcast %cst_60 : f32 to vector<8x16x128xf32>
    %138 = arith.mulf %136, %137 : vector<8x16x128xf32>
    %c0_61 = arith.constant 0 : index
    %c0_62 = arith.constant 0 : index
    %139 = vector.load %arg2[%c0_61, %c0_62] : memref<8x17xf32, #tpu.memory_space<vmem>>, vector<8x17xf32>
    %140 = vector.extract_strided_slice %139 {offsets = [0, 0], sizes = [8, 16], strides = [1, 1]} : vector<8x17xf32> to vector<8x16xf32>
    %141 = vector.extract_strided_slice %139 {offsets = [0, 16], sizes = [8, 1], strides = [1, 1]} : vector<8x17xf32> to vector<8x1xf32>
    %142 = vector.shape_cast %140 : vector<8x16xf32> to vector<8x16x1xf32>
    %143 = vector.broadcast %142 : vector<8x16x1xf32> to vector<8x16x128xf32>
    %144 = arith.mulf %138, %143 : vector<8x16x128xf32>
    %cst_63 = arith.constant dense<0.000000e+00> : vector<8x128xf32>
    %145 = vector.multi_reduction <add>, %144, %cst_63 [1] : vector<8x16x128xf32> to vector<8x128xf32>
    %146 = vector.broadcast %141 : vector<8x1xf32> to vector<8x128xf32>
    %147 = arith.addf %145, %146 : vector<8x128xf32>
    %c0_64 = arith.constant 0 : index
    %c0_65 = arith.constant 0 : index
    %148 = vector.load %arg6[%c0_64, %c0_65] : memref<8x128xf32, #tpu.memory_space<vmem>>, vector<8x128xf32>
    tpu.vector_store %arg6[%c0_64, %c0_65], %147 {strides = array<i32>} : memref<8x128xf32, #tpu.memory_space<vmem>>, vector<8x128xf32>,
    return
  }
  func.func @transform_0(%arg0: i32) -> (i32, i32, i32) {
    %c0_i32 = arith.constant 0 : i32
    %c0_i32_0 = arith.constant 0 : i32
    %c0_i32_1 = arith.constant 0 : i32
    return %arg0, %c0_i32, %c0_i32_0 : i32, i32, i32
  }
  func.func @transform_1(%arg0: i32) -> (i32, i32) {
    %c0_i32 = arith.constant 0 : i32
    %c0_i32_0 = arith.constant 0 : i32
    return %arg0, %c0_i32 : i32, i32
  }
  func.func @transform_2(%arg0: i32) -> (i32, i32) {
    %c0_i32 = arith.constant 0 : i32
    %c0_i32_0 = arith.constant 0 : i32
    %c0_i32_1 = arith.constant 0 : i32
    return %c0_i32, %c0_i32_0 : i32, i32
  }
  func.func @transform_3(%arg0: i32) -> (i32, i32, i32) {
    %c0_i32 = arith.constant 0 : i32
    %c0_i32_0 = arith.constant 0 : i32
    %c0_i32_1 = arith.constant 0 : i32
    %c0_i32_2 = arith.constant 0 : i32
    return %c0_i32, %c0_i32_0, %c0_i32_1 : i32, i32, i32
  }
  func.func @transform_4(%arg0: i32) -> (i32, i32, i32) {
    %c0_i32 = arith.constant 0 : i32
    %c0_i32_0 = arith.constant 0 : i32
    %c0_i32_1 = arith.constant 0 : i32
    %c0_i32_2 = arith.constant 0 : i32
    return %c0_i32, %c0_i32_0, %c0_i32_1 : i32, i32, i32
  }
  func.func @transform_5(%arg0: i32) -> (i32, i32) {
    %c0_i32 = arith.constant 0 : i32
    %c0_i32_0 = arith.constant 0 : i32
    return %arg0, %c0_i32 : i32, i32
  }
}

</mosaic_0001>

<llo_original>
// kernel: tpu_custom_call.1
$region0: #{tpu_custom_call.1}
  #allocation0 [shape = 'u32[]', space=smem, size = 0x4, offset = 0x4, fixed_abs, tag = 'smem constant byte address 0x4 - core index']
  #allocation1 [shape = 'u32[144,128]{1,0:T(1,128)}', space=vmem, size = 0x12000, scoped, tag = 'internal scratch']
  %s0 = inlined_call_operand.hbm [shape: f32[16,16,128], index: 0, kind: input, shape index: {}]
  %s1 = inlined_call_operand.vmem [shape: f32[16,17], index: 1, kind: input, shape index: {}]
  %s2 = inlined_call_operand.vmem [shape: f32[16,16], index: 2, kind: input, shape index: {}]
  %s3 = inlined_call_operand.hbm [shape: f32[9,16,16], index: 3, kind: input, shape index: {}]
  %s4 = inlined_call_operand.vmem [shape: f32[4,16,1], index: 4, kind: input, shape index: {}]
  %s5 = inlined_call_operand.hbm [shape: f32[16,128], index: 5, kind: output, shape index: {}]
  %s6 = sld [smem:[#allocation0]]
  $region61: #{tpu_custom_call.1} parent=0
    _
  %s8 = ssub.s32 1, %s6
  %s9 = scalar_select 0, %s8, %s6
  $region1: #{tpu_custom_call.1} parent=0
    #allocation2 [shape = 'u8[131072]{0}', space=vmem, size = 0x20000, scoped, tag = 'input window, operand 0']
    #allocation3 [shape = 's32[2]{0}', space=sflag, size = 0x8, scoped, tag = 'scoped memory for tpu_custom_call.1']
    #allocation4 [shape = 's32[2]{0}', space=sflag, size = 0x8, scoped, tag = 'scoped memory for tpu_custom_call.1']
    #allocation5 [shape = 'u8[73728]{0}', space=vmem, size = 0x12000, scoped, tag = 'input window, operand 3, single buffered']
    #allocation6 [shape = 's32[1]{0}', space=sflag, size = 0x4, scoped, tag = 'scoped memory for tpu_custom_call.1']
    #allocation7 [shape = 'u8[8192]{0}', space=vmem, size = 0x2000, scoped, tag = 'output window, operand 0']
    %10 = vsyncpa [#allocation3], 0
    %s11 = scalar_lea.sflag [#allocation3], 1
    %12 = vsyncpa %s11, 0
    %13 = vsyncpa [#allocation6], 0
    %14 = vsyncpa [#allocation4], 0
    %s15 = scalar_lea.sflag [#allocation4], 1
    %16 = vsyncpa %s15, 0
    loop: start=0, step=1, limit=4
    $region2: #{tpu_custom_call.1} parent=1 // loop_pre_header
      _
    $region3: #{tpu_custom_call.1} parent=1 // loop_header
      %s18 = sphi 0, %s22
      %p19 = scmp.ge.s32.totalorder %s18, 4
      %s28 = sphi 0, %s30
      %s31 = sphi 0, %s28
      %s32 = sphi 0, %s31
      %s48 = sphi 0, %s32
      %s54 = sphi 0, %s56
      %s57 = sphi 0, %s54
      %s58 = sphi 0, %s57
      %s74 = sphi 0, %s58
      %s78 = sphi 0, %s78
      %s80 = sphi 0, %s78
      %s81 = sphi 0, %s80
      %s95 = sphi 0, %s81
      %s99 = sphi 0, %s99
      %s101 = sphi 0, %s99
      %s102 = sphi 0, %s101
      %s116 = sphi 0, %s102
      %s120 = sphi 0, %s120
      %s122 = sphi 0, %s120
      %s123 = sphi 0, %s122
      %s137 = sphi 0, %s123
      %s143 = sphi 0, %s145
      %s146 = sphi 0, %s143
      %s147 = sphi 0, %s146
      %s163 = sphi 0, %s147
    $region4: #{tpu_custom_call.1} parent=1 // loop_header_branch
      %21 = sbr.rel (%p19) target = $region8
    $region5: #{tpu_custom_call.1} parent=1 // loop_body
      %s23 = ssub.s32 %s18, 1
      %s24 = ssub.s32 %s18, 2
      %s25 = sadd.s32 %s18, 1
      %s26 = ssub.s32 %s18, %s25
      %p27 = scmp.eq.s32.totalorder %s26, 0
      %s29 = sadd.s32 %s28, 1
      %s30 = scalar_select %p27, %s28, %s29
      %p33 = pneg %p27
      %p34 = scmp.eq.s32.totalorder %s18, 1
      %p35 = por %p33, %p34
      %p36 = scmp.ne.s32.totalorder %s28, %s31
      %p37 = scmp.eq.s32.totalorder %s18, 0
      %p38 = por %p36, %p37
      %p39 = scmp.ne.s32.totalorder %s28, %s31
      %p40 = scmp.eq.s32.totalorder %s23, 1
      %p41 = por %p39, %p40
      %p42 = scmp.ne.s32.totalorder %s31, %s32
      %p43 = scmp.eq.s32.totalorder %s23, 0
      %p44 = por %p42, %p43
      %p45 = scmp.ne.s32.totalorder %s31, %s32
      %p46 = scmp.eq.s32.totalorder %s24, 1
      %p47 = por %p45, %p46
      %p49 = scmp.ne.s32.totalorder %s32, %s48
      %p50 = scmp.eq.s32.totalorder %s24, 0
      %p51 = por %p49, %p50
      %s52 = ssub.s32 %s18, %s25
      %p53 = scmp.eq.s32.totalorder %s52, 0
      %s55 = sadd.s32 %s54, 1
      %s56 = scalar_select %p53, %s54, %s55
      %p59 = pneg %p53
      %p60 = scmp.eq.s32.totalorder %s18, 1
      %p61 = por %p59, %p60
      %p62 = scmp.ne.s32.totalorder %s54, %s57
      %p63 = scmp.eq.s32.totalorder %s18, 0
      %p64 = por %p62, %p63
      %p65 = scmp.ne.s32.totalorder %s54, %s57
      %p66 = scmp.eq.s32.totalorder %s23, 1
      %p67 = por %p65, %p66
      %p68 = scmp.ne.s32.totalorder %s57, %s58
      %p69 = scmp.eq.s32.totalorder %s23, 0
      %p70 = por %p68, %p69
      %p71 = scmp.ne.s32.totalorder %s57, %s58
      %p72 = scmp.eq.s32.totalorder %s24, 1
      %p73 = por %p71, %p72
      %p75 = scmp.ne.s32.totalorder %s58, %s74
      %p76 = scmp.eq.s32.totalorder %s24, 0
      %p77 = por %p75, %p76
      %s79 = sadd.s32 %s78, 1
      %p82 = scmp.eq.s32.totalorder %s18, 1
      %p83 = scmp.ne.s32.totalorder %s78, %s80
      %p84 = scmp.eq.s32.totalorder %s18, 0
      %p85 = por %p83, %p84
      %p86 = scmp.ne.s32.totalorder %s78, %s80
      %p87 = scmp.eq.s32.totalorder %s23, 1
      %p88 = por %p86, %p87
      %p89 = scmp.ne.s32.totalorder %s80, %s81
      %p90 = scmp.eq.s32.totalorder %s23, 0
      %p91 = por %p89, %p90
      %p92 = scmp.ne.s32.totalorder %s80, %s81
      %p93 = scmp.eq.s32.totalorder %s24, 1
      %p94 = por %p92, %p93
      %p96 = scmp.ne.s32.totalorder %s81, %s95
      %p97 = scmp.eq.s32.totalorder %s24, 0
      %p98 = por %p96, %p97
      %s100 = sadd.s32 %s99, 1
      %p103 = scmp.eq.s32.totalorder %s18, 1
      %p104 = scmp.ne.s32.totalorder %s99, %s101
      %p105 = scmp.eq.s32.totalorder %s18, 0
      %p106 = por %p104, %p105
      %p107 = scmp.ne.s32.totalorder %s99, %s101
      %p108 = scmp.eq.s32.totalorder %s23, 1
      %p109 = por %p107, %p108
      %p110 = scmp.ne.s32.totalorder %s101, %s102
      %p111 = scmp.eq.s32.totalorder %s23, 0
      %p112 = por %p110, %p111
      %p113 = scmp.ne.s32.totalorder %s101, %s102
      %p114 = scmp.eq.s32.totalorder %s24, 1
      %p115 = por %p113, %p114
      %p117 = scmp.ne.s32.totalorder %s102, %s116
      %p118 = scmp.eq.s32.totalorder %s24, 0
      %p119 = por %p117, %p118
      %s121 = sadd.s32 %s120, 1
      %p124 = scmp.eq.s32.totalorder %s18, 1
      %p125 = scmp.ne.s32.totalorder %s120, %s122
      %p126 = scmp.eq.s32.totalorder %s18, 0
      %p127 = por %p125, %p126
      %p128 = scmp.ne.s32.totalorder %s120, %s122
      %p129 = scmp.eq.s32.totalorder %s23, 1
      %p130 = por %p128, %p129
      %p131 = scmp.ne.s32.totalorder %s122, %s123
      %p132 = scmp.eq.s32.totalorder %s23, 0
      %p133 = por %p131, %p132
      %p134 = scmp.ne.s32.totalorder %s122, %s123
      %p135 = scmp.eq.s32.totalorder %s24, 1
      %p136 = por %p134, %p135
      %p138 = scmp.ne.s32.totalorder %s123, %s137
      %p139 = scmp.eq.s32.totalorder %s24, 0
      %p140 = por %p138, %p139
      %s141 = ssub.s32 %s18, %s25
      %p142 = scmp.eq.s32.totalorder %s141, 0
      %s144 = sadd.s32 %s143, 1
      %s145 = scalar_select %p142, %s143, %s144
      %p148 = pneg %p142
      %p149 = scmp.eq.s32.totalorder %s18, 1
      %p150 = por %p148, %p149
      %p151 = scmp.ne.s32.totalorder %s143, %s146
      %p152 = scmp.eq.s32.totalorder %s18, 0
      %p153 = por %p151, %p152
      %p154 = scmp.ne.s32.totalorder %s143, %s146
      %p155 = scmp.eq.s32.totalorder %s23, 1
      %p156 = por %p154, %p155
      %p157 = scmp.ne.s32.totalorder %s146, %s147
      %p158 = scmp.eq.s32.totalorder %s23, 0
      %p159 = por %p157, %p158
      %p160 = scmp.ne.s32.totalorder %s146, %s147
      %p161 = scmp.eq.s32.totalorder %s24, 1
      %p162 = por %p160, %p161
      %p164 = scmp.ne.s32.totalorder %s147, %s163
      %p165 = scmp.eq.s32.totalorder %s24, 0
      %p166 = por %p164, %p165
      %p167 = scmp.le.s32.totalorder 1, %s18
      %p168 = scmp.lt.s32.totalorder %s18, 3
      %p169 = pnand %p167, %p168
      %p170 = pneg %p169
      // Predicated region
      $region9: #{tpu_custom_call.1} parent=5 // pred_check
        _
      $region10: #{tpu_custom_call.1} parent=5 // pred_check_branch
        %172 = sbr.rel (%p169) target = $region12
      $region11: #{tpu_custom_call.1} parent=5 // pred_region
        %s173 = ssub.s32 %s18, 1
        // Predicated region
        $region13: #{tpu_custom_call.1} parent=11 // pred_check
          %p174 = pneg %p91
        $region14: #{tpu_custom_call.1} parent=11 // pred_check_branch
          %176 = sbr.rel (%p174) target = $region16
        $region15: #{tpu_custom_call.1} parent=11 // pred_region
          _
        $region16: #{tpu_custom_call.1} parent=11 // pred_fallthru
          _
        // Predicated region
        $region17: #{tpu_custom_call.1} parent=11 // pred_check
          %p177 = pneg %p112
        $region18: #{tpu_custom_call.1} parent=11 // pred_check_branch
          %179 = sbr.rel (%p177) target = $region20
        $region19: #{tpu_custom_call.1} parent=11 // pred_region
          %s181 = ssub.s32 2304, 2304
          %182 = vsyncadd [#allocation6], %s181
          %s183 = sshll.u32 [#allocation5], 4
          %s184 = int_to_ptr.vmem [resolvable:$true] %s183
          %189 = dma.hbm_to_vmem [thread:$0]  %s3, 2304, %s184, [#allocation6], 128, 128, 8
        $region20: #{tpu_custom_call.1} parent=11 // pred_fallthru
          _
        // Predicated region
        $region21: #{tpu_custom_call.1} parent=11 // pred_check
          %p190 = pneg %p133
        $region22: #{tpu_custom_call.1} parent=11 // pred_check_branch
          %192 = sbr.rel (%p190) target = $region24
        $region23: #{tpu_custom_call.1} parent=11 // pred_region
          _
        $region24: #{tpu_custom_call.1} parent=11 // pred_fallthru
          _
      $region12: #{tpu_custom_call.1} parent=5 // pred_fallthru
        _
      %p193 = scmp.lt.s32.totalorder %s18, 2
      // Predicated region
      $region25: #{tpu_custom_call.1} parent=5 // pred_check
        %p194 = pneg %p193
      $region26: #{tpu_custom_call.1} parent=5 // pred_check_branch
        %196 = sbr.rel (%p194) target = $region28
      $region27: #{tpu_custom_call.1} parent=5 // pred_region
        // Predicated region
        $region29: #{tpu_custom_call.1} parent=27 // pred_check
          %p197 = pneg %p38
        $region30: #{tpu_custom_call.1} parent=27 // pred_check_branch
          %199 = sbr.rel (%p197) target = $region32
        $region31: #{tpu_custom_call.1} parent=27 // pred_region
          %s200 = sand.u32 %s28, 1
          %s201 = scalar_lea.sflag [#allocation3], %s200
          %s202 = sand.u32 %s28, 1
          %s203 = smul.addr %s202, 128
          %s204 = scalar_lea.vmem [#allocation2], %s203
          %s205 = smul.u32 8, %s18
          %s207 = ssub.s32 2048, 2048
          %208 = vsyncadd %s201, %s207
          %s209 = smul.addr %s205, 2
          %s210 = smul.addr %s209, 128
          %s211 = scalar_lea.hbm %s0, %s210
          %s212 = sshll.u32 %s204, 4
          %s213 = int_to_ptr.vmem [resolvable:$true] %s212
          %218 = dma.hbm_to_vmem [thread:$0]  %s211, 2048, %s213, %s201, 128, 128, 8
        $region32: #{tpu_custom_call.1} parent=27 // pred_fallthru
          _
        // Predicated region
        $region33: #{tpu_custom_call.1} parent=27 // pred_check
          %p219 = pneg %p64
        $region34: #{tpu_custom_call.1} parent=27 // pred_check_branch
          %221 = sbr.rel (%p219) target = $region36
        $region35: #{tpu_custom_call.1} parent=27 // pred_region
          %p222 = scmp.lt.s32.totalorder %s18, 1
          %s223 = scalar_select %p222, %s18, 1
          %s224 = smul.addr %s223, 8
          %s225 = scalar_lea.vmem %s1, %s224
        $region36: #{tpu_custom_call.1} parent=27 // pred_fallthru
          _
      $region28: #{tpu_custom_call.1} parent=5 // pred_fallthru
        _
      %p226 = scmp.le.s32.totalorder 1, %s18
      %p227 = scmp.lt.s32.totalorder %s18, 3
      %p228 = pnand %p226, %p227
      %p229 = pneg %p228
      // Predicated region
      $region37: #{tpu_custom_call.1} parent=5 // pred_check
        _
      $region38: #{tpu_custom_call.1} parent=5 // pred_check_branch
        %231 = sbr.rel (%p228) target = $region40
      $region39: #{tpu_custom_call.1} parent=5 // pred_region
        %s232 = ssub.s32 %s18, 1
        %s233 = sand.u32 %s31, 1
        %s234 = scalar_lea.sflag [#allocation3], %s233
        %s235 = sand.u32 %s31, 1
        %s236 = smul.addr %s235, 128
        %s237 = scalar_lea.vmem [#allocation2], %s236
        // Predicated region
        $region41: #{tpu_custom_call.1} parent=39 // pred_check
          %p238 = pneg %p44
        $region42: #{tpu_custom_call.1} parent=39 // pred_check_branch
          %240 = sbr.rel (%p238) target = $region44
        $region43: #{tpu_custom_call.1} parent=39 // pred_region
          %241 = dma.done %s234, 2048
        $region44: #{tpu_custom_call.1} parent=39 // pred_fallthru
          _
        // Predicated region
        $region45: #{tpu_custom_call.1} parent=39 // pred_check
          %p242 = pneg %p112
        $region46: #{tpu_custom_call.1} parent=39 // pred_check_branch
          %244 = sbr.rel (%p242) target = $region48
        $region47: #{tpu_custom_call.1} parent=39 // pred_region
          %245 = dma.done [#allocation6], 2304
        $region48: #{tpu_custom_call.1} parent=39 // pred_fallthru
          _
        %s246 = sand.u32 %s31, 1
        %s247 = scalar_lea.sflag [#allocation3], %s246
        %s248 = sand.u32 %s31, 1
        %s249 = smul.addr %s248, 128
        %s250 = scalar_lea.vmem [#allocation2], %s249
        %p251 = pneg %p44
        %p252 = pneg %p41
        %p253 = scmp.lt.s32.totalorder %s23, 1
        %s254 = scalar_select %p253, %s23, 1
        %s255 = smul.addr %s254, 8
        %s256 = scalar_lea.vmem %s1, %s255
        %p257 = pneg %p70
        %p258 = pneg %p67
        %p259 = pneg %p91
        %p260 = pneg %p88
        %p261 = pneg %p112
        %p262 = pneg %p109
        %p263 = pneg %p133
        %p264 = pneg %p130
        %p265 = pneg %p159
        %p266 = pneg %p156
        %s267 = sand.u32 %s146, 1
        %s268 = scalar_lea.sflag [#allocation4], %s267
        %s269 = sand.u32 %s146, 1
        %s270 = smul.addr %s269, 8
        %s271 = scalar_lea.vmem [#allocation7], %s270
        %s272 = smul.u32 8, %s23
        %p273 = scmp.lt.s32.totalorder %s23, 1
        %s274 = scalar_select %p273, %s23, 1
        %s275 = smul.addr %s274, 8
        %s276 = scalar_lea.vmem %s1, %s275
        %v277 = vld [vmem:[%s237] sm:$0xff]
        %v278 = vld [vmem:[%s237 + $0x8] sm:$0xff]
        %v279 = vld [vmem:[%s237 + $0x10] sm:$0xff]
        %v280 = vld [vmem:[%s237 + $0x18] sm:$0xff]
        %v281 = vld [vmem:[%s237 + $0x20] sm:$0xff]
        %v282 = vld [vmem:[%s237 + $0x28] sm:$0xff]
        %v283 = vld [vmem:[%s237 + $0x30] sm:$0xff]
        %v284 = vld [vmem:[%s237 + $0x38] sm:$0xff]
        %v285 = vld [vmem:[%s237 + $0x40] sm:$0xff]
        %v286 = vld [vmem:[%s237 + $0x48] sm:$0xff]
        %v287 = vld [vmem:[%s237 + $0x50] sm:$0xff]
        %v288 = vld [vmem:[%s237 + $0x58] sm:$0xff]
        %v289 = vld [vmem:[%s237 + $0x60] sm:$0xff]
        %v290 = vld [vmem:[%s237 + $0x68] sm:$0xff]
        %v291 = vld [vmem:[%s237 + $0x70] sm:$0xff]
        %v292 = vld [vmem:[%s237 + $0x78] sm:$0xff]
        %v293 = vld [vmem:[%s2] sm:$0xff]
        %v294 = vld [vmem:[%s2 + $0x8] sm:$0xff]
        %vm295 = vcmask 130048
        %v297 = vsel %vm295, %v293, 0
        %v300 = vsel %vm295, %v294, 0
        %302 = vmatprep.subr.mxu0 0.0
        %303 = vmatpush1.msra.mxu0 %v277
        %304 = vmatprep.subr.mxu0 0.0
        %305 = vmatpush1.msra.mxu0 %v278
        %306 = vmatprep.subr.mxu0 0.0
        %307 = vmatpush1.msra.mxu0 0.0
        %308 = vmatprep.subr.mxu0 0.0
        %309 = vmatpush1.msra.mxu0 0.0
        %310 = vmatprep.subr.mxu0 0.0
        %311 = vmatpush1.msra.mxu0 0.0
        %312 = vmatprep.subr.mxu0 0.0
        %313 = vmatpush1.msra.mxu0 0.0
        %314 = vmatprep.subr.mxu0 0.0
        %315 = vmatpush1.msra.mxu0 0.0
        %316 = vmatprep.subr.mxu0 0.0
        %317 = vmatpush1.msra.mxu0 0.0
        %318 = vmatprep.subr.mxu0 0.0
        %319 = vmatpush1.msra.mxu0 0.0
        %320 = vmatprep.subr.mxu0 0.0
        %321 = vmatpush1.msra.mxu0 0.0
        %322 = vmatprep.subr.mxu0 0.0
        %323 = vmatpush1.msra.mxu0 0.0
        %324 = vmatprep.subr.mxu0 0.0
        %325 = vmatpush1.msra.mxu0 0.0
        %326 = vmatprep.subr.mxu0 0.0
        %327 = vmatpush1.msra.mxu0 0.0
        %328 = vmatprep.subr.mxu0 0.0
        %329 = vmatpush1.msra.mxu0 0.0
        %330 = vmatprep.subr.mxu0 0.0
        %331 = vmatpush1.msra.mxu0 0.0
        %332 = vmatprep.subr.mxu0 0.0
        %333 = vmatpush1.msra.mxu0 0.0
        %334 = vmatprep.subr.mxu0 0.0
        %335 = vmatpush1.msra.mxu0 0.0
        %336 = vmatprep.subr.mxu0 0.0
        %337 = vmatpush1.msra.mxu0 0.0
        %338 = vmatprep.subr.mxu0 0.0
        %339 = vmatpush1.msra.mxu0 0.0
        %340 = vmatprep.subr.mxu0 0.0
        %341 = vmatpush1.msra.mxu0 0.0
        %342 = vmatprep.subr.mxu0 0.0
        %343 = vmatpush1.msra.mxu0 0.0
        %344 = vmatprep.subr.mxu0 0.0
        %345 = vmatpush1.msra.mxu0 0.0
        %346 = vmatprep.subr.mxu0 0.0
        %347 = vmatpush1.msra.mxu0 0.0
        %348 = vmatprep.subr.mxu0 0.0
        %349 = vmatpush1.msra.mxu0 0.0
        %350 = vmatprep.subr.mxu0 0.0
        %351 = vmatpush1.msra.mxu0 0.0
        %352 = vmatprep.subr.mxu0 0.0
        %353 = vmatpush1.msra.mxu0 0.0
        %354 = vmatprep.subr.mxu0 0.0
        %355 = vmatpush1.msra.mxu0 0.0
        %356 = vmatprep.subr.mxu0 0.0
        %357 = vmatpush1.msra.mxu0 0.0
        %358 = vmatprep.subr.mxu0 0.0
        %359 = vmatpush1.msra.mxu0 0.0
        %360 = vmatprep.subr.mxu0 0.0
        %361 = vmatpush1.msra.mxu0 0.0
        %362 = vmatprep.subr.mxu0 0.0
        %363 = vmatpush1.msra.mxu0 0.0
        %364 = vmatprep.subr.mxu0 0.0
        %365 = vmatpush1.msra.mxu0 0.0
        %366 = vmatprep.mubr.f32.mxu0 0.0
        %367 = vmatmul.mubr.f32.gmra.mrb[0].mxu0 %v297
        %v368 = vpop.f32.mrb[0].mxu0
        %v369 = vadd.f32 0.0, %v368
        %v370 = vpop.f32.mrb[0].mxu0
        %371 = vmatprep.mubr.f32.mxu0 0.0
        %372 = vmatmul.mubr.f32.gmra.mrb[0].mxu0 %v300
        %v373 = vpop.f32.mrb[0].mxu0
        %v374 = vadd.f32 0.0, %v373
        %v375 = vpop.f32.mrb[0].mxu0
        %376 = vdwg.mxu0
        %377 = vmatprep.subr.mxu0 0.0
        %378 = vmatpush1.msra.mxu0 %v279
        %379 = vmatprep.subr.mxu0 0.0
        %380 = vmatpush1.msra.mxu0 %v280
        %381 = vmatprep.subr.mxu0 0.0
        %382 = vmatpush1.msra.mxu0 0.0
        %383 = vmatprep.subr.mxu0 0.0
        %384 = vmatpush1.msra.mxu0 0.0
        %385 = vmatprep.subr.mxu0 0.0
        %386 = vmatpush1.msra.mxu0 0.0
        %387 = vmatprep.subr.mxu0 0.0
        %388 = vmatpush1.msra.mxu0 0.0
        %389 = vmatprep.subr.mxu0 0.0
        %390 = vmatpush1.msra.mxu0 0.0
        %391 = vmatprep.subr.mxu0 0.0
        %392 = vmatpush1.msra.mxu0 0.0
        %393 = vmatprep.subr.mxu0 0.0
        %394 = vmatpush1.msra.mxu0 0.0
        %395 = vmatprep.subr.mxu0 0.0
        %396 = vmatpush1.msra.mxu0 0.0
        %397 = vmatprep.subr.mxu0 0.0
        %398 = vmatpush1.msra.mxu0 0.0
        %399 = vmatprep.subr.mxu0 0.0
        %400 = vmatpush1.msra.mxu0 0.0
        %401 = vmatprep.subr.mxu0 0.0
        %402 = vmatpush1.msra.mxu0 0.0
        %403 = vmatprep.subr.mxu0 0.0
        %404 = vmatpush1.msra.mxu0 0.0
        %405 = vmatprep.subr.mxu0 0.0
        %406 = vmatpush1.msra.mxu0 0.0
        %407 = vmatprep.subr.mxu0 0.0
        %408 = vmatpush1.msra.mxu0 0.0
        %409 = vmatprep.subr.mxu0 0.0
        %410 = vmatpush1.msra.mxu0 0.0
        %411 = vmatprep.subr.mxu0 0.0
        %412 = vmatpush1.msra.mxu0 0.0
        %413 = vmatprep.subr.mxu0 0.0
        %414 = vmatpush1.msra.mxu0 0.0
        %415 = vmatprep.subr.mxu0 0.0
        %416 = vmatpush1.msra.mxu0 0.0
        %417 = vmatprep.subr.mxu0 0.0
        %418 = vmatpush1.msra.mxu0 0.0
        %419 = vmatprep.subr.mxu0 0.0
        %420 = vmatpush1.msra.mxu0 0.0
        %421 = vmatprep.subr.mxu0 0.0
        %422 = vmatpush1.msra.mxu0 0.0
        %423 = vmatprep.subr.mxu0 0.0
        %424 = vmatpush1.msra.mxu0 0.0
        %425 = vmatprep.subr.mxu0 0.0
        %426 = vmatpush1.msra.mxu0 0.0
        %427 = vmatprep.subr.mxu0 0.0
        %428 = vmatpush1.msra.mxu0 0.0
        %429 = vmatprep.subr.mxu0 0.0
        %430 = vmatpush1.msra.mxu0 0.0
        %431 = vmatprep.subr.mxu0 0.0
        %432 = vmatpush1.msra.mxu0 0.0
        %433 = vmatprep.subr.mxu0 0.0
        %434 = vmatpush1.msra.mxu0 0.0
        %435 = vmatprep.subr.mxu0 0.0
        %436 = vmatpush1.msra.mxu0 0.0
        %437 = vmatprep.subr.mxu0 0.0
        %438 = vmatpush1.msra.mxu0 0.0
        %439 = vmatprep.subr.mxu0 0.0
        %440 = vmatpush1.msra.mxu0 0.0
        %441 = vmatprep.mubr.f32.mxu0 0.0
        %442 = vmatmul.mubr.f32.gmra.mrb[0].mxu0 %v297
        %v443 = vpop.f32.mrb[0].mxu0
        %v444 = vadd.f32 0.0, %v443
        %v445 = vpop.f32.mrb[0].mxu0
        %446 = vmatprep.mubr.f32.mxu0 0.0
        %447 = vmatmul.mubr.f32.gmra.mrb[0].mxu0 %v300
        %v448 = vpop.f32.mrb[0].mxu0
        %v449 = vadd.f32 0.0, %v448
        %v450 = vpop.f32.mrb[0].mxu0
        %451 = vdwg.mxu0
        %452 = vmatprep.subr.mxu0 0.0
        %453 = vmatpush1.msra.mxu0 %v281
        %454 = vmatprep.subr.mxu0 0.0
        %455 = vmatpush1.msra.mxu0 %v282
        %456 = vmatprep.subr.mxu0 0.0
        %457 = vmatpush1.msra.mxu0 0.0
        %458 = vmatprep.subr.mxu0 0.0
        %459 = vmatpush1.msra.mxu0 0.0
        %460 = vmatprep.subr.mxu0 0.0
        %461 = vmatpush1.msra.mxu0 0.0
        %462 = vmatprep.subr.mxu0 0.0
        %463 = vmatpush1.msra.mxu0 0.0
        %464 = vmatprep.subr.mxu0 0.0
        %465 = vmatpush1.msra.mxu0 0.0
        %466 = vmatprep.subr.mxu0 0.0
        %467 = vmatpush1.msra.mxu0 0.0
        %468 = vmatprep.subr.mxu0 0.0
        %469 = vmatpush1.msra.mxu0 0.0
        %470 = vmatprep.subr.mxu0 0.0
        %471 = vmatpush1.msra.mxu0 0.0
        %472 = vmatprep.subr.mxu0 0.0
        %473 = vmatpush1.msra.mxu0 0.0
        %474 = vmatprep.subr.mxu0 0.0
        %475 = vmatpush1.msra.mxu0 0.0
        %476 = vmatprep.subr.mxu0 0.0
        %477 = vmatpush1.msra.mxu0 0.0
        %478 = vmatprep.subr.mxu0 0.0
        %479 = vmatpush1.msra.mxu0 0.0
        %480 = vmatprep.subr.mxu0 0.0
        %481 = vmatpush1.msra.mxu0 0.0
        %482 = vmatprep.subr.mxu0 0.0
        %483 = vmatpush1.msra.mxu0 0.0
        %484 = vmatprep.subr.mxu0 0.0
        %485 = vmatpush1.msra.mxu0 0.0
        %486 = vmatprep.subr.mxu0 0.0
        %487 = vmatpush1.msra.mxu0 0.0
        %488 = vmatprep.subr.mxu0 0.0
        %489 = vmatpush1.msra.mxu0 0.0
        %490 = vmatprep.subr.mxu0 0.0
        %491 = vmatpush1.msra.mxu0 0.0
        %492 = vmatprep.subr.mxu0 0.0
        %493 = vmatpush1.msra.mxu0 0.0
        %494 = vmatprep.subr.mxu0 0.0
        %495 = vmatpush1.msra.mxu0 0.0
        %496 = vmatprep.subr.mxu0 0.0
        %497 = vmatpush1.msra.mxu0 0.0
        %498 = vmatprep.subr.mxu0 0.0
        %499 = vmatpush1.msra.mxu0 0.0
        %500 = vmatprep.subr.mxu0 0.0
        %501 = vmatpush1.msra.mxu0 0.0
        %502 = vmatprep.subr.mxu0 0.0
        %503 = vmatpush1.msra.mxu0 0.0
        %504 = vmatprep.subr.mxu0 0.0
        %505 = vmatpush1.msra.mxu0 0.0
        %506 = vmatprep.subr.mxu0 0.0
        %507 = vmatpush1.msra.mxu0 0.0
        %508 = vmatprep.subr.mxu0 0.0
        %509 = vmatpush1.msra.mxu0 0.0
        %510 = vmatprep.subr.mxu0 0.0
        %511 = vmatpush1.msra.mxu0 0.0
        %512 = vmatprep.subr.mxu0 0.0
        %513 = vmatpush1.msra.mxu0 0.0
        %514 = vmatprep.subr.mxu0 0.0
        %515 = vmatpush1.msra.mxu0 0.0
        %516 = vmatprep.mubr.f32.mxu0 0.0
        %517 = vmatmul.mubr.f32.gmra.mrb[0].mxu0 %v297
        %v518 = vpop.f32.mrb[0].mxu0
        %v519 = vadd.f32 0.0, %v518
        %v520 = vpop.f32.mrb[0].mxu0
        %521 = vmatprep.mubr.f32.mxu0 0.0
        %522 = vmatmul.mubr.f32.gmra.mrb[0].mxu0 %v300
        %v523 = vpop.f32.mrb[0].mxu0
        %v524 = vadd.f32 0.0, %v523
        %v525 = vpop.f32.mrb[0].mxu0
        %526 = vdwg.mxu0
        %527 = vmatprep.subr.mxu0 0.0
        %528 = vmatpush1.msra.mxu0 %v283
        %529 = vmatprep.subr.mxu0 0.0
        %530 = vmatpush1.msra.mxu0 %v284
        %531 = vmatprep.subr.mxu0 0.0
        %532 = vmatpush1.msra.mxu0 0.0
        %533 = vmatprep.subr.mxu0 0.0
        %534 = vmatpush1.msra.mxu0 0.0
        %535 = vmatprep.subr.mxu0 0.0
        %536 = vmatpush1.msra.mxu0 0.0
        %537 = vmatprep.subr.mxu0 0.0
        %538 = vmatpush1.msra.mxu0 0.0
        %539 = vmatprep.subr.mxu0 0.0
        %540 = vmatpush1.msra.mxu0 0.0
        %541 = vmatprep.subr.mxu0 0.0
        %542 = vmatpush1.msra.mxu0 0.0
        %543 = vmatprep.subr.mxu0 0.0
        %544 = vmatpush1.msra.mxu0 0.0
        %545 = vmatprep.subr.mxu0 0.0
        %546 = vmatpush1.msra.mxu0 0.0
        %547 = vmatprep.subr.mxu0 0.0
        %548 = vmatpush1.msra.mxu0 0.0
        %549 = vmatprep.subr.mxu0 0.0
        %550 = vmatpush1.msra.mxu0 0.0
        %551 = vmatprep.subr.mxu0 0.0
        %552 = vmatpush1.msra.mxu0 0.0
        %553 = vmatprep.subr.mxu0 0.0
        %554 = vmatpush1.msra.mxu0 0.0
        %555 = vmatprep.subr.mxu0 0.0
        %556 = vmatpush1.msra.mxu0 0.0
        %557 = vmatprep.subr.mxu0 0.0
        %558 = vmatpush1.msra.mxu0 0.0
        %559 = vmatprep.subr.mxu0 0.0
        %560 = vmatpush1.msra.mxu0 0.0
        %561 = vmatprep.subr.mxu0 0.0
        %562 = vmatpush1.msra.mxu0 0.0
        %563 = vmatprep.subr.mxu0 0.0
        %564 = vmatpush1.msra.mxu0 0.0
        %565 = vmatprep.subr.mxu0 0.0
        %566 = vmatpush1.msra.mxu0 0.0
        %567 = vmatprep.subr.mxu0 0.0
        %568 = vmatpush1.msra.mxu0 0.0
        %569 = vmatprep.subr.mxu0 0.0
        %570 = vmatpush1.msra.mxu0 0.0
        %571 = vmatprep.subr.mxu0 0.0
        %572 = vmatpush1.msra.mxu0 0.0
        %573 = vmatprep.subr.mxu0 0.0
        %574 = vmatpush1.msra.mxu0 0.0
        %575 = vmatprep.subr.mxu0 0.0
        %576 = vmatpush1.msra.mxu0 0.0
        %577 = vmatprep.subr.mxu0 0.0
        %578 = vmatpush1.msra.mxu0 0.0
        %579 = vmatprep.subr.mxu0 0.0
        %580 = vmatpush1.msra.mxu0 0.0
        %581 = vmatprep.subr.mxu0 0.0
        %582 = vmatpush1.msra.mxu0 0.0
        %583 = vmatprep.subr.mxu0 0.0
        %584 = vmatpush1.msra.mxu0 0.0
        %585 = vmatprep.subr.mxu0 0.0
        %586 = vmatpush1.msra.mxu0 0.0
        %587 = vmatprep.subr.mxu0 0.0
        %588 = vmatpush1.msra.mxu0 0.0
        %589 = vmatprep.subr.mxu0 0.0
        %590 = vmatpush1.msra.mxu0 0.0
        %591 = vmatprep.mubr.f32.mxu0 0.0
        %592 = vmatmul.mubr.f32.gmra.mrb[0].mxu0 %v297
        %v593 = vpop.f32.mrb[0].mxu0
        %v594 = vadd.f32 0.0, %v593
        %v595 = vpop.f32.mrb[0].mxu0
        %596 = vmatprep.mubr.f32.mxu0 0.0
        %597 = vmatmul.mubr.f32.gmra.mrb[0].mxu0 %v300
        %v598 = vpop.f32.mrb[0].mxu0
        %v599 = vadd.f32 0.0, %v598
        %v600 = vpop.f32.mrb[0].mxu0
        %601 = vdwg.mxu0
        %602 = vmatprep.subr.mxu0 0.0
        %603 = vmatpush1.msra.mxu0 %v285
        %604 = vmatprep.subr.mxu0 0.0
        %605 = vmatpush1.msra.mxu0 %v286
        %606 = vmatprep.subr.mxu0 0.0
        %607 = vmatpush1.msra.mxu0 0.0
        %608 = vmatprep.subr.mxu0 0.0
        %609 = vmatpush1.msra.mxu0 0.0
        %610 = vmatprep.subr.mxu0 0.0
        %611 = vmatpush1.msra.mxu0 0.0
        %612 = vmatprep.subr.mxu0 0.0
        %613 = vmatpush1.msra.mxu0 0.0
        %614 = vmatprep.subr.mxu0 0.0
        %615 = vmatpush1.msra.mxu0 0.0
        %616 = vmatprep.subr.mxu0 0.0
        %617 = vmatpush1.msra.mxu0 0.0
        %618 = vmatprep.subr.mxu0 0.0
        %619 = vmatpush1.msra.mxu0 0.0
        %620 = vmatprep.subr.mxu0 0.0
        %621 = vmatpush1.msra.mxu0 0.0
        %622 = vmatprep.subr.mxu0 0.0
        %623 = vmatpush1.msra.mxu0 0.0
        %624 = vmatprep.subr.mxu0 0.0
        %625 = vmatpush1.msra.mxu0 0.0
        %626 = vmatprep.subr.mxu0 0.0
        %627 = vmatpush1.msra.mxu0 0.0
        %628 = vmatprep.subr.mxu0 0.0
        %629 = vmatpush1.msra.mxu0 0.0
        %630 = vmatprep.subr.mxu0 0.0
        %631 = vmatpush1.msra.mxu0 0.0
        %632 = vmatprep.subr.mxu0 0.0
        %633 = vmatpush1.msra.mxu0 0.0
        %634 = vmatprep.subr.mxu0 0.0
        %635 = vmatpush1.msra.mxu0 0.0
        %636 = vmatprep.subr.mxu0 0.0
        %637 = vmatpush1.msra.mxu0 0.0
        %638 = vmatprep.subr.mxu0 0.0
        %639 = vmatpush1.msra.mxu0 0.0
        %640 = vmatprep.subr.mxu0 0.0
        %641 = vmatpush1.msra.mxu0 0.0
        %642 = vmatprep.subr.mxu0 0.0
        %643 = vmatpush1.msra.mxu0 0.0
        %644 = vmatprep.subr.mxu0 0.0
        %645 = vmatpush1.msra.mxu0 0.0
        %646 = vmatprep.subr.mxu0 0.0
        %647 = vmatpush1.msra.mxu0 0.0
        %648 = vmatprep.subr.mxu0 0.0
        %649 = vmatpush1.msra.mxu0 0.0
        %650 = vmatprep.subr.mxu0 0.0
        %651 = vmatpush1.msra.mxu0 0.0
        %652 = vmatprep.subr.mxu0 0.0
        %653 = vmatpush1.msra.mxu0 0.0
        %654 = vmatprep.subr.mxu0 0.0
        %655 = vmatpush1.msra.mxu0 0.0
        %656 = vmatprep.subr.mxu0 0.0
        %657 = vmatpush1.msra.mxu0 0.0
        %658 = vmatprep.subr.mxu0 0.0
        %659 = vmatpush1.msra.mxu0 0.0
        %660 = vmatprep.subr.mxu0 0.0
        %661 = vmatpush1.msra.mxu0 0.0
        %662 = vmatprep.subr.mxu0 0.0
        %663 = vmatpush1.msra.mxu0 0.0
        %664 = vmatprep.subr.mxu0 0.0
        %665 = vmatpush1.msra.mxu0 0.0
        %666 = vmatprep.mubr.f32.mxu0 0.0
        %667 = vmatmul.mubr.f32.gmra.mrb[0].mxu0 %v297
        %v668 = vpop.f32.mrb[0].mxu0
        %v669 = vadd.f32 0.0, %v668
        %v670 = vpop.f32.mrb[0].mxu0
        %671 = vmatprep.mubr.f32.mxu0 0.0
        %672 = vmatmul.mubr.f32.gmra.mrb[0].mxu0 %v300
        %v673 = vpop.f32.mrb[0].mxu0
        %v674 = vadd.f32 0.0, %v673
        %v675 = vpop.f32.mrb[0].mxu0
        %676 = vdwg.mxu0
        %677 = vmatprep.subr.mxu0 0.0
        %678 = vmatpush1.msra.mxu0 %v287
        %679 = vmatprep.subr.mxu0 0.0
        %680 = vmatpush1.msra.mxu0 %v288
        %681 = vmatprep.subr.mxu0 0.0
        %682 = vmatpush1.msra.mxu0 0.0
        %683 = vmatprep.subr.mxu0 0.0
        %684 = vmatpush1.msra.mxu0 0.0
        %685 = vmatprep.subr.mxu0 0.0
        %686 = vmatpush1.msra.mxu0 0.0
        %687 = vmatprep.subr.mxu0 0.0
        %688 = vmatpush1.msra.mxu0 0.0
        %689 = vmatprep.subr.mxu0 0.0
        %690 = vmatpush1.msra.mxu0 0.0
        %691 = vmatprep.subr.mxu0 0.0
        %692 = vmatpush1.msra.mxu0 0.0
        %693 = vmatprep.subr.mxu0 0.0
        %694 = vmatpush1.msra.mxu0 0.0
        %695 = vmatprep.subr.mxu0 0.0
        %696 = vmatpush1.msra.mxu0 0.0
        %697 = vmatprep.subr.mxu0 0.0
        %698 = vmatpush1.msra.mxu0 0.0
        %699 = vmatprep.subr.mxu0 0.0
        %700 = vmatpush1.msra.mxu0 0.0
        %701 = vmatprep.subr.mxu0 0.0
        %702 = vmatpush1.msra.mxu0 0.0
        %703 = vmatprep.subr.mxu0 0.0
        %704 = vmatpush1.msra.mxu0 0.0
        %705 = vmatprep.subr.mxu0 0.0
        %706 = vmatpush1.msra.mxu0 0.0
        %707 = vmatprep.subr.mxu0 0.0
        %708 = vmatpush1.msra.mxu0 0.0
        %709 = vmatprep.subr.mxu0 0.0
        %710 = vmatpush1.msra.mxu0 0.0
        %711 = vmatprep.subr.mxu0 0.0
        %712 = vmatpush1.msra.mxu0 0.0
        %713 = vmatprep.subr.mxu0 0.0
        %714 = vmatpush1.msra.mxu0 0.0
        %715 = vmatprep.subr.mxu0 0.0
        %716 = vmatpush1.msra.mxu0 0.0
        %717 = vmatprep.subr.mxu0 0.0
        %718 = vmatpush1.msra.mxu0 0.0
        %719 = vmatprep.subr.mxu0 0.0
        %720 = vmatpush1.msra.mxu0 0.0
        %721 = vmatprep.subr.mxu0 0.0
        %722 = vmatpush1.msra.mxu0 0.0
        %723 = vmatprep.subr.mxu0 0.0
        %724 = vmatpush1.msra.mxu0 0.0
        %725 = vmatprep.subr.mxu0 0.0
        %726 = vmatpush1.msra.mxu0 0.0
        %727 = vmatprep.subr.mxu0 0.0
        %728 = vmatpush1.msra.mxu0 0.0
        %729 = vmatprep.subr.mxu0 0.0
        %730 = vmatpush1.msra.mxu0 0.0
        %731 = vmatprep.subr.mxu0 0.0
        %732 = vmatpush1.msra.mxu0 0.0
        %733 = vmatprep.subr.mxu0 0.0
        %734 = vmatpush1.msra.mxu0 0.0
        %735 = vmatprep.subr.mxu0 0.0
        %736 = vmatpush1.msra.mxu0 0.0
        %737 = vmatprep.subr.mxu0 0.0
        %738 = vmatpush1.msra.mxu0 0.0
        %739 = vmatprep.subr.mxu0 0.0
        %740 = vmatpush1.msra.mxu0 0.0
        %741 = vmatprep.mubr.f32.mxu0 0.0
        %742 = vmatmul.mubr.f32.gmra.mrb[0].mxu0 %v297
        %v743 = vpop.f32.mrb[0].mxu0
        %v744 = vadd.f32 0.0, %v743
        %v745 = vpop.f32.mrb[0].mxu0
        %746 = vmatprep.mubr.f32.mxu0 0.0
        %747 = vmatmul.mubr.f32.gmra.mrb[0].mxu0 %v300
        %v748 = vpop.f32.mrb[0].mxu0
        %v749 = vadd.f32 0.0, %v748
        %v750 = vpop.f32.mrb[0].mxu0
        %751 = vdwg.mxu0
        %752 = vmatprep.subr.mxu0 0.0
        %753 = vmatpush1.msra.mxu0 %v289
        %754 = vmatprep.subr.mxu0 0.0
        %755 = vmatpush1.msra.mxu0 %v290
        %756 = vmatprep.subr.mxu0 0.0
        %757 = vmatpush1.msra.mxu0 0.0
        %758 = vmatprep.subr.mxu0 0.0
        %759 = vmatpush1.msra.mxu0 0.0
        %760 = vmatprep.subr.mxu0 0.0
        %761 = vmatpush1.msra.mxu0 0.0
        %762 = vmatprep.subr.mxu0 0.0
        %763 = vmatpush1.msra.mxu0 0.0
        %764 = vmatprep.subr.mxu0 0.0
        %765 = vmatpush1.msra.mxu0 0.0
        %766 = vmatprep.subr.mxu0 0.0
        %767 = vmatpush1.msra.mxu0 0.0
        %768 = vmatprep.subr.mxu0 0.0
        %769 = vmatpush1.msra.mxu0 0.0
        %770 = vmatprep.subr.mxu0 0.0
        %771 = vmatpush1.msra.mxu0 0.0
        %772 = vmatprep.subr.mxu0 0.0
        %773 = vmatpush1.msra.mxu0 0.0
        %774 = vmatprep.subr.mxu0 0.0
        %775 = vmatpush1.msra.mxu0 0.0
        %776 = vmatprep.subr.mxu0 0.0
        %777 = vmatpush1.msra.mxu0 0.0
        %778 = vmatprep.subr.mxu0 0.0
        %779 = vmatpush1.msra.mxu0 0.0
        %780 = vmatprep.subr.mxu0 0.0
        %781 = vmatpush1.msra.mxu0 0.0
        %782 = vmatprep.subr.mxu0 0.0
        %783 = vmatpush1.msra.mxu0 0.0
        %784 = vmatprep.subr.mxu0 0.0
        %785 = vmatpush1.msra.mxu0 0.0
        %786 = vmatprep.subr.mxu0 0.0
        %787 = vmatpush1.msra.mxu0 0.0
        %788 = vmatprep.subr.mxu0 0.0
        %789 = vmatpush1.msra.mxu0 0.0
        %790 = vmatprep.subr.mxu0 0.0
        %791 = vmatpush1.msra.mxu0 0.0
        %792 = vmatprep.subr.mxu0 0.0
        %793 = vmatpush1.msra.mxu0 0.0
        %794 = vmatprep.subr.mxu0 0.0
        %795 = vmatpush1.msra.mxu0 0.0
        %796 = vmatprep.subr.mxu0 0.0
        %797 = vmatpush1.msra.mxu0 0.0
        %798 = vmatprep.subr.mxu0 0.0
        %799 = vmatpush1.msra.mxu0 0.0
        %800 = vmatprep.subr.mxu0 0.0
        %801 = vmatpush1.msra.mxu0 0.0
        %802 = vmatprep.subr.mxu0 0.0
        %803 = vmatpush1.msra.mxu0 0.0
        %804 = vmatprep.subr.mxu0 0.0
        %805 = vmatpush1.msra.mxu0 0.0
        %806 = vmatprep.subr.mxu0 0.0
        %807 = vmatpush1.msra.mxu0 0.0
        %808 = vmatprep.subr.mxu0 0.0
        %809 = vmatpush1.msra.mxu0 0.0
        %810 = vmatprep.subr.mxu0 0.0
        %811 = vmatpush1.msra.mxu0 0.0
        %812 = vmatprep.subr.mxu0 0.0
        %813 = vmatpush1.msra.mxu0 0.0
        %814 = vmatprep.subr.mxu0 0.0
        %815 = vmatpush1.msra.mxu0 0.0
        %816 = vmatprep.mubr.f32.mxu0 0.0
        %817 = vmatmul.mubr.f32.gmra.mrb[0].mxu0 %v297
        %v818 = vpop.f32.mrb[0].mxu0
        %v819 = vadd.f32 0.0, %v818
        %v820 = vpop.f32.mrb[0].mxu0
        %821 = vmatprep.mubr.f32.mxu0 0.0
        %822 = vmatmul.mubr.f32.gmra.mrb[0].mxu0 %v300
        %v823 = vpop.f32.mrb[0].mxu0
        %v824 = vadd.f32 0.0, %v823
        %v825 = vpop.f32.mrb[0].mxu0
        %826 = vdwg.mxu0
        %827 = vmatprep.subr.mxu0 0.0
        %828 = vmatpush1.msra.mxu0 %v291
        %829 = vmatprep.subr.mxu0 0.0
        %830 = vmatpush1.msra.mxu0 %v292
        %831 = vmatprep.subr.mxu0 0.0
        %832 = vmatpush1.msra.mxu0 0.0
        %833 = vmatprep.subr.mxu0 0.0
        %834 = vmatpush1.msra.mxu0 0.0
        %835 = vmatprep.subr.mxu0 0.0
        %836 = vmatpush1.msra.mxu0 0.0
        %837 = vmatprep.subr.mxu0 0.0
        %838 = vmatpush1.msra.mxu0 0.0
        %839 = vmatprep.subr.mxu0 0.0
        %840 = vmatpush1.msra.mxu0 0.0
        %841 = vmatprep.subr.mxu0 0.0
        %842 = vmatpush1.msra.mxu0 0.0
        %843 = vmatprep.subr.mxu0 0.0
        %844 = vmatpush1.msra.mxu0 0.0
        %845 = vmatprep.subr.mxu0 0.0
        %846 = vmatpush1.msra.mxu0 0.0
        %847 = vmatprep.subr.mxu0 0.0
        %848 = vmatpush1.msra.mxu0 0.0
        %849 = vmatprep.subr.mxu0 0.0
        %850 = vmatpush1.msra.mxu0 0.0
        %851 = vmatprep.subr.mxu0 0.0
        %852 = vmatpush1.msra.mxu0 0.0
        %853 = vmatprep.subr.mxu0 0.0
        %854 = vmatpush1.msra.mxu0 0.0
        %855 = vmatprep.subr.mxu0 0.0
        %856 = vmatpush1.msra.mxu0 0.0
        %857 = vmatprep.subr.mxu0 0.0
        %858 = vmatpush1.msra.mxu0 0.0
        %859 = vmatprep.subr.mxu0 0.0
        %860 = vmatpush1.msra.mxu0 0.0
        %861 = vmatprep.subr.mxu0 0.0
        %862 = vmatpush1.msra.mxu0 0.0
        %863 = vmatprep.subr.mxu0 0.0
        %864 = vmatpush1.msra.mxu0 0.0
        %865 = vmatprep.subr.mxu0 0.0
        %866 = vmatpush1.msra.mxu0 0.0
        %867 = vmatprep.subr.mxu0 0.0
        %868 = vmatpush1.msra.mxu0 0.0
        %869 = vmatprep.subr.mxu0 0.0
        %870 = vmatpush1.msra.mxu0 0.0
        %871 = vmatprep.subr.mxu0 0.0
        %872 = vmatpush1.msra.mxu0 0.0
        %873 = vmatprep.subr.mxu0 0.0
        %874 = vmatpush1.msra.mxu0 0.0
        %875 = vmatprep.subr.mxu0 0.0
        %876 = vmatpush1.msra.mxu0 0.0
        %877 = vmatprep.subr.mxu0 0.0
        %878 = vmatpush1.msra.mxu0 0.0
        %879 = vmatprep.subr.mxu0 0.0
        %880 = vmatpush1.msra.mxu0 0.0
        %881 = vmatprep.subr.mxu0 0.0
        %882 = vmatpush1.msra.mxu0 0.0
        %883 = vmatprep.subr.mxu0 0.0
        %884 = vmatpush1.msra.mxu0 0.0
        %885 = vmatprep.subr.mxu0 0.0
        %886 = vmatpush1.msra.mxu0 0.0
        %887 = vmatprep.subr.mxu0 0.0
        %888 = vmatpush1.msra.mxu0 0.0
        %889 = vmatprep.subr.mxu0 0.0
        %890 = vmatpush1.msra.mxu0 0.0
        %891 = vmatprep.mubr.f32.mxu0 0.0
        %892 = vmatmul.mubr.f32.gmra.mrb[0].mxu0 %v297
        %v893 = vpop.f32.mrb[0].mxu0
        %v894 = vadd.f32 0.0, %v893
        %v895 = vpop.f32.mrb[0].mxu0
        %896 = vmatprep.mubr.f32.mxu0 0.0
        %897 = vmatmul.mubr.f32.gmra.mrb[0].mxu0 %v300
        %v898 = vpop.f32.mrb[0].mxu0
        %v899 = vadd.f32 0.0, %v898
        %v900 = vpop.f32.mrb[0].mxu0
        %901 = vdwg.mxu0
        %v902 = vld [vmem:[%s4] sm:$0xff]
        %v903 = vld [vmem:[%s4 + $0x8] sm:$0xff]
        %s904 = scalar_lea.vmem %s4, 16
        %v905 = vld [vmem:[%s904] sm:$0xff]
        %v906 = vld [vmem:[%s904 + $0x8] sm:$0xff]
        %907 = vadd.xlane.f32.xlu0 %v369
        %v908 = vpop.xlane.xlu0 %907
        %909 = vadd.xlane.f32.xlu0 %v374
        %v910 = vpop.xlane.xlu0 %909
        %911 = vadd.xlane.f32.xlu0 %v444
        %v912 = vpop.xlane.xlu0 %911
        %913 = vadd.xlane.f32.xlu0 %v449
        %v914 = vpop.xlane.xlu0 %913
        %915 = vadd.xlane.f32.xlu0 %v519
        %v916 = vpop.xlane.xlu0 %915
        %917 = vadd.xlane.f32.xlu0 %v524
        %v918 = vpop.xlane.xlu0 %917
        %919 = vadd.xlane.f32.xlu0 %v594
        %v920 = vpop.xlane.xlu0 %919
        %921 = vadd.xlane.f32.xlu0 %v599
        %v922 = vpop.xlane.xlu0 %921
        %923 = vadd.xlane.f32.xlu0 %v669
        %v924 = vpop.xlane.xlu0 %923
        %925 = vadd.xlane.f32.xlu0 %v674
        %v926 = vpop.xlane.xlu0 %925
        %927 = vadd.xlane.f32.xlu0 %v744
        %v928 = vpop.xlane.xlu0 %927
        %929 = vadd.xlane.f32.xlu0 %v749
        %v930 = vpop.xlane.xlu0 %929
        %931 = vadd.xlane.f32.xlu0 %v819
        %v932 = vpop.xlane.xlu0 %931
        %933 = vadd.xlane.f32.xlu0 %v824
        %v934 = vpop.xlane.xlu0 %933
        %935 = vadd.xlane.f32.xlu0 %v894
        %v936 = vpop.xlane.xlu0 %935
        %937 = vadd.xlane.f32.xlu0 %v899
        %v938 = vpop.xlane.xlu0 %937
        %v939 = vmul.f32 %v369, %v369
        %v940 = vmul.f32 %v374, %v374
        %v941 = vmul.f32 %v444, %v444
        %v942 = vmul.f32 %v449, %v449
        %v943 = vmul.f32 %v519, %v519
        %v944 = vmul.f32 %v524, %v524
        %v945 = vmul.f32 %v594, %v594
        %v946 = vmul.f32 %v599, %v599
        %v947 = vmul.f32 %v669, %v669
        %v948 = vmul.f32 %v674, %v674
        %v949 = vmul.f32 %v744, %v744
        %v950 = vmul.f32 %v749, %v749
        %v951 = vmul.f32 %v819, %v819
        %v952 = vmul.f32 %v824, %v824
        %v953 = vmul.f32 %v894, %v894
        %v954 = vmul.f32 %v899, %v899
        %955 = vadd.xlane.f32.xlu0 %v939
        %v956 = vpop.xlane.xlu0 %955
        %957 = vadd.xlane.f32.xlu0 %v940
        %v958 = vpop.xlane.xlu0 %957
        %959 = vadd.xlane.f32.xlu0 %v941
        %v960 = vpop.xlane.xlu0 %959
        %961 = vadd.xlane.f32.xlu0 %v942
        %v962 = vpop.xlane.xlu0 %961
        %963 = vadd.xlane.f32.xlu0 %v943
        %v964 = vpop.xlane.xlu0 %963
        %965 = vadd.xlane.f32.xlu0 %v944
        %v966 = vpop.xlane.xlu0 %965
        %967 = vadd.xlane.f32.xlu0 %v945
        %v968 = vpop.xlane.xlu0 %967
        %969 = vadd.xlane.f32.xlu0 %v946
        %v970 = vpop.xlane.xlu0 %969
        %971 = vadd.xlane.f32.xlu0 %v947
        %v972 = vpop.xlane.xlu0 %971
        %973 = vadd.xlane.f32.xlu0 %v948
        %v974 = vpop.xlane.xlu0 %973
        %975 = vadd.xlane.f32.xlu0 %v949
        %v976 = vpop.xlane.xlu0 %975
        %977 = vadd.xlane.f32.xlu0 %v950
        %v978 = vpop.xlane.xlu0 %977
        %979 = vadd.xlane.f32.xlu0 %v951
        %v980 = vpop.xlane.xlu0 %979
        %981 = vadd.xlane.f32.xlu0 %v952
        %v982 = vpop.xlane.xlu0 %981
        %983 = vadd.xlane.f32.xlu0 %v953
        %v984 = vpop.xlane.xlu0 %983
        %985 = vadd.xlane.f32.xlu0 %v954
        %v986 = vpop.xlane.xlu0 %985
        %v987 = vadd.f32 %v908, %v912
        %v988 = vadd.f32 %v987, %v916
        %v989 = vadd.f32 %v988, %v920
        %v990 = vadd.f32 %v989, %v924
        %v991 = vadd.f32 %v990, %v928
        %v992 = vadd.f32 %v991, %v932
        %v993 = vadd.f32 %v992, %v936
        %v994 = vadd.f32 %v910, %v914
        %v995 = vadd.f32 %v994, %v918
        %v996 = vadd.f32 %v995, %v922
        %v997 = vadd.f32 %v996, %v926
        %v998 = vadd.f32 %v997, %v930
        %v999 = vadd.f32 %v998, %v934
        %v1000 = vadd.f32 %v999, %v938
        %v1001 = vadd.f32 %v956, %v960
        %v1002 = vadd.f32 %v1001, %v964
        %v1003 = vadd.f32 %v1002, %v968
        %v1004 = vadd.f32 %v1003, %v972
        %v1005 = vadd.f32 %v1004, %v976
        %v1006 = vadd.f32 %v1005, %v980
        %v1007 = vadd.f32 %v1006, %v984
        %v1008 = vadd.f32 %v958, %v962
        %v1009 = vadd.f32 %v1008, %v966
        %v1010 = vadd.f32 %v1009, %v970
        %v1011 = vadd.f32 %v1010, %v974
        %v1012 = vadd.f32 %v1011, %v978
        %v1013 = vadd.f32 %v1012, %v982
        %v1014 = vadd.f32 %v1013, %v986
        %v1015 = vmul.f32 %v993, 0.0009765625
        %v1016 = vmul.f32 %v1000, 0.0009765625
        %v1017 = vmul.f32 %v1007, 0.0009765625
        %v1018 = vmul.f32 %v1014, 0.0009765625
        %v1019 = vmul.f32 %v1015, %v1015
        %v1020 = vmul.f32 %v1016, %v1016
        %v1021 = vsub.f32 %v1017, %v1019
        %v1022 = vsub.f32 %v1018, %v1020
        %v1023 = vadd.f32 %v1021, 1e-05
        %v1024 = vadd.f32 %v1022, 1e-05
        %v1025 = vrsqrt.pop %v1023
        %v1026 = vrsqrt.pop %v1024
        %v1027 = vmul.f32 %v902, %v1025
        %v1028 = vmul.f32 %v903, %v1026
        %v1029 = vmul.f32 %v1015, %v1027
        %v1030 = vmul.f32 %v1016, %v1028
        %v1031 = vsub.f32 %v905, %v1029
        %v1032 = vsub.f32 %v906, %v1030
        %1034 = vset.pattern.permute.xlu0 0
        %1035 = vperm.xlu0 %1034, %v1027
        %v1036 = vpop.permute.xlu0 %1035
        %1039 = vset.pattern.permute.xlu0 0
        %1040 = vperm.xlu0 %1039, %v1028
        %v1041 = vpop.permute.xlu0 %1040
        %v1043 = vmul.f32 %v369, %v1036
        %v1044 = vmul.f32 %v374, %v1041
        %v1045 = vmul.f32 %v444, %v1036
        %v1046 = vmul.f32 %v449, %v1041
        %v1047 = vmul.f32 %v519, %v1036
        %v1048 = vmul.f32 %v524, %v1041
        %v1049 = vmul.f32 %v594, %v1036
        %v1050 = vmul.f32 %v599, %v1041
        %v1051 = vmul.f32 %v669, %v1036
        %v1052 = vmul.f32 %v674, %v1041
        %v1053 = vmul.f32 %v744, %v1036
        %v1054 = vmul.f32 %v749, %v1041
        %v1055 = vmul.f32 %v819, %v1036
        %v1056 = vmul.f32 %v824, %v1041
        %v1057 = vmul.f32 %v894, %v1036
        %v1058 = vmul.f32 %v899, %v1041
        %1060 = vset.pattern.permute.xlu0 0
        %1061 = vperm.xlu0 %1060, %v1031
        %v1062 = vpop.permute.xlu0 %1061
        %1065 = vset.pattern.permute.xlu0 0
        %1066 = vperm.xlu0 %1065, %v1032
        %v1067 = vpop.permute.xlu0 %1066
        %v1069 = vadd.f32 %v1043, %v1062
        %v1070 = vadd.f32 %v1044, %v1067
        %v1071 = vadd.f32 %v1045, %v1062
        %v1072 = vadd.f32 %v1046, %v1067
        %v1073 = vadd.f32 %v1047, %v1062
        %v1074 = vadd.f32 %v1048, %v1067
        %v1075 = vadd.f32 %v1049, %v1062
        %v1076 = vadd.f32 %v1050, %v1067
        %v1077 = vadd.f32 %v1051, %v1062
        %v1078 = vadd.f32 %v1052, %v1067
        %v1079 = vadd.f32 %v1053, %v1062
        %v1080 = vadd.f32 %v1054, %v1067
        %v1081 = vadd.f32 %v1055, %v1062
        %v1082 = vadd.f32 %v1056, %v1067
        %v1083 = vadd.f32 %v1057, %v1062
        %v1084 = vadd.f32 %v1058, %v1067
        %v1085 = vmul.f32 %v1069, 0.2
        %v1086 = vmul.f32 %v1070, 0.2
        %v1087 = vmul.f32 %v1071, 0.2
        %v1088 = vmul.f32 %v1072, 0.2
        %v1089 = vmul.f32 %v1073, 0.2
        %v1090 = vmul.f32 %v1074, 0.2
        %v1091 = vmul.f32 %v1075, 0.2
        %v1092 = vmul.f32 %v1076, 0.2
        %v1093 = vmul.f32 %v1077, 0.2
        %v1094 = vmul.f32 %v1078, 0.2
        %v1095 = vmul.f32 %v1079, 0.2
        %v1096 = vmul.f32 %v1080, 0.2
        %v1097 = vmul.f32 %v1081, 0.2
        %v1098 = vmul.f32 %v1082, 0.2
        %v1099 = vmul.f32 %v1083, 0.2
        %v1100 = vmul.f32 %v1084, 0.2
        %v1101 = vmax.f32 %v1069, %v1085
        %v1102 = vmax.f32 %v1070, %v1086
        %v1103 = vmax.f32 %v1071, %v1087
        %v1104 = vmax.f32 %v1072, %v1088
        %v1105 = vmax.f32 %v1073, %v1089
        %v1106 = vmax.f32 %v1074, %v1090
        %v1107 = vmax.f32 %v1075, %v1091
        %v1108 = vmax.f32 %v1076, %v1092
        %v1109 = vmax.f32 %v1077, %v1093
        %v1110 = vmax.f32 %v1078, %v1094
        %v1111 = vmax.f32 %v1079, %v1095
        %v1112 = vmax.f32 %v1080, %v1096
        %v1113 = vmax.f32 %v1081, %v1097
        %v1114 = vmax.f32 %v1082, %v1098
        %v1115 = vmax.f32 %v1083, %v1099
        %v1116 = vmax.f32 %v1084, %v1100
        %s1117 = scalar_lea.vmem [#allocation5], 64
        %v1118 = vld [vmem:[%s1117] sm:$0xff]
        %v1119 = vld [vmem:[%s1117 + $0x8] sm:$0xff]
        %1120 = vrot.lane.b32.xlu0 %v1101, 4
        %v1121 = vpop.permute.xlu0 %1120
        %1122 = vrot.lane.b32.xlu0 %v1102, 4
        %v1123 = vpop.permute.xlu0 %1122
        %1124 = vrot.lane.b32.xlu0 %v1103, 4
        %v1125 = vpop.permute.xlu0 %1124
        %1126 = vrot.lane.b32.xlu0 %v1104, 4
        %v1127 = vpop.permute.xlu0 %1126
        %1128 = vrot.lane.b32.xlu0 %v1105, 4
        %v1129 = vpop.permute.xlu0 %1128
        %1130 = vrot.lane.b32.xlu0 %v1106, 4
        %v1131 = vpop.permute.xlu0 %1130
        %1132 = vrot.lane.b32.xlu0 %v1107, 4
        %v1133 = vpop.permute.xlu0 %1132
        %1134 = vrot.lane.b32.xlu0 %v1108, 4
        %v1135 = vpop.permute.xlu0 %1134
        %1136 = vrot.lane.b32.xlu0 %v1109, 4
        %v1137 = vpop.permute.xlu0 %1136
        %1138 = vrot.lane.b32.xlu0 %v1110, 4
        %v1139 = vpop.permute.xlu0 %1138
        %1140 = vrot.lane.b32.xlu0 %v1111, 4
        %v1141 = vpop.permute.xlu0 %1140
        %1142 = vrot.lane.b32.xlu0 %v1112, 4
        %v1143 = vpop.permute.xlu0 %1142
        %1144 = vrot.lane.b32.xlu0 %v1113, 4
        %v1145 = vpop.permute.xlu0 %1144
        %1146 = vrot.lane.b32.xlu0 %v1114, 4
        %v1147 = vpop.permute.xlu0 %1146
        %1148 = vrot.lane.b32.xlu0 %v1115, 4
        %v1149 = vpop.permute.xlu0 %1148
        %1150 = vrot.lane.b32.xlu0 %v1116, 4
        %v1151 = vpop.permute.xlu0 %1150
        %v1152 = vld [vmem:[#allocation5] sm:$0xff]
        %v1153 = vld [vmem:[#allocation5 + $0x8] sm:$0xff]
        %v1155 = vsel %vm295, %v1152, 0
        %v1158 = vsel %vm295, %v1153, 0
        %1160 = vmatprep.subr.mxu0 0.0
        %1161 = vmatpush1.msra.mxu0 %v1121
        %1162 = vmatprep.subr.mxu0 0.0
        %1163 = vmatpush1.msra.mxu0 %v1123
        %1164 = vmatprep.subr.mxu0 0.0
        %1165 = vmatpush1.msra.mxu0 0.0
        %1166 = vmatprep.subr.mxu0 0.0
        %1167 = vmatpush1.msra.mxu0 0.0
        %1168 = vmatprep.subr.mxu0 0.0
        %1169 = vmatpush1.msra.mxu0 0.0
        %1170 = vmatprep.subr.mxu0 0.0
        %1171 = vmatpush1.msra.mxu0 0.0
        %1172 = vmatprep.subr.mxu0 0.0
        %1173 = vmatpush1.msra.mxu0 0.0
        %1174 = vmatprep.subr.mxu0 0.0
        %1175 = vmatpush1.msra.mxu0 0.0
        %1176 = vmatprep.subr.mxu0 0.0
        %1177 = vmatpush1.msra.mxu0 0.0
        %1178 = vmatprep.subr.mxu0 0.0
        %1179 = vmatpush1.msra.mxu0 0.0
        %1180 = vmatprep.subr.mxu0 0.0
        %1181 = vmatpush1.msra.mxu0 0.0
        %1182 = vmatprep.subr.mxu0 0.0
        %1183 = vmatpush1.msra.mxu0 0.0
        %1184 = vmatprep.subr.mxu0 0.0
        %1185 = vmatpush1.msra.mxu0 0.0
        %1186 = vmatprep.subr.mxu0 0.0
        %1187 = vmatpush1.msra.mxu0 0.0
        %1188 = vmatprep.subr.mxu0 0.0
        %1189 = vmatpush1.msra.mxu0 0.0
        %1190 = vmatprep.subr.mxu0 0.0
        %1191 = vmatpush1.msra.mxu0 0.0
        %1192 = vmatprep.subr.mxu0 0.0
        %1193 = vmatpush1.msra.mxu0 0.0
        %1194 = vmatprep.subr.mxu0 0.0
        %1195 = vmatpush1.msra.mxu0 0.0
        %1196 = vmatprep.subr.mxu0 0.0
        %1197 = vmatpush1.msra.mxu0 0.0
        %1198 = vmatprep.subr.mxu0 0.0
        %1199 = vmatpush1.msra.mxu0 0.0
        %1200 = vmatprep.subr.mxu0 0.0
        %1201 = vmatpush1.msra.mxu0 0.0
        %1202 = vmatprep.subr.mxu0 0.0
        %1203 = vmatpush1.msra.mxu0 0.0
        %1204 = vmatprep.subr.mxu0 0.0
        %1205 = vmatpush1.msra.mxu0 0.0
        %1206 = vmatprep.subr.mxu0 0.0
        %1207 = vmatpush1.msra.mxu0 0.0
        %1208 = vmatprep.subr.mxu0 0.0
        %1209 = vmatpush1.msra.mxu0 0.0
        %1210 = vmatprep.subr.mxu0 0.0
        %1211 = vmatpush1.msra.mxu0 0.0
        %1212 = vmatprep.subr.mxu0 0.0
        %1213 = vmatpush1.msra.mxu0 0.0
        %1214 = vmatprep.subr.mxu0 0.0
        %1215 = vmatpush1.msra.mxu0 0.0
        %1216 = vmatprep.subr.mxu0 0.0
        %1217 = vmatpush1.msra.mxu0 0.0
        %1218 = vmatprep.subr.mxu0 0.0
        %1219 = vmatpush1.msra.mxu0 0.0
        %1220 = vmatprep.subr.mxu0 0.0
        %1221 = vmatpush1.msra.mxu0 0.0
        %1222 = vmatprep.subr.mxu0 0.0
        %1223 = vmatpush1.msra.mxu0 0.0
        %1224 = vmatprep.mubr.f32.mxu0 0.0
        %1225 = vmatmul.mubr.f32.gmra.mrb[0].mxu0 %v1155
        %v1226 = vpop.f32.mrb[0].mxu0
        %v1227 = vadd.f32 0.0, %v1226
        %v1228 = vpop.f32.mrb[0].mxu0
        %1229 = vmatprep.mubr.f32.mxu0 0.0
        %1230 = vmatmul.mubr.f32.gmra.mrb[0].mxu0 %v1158
        %v1231 = vpop.f32.mrb[0].mxu0
        %v1232 = vadd.f32 0.0, %v1231
        %v1233 = vpop.f32.mrb[0].mxu0
        %1234 = vdwg.mxu0
        %1235 = vmatprep.subr.mxu0 0.0
        %1236 = vmatpush1.msra.mxu0 %v1125
        %1237 = vmatprep.subr.mxu0 0.0
        %1238 = vmatpush1.msra.mxu0 %v1127
        %1239 = vmatprep.subr.mxu0 0.0
        %1240 = vmatpush1.msra.mxu0 0.0
        %1241 = vmatprep.subr.mxu0 0.0
        %1242 = vmatpush1.msra.mxu0 0.0
        %1243 = vmatprep.subr.mxu0 0.0
        %1244 = vmatpush1.msra.mxu0 0.0
        %1245 = vmatprep.subr.mxu0 0.0
        %1246 = vmatpush1.msra.mxu0 0.0
        %1247 = vmatprep.subr.mxu0 0.0
        %1248 = vmatpush1.msra.mxu0 0.0
        %1249 = vmatprep.subr.mxu0 0.0
        %1250 = vmatpush1.msra.mxu0 0.0
        %1251 = vmatprep.subr.mxu0 0.0
        %1252 = vmatpush1.msra.mxu0 0.0
        %1253 = vmatprep.subr.mxu0 0.0
        %1254 = vmatpush1.msra.mxu0 0.0
        %1255 = vmatprep.subr.mxu0 0.0
        %1256 = vmatpush1.msra.mxu0 0.0
        %1257 = vmatprep.subr.mxu0 0.0
        %1258 = vmatpush1.msra.mxu0 0.0
        %1259 = vmatprep.subr.mxu0 0.0
        %1260 = vmatpush1.msra.mxu0 0.0
        %1261 = vmatprep.subr.mxu0 0.0
        %1262 = vmatpush1.msra.mxu0 0.0
        %1263 = vmatprep.subr.mxu0 0.0
        %1264 = vmatpush1.msra.mxu0 0.0
        %1265 = vmatprep.subr.mxu0 0.0
        %1266 = vmatpush1.msra.mxu0 0.0
        %1267 = vmatprep.subr.mxu0 0.0
        %1268 = vmatpush1.msra.mxu0 0.0
        %1269 = vmatprep.subr.mxu0 0.0
        %1270 = vmatpush1.msra.mxu0 0.0
        %1271 = vmatprep.subr.mxu0 0.0
        %1272 = vmatpush1.msra.mxu0 0.0
        %1273 = vmatprep.subr.mxu0 0.0
        %1274 = vmatpush1.msra.mxu0 0.0
        %1275 = vmatprep.subr.mxu0 0.0
        %1276 = vmatpush1.msra.mxu0 0.0
        %1277 = vmatprep.subr.mxu0 0.0
        %1278 = vmatpush1.msra.mxu0 0.0
        %1279 = vmatprep.subr.mxu0 0.0
        %1280 = vmatpush1.msra.mxu0 0.0
        %1281 = vmatprep.subr.mxu0 0.0
        %1282 = vmatpush1.msra.mxu0 0.0
        %1283 = vmatprep.subr.mxu0 0.0
        %1284 = vmatpush1.msra.mxu0 0.0
        %1285 = vmatprep.subr.mxu0 0.0
        %1286 = vmatpush1.msra.mxu0 0.0
        %1287 = vmatprep.subr.mxu0 0.0
        %1288 = vmatpush1.msra.mxu0 0.0
        %1289 = vmatprep.subr.mxu0 0.0
        %1290 = vmatpush1.msra.mxu0 0.0
        %1291 = vmatprep.subr.mxu0 0.0
        %1292 = vmatpush1.msra.mxu0 0.0
        %1293 = vmatprep.subr.mxu0 0.0
        %1294 = vmatpush1.msra.mxu0 0.0
        %1295 = vmatprep.subr.mxu0 0.0
        %1296 = vmatpush1.msra.mxu0 0.0
        %1297 = vmatprep.subr.mxu0 0.0
        %1298 = vmatpush1.msra.mxu0 0.0
        %1299 = vmatprep.mubr.f32.mxu0 0.0
        %1300 = vmatmul.mubr.f32.gmra.mrb[0].mxu0 %v1155
        %v1301 = vpop.f32.mrb[0].mxu0
        %v1302 = vadd.f32 0.0, %v1301
        %v1303 = vpop.f32.mrb[0].mxu0
        %1304 = vmatprep.mubr.f32.mxu0 0.0
        %1305 = vmatmul.mubr.f32.gmra.mrb[0].mxu0 %v1158
        %v1306 = vpop.f32.mrb[0].mxu0
        %v1307 = vadd.f32 0.0, %v1306
        %v1308 = vpop.f32.mrb[0].mxu0
        %1309 = vdwg.mxu0
        %1310 = vmatprep.subr.mxu0 0.0
        %1311 = vmatpush1.msra.mxu0 %v1129
        %1312 = vmatprep.subr.mxu0 0.0
        %1313 = vmatpush1.msra.mxu0 %v1131
        %1314 = vmatprep.subr.mxu0 0.0
        %1315 = vmatpush1.msra.mxu0 0.0
        %1316 = vmatprep.subr.mxu0 0.0
        %1317 = vmatpush1.msra.mxu0 0.0
        %1318 = vmatprep.subr.mxu0 0.0
        %1319 = vmatpush1.msra.mxu0 0.0
        %1320 = vmatprep.subr.mxu0 0.0
        %1321 = vmatpush1.msra.mxu0 0.0
        %1322 = vmatprep.subr.mxu0 0.0
        %1323 = vmatpush1.msra.mxu0 0.0
        %1324 = vmatprep.subr.mxu0 0.0
        %1325 = vmatpush1.msra.mxu0 0.0
        %1326 = vmatprep.subr.mxu0 0.0
        %1327 = vmatpush1.msra.mxu0 0.0
        %1328 = vmatprep.subr.mxu0 0.0
        %1329 = vmatpush1.msra.mxu0 0.0
        %1330 = vmatprep.subr.mxu0 0.0
        %1331 = vmatpush1.msra.mxu0 0.0
        %1332 = vmatprep.subr.mxu0 0.0
        %1333 = vmatpush1.msra.mxu0 0.0
        %1334 = vmatprep.subr.mxu0 0.0
        %1335 = vmatpush1.msra.mxu0 0.0
        %1336 = vmatprep.subr.mxu0 0.0
        %1337 = vmatpush1.msra.mxu0 0.0
        %1338 = vmatprep.subr.mxu0 0.0
        %1339 = vmatpush1.msra.mxu0 0.0
        %1340 = vmatprep.subr.mxu0 0.0
        %1341 = vmatpush1.msra.mxu0 0.0
        %1342 = vmatprep.subr.mxu0 0.0
        %1343 = vmatpush1.msra.mxu0 0.0
        %1344 = vmatprep.subr.mxu0 0.0
        %1345 = vmatpush1.msra.mxu0 0.0
        %1346 = vmatprep.subr.mxu0 0.0
        %1347 = vmatpush1.msra.mxu0 0.0
        %1348 = vmatprep.subr.mxu0 0.0
        %1349 = vmatpush1.msra.mxu0 0.0
        %1350 = vmatprep.subr.mxu0 0.0
        %1351 = vmatpush1.msra.mxu0 0.0
        %1352 = vmatprep.subr.mxu0 0.0
        %1353 = vmatpush1.msra.mxu0 0.0
        %1354 = vmatprep.subr.mxu0 0.0
        %1355 = vmatpush1.msra.mxu0 0.0
        %1356 = vmatprep.subr.mxu0 0.0
        %1357 = vmatpush1.msra.mxu0 0.0
        %1358 = vmatprep.subr.mxu0 0.0
        %1359 = vmatpush1.msra.mxu0 0.0
        %1360 = vmatprep.subr.mxu0 0.0
        %1361 = vmatpush1.msra.mxu0 0.0
        %1362 = vmatprep.subr.mxu0 0.0
        %1363 = vmatpush1.msra.mxu0 0.0
        %1364 = vmatprep.subr.mxu0 0.0
        %1365 = vmatpush1.msra.mxu0 0.0
        %1366 = vmatprep.subr.mxu0 0.0
        %1367 = vmatpush1.msra.mxu0 0.0
        %1368 = vmatprep.subr.mxu0 0.0
        %1369 = vmatpush1.msra.mxu0 0.0
        %1370 = vmatprep.subr.mxu0 0.0
        %1371 = vmatpush1.msra.mxu0 0.0
        %1372 = vmatprep.subr.mxu0 0.0
        %1373 = vmatpush1.msra.mxu0 0.0
        %1374 = vmatprep.mubr.f32.mxu0 0.0
        %1375 = vmatmul.mubr.f32.gmra.mrb[0].mxu0 %v1155
        %v1376 = vpop.f32.mrb[0].mxu0
        %v1377 = vadd.f32 0.0, %v1376
        %v1378 = vpop.f32.mrb[0].mxu0
        %1379 = vmatprep.mubr.f32.mxu0 0.0
        %1380 = vmatmul.mubr.f32.gmra.mrb[0].mxu0 %v1158
        %v1381 = vpop.f32.mrb[0].mxu0
        %v1382 = vadd.f32 0.0, %v1381
        %v1383 = vpop.f32.mrb[0].mxu0
        %1384 = vdwg.mxu0
        %1385 = vmatprep.subr.mxu0 0.0
        %1386 = vmatpush1.msra.mxu0 %v1133
        %1387 = vmatprep.subr.mxu0 0.0
        %1388 = vmatpush1.msra.mxu0 %v1135
        %1389 = vmatprep.subr.mxu0 0.0
        %1390 = vmatpush1.msra.mxu0 0.0
        %1391 = vmatprep.subr.mxu0 0.0
        %1392 = vmatpush1.msra.mxu0 0.0
        %1393 = vmatprep.subr.mxu0 0.0
        %1394 = vmatpush1.msra.mxu0 0.0
        %1395 = vmatprep.subr.mxu0 0.0
        %1396 = vmatpush1.msra.mxu0 0.0
        %1397 = vmatprep.subr.mxu0 0.0
        %1398 = vmatpush1.msra.mxu0 0.0
        %1399 = vmatprep.subr.mxu0 0.0
        %1400 = vmatpush1.msra.mxu0 0.0
        %1401 = vmatprep.subr.mxu0 0.0
        %1402 = vmatpush1.msra.mxu0 0.0
        %1403 = vmatprep.subr.mxu0 0.0
        %1404 = vmatpush1.msra.mxu0 0.0
        %1405 = vmatprep.subr.mxu0 0.0
        %1406 = vmatpush1.msra.mxu0 0.0
        %1407 = vmatprep.subr.mxu0 0.0
        %1408 = vmatpush1.msra.mxu0 0.0
        %1409 = vmatprep.subr.mxu0 0.0
        %1410 = vmatpush1.msra.mxu0 0.0
        %1411 = vmatprep.subr.mxu0 0.0
        %1412 = vmatpush1.msra.mxu0 0.0
        %1413 = vmatprep.subr.mxu0 0.0
        %1414 = vmatpush1.msra.mxu0 0.0
        %1415 = vmatprep.subr.mxu0 0.0
        %1416 = vmatpush1.msra.mxu0 0.0
        %1417 = vmatprep.subr.mxu0 0.0
        %1418 = vmatpush1.msra.mxu0 0.0
        %1419 = vmatprep.subr.mxu0 0.0
        %1420 = vmatpush1.msra.mxu0 0.0
        %1421 = vmatprep.subr.mxu0 0.0
        %1422 = vmatpush1.msra.mxu0 0.0
        %1423 = vmatprep.subr.mxu0 0.0
        %1424 = vmatpush1.msra.mxu0 0.0
        %1425 = vmatprep.subr.mxu0 0.0
        %1426 = vmatpush1.msra.mxu0 0.0
        %1427 = vmatprep.subr.mxu0 0.0
        %1428 = vmatpush1.msra.mxu0 0.0
        %1429 = vmatprep.subr.mxu0 0.0
        %1430 = vmatpush1.msra.mxu0 0.0
        %1431 = vmatprep.subr.mxu0 0.0
        %1432 = vmatpush1.msra.mxu0 0.0
        %1433 = vmatprep.subr.mxu0 0.0
        %1434 = vmatpush1.msra.mxu0 0.0
        %1435 = vmatprep.subr.mxu0 0.0
        %1436 = vmatpush1.msra.mxu0 0.0
        %1437 = vmatprep.subr.mxu0 0.0
        %1438 = vmatpush1.msra.mxu0 0.0
        %1439 = vmatprep.subr.mxu0 0.0
        %1440 = vmatpush1.msra.mxu0 0.0
        %1441 = vmatprep.subr.mxu0 0.0
        %1442 = vmatpush1.msra.mxu0 0.0
        %1443 = vmatprep.subr.mxu0 0.0
        %1444 = vmatpush1.msra.mxu0 0.0
        %1445 = vmatprep.subr.mxu0 0.0
        %1446 = vmatpush1.msra.mxu0 0.0
        %1447 = vmatprep.subr.mxu0 0.0
        %1448 = vmatpush1.msra.mxu0 0.0
        %1449 = vmatprep.mubr.f32.mxu0 0.0
        %1450 = vmatmul.mubr.f32.gmra.mrb[0].mxu0 %v1155
        %v1451 = vpop.f32.mrb[0].mxu0
        %v1452 = vadd.f32 0.0, %v1451
        %v1453 = vpop.f32.mrb[0].mxu0
        %1454 = vmatprep.mubr.f32.mxu0 0.0
        %1455 = vmatmul.mubr.f32.gmra.mrb[0].mxu0 %v1158
        %v1456 = vpop.f32.mrb[0].mxu0
        %v1457 = vadd.f32 0.0, %v1456
        %v1458 = vpop.f32.mrb[0].mxu0
        %1459 = vdwg.mxu0
        %1460 = vmatprep.subr.mxu0 0.0
        %1461 = vmatpush1.msra.mxu0 %v1137
        %1462 = vmatprep.subr.mxu0 0.0
        %1463 = vmatpush1.msra.mxu0 %v1139
        %1464 = vmatprep.subr.mxu0 0.0
        %1465 = vmatpush1.msra.mxu0 0.0
        %1466 = vmatprep.subr.mxu0 0.0
        %1467 = vmatpush1.msra.mxu0 0.0
        %1468 = vmatprep.subr.mxu0 0.0
        %1469 = vmatpush1.msra.mxu0 0.0
        %1470 = vmatprep.subr.mxu0 0.0
        %1471 = vmatpush1.msra.mxu0 0.0
        %1472 = vmatprep.subr.mxu0 0.0
        %1473 = vmatpush1.msra.mxu0 0.0
        %1474 = vmatprep.subr.mxu0 0.0
        %1475 = vmatpush1.msra.mxu0 0.0
        %1476 = vmatprep.subr.mxu0 0.0
        %1477 = vmatpush1.msra.mxu0 0.0
        %1478 = vmatprep.subr.mxu0 0.0
        %1479 = vmatpush1.msra.mxu0 0.0
        %1480 = vmatprep.subr.mxu0 0.0
        %1481 = vmatpush1.msra.mxu0 0.0
        %1482 = vmatprep.subr.mxu0 0.0
        %1483 = vmatpush1.msra.mxu0 0.0
        %1484 = vmatprep.subr.mxu0 0.0
        %1485 = vmatpush1.msra.mxu0 0.0
        %1486 = vmatprep.subr.mxu0 0.0
        %1487 = vmatpush1.msra.mxu0 0.0
        %1488 = vmatprep.subr.mxu0 0.0
        %1489 = vmatpush1.msra.mxu0 0.0
        %1490 = vmatprep.subr.mxu0 0.0
        %1491 = vmatpush1.msra.mxu0 0.0
        %1492 = vmatprep.subr.mxu0 0.0
        %1493 = vmatpush1.msra.mxu0 0.0
        %1494 = vmatprep.subr.mxu0 0.0
        %1495 = vmatpush1.msra.mxu0 0.0
        %1496 = vmatprep.subr.mxu0 0.0
        %1497 = vmatpush1.msra.mxu0 0.0
        %1498 = vmatprep.subr.mxu0 0.0
        %1499 = vmatpush1.msra.mxu0 0.0
        %1500 = vmatprep.subr.mxu0 0.0
        %1501 = vmatpush1.msra.mxu0 0.0
        %1502 = vmatprep.subr.mxu0 0.0
        %1503 = vmatpush1.msra.mxu0 0.0
        %1504 = vmatprep.subr.mxu0 0.0
        %1505 = vmatpush1.msra.mxu0 0.0
        %1506 = vmatprep.subr.mxu0 0.0
        %1507 = vmatpush1.msra.mxu0 0.0
        %1508 = vmatprep.subr.mxu0 0.0
        %1509 = vmatpush1.msra.mxu0 0.0
        %1510 = vmatprep.subr.mxu0 0.0
        %1511 = vmatpush1.msra.mxu0 0.0
        %1512 = vmatprep.subr.mxu0 0.0
        %1513 = vmatpush1.msra.mxu0 0.0
        %1514 = vmatprep.subr.mxu0 0.0
        %1515 = vmatpush1.msra.mxu0 0.0
        %1516 = vmatprep.subr.mxu0 0.0
        %1517 = vmatpush1.msra.mxu0 0.0
        %1518 = vmatprep.subr.mxu0 0.0
        %1519 = vmatpush1.msra.mxu0 0.0
        %1520 = vmatprep.subr.mxu0 0.0
        %1521 = vmatpush1.msra.mxu0 0.0
        %1522 = vmatprep.subr.mxu0 0.0
        %1523 = vmatpush1.msra.mxu0 0.0
        %1524 = vmatprep.mubr.f32.mxu0 0.0
        %1525 = vmatmul.mubr.f32.gmra.mrb[0].mxu0 %v1155
        %v1526 = vpop.f32.mrb[0].mxu0
        %v1527 = vadd.f32 0.0, %v1526
        %v1528 = vpop.f32.mrb[0].mxu0
        %1529 = vmatprep.mubr.f32.mxu0 0.0
        %1530 = vmatmul.mubr.f32.gmra.mrb[0].mxu0 %v1158
        %v1531 = vpop.f32.mrb[0].mxu0
        %v1532 = vadd.f32 0.0, %v1531
        %v1533 = vpop.f32.mrb[0].mxu0
        %1534 = vdwg.mxu0
        %1535 = vmatprep.subr.mxu0 0.0
        %1536 = vmatpush1.msra.mxu0 %v1141
        %1537 = vmatprep.subr.mxu0 0.0
        %1538 = vmatpush1.msra.mxu0 %v1143
        %1539 = vmatprep.subr.mxu0 0.0
        %1540 = vmatpush1.msra.mxu0 0.0
        %1541 = vmatprep.subr.mxu0 0.0
        %1542 = vmatpush1.msra.mxu0 0.0
        %1543 = vmatprep.subr.mxu0 0.0
        %1544 = vmatpush1.msra.mxu0 0.0
        %1545 = vmatprep.subr.mxu0 0.0
        %1546 = vmatpush1.msra.mxu0 0.0
        %1547 = vmatprep.subr.mxu0 0.0
        %1548 = vmatpush1.msra.mxu0 0.0
        %1549 = vmatprep.subr.mxu0 0.0
        %1550 = vmatpush1.msra.mxu0 0.0
        %1551 = vmatprep.subr.mxu0 0.0
        %1552 = vmatpush1.msra.mxu0 0.0
        %1553 = vmatprep.subr.mxu0 0.0
        %1554 = vmatpush1.msra.mxu0 0.0
        %1555 = vmatprep.subr.mxu0 0.0
        %1556 = vmatpush1.msra.mxu0 0.0
        %1557 = vmatprep.subr.mxu0 0.0
        %1558 = vmatpush1.msra.mxu0 0.0
        %1559 = vmatprep.subr.mxu0 0.0
        %1560 = vmatpush1.msra.mxu0 0.0
        %1561 = vmatprep.subr.mxu0 0.0
        %1562 = vmatpush1.msra.mxu0 0.0
        %1563 = vmatprep.subr.mxu0 0.0
        %1564 = vmatpush1.msra.mxu0 0.0
        %1565 = vmatprep.subr.mxu0 0.0
        %1566 = vmatpush1.msra.mxu0 0.0
        %1567 = vmatprep.subr.mxu0 0.0
        %1568 = vmatpush1.msra.mxu0 0.0
        %1569 = vmatprep.subr.mxu0 0.0
        %1570 = vmatpush1.msra.mxu0 0.0
        %1571 = vmatprep.subr.mxu0 0.0
        %1572 = vmatpush1.msra.mxu0 0.0
        %1573 = vmatprep.subr.mxu0 0.0
        %1574 = vmatpush1.msra.mxu0 0.0
        %1575 = vmatprep.subr.mxu0 0.0
        %1576 = vmatpush1.msra.mxu0 0.0
        %1577 = vmatprep.subr.mxu0 0.0
        %1578 = vmatpush1.msra.mxu0 0.0
        %1579 = vmatprep.subr.mxu0 0.0
        %1580 = vmatpush1.msra.mxu0 0.0
        %1581 = vmatprep.subr.mxu0 0.0
        %1582 = vmatpush1.msra.mxu0 0.0
        %1583 = vmatprep.subr.mxu0 0.0
        %1584 = vmatpush1.msra.mxu0 0.0
        %1585 = vmatprep.subr.mxu0 0.0
        %1586 = vmatpush1.msra.mxu0 0.0
        %1587 = vmatprep.subr.mxu0 0.0
        %1588 = vmatpush1.msra.mxu0 0.0
        %1589 = vmatprep.subr.mxu0 0.0
        %1590 = vmatpush1.msra.mxu0 0.0
        %1591 = vmatprep.subr.mxu0 0.0
        %1592 = vmatpush1.msra.mxu0 0.0
        %1593 = vmatprep.subr.mxu0 0.0
        %1594 = vmatpush1.msra.mxu0 0.0
        %1595 = vmatprep.subr.mxu0 0.0
        %1596 = vmatpush1.msra.mxu0 0.0
        %1597 = vmatprep.subr.mxu0 0.0
        %1598 = vmatpush1.msra.mxu0 0.0
        %1599 = vmatprep.mubr.f32.mxu0 0.0
        %1600 = vmatmul.mubr.f32.gmra.mrb[0].mxu0 %v1155
        %v1601 = vpop.f32.mrb[0].mxu0
        %v1602 = vadd.f32 0.0, %v1601
        %v1603 = vpop.f32.mrb[0].mxu0
        %1604 = vmatprep.mubr.f32.mxu0 0.0
        %1605 = vmatmul.mubr.f32.gmra.mrb[0].mxu0 %v1158
        %v1606 = vpop.f32.mrb[0].mxu0
        %v1607 = vadd.f32 0.0, %v1606
        %v1608 = vpop.f32.mrb[0].mxu0
        %1609 = vdwg.mxu0
        %1610 = vmatprep.subr.mxu0 0.0
        %1611 = vmatpush1.msra.mxu0 %v1145
        %1612 = vmatprep.subr.mxu0 0.0
        %1613 = vmatpush1.msra.mxu0 %v1147
        %1614 = vmatprep.subr.mxu0 0.0
        %1615 = vmatpush1.msra.mxu0 0.0
        %1616 = vmatprep.subr.mxu0 0.0
        %1617 = vmatpush1.msra.mxu0 0.0
        %1618 = vmatprep.subr.mxu0 0.0
        %1619 = vmatpush1.msra.mxu0 0.0
        %1620 = vmatprep.subr.mxu0 0.0
        %1621 = vmatpush1.msra.mxu0 0.0
        %1622 = vmatprep.subr.mxu0 0.0
        %1623 = vmatpush1.msra.mxu0 0.0
        %1624 = vmatprep.subr.mxu0 0.0
        %1625 = vmatpush1.msra.mxu0 0.0
        %1626 = vmatprep.subr.mxu0 0.0
        %1627 = vmatpush1.msra.mxu0 0.0
        %1628 = vmatprep.subr.mxu0 0.0
        %1629 = vmatpush1.msra.mxu0 0.0
        %1630 = vmatprep.subr.mxu0 0.0
        %1631 = vmatpush1.msra.mxu0 0.0
        %1632 = vmatprep.subr.mxu0 0.0
        %1633 = vmatpush1.msra.mxu0 0.0
        %1634 = vmatprep.subr.mxu0 0.0
        %1635 = vmatpush1.msra.mxu0 0.0
        %1636 = vmatprep.subr.mxu0 0.0
        %1637 = vmatpush1.msra.mxu0 0.0
        %1638 = vmatprep.subr.mxu0 0.0
        %1639 = vmatpush1.msra.mxu0 0.0
        %1640 = vmatprep.subr.mxu0 0.0
        %1641 = vmatpush1.msra.mxu0 0.0
        %1642 = vmatprep.subr.mxu0 0.0
        %1643 = vmatpush1.msra.mxu0 0.0
        %1644 = vmatprep.subr.mxu0 0.0
        %1645 = vmatpush1.msra.mxu0 0.0
        %1646 = vmatprep.subr.mxu0 0.0
        %1647 = vmatpush1.msra.mxu0 0.0
        %1648 = vmatprep.subr.mxu0 0.0
        %1649 = vmatpush1.msra.mxu0 0.0
        %1650 = vmatprep.subr.mxu0 0.0
        %1651 = vmatpush1.msra.mxu0 0.0
        %1652 = vmatprep.subr.mxu0 0.0
        %1653 = vmatpush1.msra.mxu0 0.0
        %1654 = vmatprep.subr.mxu0 0.0
        %1655 = vmatpush1.msra.mxu0 0.0
        %1656 = vmatprep.subr.mxu0 0.0
        %1657 = vmatpush1.msra.mxu0 0.0
        %1658 = vmatprep.subr.mxu0 0.0
        %1659 = vmatpush1.msra.mxu0 0.0
        %1660 = vmatprep.subr.mxu0 0.0
        %1661 = vmatpush1.msra.mxu0 0.0
        %1662 = vmatprep.subr.mxu0 0.0
        %1663 = vmatpush1.msra.mxu0 0.0
        %1664 = vmatprep.subr.mxu0 0.0
        %1665 = vmatpush1.msra.mxu0 0.0
        %1666 = vmatprep.subr.mxu0 0.0
        %1667 = vmatpush1.msra.mxu0 0.0
        %1668 = vmatprep.subr.mxu0 0.0
        %1669 = vmatpush1.msra.mxu0 0.0
        %1670 = vmatprep.subr.mxu0 0.0
        %1671 = vmatpush1.msra.mxu0 0.0
        %1672 = vmatprep.subr.mxu0 0.0
        %1673 = vmatpush1.msra.mxu0 0.0
        %1674 = vmatprep.mubr.f32.mxu0 0.0
        %1675 = vmatmul.mubr.f32.gmra.mrb[0].mxu0 %v1155
        %v1676 = vpop.f32.mrb[0].mxu0
        %v1677 = vadd.f32 0.0, %v1676
        %v1678 = vpop.f32.mrb[0].mxu0
        %1679 = vmatprep.mubr.f32.mxu0 0.0
        %1680 = vmatmul.mubr.f32.gmra.mrb[0].mxu0 %v1158
        %v1681 = vpop.f32.mrb[0].mxu0
        %v1682 = vadd.f32 0.0, %v1681
        %v1683 = vpop.f32.mrb[0].mxu0
        %1684 = vdwg.mxu0
        %1685 = vmatprep.subr.mxu0 0.0
        %1686 = vmatpush1.msra.mxu0 %v1149
        %1687 = vmatprep.subr.mxu0 0.0
        %1688 = vmatpush1.msra.mxu0 %v1151
        %1689 = vmatprep.subr.mxu0 0.0
        %1690 = vmatpush1.msra.mxu0 0.0
        %1691 = vmatprep.subr.mxu0 0.0
        %1692 = vmatpush1.msra.mxu0 0.0
        %1693 = vmatprep.subr.mxu0 0.0
        %1694 = vmatpush1.msra.mxu0 0.0
        %1695 = vmatprep.subr.mxu0 0.0
        %1696 = vmatpush1.msra.mxu0 0.0
        %1697 = vmatprep.subr.mxu0 0.0
        %1698 = vmatpush1.msra.mxu0 0.0
        %1699 = vmatprep.subr.mxu0 0.0
        %1700 = vmatpush1.msra.mxu0 0.0
        %1701 = vmatprep.subr.mxu0 0.0
        %1702 = vmatpush1.msra.mxu0 0.0
        %1703 = vmatprep.subr.mxu0 0.0
        %1704 = vmatpush1.msra.mxu0 0.0
        %1705 = vmatprep.subr.mxu0 0.0
        %1706 = vmatpush1.msra.mxu0 0.0
        %1707 = vmatprep.subr.mxu0 0.0
        %1708 = vmatpush1.msra.mxu0 0.0
        %1709 = vmatprep.subr.mxu0 0.0
        %1710 = vmatpush1.msra.mxu0 0.0
        %1711 = vmatprep.subr.mxu0 0.0
        %1712 = vmatpush1.msra.mxu0 0.0
        %1713 = vmatprep.subr.mxu0 0.0
        %1714 = vmatpush1.msra.mxu0 0.0
        %1715 = vmatprep.subr.mxu0 0.0
        %1716 = vmatpush1.msra.mxu0 0.0
        %1717 = vmatprep.subr.mxu0 0.0
        %1718 = vmatpush1.msra.mxu0 0.0
        %1719 = vmatprep.subr.mxu0 0.0
        %1720 = vmatpush1.msra.mxu0 0.0
        %1721 = vmatprep.subr.mxu0 0.0
        %1722 = vmatpush1.msra.mxu0 0.0
        %1723 = vmatprep.subr.mxu0 0.0
        %1724 = vmatpush1.msra.mxu0 0.0
        %1725 = vmatprep.subr.mxu0 0.0
        %1726 = vmatpush1.msra.mxu0 0.0
        %1727 = vmatprep.subr.mxu0 0.0
        %1728 = vmatpush1.msra.mxu0 0.0
        %1729 = vmatprep.subr.mxu0 0.0
        %1730 = vmatpush1.msra.mxu0 0.0
        %1731 = vmatprep.subr.mxu0 0.0
        %1732 = vmatpush1.msra.mxu0 0.0
        %1733 = vmatprep.subr.mxu0 0.0
        %1734 = vmatpush1.msra.mxu0 0.0
        %1735 = vmatprep.subr.mxu0 0.0
        %1736 = vmatpush1.msra.mxu0 0.0
        %1737 = vmatprep.subr.mxu0 0.0
        %1738 = vmatpush1.msra.mxu0 0.0
        %1739 = vmatprep.subr.mxu0 0.0
        %1740 = vmatpush1.msra.mxu0 0.0
        %1741 = vmatprep.subr.mxu0 0.0
        %1742 = vmatpush1.msra.mxu0 0.0
        %1743 = vmatprep.subr.mxu0 0.0
        %1744 = vmatpush1.msra.mxu0 0.0
        %1745 = vmatprep.subr.mxu0 0.0
        %1746 = vmatpush1.msra.mxu0 0.0
        %1747 = vmatprep.subr.mxu0 0.0
        %1748 = vmatpush1.msra.mxu0 0.0
        %1749 = vmatprep.mubr.f32.mxu0 0.0
        %1750 = vmatmul.mubr.f32.gmra.mrb[0].mxu0 %v1155
        %v1751 = vpop.f32.mrb[0].mxu0
        %v1752 = vadd.f32 0.0, %v1751
        %v1753 = vpop.f32.mrb[0].mxu0
        %1754 = vmatprep.mubr.f32.mxu0 0.0
        %1755 = vmatmul.mubr.f32.gmra.mrb[0].mxu0 %v1158
        %v1756 = vpop.f32.mrb[0].mxu0
        %v1757 = vadd.f32 0.0, %v1756
        %v1758 = vpop.f32.mrb[0].mxu0
        %1759 = vdwg.mxu0
        %v1761 = vsel %vm295, %v1118, 0
        %v1764 = vsel %vm295, %v1119, 0
        %1766 = vmatprep.subr.mxu0 0.0
        %1767 = vmatpush1.msra.mxu0 %v1101
        %1768 = vmatprep.subr.mxu0 0.0
        %1769 = vmatpush1.msra.mxu0 %v1102
        %1770 = vmatprep.subr.mxu0 0.0
        %1771 = vmatpush1.msra.mxu0 0.0
        %1772 = vmatprep.subr.mxu0 0.0
        %1773 = vmatpush1.msra.mxu0 0.0
        %1774 = vmatprep.subr.mxu0 0.0
        %1775 = vmatpush1.msra.mxu0 0.0
        %1776 = vmatprep.subr.mxu0 0.0
        %1777 = vmatpush1.msra.mxu0 0.0
        %1778 = vmatprep.subr.mxu0 0.0
        %1779 = vmatpush1.msra.mxu0 0.0
        %1780 = vmatprep.subr.mxu0 0.0
        %1781 = vmatpush1.msra.mxu0 0.0
        %1782 = vmatprep.subr.mxu0 0.0
        %1783 = vmatpush1.msra.mxu0 0.0
        %1784 = vmatprep.subr.mxu0 0.0
        %1785 = vmatpush1.msra.mxu0 0.0
        %1786 = vmatprep.subr.mxu0 0.0
        %1787 = vmatpush1.msra.mxu0 0.0
        %1788 = vmatprep.subr.mxu0 0.0
        %1789 = vmatpush1.msra.mxu0 0.0
        %1790 = vmatprep.subr.mxu0 0.0
        %1791 = vmatpush1.msra.mxu0 0.0
        %1792 = vmatprep.subr.mxu0 0.0
        %1793 = vmatpush1.msra.mxu0 0.0
        %1794 = vmatprep.subr.mxu0 0.0
        %1795 = vmatpush1.msra.mxu0 0.0
        %1796 = vmatprep.subr.mxu0 0.0
        %1797 = vmatpush1.msra.mxu0 0.0
        %1798 = vmatprep.subr.mxu0 0.0
        %1799 = vmatpush1.msra.mxu0 0.0
        %1800 = vmatprep.subr.mxu0 0.0
        %1801 = vmatpush1.msra.mxu0 0.0
        %1802 = vmatprep.subr.mxu0 0.0
        %1803 = vmatpush1.msra.mxu0 0.0
        %1804 = vmatprep.subr.mxu0 0.0
        %1805 = vmatpush1.msra.mxu0 0.0
        %1806 = vmatprep.subr.mxu0 0.0
        %1807 = vmatpush1.msra.mxu0 0.0
        %1808 = vmatprep.subr.mxu0 0.0
        %1809 = vmatpush1.msra.mxu0 0.0
        %1810 = vmatprep.subr.mxu0 0.0
        %1811 = vmatpush1.msra.mxu0 0.0
        %1812 = vmatprep.subr.mxu0 0.0
        %1813 = vmatpush1.msra.mxu0 0.0
        %1814 = vmatprep.subr.mxu0 0.0
        %1815 = vmatpush1.msra.mxu0 0.0
        %1816 = vmatprep.subr.mxu0 0.0
        %1817 = vmatpush1.msra.mxu0 0.0
        %1818 = vmatprep.subr.mxu0 0.0
        %1819 = vmatpush1.msra.mxu0 0.0
        %1820 = vmatprep.subr.mxu0 0.0
        %1821 = vmatpush1.msra.mxu0 0.0
        %1822 = vmatprep.subr.mxu0 0.0
        %1823 = vmatpush1.msra.mxu0 0.0
        %1824 = vmatprep.subr.mxu0 0.0
        %1825 = vmatpush1.msra.mxu0 0.0
        %1826 = vmatprep.subr.mxu0 0.0
        %1827 = vmatpush1.msra.mxu0 0.0
        %1828 = vmatprep.subr.mxu0 0.0
        %1829 = vmatpush1.msra.mxu0 0.0
        %1830 = vmatprep.mubr.f32.mxu0 0.0
        %1831 = vmatmul.mubr.f32.gmra.mrb[0].mxu0 %v1761
        %v1832 = vpop.f32.mrb[0].mxu0
        %v1833 = vadd.f32 %v1227, %v1832
        %v1834 = vpop.f32.mrb[0].mxu0
        %1835 = vmatprep.mubr.f32.mxu0 0.0
        %1836 = vmatmul.mubr.f32.gmra.mrb[0].mxu0 %v1764
        %v1837 = vpop.f32.mrb[0].mxu0
        %v1838 = vadd.f32 %v1232, %v1837
        %v1839 = vpop.f32.mrb[0].mxu0
        %1840 = vdwg.mxu0
        %1841 = vmatprep.subr.mxu0 0.0
        %1842 = vmatpush1.msra.mxu0 %v1103
        %1843 = vmatprep.subr.mxu0 0.0
        %1844 = vmatpush1.msra.mxu0 %v1104
        %1845 = vmatprep.subr.mxu0 0.0
        %1846 = vmatpush1.msra.mxu0 0.0
        %1847 = vmatprep.subr.mxu0 0.0
        %1848 = vmatpush1.msra.mxu0 0.0
        %1849 = vmatprep.subr.mxu0 0.0
        %1850 = vmatpush1.msra.mxu0 0.0
        %1851 = vmatprep.subr.mxu0 0.0
        %1852 = vmatpush1.msra.mxu0 0.0
        %1853 = vmatprep.subr.mxu0 0.0
        %1854 = vmatpush1.msra.mxu0 0.0
        %1855 = vmatprep.subr.mxu0 0.0
        %1856 = vmatpush1.msra.mxu0 0.0
        %1857 = vmatprep.subr.mxu0 0.0
        %1858 = vmatpush1.msra.mxu0 0.0
        %1859 = vmatprep.subr.mxu0 0.0
        %1860 = vmatpush1.msra.mxu0 0.0
        %1861 = vmatprep.subr.mxu0 0.0
        %1862 = vmatpush1.msra.mxu0 0.0
        %1863 = vmatprep.subr.mxu0 0.0
        %1864 = vmatpush1.msra.mxu0 0.0
        %1865 = vmatprep.subr.mxu0 0.0
        %1866 = vmatpush1.msra.mxu0 0.0
        %1867 = vmatprep.subr.mxu0 0.0
        %1868 = vmatpush1.msra.mxu0 0.0
        %1869 = vmatprep.subr.mxu0 0.0
        %1870 = vmatpush1.msra.mxu0 0.0
        %1871 = vmatprep.subr.mxu0 0.0
        %1872 = vmatpush1.msra.mxu0 0.0
        %1873 = vmatprep.subr.mxu0 0.0
        %1874 = vmatpush1.msra.mxu0 0.0
        %1875 = vmatprep.subr.mxu0 0.0
        %1876 = vmatpush1.msra.mxu0 0.0
        %1877 = vmatprep.subr.mxu0 0.0
        %1878 = vmatpush1.msra.mxu0 0.0
        %1879 = vmatprep.subr.mxu0 0.0
        %1880 = vmatpush1.msra.mxu0 0.0
        %1881 = vmatprep.subr.mxu0 0.0
        %1882 = vmatpush1.msra.mxu0 0.0
        %1883 = vmatprep.subr.mxu0 0.0
        %1884 = vmatpush1.msra.mxu0 0.0
        %1885 = vmatprep.subr.mxu0 0.0
        %1886 = vmatpush1.msra.mxu0 0.0
        %1887 = vmatprep.subr.mxu0 0.0
        %1888 = vmatpush1.msra.mxu0 0.0
        %1889 = vmatprep.subr.mxu0 0.0
        %1890 = vmatpush1.msra.mxu0 0.0
        %1891 = vmatprep.subr.mxu0 0.0
        %1892 = vmatpush1.msra.mxu0 0.0
        %1893 = vmatprep.subr.mxu0 0.0
        %1894 = vmatpush1.msra.mxu0 0.0
        %1895 = vmatprep.subr.mxu0 0.0
        %1896 = vmatpush1.msra.mxu0 0.0
        %1897 = vmatprep.subr.mxu0 0.0
        %1898 = vmatpush1.msra.mxu0 0.0
        %1899 = vmatprep.subr.mxu0 0.0
        %1900 = vmatpush1.msra.mxu0 0.0
        %1901 = vmatprep.subr.mxu0 0.0
        %1902 = vmatpush1.msra.mxu0 0.0
        %1903 = vmatprep.subr.mxu0 0.0
        %1904 = vmatpush1.msra.mxu0 0.0
        %1905 = vmatprep.mubr.f32.mxu0 0.0
        %1906 = vmatmul.mubr.f32.gmra.mrb[0].mxu0 %v1761
        %v1907 = vpop.f32.mrb[0].mxu0
        %v1908 = vadd.f32 %v1302, %v1907
        %v1909 = vpop.f32.mrb[0].mxu0
        %1910 = vmatprep.mubr.f32.mxu0 0.0
        %1911 = vmatmul.mubr.f32.gmra.mrb[0].mxu0 %v1764
        %v1912 = vpop.f32.mrb[0].mxu0
        %v1913 = vadd.f32 %v1307, %v1912
        %v1914 = vpop.f32.mrb[0].mxu0
        %1915 = vdwg.mxu0
        %1916 = vmatprep.subr.mxu0 0.0
        %1917 = vmatpush1.msra.mxu0 %v1105
        %1918 = vmatprep.subr.mxu0 0.0
        %1919 = vmatpush1.msra.mxu0 %v1106
        %1920 = vmatprep.subr.mxu0 0.0
        %1921 = vmatpush1.msra.mxu0 0.0
        %1922 = vmatprep.subr.mxu0 0.0
        %1923 = vmatpush1.msra.mxu0 0.0
        %1924 = vmatprep.subr.mxu0 0.0
        %1925 = vmatpush1.msra.mxu0 0.0
        %1926 = vmatprep.subr.mxu0 0.0
        %1927 = vmatpush1.msra.mxu0 0.0
        %1928 = vmatprep.subr.mxu0 0.0
        %1929 = vmatpush1.msra.mxu0 0.0
        %1930 = vmatprep.subr.mxu0 0.0
        %1931 = vmatpush1.msra.mxu0 0.0
        %1932 = vmatprep.subr.mxu0 0.0
        %1933 = vmatpush1.msra.mxu0 0.0
        %1934 = vmatprep.subr.mxu0 0.0
        %1935 = vmatpush1.msra.mxu0 0.0
        %1936 = vmatprep.subr.mxu0 0.0
        %1937 = vmatpush1.msra.mxu0 0.0
        %1938 = vmatprep.subr.mxu0 0.0
        %1939 = vmatpush1.msra.mxu0 0.0
        %1940 = vmatprep.subr.mxu0 0.0
        %1941 = vmatpush1.msra.mxu0 0.0
        %1942 = vmatprep.subr.mxu0 0.0
        %1943 = vmatpush1.msra.mxu0 0.0
        %1944 = vmatprep.subr.mxu0 0.0
        %1945 = vmatpush1.msra.mxu0 0.0
        %1946 = vmatprep.subr.mxu0 0.0
        %1947 = vmatpush1.msra.mxu0 0.0
        %1948 = vmatprep.subr.mxu0 0.0
        %1949 = vmatpush1.msra.mxu0 0.0
        %1950 = vmatprep.subr.mxu0 0.0
        %1951 = vmatpush1.msra.mxu0 0.0
        %1952 = vmatprep.subr.mxu0 0.0
        %1953 = vmatpush1.msra.mxu0 0.0
        %1954 = vmatprep.subr.mxu0 0.0
        %1955 = vmatpush1.msra.mxu0 0.0
        %1956 = vmatprep.subr.mxu0 0.0
        %1957 = vmatpush1.msra.mxu0 0.0
        %1958 = vmatprep.subr.mxu0 0.0
        %1959 = vmatpush1.msra.mxu0 0.0
        %1960 = vmatprep.subr.mxu0 0.0
        %1961 = vmatpush1.msra.mxu0 0.0
        %1962 = vmatprep.subr.mxu0 0.0
        %1963 = vmatpush1.msra.mxu0 0.0
        %1964 = vmatprep.subr.mxu0 0.0
        %1965 = vmatpush1.msra.mxu0 0.0
        %1966 = vmatprep.subr.mxu0 0.0
        %1967 = vmatpush1.msra.mxu0 0.0
        %1968 = vmatprep.subr.mxu0 0.0
        %1969 = vmatpush1.msra.mxu0 0.0
        %1970 = vmatprep.subr.mxu0 0.0
        %1971 = vmatpush1.msra.mxu0 0.0
        %1972 = vmatprep.subr.mxu0 0.0
        %1973 = vmatpush1.msra.mxu0 0.0
        %1974 = vmatprep.subr.mxu0 0.0
        %1975 = vmatpush1.msra.mxu0 0.0
        %1976 = vmatprep.subr.mxu0 0.0
        %1977 = vmatpush1.msra.mxu0 0.0
        %1978 = vmatprep.subr.mxu0 0.0
        %1979 = vmatpush1.msra.mxu0 0.0
        %1980 = vmatprep.mubr.f32.mxu0 0.0
        %1981 = vmatmul.mubr.f32.gmra.mrb[0].mxu0 %v1761
        %v1982 = vpop.f32.mrb[0].mxu0
        %v1983 = vadd.f32 %v1377, %v1982
        %v1984 = vpop.f32.mrb[0].mxu0
        %1985 = vmatprep.mubr.f32.mxu0 0.0
        %1986 = vmatmul.mubr.f32.gmra.mrb[0].mxu0 %v1764
        %v1987 = vpop.f32.mrb[0].mxu0
        %v1988 = vadd.f32 %v1382, %v1987
        %v1989 = vpop.f32.mrb[0].mxu0
        %1990 = vdwg.mxu0
        %1991 = vmatprep.subr.mxu0 0.0
        %1992 = vmatpush1.msra.mxu0 %v1107
        %1993 = vmatprep.subr.mxu0 0.0
        %1994 = vmatpush1.msra.mxu0 %v1108
        %1995 = vmatprep.subr.mxu0 0.0
        %1996 = vmatpush1.msra.mxu0 0.0
        %1997 = vmatprep.subr.mxu0 0.0
        %1998 = vmatpush1.msra.mxu0 0.0
        %1999 = vmatprep.subr.mxu0 0.0
        %2000 = vmatpush1.msra.mxu0 0.0
        %2001 = vmatprep.subr.mxu0 0.0
        %2002 = vmatpush1.msra.mxu0 0.0
        %2003 = vmatprep.subr.mxu0 0.0
        %2004 = vmatpush1.msra.mxu0 0.0
        %2005 = vmatprep.subr.mxu0 0.0
        %2006 = vmatpush1.msra.mxu0 0.0
        %2007 = vmatprep.subr.mxu0 0.0
        %2008 = vmatpush1.msra.mxu0 0.0
        %2009 = vmatprep.subr.mxu0 0.0
        %2010 = vmatpush1.msra.mxu0 0.0
        %2011 = vmatprep.subr.mxu0 0.0
        %2012 = vmatpush1.msra.mxu0 0.0
        %2013 = vmatprep.subr.mxu0 0.0
        %2014 = vmatpush1.msra.mxu0 0.0
        %2015 = vmatprep.subr.mxu0 0.0
        %2016 = vmatpush1.msra.mxu0 0.0
        %2017 = vmatprep.subr.mxu0 0.0
        %2018 = vmatpush1.msra.mxu0 0.0
        %2019 = vmatprep.subr.mxu0 0.0
        %2020 = vmatpush1.msra.mxu0 0.0
        %2021 = vmatprep.subr.mxu0 0.0
        %2022 = vmatpush1.msra.mxu0 0.0
        %2023 = vmatprep.subr.mxu0 0.0
        %2024 = vmatpush1.msra.mxu0 0.0
        %2025 = vmatprep.subr.mxu0 0.0
        %2026 = vmatpush1.msra.mxu0 0.0
        %2027 = vmatprep.subr.mxu0 0.0
        %2028 = vmatpush1.msra.mxu0 0.0
        %2029 = vmatprep.subr.mxu0 0.0
        %2030 = vmatpush1.msra.mxu0 0.0
        %2031 = vmatprep.subr.mxu0 0.0
        %2032 = vmatpush1.msra.mxu0 0.0
        %2033 = vmatprep.subr.mxu0 0.0
        %2034 = vmatpush1.msra.mxu0 0.0
        %2035 = vmatprep.subr.mxu0 0.0
        %2036 = vmatpush1.msra.mxu0 0.0
        %2037 = vmatprep.subr.mxu0 0.0
        %2038 = vmatpush1.msra.mxu0 0.0
        %2039 = vmatprep.subr.mxu0 0.0
        %2040 = vmatpush1.msra.mxu0 0.0
        %2041 = vmatprep.subr.mxu0 0.0
        %2042 = vmatpush1.msra.mxu0 0.0
        %2043 = vmatprep.subr.mxu0 0.0
        %2044 = vmatpush1.msra.mxu0 0.0
        %2045 = vmatprep.subr.mxu0 0.0
        %2046 = vmatpush1.msra.mxu0 0.0
        %2047 = vmatprep.subr.mxu0 0.0
        %2048 = vmatpush1.msra.mxu0 0.0
        %2049 = vmatprep.subr.mxu0 0.0
        %2050 = vmatpush1.msra.mxu0 0.0
        %2051 = vmatprep.subr.mxu0 0.0
        %2052 = vmatpush1.msra.mxu0 0.0
        %2053 = vmatprep.subr.mxu0 0.0
        %2054 = vmatpush1.msra.mxu0 0.0
        %2055 = vmatprep.mubr.f32.mxu0 0.0
        %2056 = vmatmul.mubr.f32.gmra.mrb[0].mxu0 %v1761
        %v2057 = vpop.f32.mrb[0].mxu0
        %v2058 = vadd.f32 %v1452, %v2057
        %v2059 = vpop.f32.mrb[0].mxu0
        %2060 = vmatprep.mubr.f32.mxu0 0.0
        %2061 = vmatmul.mubr.f32.gmra.mrb[0].mxu0 %v1764
        %v2062 = vpop.f32.mrb[0].mxu0
        %v2063 = vadd.f32 %v1457, %v2062
        %v2064 = vpop.f32.mrb[0].mxu0
        %2065 = vdwg.mxu0
        %2066 = vmatprep.subr.mxu0 0.0
        %2067 = vmatpush1.msra.mxu0 %v1109
        %2068 = vmatprep.subr.mxu0 0.0
        %2069 = vmatpush1.msra.mxu0 %v1110
        %2070 = vmatprep.subr.mxu0 0.0
        %2071 = vmatpush1.msra.mxu0 0.0
        %2072 = vmatprep.subr.mxu0 0.0
        %2073 = vmatpush1.msra.mxu0 0.0
        %2074 = vmatprep.subr.mxu0 0.0
        %2075 = vmatpush1.msra.mxu0 0.0
        %2076 = vmatprep.subr.mxu0 0.0
        %2077 = vmatpush1.msra.mxu0 0.0
        %2078 = vmatprep.subr.mxu0 0.0
        %2079 = vmatpush1.msra.mxu0 0.0
        %2080 = vmatprep.subr.mxu0 0.0
        %2081 = vmatpush1.msra.mxu0 0.0
        %2082 = vmatprep.subr.mxu0 0.0
        %2083 = vmatpush1.msra.mxu0 0.0
        %2084 = vmatprep.subr.mxu0 0.0
        %2085 = vmatpush1.msra.mxu0 0.0
        %2086 = vmatprep.subr.mxu0 0.0
        %2087 = vmatpush1.msra.mxu0 0.0
        %2088 = vmatprep.subr.mxu0 0.0
        %2089 = vmatpush1.msra.mxu0 0.0
        %2090 = vmatprep.subr.mxu0 0.0
        %2091 = vmatpush1.msra.mxu0 0.0
        %2092 = vmatprep.subr.mxu0 0.0
        %2093 = vmatpush1.msra.mxu0 0.0
        %2094 = vmatprep.subr.mxu0 0.0
        %2095 = vmatpush1.msra.mxu0 0.0
        %2096 = vmatprep.subr.mxu0 0.0
        %2097 = vmatpush1.msra.mxu0 0.0
        %2098 = vmatprep.subr.mxu0 0.0
        %2099 = vmatpush1.msra.mxu0 0.0
        %2100 = vmatprep.subr.mxu0 0.0
        %2101 = vmatpush1.msra.mxu0 0.0
        %2102 = vmatprep.subr.mxu0 0.0
        %2103 = vmatpush1.msra.mxu0 0.0
        %2104 = vmatprep.subr.mxu0 0.0
        %2105 = vmatpush1.msra.mxu0 0.0
        %2106 = vmatprep.subr.mxu0 0.0
        %2107 = vmatpush1.msra.mxu0 0.0
        %2108 = vmatprep.subr.mxu0 0.0
        %2109 = vmatpush1.msra.mxu0 0.0
        %2110 = vmatprep.subr.mxu0 0.0
        %2111 = vmatpush1.msra.mxu0 0.0
        %2112 = vmatprep.subr.mxu0 0.0
        %2113 = vmatpush1.msra.mxu0 0.0
        %2114 = vmatprep.subr.mxu0 0.0
        %2115 = vmatpush1.msra.mxu0 0.0
        %2116 = vmatprep.subr.mxu0 0.0
        %2117 = vmatpush1.msra.mxu0 0.0
        %2118 = vmatprep.subr.mxu0 0.0
        %2119 = vmatpush1.msra.mxu0 0.0
        %2120 = vmatprep.subr.mxu0 0.0
        %2121 = vmatpush1.msra.mxu0 0.0
        %2122 = vmatprep.subr.mxu0 0.0
        %2123 = vmatpush1.msra.mxu0 0.0
        %2124 = vmatprep.subr.mxu0 0.0
        %2125 = vmatpush1.msra.mxu0 0.0
        %2126 = vmatprep.subr.mxu0 0.0
        %2127 = vmatpush1.msra.mxu0 0.0
        %2128 = vmatprep.subr.mxu0 0.0
        %2129 = vmatpush1.msra.mxu0 0.0
        %2130 = vmatprep.mubr.f32.mxu0 0.0
        %2131 = vmatmul.mubr.f32.gmra.mrb[0].mxu0 %v1761
        %v2132 = vpop.f32.mrb[0].mxu0
        %v2133 = vadd.f32 %v1527, %v2132
        %v2134 = vpop.f32.mrb[0].mxu0
        %2135 = vmatprep.mubr.f32.mxu0 0.0
        %2136 = vmatmul.mubr.f32.gmra.mrb[0].mxu0 %v1764
        %v2137 = vpop.f32.mrb[0].mxu0
        %v2138 = vadd.f32 %v1532, %v2137
        %v2139 = vpop.f32.mrb[0].mxu0
        %2140 = vdwg.mxu0
        %2141 = vmatprep.subr.mxu0 0.0
        %2142 = vmatpush1.msra.mxu0 %v1111
        %2143 = vmatprep.subr.mxu0 0.0
        %2144 = vmatpush1.msra.mxu0 %v1112
        %2145 = vmatprep.subr.mxu0 0.0
        %2146 = vmatpush1.msra.mxu0 0.0
        %2147 = vmatprep.subr.mxu0 0.0
        %2148 = vmatpush1.msra.mxu0 0.0
        %2149 = vmatprep.subr.mxu0 0.0
        %2150 = vmatpush1.msra.mxu0 0.0
        %2151 = vmatprep.subr.mxu0 0.0
        %2152 = vmatpush1.msra.mxu0 0.0
        %2153 = vmatprep.subr.mxu0 0.0
        %2154 = vmatpush1.msra.mxu0 0.0
        %2155 = vmatprep.subr.mxu0 0.0
        %2156 = vmatpush1.msra.mxu0 0.0
        %2157 = vmatprep.subr.mxu0 0.0
        %2158 = vmatpush1.msra.mxu0 0.0
        %2159 = vmatprep.subr.mxu0 0.0
        %2160 = vmatpush1.msra.mxu0 0.0
        %2161 = vmatprep.subr.mxu0 0.0
        %2162 = vmatpush1.msra.mxu0 0.0
        %2163 = vmatprep.subr.mxu0 0.0
        %2164 = vmatpush1.msra.mxu0 0.0
        %2165 = vmatprep.subr.mxu0 0.0
        %2166 = vmatpush1.msra.mxu0 0.0
        %2167 = vmatprep.subr.mxu0 0.0
        %2168 = vmatpush1.msra.mxu0 0.0
        %2169 = vmatprep.subr.mxu0 0.0
        %2170 = vmatpush1.msra.mxu0 0.0
        %2171 = vmatprep.subr.mxu0 0.0
        %2172 = vmatpush1.msra.mxu0 0.0
        %2173 = vmatprep.subr.mxu0 0.0
        %2174 = vmatpush1.msra.mxu0 0.0
        %2175 = vmatprep.subr.mxu0 0.0
        %2176 = vmatpush1.msra.mxu0 0.0
        %2177 = vmatprep.subr.mxu0 0.0
        %2178 = vmatpush1.msra.mxu0 0.0
        %2179 = vmatprep.subr.mxu0 0.0
        %2180 = vmatpush1.msra.mxu0 0.0
        %2181 = vmatprep.subr.mxu0 0.0
        %2182 = vmatpush1.msra.mxu0 0.0
        %2183 = vmatprep.subr.mxu0 0.0
        %2184 = vmatpush1.msra.mxu0 0.0
        %2185 = vmatprep.subr.mxu0 0.0
        %2186 = vmatpush1.msra.mxu0 0.0
        %2187 = vmatprep.subr.mxu0 0.0
        %2188 = vmatpush1.msra.mxu0 0.0
        %2189 = vmatprep.subr.mxu0 0.0
        %2190 = vmatpush1.msra.mxu0 0.0
        %2191 = vmatprep.subr.mxu0 0.0
        %2192 = vmatpush1.msra.mxu0 0.0
        %2193 = vmatprep.subr.mxu0 0.0
        %2194 = vmatpush1.msra.mxu0 0.0
        %2195 = vmatprep.subr.mxu0 0.0
        %2196 = vmatpush1.msra.mxu0 0.0
        %2197 = vmatprep.subr.mxu0 0.0
        %2198 = vmatpush1.msra.mxu0 0.0
        %2199 = vmatprep.subr.mxu0 0.0
        %2200 = vmatpush1.msra.mxu0 0.0
        %2201 = vmatprep.subr.mxu0 0.0
        %2202 = vmatpush1.msra.mxu0 0.0
        %2203 = vmatprep.subr.mxu0 0.0
        %2204 = vmatpush1.msra.mxu0 0.0
        %2205 = vmatprep.mubr.f32.mxu0 0.0
        %2206 = vmatmul.mubr.f32.gmra.mrb[0].mxu0 %v1761
        %v2207 = vpop.f32.mrb[0].mxu0
        %v2208 = vadd.f32 %v1602, %v2207
        %v2209 = vpop.f32.mrb[0].mxu0
        %2210 = vmatprep.mubr.f32.mxu0 0.0
        %2211 = vmatmul.mubr.f32.gmra.mrb[0].mxu0 %v1764
        %v2212 = vpop.f32.mrb[0].mxu0
        %v2213 = vadd.f32 %v1607, %v2212
        %v2214 = vpop.f32.mrb[0].mxu0
        %2215 = vdwg.mxu0
        %2216 = vmatprep.subr.mxu0 0.0
        %2217 = vmatpush1.msra.mxu0 %v1113
        %2218 = vmatprep.subr.mxu0 0.0
        %2219 = vmatpush1.msra.mxu0 %v1114
        %2220 = vmatprep.subr.mxu0 0.0
        %2221 = vmatpush1.msra.mxu0 0.0
        %2222 = vmatprep.subr.mxu0 0.0
        %2223 = vmatpush1.msra.mxu0 0.0
        %2224 = vmatprep.subr.mxu0 0.0
        %2225 = vmatpush1.msra.mxu0 0.0
        %2226 = vmatprep.subr.mxu0 0.0
        %2227 = vmatpush1.msra.mxu0 0.0
        %2228 = vmatprep.subr.mxu0 0.0
        %2229 = vmatpush1.msra.mxu0 0.0
        %2230 = vmatprep.subr.mxu0 0.0
        %2231 = vmatpush1.msra.mxu0 0.0
        %2232 = vmatprep.subr.mxu0 0.0
        %2233 = vmatpush1.msra.mxu0 0.0
        %2234 = vmatprep.subr.mxu0 0.0
        %2235 = vmatpush1.msra.mxu0 0.0
        %2236 = vmatprep.subr.mxu0 0.0
        %2237 = vmatpush1.msra.mxu0 0.0
        %2238 = vmatprep.subr.mxu0 0.0
        %2239 = vmatpush1.msra.mxu0 0.0
        %2240 = vmatprep.subr.mxu0 0.0
        %2241 = vmatpush1.msra.mxu0 0.0
        %2242 = vmatprep.subr.mxu0 0.0
        %2243 = vmatpush1.msra.mxu0 0.0
        %2244 = vmatprep.subr.mxu0 0.0
        %2245 = vmatpush1.msra.mxu0 0.0
        %2246 = vmatprep.subr.mxu0 0.0
        %2247 = vmatpush1.msra.mxu0 0.0
        %2248 = vmatprep.subr.mxu0 0.0
        %2249 = vmatpush1.msra.mxu0 0.0
        %2250 = vmatprep.subr.mxu0 0.0
        %2251 = vmatpush1.msra.mxu0 0.0
        %2252 = vmatprep.subr.mxu0 0.0
        %2253 = vmatpush1.msra.mxu0 0.0
        %2254 = vmatprep.subr.mxu0 0.0
        %2255 = vmatpush1.msra.mxu0 0.0
        %2256 = vmatprep.subr.mxu0 0.0
        %2257 = vmatpush1.msra.mxu0 0.0
        %2258 = vmatprep.subr.mxu0 0.0
        %2259 = vmatpush1.msra.mxu0 0.0
        %2260 = vmatprep.subr.mxu0 0.0
        %2261 = vmatpush1.msra.mxu0 0.0
        %2262 = vmatprep.subr.mxu0 0.0
        %2263 = vmatpush1.msra.mxu0 0.0
        %2264 = vmatprep.subr.mxu0 0.0
        %2265 = vmatpush1.msra.mxu0 0.0
        %2266 = vmatprep.subr.mxu0 0.0
        %2267 = vmatpush1.msra.mxu0 0.0
        %2268 = vmatprep.subr.mxu0 0.0
        %2269 = vmatpush1.msra.mxu0 0.0
        %2270 = vmatprep.subr.mxu0 0.0
        %2271 = vmatpush1.msra.mxu0 0.0
        %2272 = vmatprep.subr.mxu0 0.0
        %2273 = vmatpush1.msra.mxu0 0.0
        %2274 = vmatprep.subr.mxu0 0.0
        %2275 = vmatpush1.msra.mxu0 0.0
        %2276 = vmatprep.subr.mxu0 0.0
        %2277 = vmatpush1.msra.mxu0 0.0
        %2278 = vmatprep.subr.mxu0 0.0
        %2279 = vmatpush1.msra.mxu0 0.0
        %2280 = vmatprep.mubr.f32.mxu0 0.0
        %2281 = vmatmul.mubr.f32.gmra.mrb[0].mxu0 %v1761
        %v2282 = vpop.f32.mrb[0].mxu0
        %v2283 = vadd.f32 %v1677, %v2282
        %v2284 = vpop.f32.mrb[0].mxu0
        %2285 = vmatprep.mubr.f32.mxu0 0.0
        %2286 = vmatmul.mubr.f32.gmra.mrb[0].mxu0 %v1764
        %v2287 = vpop.f32.mrb[0].mxu0
        %v2288 = vadd.f32 %v1682, %v2287
        %v2289 = vpop.f32.mrb[0].mxu0
        %2290 = vdwg.mxu0
        %2291 = vmatprep.subr.mxu0 0.0
        %2292 = vmatpush1.msra.mxu0 %v1115
        %2293 = vmatprep.subr.mxu0 0.0
        %2294 = vmatpush1.msra.mxu0 %v1116
        %2295 = vmatprep.subr.mxu0 0.0
        %2296 = vmatpush1.msra.mxu0 0.0
        %2297 = vmatprep.subr.mxu0 0.0
        %2298 = vmatpush1.msra.mxu0 0.0
        %2299 = vmatprep.subr.mxu0 0.0
        %2300 = vmatpush1.msra.mxu0 0.0
        %2301 = vmatprep.subr.mxu0 0.0
        %2302 = vmatpush1.msra.mxu0 0.0
        %2303 = vmatprep.subr.mxu0 0.0
        %2304 = vmatpush1.msra.mxu0 0.0
        %2305 = vmatprep.subr.mxu0 0.0
        %2306 = vmatpush1.msra.mxu0 0.0
        %2307 = vmatprep.subr.mxu0 0.0
        %2308 = vmatpush1.msra.mxu0 0.0
        %2309 = vmatprep.subr.mxu0 0.0
        %2310 = vmatpush1.msra.mxu0 0.0
        %2311 = vmatprep.subr.mxu0 0.0
        %2312 = vmatpush1.msra.mxu0 0.0
        %2313 = vmatprep.subr.mxu0 0.0
        %2314 = vmatpush1.msra.mxu0 0.0
        %2315 = vmatprep.subr.mxu0 0.0
        %2316 = vmatpush1.msra.mxu0 0.0
        %2317 = vmatprep.subr.mxu0 0.0
        %2318 = vmatpush1.msra.mxu0 0.0
        %2319 = vmatprep.subr.mxu0 0.0
        %2320 = vmatpush1.msra.mxu0 0.0
        %2321 = vmatprep.subr.mxu0 0.0
        %2322 = vmatpush1.msra.mxu0 0.0
        %2323 = vmatprep.subr.mxu0 0.0
        %2324 = vmatpush1.msra.mxu0 0.0
        %2325 = vmatprep.subr.mxu0 0.0
        %2326 = vmatpush1.msra.mxu0 0.0
        %2327 = vmatprep.subr.mxu0 0.0
        %2328 = vmatpush1.msra.mxu0 0.0
        %2329 = vmatprep.subr.mxu0 0.0
        %2330 = vmatpush1.msra.mxu0 0.0
        %2331 = vmatprep.subr.mxu0 0.0
        %2332 = vmatpush1.msra.mxu0 0.0
        %2333 = vmatprep.subr.mxu0 0.0
        %2334 = vmatpush1.msra.mxu0 0.0
        %2335 = vmatprep.subr.mxu0 0.0
        %2336 = vmatpush1.msra.mxu0 0.0
        %2337 = vmatprep.subr.mxu0 0.0
        %2338 = vmatpush1.msra.mxu0 0.0
        %2339 = vmatprep.subr.mxu0 0.0
        %2340 = vmatpush1.msra.mxu0 0.0
        %2341 = vmatprep.subr.mxu0 0.0
        %2342 = vmatpush1.msra.mxu0 0.0
        %2343 = vmatprep.subr.mxu0 0.0
        %2344 = vmatpush1.msra.mxu0 0.0
        %2345 = vmatprep.subr.mxu0 0.0
        %2346 = vmatpush1.msra.mxu0 0.0
        %2347 = vmatprep.subr.mxu0 0.0
        %2348 = vmatpush1.msra.mxu0 0.0
        %2349 = vmatprep.subr.mxu0 0.0
        %2350 = vmatpush1.msra.mxu0 0.0
        %2351 = vmatprep.subr.mxu0 0.0
        %2352 = vmatpush1.msra.mxu0 0.0
        %2353 = vmatprep.subr.mxu0 0.0
        %2354 = vmatpush1.msra.mxu0 0.0
        %2355 = vmatprep.mubr.f32.mxu0 0.0
        %2356 = vmatmul.mubr.f32.gmra.mrb[0].mxu0 %v1761
        %v2357 = vpop.f32.mrb[0].mxu0
        %v2358 = vadd.f32 %v1752, %v2357
        %v2359 = vpop.f32.mrb[0].mxu0
        %2360 = vmatprep.mubr.f32.mxu0 0.0
        %2361 = vmatmul.mubr.f32.gmra.mrb[0].mxu0 %v1764
        %v2362 = vpop.f32.mrb[0].mxu0
        %v2363 = vadd.f32 %v1757, %v2362
        %v2364 = vpop.f32.mrb[0].mxu0
        %2365 = vdwg.mxu0
        %2366 = vrot.lane.b32.xlu0 %v1101, 3
        %v2367 = vpop.permute.xlu0 %2366
        %2368 = vrot.lane.b32.xlu0 %v1102, 3
        %v2369 = vpop.permute.xlu0 %2368
        %2370 = vrot.lane.b32.xlu0 %v1103, 3
        %v2371 = vpop.permute.xlu0 %2370
        %2372 = vrot.lane.b32.xlu0 %v1104, 3
        %v2373 = vpop.permute.xlu0 %2372
        %2374 = vrot.lane.b32.xlu0 %v1105, 3
        %v2375 = vpop.permute.xlu0 %2374
        %2376 = vrot.lane.b32.xlu0 %v1106, 3
        %v2377 = vpop.permute.xlu0 %2376
        %2378 = vrot.lane.b32.xlu0 %v1107, 3
        %v2379 = vpop.permute.xlu0 %2378
        %2380 = vrot.lane.b32.xlu0 %v1108, 3
        %v2381 = vpop.permute.xlu0 %2380
        %2382 = vrot.lane.b32.xlu0 %v1109, 3
        %v2383 = vpop.permute.xlu0 %2382
        %2384 = vrot.lane.b32.xlu0 %v1110, 3
        %v2385 = vpop.permute.xlu0 %2384
        %2386 = vrot.lane.b32.xlu0 %v1111, 3
        %v2387 = vpop.permute.xlu0 %2386
        %2388 = vrot.lane.b32.xlu0 %v1112, 3
        %v2389 = vpop.permute.xlu0 %2388
        %2390 = vrot.lane.b32.xlu0 %v1113, 3
        %v2391 = vpop.permute.xlu0 %2390
        %2392 = vrot.lane.b32.xlu0 %v1114, 3
        %v2393 = vpop.permute.xlu0 %2392
        %2394 = vrot.lane.b32.xlu0 %v1115, 3
        %v2395 = vpop.permute.xlu0 %2394
        %2396 = vrot.lane.b32.xlu0 %v1116, 3
        %v2397 = vpop.permute.xlu0 %2396
        %s2398 = scalar_lea.vmem [#allocation5], 16
        %v2399 = vld [vmem:[%s2398] sm:$0xff]
        %v2400 = vld [vmem:[%s2398 + $0x8] sm:$0xff]
        %v2402 = vsel %vm295, %v2399, 0
        %v2405 = vsel %vm295, %v2400, 0
        %2407 = vmatprep.subr.mxu0 0.0
        %2408 = vmatpush1.msra.mxu0 %v2367
        %2409 = vmatprep.subr.mxu0 0.0
        %2410 = vmatpush1.msra.mxu0 %v2369
        %2411 = vmatprep.subr.mxu0 0.0
        %2412 = vmatpush1.msra.mxu0 0.0
        %2413 = vmatprep.subr.mxu0 0.0
        %2414 = vmatpush1.msra.mxu0 0.0
        %2415 = vmatprep.subr.mxu0 0.0
        %2416 = vmatpush1.msra.mxu0 0.0
        %2417 = vmatprep.subr.mxu0 0.0
        %2418 = vmatpush1.msra.mxu0 0.0
        %2419 = vmatprep.subr.mxu0 0.0
        %2420 = vmatpush1.msra.mxu0 0.0
        %2421 = vmatprep.subr.mxu0 0.0
        %2422 = vmatpush1.msra.mxu0 0.0
        %2423 = vmatprep.subr.mxu0 0.0
        %2424 = vmatpush1.msra.mxu0 0.0
        %2425 = vmatprep.subr.mxu0 0.0
        %2426 = vmatpush1.msra.mxu0 0.0
        %2427 = vmatprep.subr.mxu0 0.0
        %2428 = vmatpush1.msra.mxu0 0.0
        %2429 = vmatprep.subr.mxu0 0.0
        %2430 = vmatpush1.msra.mxu0 0.0
        %2431 = vmatprep.subr.mxu0 0.0
        %2432 = vmatpush1.msra.mxu0 0.0
        %2433 = vmatprep.subr.mxu0 0.0
        %2434 = vmatpush1.msra.mxu0 0.0
        %2435 = vmatprep.subr.mxu0 0.0
        %2436 = vmatpush1.msra.mxu0 0.0
        %2437 = vmatprep.subr.mxu0 0.0
        %2438 = vmatpush1.msra.mxu0 0.0
        %2439 = vmatprep.subr.mxu0 0.0
        %2440 = vmatpush1.msra.mxu0 0.0
        %2441 = vmatprep.subr.mxu0 0.0
        %2442 = vmatpush1.msra.mxu0 0.0
        %2443 = vmatprep.subr.mxu0 0.0
        %2444 = vmatpush1.msra.mxu0 0.0
        %2445 = vmatprep.subr.mxu0 0.0
        %2446 = vmatpush1.msra.mxu0 0.0
        %2447 = vmatprep.subr.mxu0 0.0
        %2448 = vmatpush1.msra.mxu0 0.0
        %2449 = vmatprep.subr.mxu0 0.0
        %2450 = vmatpush1.msra.mxu0 0.0
        %2451 = vmatprep.subr.mxu0 0.0
        %2452 = vmatpush1.msra.mxu0 0.0
        %2453 = vmatprep.subr.mxu0 0.0
        %2454 = vmatpush1.msra.mxu0 0.0
        %2455 = vmatprep.subr.mxu0 0.0
        %2456 = vmatpush1.msra.mxu0 0.0
        %2457 = vmatprep.subr.mxu0 0.0
        %2458 = vmatpush1.msra.mxu0 0.0
        %2459 = vmatprep.subr.mxu0 0.0
        %2460 = vmatpush1.msra.mxu0 0.0
        %2461 = vmatprep.subr.mxu0 0.0
        %2462 = vmatpush1.msra.mxu0 0.0
        %2463 = vmatprep.subr.mxu0 0.0
        %2464 = vmatpush1.msra.mxu0 0.0
        %2465 = vmatprep.subr.mxu0 0.0
        %2466 = vmatpush1.msra.mxu0 0.0
        %2467 = vmatprep.subr.mxu0 0.0
        %2468 = vmatpush1.msra.mxu0 0.0
        %2469 = vmatprep.subr.mxu0 0.0
        %2470 = vmatpush1.msra.mxu0 0.0
        %2471 = vmatprep.mubr.f32.mxu0 0.0
        %2472 = vmatmul.mubr.f32.gmra.mrb[0].mxu0 %v2402
        %v2473 = vpop.f32.mrb[0].mxu0
        %v2474 = vadd.f32 0.0, %v2473
        %v2475 = vpop.f32.mrb[0].mxu0
        %2476 = vmatprep.mubr.f32.mxu0 0.0
        %2477 = vmatmul.mubr.f32.gmra.mrb[0].mxu0 %v2405
        %v2478 = vpop.f32.mrb[0].mxu0
        %v2479 = vadd.f32 0.0, %v2478
        %v2480 = vpop.f32.mrb[0].mxu0
        %2481 = vdwg.mxu0
        %2482 = vmatprep.subr.mxu0 0.0
        %2483 = vmatpush1.msra.mxu0 %v2371
        %2484 = vmatprep.subr.mxu0 0.0
        %2485 = vmatpush1.msra.mxu0 %v2373
        %2486 = vmatprep.subr.mxu0 0.0
        %2487 = vmatpush1.msra.mxu0 0.0
        %2488 = vmatprep.subr.mxu0 0.0
        %2489 = vmatpush1.msra.mxu0 0.0
        %2490 = vmatprep.subr.mxu0 0.0
        %2491 = vmatpush1.msra.mxu0 0.0
        %2492 = vmatprep.subr.mxu0 0.0
        %2493 = vmatpush1.msra.mxu0 0.0
        %2494 = vmatprep.subr.mxu0 0.0
        %2495 = vmatpush1.msra.mxu0 0.0
        %2496 = vmatprep.subr.mxu0 0.0
        %2497 = vmatpush1.msra.mxu0 0.0
        %2498 = vmatprep.subr.mxu0 0.0
        %2499 = vmatpush1.msra.mxu0 0.0
        %2500 = vmatprep.subr.mxu0 0.0
        %2501 = vmatpush1.msra.mxu0 0.0
        %2502 = vmatprep.subr.mxu0 0.0
        %2503 = vmatpush1.msra.mxu0 0.0
        %2504 = vmatprep.subr.mxu0 0.0
        %2505 = vmatpush1.msra.mxu0 0.0
        %2506 = vmatprep.subr.mxu0 0.0
        %2507 = vmatpush1.msra.mxu0 0.0
        %2508 = vmatprep.subr.mxu0 0.0
        %2509 = vmatpush1.msra.mxu0 0.0
        %2510 = vmatprep.subr.mxu0 0.0
        %2511 = vmatpush1.msra.mxu0 0.0
        %2512 = vmatprep.subr.mxu0 0.0
        %2513 = vmatpush1.msra.mxu0 0.0
        %2514 = vmatprep.subr.mxu0 0.0
        %2515 = vmatpush1.msra.mxu0 0.0
        %2516 = vmatprep.subr.mxu0 0.0
        %2517 = vmatpush1.msra.mxu0 0.0
        %2518 = vmatprep.subr.mxu0 0.0
        %2519 = vmatpush1.msra.mxu0 0.0
        %2520 = vmatprep.subr.mxu0 0.0
        %2521 = vmatpush1.msra.mxu0 0.0
        %2522 = vmatprep.subr.mxu0 0.0
        %2523 = vmatpush1.msra.mxu0 0.0
        %2524 = vmatprep.subr.mxu0 0.0
        %2525 = vmatpush1.msra.mxu0 0.0
        %2526 = vmatprep.subr.mxu0 0.0
        %2527 = vmatpush1.msra.mxu0 0.0
        %2528 = vmatprep.subr.mxu0 0.0
        %2529 = vmatpush1.msra.mxu0 0.0
        %2530 = vmatprep.subr.mxu0 0.0
        %2531 = vmatpush1.msra.mxu0 0.0
        %2532 = vmatprep.subr.mxu0 0.0
        %2533 = vmatpush1.msra.mxu0 0.0
        %2534 = vmatprep.subr.mxu0 0.0
        %2535 = vmatpush1.msra.mxu0 0.0
        %2536 = vmatprep.subr.mxu0 0.0
        %2537 = vmatpush1.msra.mxu0 0.0
        %2538 = vmatprep.subr.mxu0 0.0
        %2539 = vmatpush1.msra.mxu0 0.0
        %2540 = vmatprep.subr.mxu0 0.0
        %2541 = vmatpush1.msra.mxu0 0.0
        %2542 = vmatprep.subr.mxu0 0.0
        %2543 = vmatpush1.msra.mxu0 0.0
        %2544 = vmatprep.subr.mxu0 0.0
        %2545 = vmatpush1.msra.mxu0 0.0
        %2546 = vmatprep.mubr.f32.mxu0 0.0
        %2547 = vmatmul.mubr.f32.gmra.mrb[0].mxu0 %v2402
        %v2548 = vpop.f32.mrb[0].mxu0
        %v2549 = vadd.f32 0.0, %v2548
        %v2550 = vpop.f32.mrb[0].mxu0
        %2551 = vmatprep.mubr.f32.mxu0 0.0
        %2552 = vmatmul.mubr.f32.gmra.mrb[0].mxu0 %v2405
        %v2553 = vpop.f32.mrb[0].mxu0
        %v2554 = vadd.f32 0.0, %v2553
        %v2555 = vpop.f32.mrb[0].mxu0
        %2556 = vdwg.mxu0
        %2557 = vmatprep.subr.mxu0 0.0
        %2558 = vmatpush1.msra.mxu0 %v2375
        %2559 = vmatprep.subr.mxu0 0.0
        %2560 = vmatpush1.msra.mxu0 %v2377
        %2561 = vmatprep.subr.mxu0 0.0
        %2562 = vmatpush1.msra.mxu0 0.0
        %2563 = vmatprep.subr.mxu0 0.0
        %2564 = vmatpush1.msra.mxu0 0.0
        %2565 = vmatprep.subr.mxu0 0.0
        %2566 = vmatpush1.msra.mxu0 0.0
        %2567 = vmatprep.subr.mxu0 0.0
        %2568 = vmatpush1.msra.mxu0 0.0
        %2569 = vmatprep.subr.mxu0 0.0
        %2570 = vmatpush1.msra.mxu0 0.0
        %2571 = vmatprep.subr.mxu0 0.0
        %2572 = vmatpush1.msra.mxu0 0.0
        %2573 = vmatprep.subr.mxu0 0.0
        %2574 = vmatpush1.msra.mxu0 0.0
        %2575 = vmatprep.subr.mxu0 0.0
        %2576 = vmatpush1.msra.mxu0 0.0
        %2577 = vmatprep.subr.mxu0 0.0
        %2578 = vmatpush1.msra.mxu0 0.0
        %2579 = vmatprep.subr.mxu0 0.0
        %2580 = vmatpush1.msra.mxu0 0.0
        %2581 = vmatprep.subr.mxu0 0.0
        %2582 = vmatpush1.msra.mxu0 0.0
        %2583 = vmatprep.subr.mxu0 0.0
        %2584 = vmatpush1.msra.mxu0 0.0
        %2585 = vmatprep.subr.mxu0 0.0
        %2586 = vmatpush1.msra.mxu0 0.0
        %2587 = vmatprep.subr.mxu0 0.0
        %2588 = vmatpush1.msra.mxu0 0.0
        %2589 = vmatprep.subr.mxu0 0.0
        %2590 = vmatpush1.msra.mxu0 0.0
        %2591 = vmatprep.subr.mxu0 0.0
        %2592 = vmatpush1.msra.mxu0 0.0
        %2593 = vmatprep.subr.mxu0 0.0
        %2594 = vmatpush1.msra.mxu0 0.0
        %2595 = vmatprep.subr.mxu0 0.0
        %2596 = vmatpush1.msra.mxu0 0.0
        %2597 = vmatprep.subr.mxu0 0.0
        %2598 = vmatpush1.msra.mxu0 0.0
        %2599 = vmatprep.subr.mxu0 0.0
        %2600 = vmatpush1.msra.mxu0 0.0
        %2601 = vmatprep.subr.mxu0 0.0
        %2602 = vmatpush1.msra.mxu0 0.0
        %2603 = vmatprep.subr.mxu0 0.0
        %2604 = vmatpush1.msra.mxu0 0.0
        %2605 = vmatprep.subr.mxu0 0.0
        %2606 = vmatpush1.msra.mxu0 0.0
        %2607 = vmatprep.subr.mxu0 0.0
        %2608 = vmatpush1.msra.mxu0 0.0
        %2609 = vmatprep.subr.mxu0 0.0
        %2610 = vmatpush1.msra.mxu0 0.0
        %2611 = vmatprep.subr.mxu0 0.0
        %2612 = vmatpush1.msra.mxu0 0.0
        %2613 = vmatprep.subr.mxu0 0.0
        %2614 = vmatpush1.msra.mxu0 0.0
        %2615 = vmatprep.subr.mxu0 0.0
        %2616 = vmatpush1.msra.mxu0 0.0
        %2617 = vmatprep.subr.mxu0 0.0
        %2618 = vmatpush1.msra.mxu0 0.0
        %2619 = vmatprep.subr.mxu0 0.0
        %2620 = vmatpush1.msra.mxu0 0.0
        %2621 = vmatprep.mubr.f32.mxu0 0.0
        %2622 = vmatmul.mubr.f32.gmra.mrb[0].mxu0 %v2402
        %v2623 = vpop.f32.mrb[0].mxu0
        %v2624 = vadd.f32 0.0, %v2623
        %v2625 = vpop.f32.mrb[0].mxu0
        %2626 = vmatprep.mubr.f32.mxu0 0.0
        %2627 = vmatmul.mubr.f32.gmra.mrb[0].mxu0 %v2405
        %v2628 = vpop.f32.mrb[0].mxu0
        %v2629 = vadd.f32 0.0, %v2628
        %v2630 = vpop.f32.mrb[0].mxu0
        %2631 = vdwg.mxu0
        %2632 = vmatprep.subr.mxu0 0.0
        %2633 = vmatpush1.msra.mxu0 %v2379
        %2634 = vmatprep.subr.mxu0 0.0
        %2635 = vmatpush1.msra.mxu0 %v2381
        %2636 = vmatprep.subr.mxu0 0.0
        %2637 = vmatpush1.msra.mxu0 0.0
        %2638 = vmatprep.subr.mxu0 0.0
        %2639 = vmatpush1.msra.mxu0 0.0
        %2640 = vmatprep.subr.mxu0 0.0
        %2641 = vmatpush1.msra.mxu0 0.0
        %2642 = vmatprep.subr.mxu0 0.0
        %2643 = vmatpush1.msra.mxu0 0.0
        %2644 = vmatprep.subr.mxu0 0.0
        %2645 = vmatpush1.msra.mxu0 0.0
        %2646 = vmatprep.subr.mxu0 0.0
        %2647 = vmatpush1.msra.mxu0 0.0
        %2648 = vmatprep.subr.mxu0 0.0
        %2649 = vmatpush1.msra.mxu0 0.0
        %2650 = vmatprep.subr.mxu0 0.0
        %2651 = vmatpush1.msra.mxu0 0.0
        %2652 = vmatprep.subr.mxu0 0.0
        %2653 = vmatpush1.msra.mxu0 0.0
        %2654 = vmatprep.subr.mxu0 0.0
        %2655 = vmatpush1.msra.mxu0 0.0
        %2656 = vmatprep.subr.mxu0 0.0
        %2657 = vmatpush1.msra.mxu0 0.0
        %2658 = vmatprep.subr.mxu0 0.0
        %2659 = vmatpush1.msra.mxu0 0.0
        %2660 = vmatprep.subr.mxu0 0.0
        %2661 = vmatpush1.msra.mxu0 0.0
        %2662 = vmatprep.subr.mxu0 0.0
        %2663 = vmatpush1.msra.mxu0 0.0
        %2664 = vmatprep.subr.mxu0 0.0
        %2665 = vmatpush1.msra.mxu0 0.0
        %2666 = vmatprep.subr.mxu0 0.0
        %2667 = vmatpush1.msra.mxu0 0.0
        %2668 = vmatprep.subr.mxu0 0.0
        %2669 = vmatpush1.msra.mxu0 0.0
        %2670 = vmatprep.subr.mxu0 0.0
        %2671 = vmatpush1.msra.mxu0 0.0
        %2672 = vmatprep.subr.mxu0 0.0
        %2673 = vmatpush1.msra.mxu0 0.0
        %2674 = vmatprep.subr.mxu0 0.0
        %2675 = vmatpush1.msra.mxu0 0.0
        %2676 = vmatprep.subr.mxu0 0.0
        %2677 = vmatpush1.msra.mxu0 0.0
        %2678 = vmatprep.subr.mxu0 0.0
        %2679 = vmatpush1.msra.mxu0 0.0
        %2680 = vmatprep.subr.mxu0 0.0
        %2681 = vmatpush1.msra.mxu0 0.0
        %2682 = vmatprep.subr.mxu0 0.0
        %2683 = vmatpush1.msra.mxu0 0.0
        %2684 = vmatprep.subr.mxu0 0.0
        %2685 = vmatpush1.msra.mxu0 0.0
        %2686 = vmatprep.subr.mxu0 0.0
        %2687 = vmatpush1.msra.mxu0 0.0
        %2688 = vmatprep.subr.mxu0 0.0
        %2689 = vmatpush1.msra.mxu0 0.0
        %2690 = vmatprep.subr.mxu0 0.0
        %2691 = vmatpush1.msra.mxu0 0.0
        %2692 = vmatprep.subr.mxu0 0.0
        %2693 = vmatpush1.msra.mxu0 0.0
        %2694 = vmatprep.subr.mxu0 0.0
        %2695 = vmatpush1.msra.mxu0 0.0
        %2696 = vmatprep.mubr.f32.mxu0 0.0
        %2697 = vmatmul.mubr.f32.gmra.mrb[0].mxu0 %v2402
        %v2698 = vpop.f32.mrb[0].mxu0
        %v2699 = vadd.f32 0.0, %v2698
        %v2700 = vpop.f32.mrb[0].mxu0
        %2701 = vmatprep.mubr.f32.mxu0 0.0
        %2702 = vmatmul.mubr.f32.gmra.mrb[0].mxu0 %v2405
        %v2703 = vpop.f32.mrb[0].mxu0
        %v2704 = vadd.f32 0.0, %v2703
        %v2705 = vpop.f32.mrb[0].mxu0
        %2706 = vdwg.mxu0
        %2707 = vmatprep.subr.mxu0 0.0
        %2708 = vmatpush1.msra.mxu0 %v2383
        %2709 = vmatprep.subr.mxu0 0.0
        %2710 = vmatpush1.msra.mxu0 %v2385
        %2711 = vmatprep.subr.mxu0 0.0
        %2712 = vmatpush1.msra.mxu0 0.0
        %2713 = vmatprep.subr.mxu0 0.0
        %2714 = vmatpush1.msra.mxu0 0.0
        %2715 = vmatprep.subr.mxu0 0.0
        %2716 = vmatpush1.msra.mxu0 0.0
        %2717 = vmatprep.subr.mxu0 0.0
        %2718 = vmatpush1.msra.mxu0 0.0
        %2719 = vmatprep.subr.mxu0 0.0
        %2720 = vmatpush1.msra.mxu0 0.0
        %2721 = vmatprep.subr.mxu0 0.0
        %2722 = vmatpush1.msra.mxu0 0.0
        %2723 = vmatprep.subr.mxu0 0.0
        %2724 = vmatpush1.msra.mxu0 0.0
        %2725 = vmatprep.subr.mxu0 0.0
        %2726 = vmatpush1.msra.mxu0 0.0
        %2727 = vmatprep.subr.mxu0 0.0
        %2728 = vmatpush1.msra.mxu0 0.0
        %2729 = vmatprep.subr.mxu0 0.0
        %2730 = vmatpush1.msra.mxu0 0.0
        %2731 = vmatprep.subr.mxu0 0.0
        %2732 = vmatpush1.msra.mxu0 0.0
        %2733 = vmatprep.subr.mxu0 0.0
        %2734 = vmatpush1.msra.mxu0 0.0
        %2735 = vmatprep.subr.mxu0 0.0
        %2736 = vmatpush1.msra.mxu0 0.0
        %2737 = vmatprep.subr.mxu0 0.0
        %2738 = vmatpush1.msra.mxu0 0.0
        %2739 = vmatprep.subr.mxu0 0.0
        %2740 = vmatpush1.msra.mxu0 0.0
        %2741 = vmatprep.subr.mxu0 0.0
        %2742 = vmatpush1.msra.mxu0 0.0
        %2743 = vmatprep.subr.mxu0 0.0
        %2744 = vmatpush1.msra.mxu0 0.0
        %2745 = vmatprep.subr.mxu0 0.0
        %2746 = vmatpush1.msra.mxu0 0.0
        %2747 = vmatprep.subr.mxu0 0.0
        %2748 = vmatpush1.msra.mxu0 0.0
        %2749 = vmatprep.subr.mxu0 0.0
        %2750 = vmatpush1.msra.mxu0 0.0
        %2751 = vmatprep.subr.mxu0 0.0
        %2752 = vmatpush1.msra.mxu0 0.0
        %2753 = vmatprep.subr.mxu0 0.0
        %2754 = vmatpush1.msra.mxu0 0.0
        %2755 = vmatprep.subr.mxu0 0.0
        %2756 = vmatpush1.msra.mxu0 0.0
        %2757 = vmatprep.subr.mxu0 0.0
        %2758 = vmatpush1.msra.mxu0 0.0
        %2759 = vmatprep.subr.mxu0 0.0
        %2760 = vmatpush1.msra.mxu0 0.0
        %2761 = vmatprep.subr.mxu0 0.0
        %2762 = vmatpush1.msra.mxu0 0.0
        %2763 = vmatprep.subr.mxu0 0.0
        %2764 = vmatpush1.msra.mxu0 0.0
        %2765 = vmatprep.subr.mxu0 0.0
        %2766 = vmatpush1.msra.mxu0 0.0
        %2767 = vmatprep.subr.mxu0 0.0
        %2768 = vmatpush1.msra.mxu0 0.0
        %2769 = vmatprep.subr.mxu0 0.0
        %2770 = vmatpush1.msra.mxu0 0.0
        %2771 = vmatprep.mubr.f32.mxu0 0.0
        %2772 = vmatmul.mubr.f32.gmra.mrb[0].mxu0 %v2402
        %v2773 = vpop.f32.mrb[0].mxu0
        %v2774 = vadd.f32 0.0, %v2773
        %v2775 = vpop.f32.mrb[0].mxu0
        %2776 = vmatprep.mubr.f32.mxu0 0.0
        %2777 = vmatmul.mubr.f32.gmra.mrb[0].mxu0 %v2405
        %v2778 = vpop.f32.mrb[0].mxu0
        %v2779 = vadd.f32 0.0, %v2778
        %v2780 = vpop.f32.mrb[0].mxu0
        %2781 = vdwg.mxu0
        %2782 = vmatprep.subr.mxu0 0.0
        %2783 = vmatpush1.msra.mxu0 %v2387
        %2784 = vmatprep.subr.mxu0 0.0
        %2785 = vmatpush1.msra.mxu0 %v2389
        %2786 = vmatprep.subr.mxu0 0.0
        %2787 = vmatpush1.msra.mxu0 0.0
        %2788 = vmatprep.subr.mxu0 0.0
        %2789 = vmatpush1.msra.mxu0 0.0
        %2790 = vmatprep.subr.mxu0 0.0
        %2791 = vmatpush1.msra.mxu0 0.0
        %2792 = vmatprep.subr.mxu0 0.0
        %2793 = vmatpush1.msra.mxu0 0.0
        %2794 = vmatprep.subr.mxu0 0.0
        %2795 = vmatpush1.msra.mxu0 0.0
        %2796 = vmatprep.subr.mxu0 0.0
        %2797 = vmatpush1.msra.mxu0 0.0
        %2798 = vmatprep.subr.mxu0 0.0
        %2799 = vmatpush1.msra.mxu0 0.0
        %2800 = vmatprep.subr.mxu0 0.0
        %2801 = vmatpush1.msra.mxu0 0.0
        %2802 = vmatprep.subr.mxu0 0.0
        %2803 = vmatpush1.msra.mxu0 0.0
        %2804 = vmatprep.subr.mxu0 0.0
        %2805 = vmatpush1.msra.mxu0 0.0
        %2806 = vmatprep.subr.mxu0 0.0
        %2807 = vmatpush1.msra.mxu0 0.0
        %2808 = vmatprep.subr.mxu0 0.0
        %2809 = vmatpush1.msra.mxu0 0.0
        %2810 = vmatprep.subr.mxu0 0.0
        %2811 = vmatpush1.msra.mxu0 0.0
        %2812 = vmatprep.subr.mxu0 0.0
        %2813 = vmatpush1.msra.mxu0 0.0
        %2814 = vmatprep.subr.mxu0 0.0
        %2815 = vmatpush1.msra.mxu0 0.0
        %2816 = vmatprep.subr.mxu0 0.0
        %2817 = vmatpush1.msra.mxu0 0.0
        %2818 = vmatprep.subr.mxu0 0.0
        %2819 = vmatpush1.msra.mxu0 0.0
        %2820 = vmatprep.subr.mxu0 0.0
        %2821 = vmatpush1.msra.mxu0 0.0
        %2822 = vmatprep.subr.mxu0 0.0
        %2823 = vmatpush1.msra.mxu0 0.0
        %2824 = vmatprep.subr.mxu0 0.0
        %2825 = vmatpush1.msra.mxu0 0.0
        %2826 = vmatprep.subr.mxu0 0.0
        %2827 = vmatpush1.msra.mxu0 0.0
        %2828 = vmatprep.subr.mxu0 0.0
        %2829 = vmatpush1.msra.mxu0 0.0
        %2830 = vmatprep.subr.mxu0 0.0
        %2831 = vmatpush1.msra.mxu0 0.0
        %2832 = vmatprep.subr.mxu0 0.0
        %2833 = vmatpush1.msra.mxu0 0.0
        %2834 = vmatprep.subr.mxu0 0.0
        %2835 = vmatpush1.msra.mxu0 0.0
        %2836 = vmatprep.subr.mxu0 0.0
        %2837 = vmatpush1.msra.mxu0 0.0
        %2838 = vmatprep.subr.mxu0 0.0
        %2839 = vmatpush1.msra.mxu0 0.0
        %2840 = vmatprep.subr.mxu0 0.0
        %2841 = vmatpush1.msra.mxu0 0.0
        %2842 = vmatprep.subr.mxu0 0.0
        %2843 = vmatpush1.msra.mxu0 0.0
        %2844 = vmatprep.subr.mxu0 0.0
        %2845 = vmatpush1.msra.mxu0 0.0
        %2846 = vmatprep.mubr.f32.mxu0 0.0
        %2847 = vmatmul.mubr.f32.gmra.mrb[0].mxu0 %v2402
        %v2848 = vpop.f32.mrb[0].mxu0
        %v2849 = vadd.f32 0.0, %v2848
        %v2850 = vpop.f32.mrb[0].mxu0
        %2851 = vmatprep.mubr.f32.mxu0 0.0
        %2852 = vmatmul.mubr.f32.gmra.mrb[0].mxu0 %v2405
        %v2853 = vpop.f32.mrb[0].mxu0
        %v2854 = vadd.f32 0.0, %v2853
        %v2855 = vpop.f32.mrb[0].mxu0
        %2856 = vdwg.mxu0
        %2857 = vmatprep.subr.mxu0 0.0
        %2858 = vmatpush1.msra.mxu0 %v2391
        %2859 = vmatprep.subr.mxu0 0.0
        %2860 = vmatpush1.msra.mxu0 %v2393
        %2861 = vmatprep.subr.mxu0 0.0
        %2862 = vmatpush1.msra.mxu0 0.0
        %2863 = vmatprep.subr.mxu0 0.0
        %2864 = vmatpush1.msra.mxu0 0.0
        %2865 = vmatprep.subr.mxu0 0.0
        %2866 = vmatpush1.msra.mxu0 0.0
        %2867 = vmatprep.subr.mxu0 0.0
        %2868 = vmatpush1.msra.mxu0 0.0
        %2869 = vmatprep.subr.mxu0 0.0
        %2870 = vmatpush1.msra.mxu0 0.0
        %2871 = vmatprep.subr.mxu0 0.0
        %2872 = vmatpush1.msra.mxu0 0.0
        %2873 = vmatprep.subr.mxu0 0.0
        %2874 = vmatpush1.msra.mxu0 0.0
        %2875 = vmatprep.subr.mxu0 0.0
        %2876 = vmatpush1.msra.mxu0 0.0
        %2877 = vmatprep.subr.mxu0 0.0
        %2878 = vmatpush1.msra.mxu0 0.0
        %2879 = vmatprep.subr.mxu0 0.0
        %2880 = vmatpush1.msra.mxu0 0.0
        %2881 = vmatprep.subr.mxu0 0.0
        %2882 = vmatpush1.msra.mxu0 0.0
        %2883 = vmatprep.subr.mxu0 0.0
        %2884 = vmatpush1.msra.mxu0 0.0
        %2885 = vmatprep.subr.mxu0 0.0
        %2886 = vmatpush1.msra.mxu0 0.0
        %2887 = vmatprep.subr.mxu0 0.0
        %2888 = vmatpush1.msra.mxu0 0.0
        %2889 = vmatprep.subr.mxu0 0.0
        %2890 = vmatpush1.msra.mxu0 0.0
        %2891 = vmatprep.subr.mxu0 0.0
        %2892 = vmatpush1.msra.mxu0 0.0
        %2893 = vmatprep.subr.mxu0 0.0
        %2894 = vmatpush1.msra.mxu0 0.0
        %2895 = vmatprep.subr.mxu0 0.0
        %2896 = vmatpush1.msra.mxu0 0.0
        %2897 = vmatprep.subr.mxu0 0.0
        %2898 = vmatpush1.msra.mxu0 0.0
        %2899 = vmatprep.subr.mxu0 0.0
        %2900 = vmatpush1.msra.mxu0 0.0
        %2901 = vmatprep.subr.mxu0 0.0
        %2902 = vmatpush1.msra.mxu0 0.0
        %2903 = vmatprep.subr.mxu0 0.0
        %2904 = vmatpush1.msra.mxu0 0.0
        %2905 = vmatprep.subr.mxu0 0.0
        %2906 = vmatpush1.msra.mxu0 0.0
        %2907 = vmatprep.subr.mxu0 0.0
        %2908 = vmatpush1.msra.mxu0 0.0
        %2909 = vmatprep.subr.mxu0 0.0
        %2910 = vmatpush1.msra.mxu0 0.0
        %2911 = vmatprep.subr.mxu0 0.0
        %2912 = vmatpush1.msra.mxu0 0.0
        %2913 = vmatprep.subr.mxu0 0.0
        %2914 = vmatpush1.msra.mxu0 0.0
        %2915 = vmatprep.subr.mxu0 0.0
        %2916 = vmatpush1.msra.mxu0 0.0
        %2917 = vmatprep.subr.mxu0 0.0
        %2918 = vmatpush1.msra.mxu0 0.0
        %2919 = vmatprep.subr.mxu0 0.0
        %2920 = vmatpush1.msra.mxu0 0.0
        %2921 = vmatprep.mubr.f32.mxu0 0.0
        %2922 = vmatmul.mubr.f32.gmra.mrb[0].mxu0 %v2402
        %v2923 = vpop.f32.mrb[0].mxu0
        %v2924 = vadd.f32 0.0, %v2923
        %v2925 = vpop.f32.mrb[0].mxu0
        %2926 = vmatprep.mubr.f32.mxu0 0.0
        %2927 = vmatmul.mubr.f32.gmra.mrb[0].mxu0 %v2405
        %v2928 = vpop.f32.mrb[0].mxu0
        %v2929 = vadd.f32 0.0, %v2928
        %v2930 = vpop.f32.mrb[0].mxu0
        %2931 = vdwg.mxu0
        %2932 = vmatprep.subr.mxu0 0.0
        %2933 = vmatpush1.msra.mxu0 %v2395
        %2934 = vmatprep.subr.mxu0 0.0
        %2935 = vmatpush1.msra.mxu0 %v2397
        %2936 = vmatprep.subr.mxu0 0.0
        %2937 = vmatpush1.msra.mxu0 0.0
        %2938 = vmatprep.subr.mxu0 0.0
        %2939 = vmatpush1.msra.mxu0 0.0
        %2940 = vmatprep.subr.mxu0 0.0
        %2941 = vmatpush1.msra.mxu0 0.0
        %2942 = vmatprep.subr.mxu0 0.0
        %2943 = vmatpush1.msra.mxu0 0.0
        %2944 = vmatprep.subr.mxu0 0.0
        %2945 = vmatpush1.msra.mxu0 0.0
        %2946 = vmatprep.subr.mxu0 0.0
        %2947 = vmatpush1.msra.mxu0 0.0
        %2948 = vmatprep.subr.mxu0 0.0
        %2949 = vmatpush1.msra.mxu0 0.0
        %2950 = vmatprep.subr.mxu0 0.0
        %2951 = vmatpush1.msra.mxu0 0.0
        %2952 = vmatprep.subr.mxu0 0.0
        %2953 = vmatpush1.msra.mxu0 0.0
        %2954 = vmatprep.subr.mxu0 0.0
        %2955 = vmatpush1.msra.mxu0 0.0
        %2956 = vmatprep.subr.mxu0 0.0
        %2957 = vmatpush1.msra.mxu0 0.0
        %2958 = vmatprep.subr.mxu0 0.0
        %2959 = vmatpush1.msra.mxu0 0.0
        %2960 = vmatprep.subr.mxu0 0.0
        %2961 = vmatpush1.msra.mxu0 0.0
        %2962 = vmatprep.subr.mxu0 0.0
        %2963 = vmatpush1.msra.mxu0 0.0
        %2964 = vmatprep.subr.mxu0 0.0
        %2965 = vmatpush1.msra.mxu0 0.0
        %2966 = vmatprep.subr.mxu0 0.0
        %2967 = vmatpush1.msra.mxu0 0.0
        %2968 = vmatprep.subr.mxu0 0.0
        %2969 = vmatpush1.msra.mxu0 0.0
        %2970 = vmatprep.subr.mxu0 0.0
        %2971 = vmatpush1.msra.mxu0 0.0
        %2972 = vmatprep.subr.mxu0 0.0
        %2973 = vmatpush1.msra.mxu0 0.0
        %2974 = vmatprep.subr.mxu0 0.0
        %2975 = vmatpush1.msra.mxu0 0.0
        %2976 = vmatprep.subr.mxu0 0.0
        %2977 = vmatpush1.msra.mxu0 0.0
        %2978 = vmatprep.subr.mxu0 0.0
        %2979 = vmatpush1.msra.mxu0 0.0
        %2980 = vmatprep.subr.mxu0 0.0
        %2981 = vmatpush1.msra.mxu0 0.0
        %2982 = vmatprep.subr.mxu0 0.0
        %2983 = vmatpush1.msra.mxu0 0.0
        %2984 = vmatprep.subr.mxu0 0.0
        %2985 = vmatpush1.msra.mxu0 0.0
        %2986 = vmatprep.subr.mxu0 0.0
        %2987 = vmatpush1.msra.mxu0 0.0
        %2988 = vmatprep.subr.mxu0 0.0
        %2989 = vmatpush1.msra.mxu0 0.0
        %2990 = vmatprep.subr.mxu0 0.0
        %2991 = vmatpush1.msra.mxu0 0.0
        %2992 = vmatprep.subr.mxu0 0.0
        %2993 = vmatpush1.msra.mxu0 0.0
        %2994 = vmatprep.subr.mxu0 0.0
        %2995 = vmatpush1.msra.mxu0 0.0
        %2996 = vmatprep.mubr.f32.mxu0 0.0
        %2997 = vmatmul.mubr.f32.gmra.mrb[0].mxu0 %v2402
        %v2998 = vpop.f32.mrb[0].mxu0
        %v2999 = vadd.f32 0.0, %v2998
        %v3000 = vpop.f32.mrb[0].mxu0
        %3001 = vmatprep.mubr.f32.mxu0 0.0
        %3002 = vmatmul.mubr.f32.gmra.mrb[0].mxu0 %v2405
        %v3003 = vpop.f32.mrb[0].mxu0
        %v3004 = vadd.f32 0.0, %v3003
        %v3005 = vpop.f32.mrb[0].mxu0
        %3006 = vdwg.mxu0
        %v3007 = vadd.f32 %v1833, %v2474
        %v3008 = vadd.f32 %v1838, %v2479
        %v3009 = vadd.f32 %v1908, %v2549
        %v3010 = vadd.f32 %v1913, %v2554
        %v3011 = vadd.f32 %v1983, %v2624
        %v3012 = vadd.f32 %v1988, %v2629
        %v3013 = vadd.f32 %v2058, %v2699
        %v3014 = vadd.f32 %v2063, %v2704
        %v3015 = vadd.f32 %v2133, %v2774
        %v3016 = vadd.f32 %v2138, %v2779
        %v3017 = vadd.f32 %v2208, %v2849
        %v3018 = vadd.f32 %v2213, %v2854
        %v3019 = vadd.f32 %v2283, %v2924
        %v3020 = vadd.f32 %v2288, %v2929
        %v3021 = vadd.f32 %v2358, %v2999
        %v3022 = vadd.f32 %v2363, %v3004
        %3023 = vrot.lane.b32.xlu0 %v1101, 2
        %v3024 = vpop.permute.xlu0 %3023
        %3025 = vrot.lane.b32.xlu0 %v1102, 2
        %v3026 = vpop.permute.xlu0 %3025
        %3027 = vrot.lane.b32.xlu0 %v1103, 2
        %v3028 = vpop.permute.xlu0 %3027
        %3029 = vrot.lane.b32.xlu0 %v1104, 2
        %v3030 = vpop.permute.xlu0 %3029
        %3031 = vrot.lane.b32.xlu0 %v1105, 2
        %v3032 = vpop.permute.xlu0 %3031
        %3033 = vrot.lane.b32.xlu0 %v1106, 2
        %v3034 = vpop.permute.xlu0 %3033
        %3035 = vrot.lane.b32.xlu0 %v1107, 2
        %v3036 = vpop.permute.xlu0 %3035
        %3037 = vrot.lane.b32.xlu0 %v1108, 2
        %v3038 = vpop.permute.xlu0 %3037
        %3039 = vrot.lane.b32.xlu0 %v1109, 2
        %v3040 = vpop.permute.xlu0 %3039
        %3041 = vrot.lane.b32.xlu0 %v1110, 2
        %v3042 = vpop.permute.xlu0 %3041
        %3043 = vrot.lane.b32.xlu0 %v1111, 2
        %v3044 = vpop.permute.xlu0 %3043
        %3045 = vrot.lane.b32.xlu0 %v1112, 2
        %v3046 = vpop.permute.xlu0 %3045
        %3047 = vrot.lane.b32.xlu0 %v1113, 2
        %v3048 = vpop.permute.xlu0 %3047
        %3049 = vrot.lane.b32.xlu0 %v1114, 2
        %v3050 = vpop.permute.xlu0 %3049
        %3051 = vrot.lane.b32.xlu0 %v1115, 2
        %v3052 = vpop.permute.xlu0 %3051
        %3053 = vrot.lane.b32.xlu0 %v1116, 2
        %v3054 = vpop.permute.xlu0 %3053
        %s3055 = scalar_lea.vmem [#allocation5], 32
        %v3056 = vld [vmem:[%s3055] sm:$0xff]
        %v3057 = vld [vmem:[%s3055 + $0x8] sm:$0xff]
        %v3059 = vsel %vm295, %v3056, 0
        %v3062 = vsel %vm295, %v3057, 0
        %3064 = vmatprep.subr.mxu0 0.0
        %3065 = vmatpush1.msra.mxu0 %v3024
        %3066 = vmatprep.subr.mxu0 0.0
        %3067 = vmatpush1.msra.mxu0 %v3026
        %3068 = vmatprep.subr.mxu0 0.0
        %3069 = vmatpush1.msra.mxu0 0.0
        %3070 = vmatprep.subr.mxu0 0.0
        %3071 = vmatpush1.msra.mxu0 0.0
        %3072 = vmatprep.subr.mxu0 0.0
        %3073 = vmatpush1.msra.mxu0 0.0
        %3074 = vmatprep.subr.mxu0 0.0
        %3075 = vmatpush1.msra.mxu0 0.0
        %3076 = vmatprep.subr.mxu0 0.0
        %3077 = vmatpush1.msra.mxu0 0.0
        %3078 = vmatprep.subr.mxu0 0.0
        %3079 = vmatpush1.msra.mxu0 0.0
        %3080 = vmatprep.subr.mxu0 0.0
        %3081 = vmatpush1.msra.mxu0 0.0
        %3082 = vmatprep.subr.mxu0 0.0
        %3083 = vmatpush1.msra.mxu0 0.0
        %3084 = vmatprep.subr.mxu0 0.0
        %3085 = vmatpush1.msra.mxu0 0.0
        %3086 = vmatprep.subr.mxu0 0.0
        %3087 = vmatpush1.msra.mxu0 0.0
        %3088 = vmatprep.subr.mxu0 0.0
        %3089 = vmatpush1.msra.mxu0 0.0
        %3090 = vmatprep.subr.mxu0 0.0
        %3091 = vmatpush1.msra.mxu0 0.0
        %3092 = vmatprep.subr.mxu0 0.0
        %3093 = vmatpush1.msra.mxu0 0.0
        %3094 = vmatprep.subr.mxu0 0.0
        %3095 = vmatpush1.msra.mxu0 0.0
        %3096 = vmatprep.subr.mxu0 0.0
        %3097 = vmatpush1.msra.mxu0 0.0
        %3098 = vmatprep.subr.mxu0 0.0
        %3099 = vmatpush1.msra.mxu0 0.0
        %3100 = vmatprep.subr.mxu0 0.0
        %3101 = vmatpush1.msra.mxu0 0.0
        %3102 = vmatprep.subr.mxu0 0.0
        %3103 = vmatpush1.msra.mxu0 0.0
        %3104 = vmatprep.subr.mxu0 0.0
        %3105 = vmatpush1.msra.mxu0 0.0
        %3106 = vmatprep.subr.mxu0 0.0
        %3107 = vmatpush1.msra.mxu0 0.0
        %3108 = vmatprep.subr.mxu0 0.0
        %3109 = vmatpush1.msra.mxu0 0.0
        %3110 = vmatprep.subr.mxu0 0.0
        %3111 = vmatpush1.msra.mxu0 0.0
        %3112 = vmatprep.subr.mxu0 0.0
        %3113 = vmatpush1.msra.mxu0 0.0
        %3114 = vmatprep.subr.mxu0 0.0
        %3115 = vmatpush1.msra.mxu0 0.0
        %3116 = vmatprep.subr.mxu0 0.0
        %3117 = vmatpush1.msra.mxu0 0.0
        %3118 = vmatprep.subr.mxu0 0.0
        %3119 = vmatpush1.msra.mxu0 0.0
        %3120 = vmatprep.subr.mxu0 0.0
        %3121 = vmatpush1.msra.mxu0 0.0
        %3122 = vmatprep.subr.mxu0 0.0
        %3123 = vmatpush1.msra.mxu0 0.0
        %3124 = vmatprep.subr.mxu0 0.0
        %3125 = vmatpush1.msra.mxu0 0.0
        %3126 = vmatprep.subr.mxu0 0.0
        %3127 = vmatpush1.msra.mxu0 0.0
        %3128 = vmatprep.mubr.f32.mxu0 0.0
        %3129 = vmatmul.mubr.f32.gmra.mrb[0].mxu0 %v3059
        %v3130 = vpop.f32.mrb[0].mxu0
        %v3131 = vadd.f32 0.0, %v3130
        %v3132 = vpop.f32.mrb[0].mxu0
        %3133 = vmatprep.mubr.f32.mxu0 0.0
        %3134 = vmatmul.mubr.f32.gmra.mrb[0].mxu0 %v3062
        %v3135 = vpop.f32.mrb[0].mxu0
        %v3136 = vadd.f32 0.0, %v3135
        %v3137 = vpop.f32.mrb[0].mxu0
        %3138 = vdwg.mxu0
        %3139 = vmatprep.subr.mxu0 0.0
        %3140 = vmatpush1.msra.mxu0 %v3028
        %3141 = vmatprep.subr.mxu0 0.0
        %3142 = vmatpush1.msra.mxu0 %v3030
        %3143 = vmatprep.subr.mxu0 0.0
        %3144 = vmatpush1.msra.mxu0 0.0
        %3145 = vmatprep.subr.mxu0 0.0
        %3146 = vmatpush1.msra.mxu0 0.0
        %3147 = vmatprep.subr.mxu0 0.0
        %3148 = vmatpush1.msra.mxu0 0.0
        %3149 = vmatprep.subr.mxu0 0.0
        %3150 = vmatpush1.msra.mxu0 0.0
        %3151 = vmatprep.subr.mxu0 0.0
        %3152 = vmatpush1.msra.mxu0 0.0
        %3153 = vmatprep.subr.mxu0 0.0
        %3154 = vmatpush1.msra.mxu0 0.0
        %3155 = vmatprep.subr.mxu0 0.0
        %3156 = vmatpush1.msra.mxu0 0.0
        %3157 = vmatprep.subr.mxu0 0.0
        %3158 = vmatpush1.msra.mxu0 0.0
        %3159 = vmatprep.subr.mxu0 0.0
        %3160 = vmatpush1.msra.mxu0 0.0
        %3161 = vmatprep.subr.mxu0 0.0
        %3162 = vmatpush1.msra.mxu0 0.0
        %3163 = vmatprep.subr.mxu0 0.0
        %3164 = vmatpush1.msra.mxu0 0.0
        %3165 = vmatprep.subr.mxu0 0.0
        %3166 = vmatpush1.msra.mxu0 0.0
        %3167 = vmatprep.subr.mxu0 0.0
        %3168 = vmatpush1.msra.mxu0 0.0
        %3169 = vmatprep.subr.mxu0 0.0
        %3170 = vmatpush1.msra.mxu0 0.0
        %3171 = vmatprep.subr.mxu0 0.0
        %3172 = vmatpush1.msra.mxu0 0.0
        %3173 = vmatprep.subr.mxu0 0.0
        %3174 = vmatpush1.msra.mxu0 0.0
        %3175 = vmatprep.subr.mxu0 0.0
        %3176 = vmatpush1.msra.mxu0 0.0
        %3177 = vmatprep.subr.mxu0 0.0
        %3178 = vmatpush1.msra.mxu0 0.0
        %3179 = vmatprep.subr.mxu0 0.0
        %3180 = vmatpush1.msra.mxu0 0.0
        %3181 = vmatprep.subr.mxu0 0.0
        %3182 = vmatpush1.msra.mxu0 0.0
        %3183 = vmatprep.subr.mxu0 0.0
        %3184 = vmatpush1.msra.mxu0 0.0
        %3185 = vmatprep.subr.mxu0 0.0
        %3186 = vmatpush1.msra.mxu0 0.0
        %3187 = vmatprep.subr.mxu0 0.0
        %3188 = vmatpush1.msra.mxu0 0.0
        %3189 = vmatprep.subr.mxu0 0.0
        %3190 = vmatpush1.msra.mxu0 0.0
        %3191 = vmatprep.subr.mxu0 0.0
        %3192 = vmatpush1.msra.mxu0 0.0
        %3193 = vmatprep.subr.mxu0 0.0
        %3194 = vmatpush1.msra.mxu0 0.0
        %3195 = vmatprep.subr.mxu0 0.0
        %3196 = vmatpush1.msra.mxu0 0.0
        %3197 = vmatprep.subr.mxu0 0.0
        %3198 = vmatpush1.msra.mxu0 0.0
        %3199 = vmatprep.subr.mxu0 0.0
        %3200 = vmatpush1.msra.mxu0 0.0
        %3201 = vmatprep.subr.mxu0 0.0
        %3202 = vmatpush1.msra.mxu0 0.0
        %3203 = vmatprep.mubr.f32.mxu0 0.0
        %3204 = vmatmul.mubr.f32.gmra.mrb[0].mxu0 %v3059
        %v3205 = vpop.f32.mrb[0].mxu0
        %v3206 = vadd.f32 0.0, %v3205
        %v3207 = vpop.f32.mrb[0].mxu0
        %3208 = vmatprep.mubr.f32.mxu0 0.0
        %3209 = vmatmul.mubr.f32.gmra.mrb[0].mxu0 %v3062
        %v3210 = vpop.f32.mrb[0].mxu0
        %v3211 = vadd.f32 0.0, %v3210
        %v3212 = vpop.f32.mrb[0].mxu0
        %3213 = vdwg.mxu0
        %3214 = vmatprep.subr.mxu0 0.0
        %3215 = vmatpush1.msra.mxu0 %v3032
        %3216 = vmatprep.subr.mxu0 0.0
        %3217 = vmatpush1.msra.mxu0 %v3034
        %3218 = vmatprep.subr.mxu0 0.0
        %3219 = vmatpush1.msra.mxu0 0.0
        %3220 = vmatprep.subr.mxu0 0.0
        %3221 = vmatpush1.msra.mxu0 0.0
        %3222 = vmatprep.subr.mxu0 0.0
        %3223 = vmatpush1.msra.mxu0 0.0
        %3224 = vmatprep.subr.mxu0 0.0
        %3225 = vmatpush1.msra.mxu0 0.0
        %3226 = vmatprep.subr.mxu0 0.0
        %3227 = vmatpush1.msra.mxu0 0.0
        %3228 = vmatprep.subr.mxu0 0.0
        %3229 = vmatpush1.msra.mxu0 0.0
        %3230 = vmatprep.subr.mxu0 0.0
        %3231 = vmatpush1.msra.mxu0 0.0
        %3232 = vmatprep.subr.mxu0 0.0
        %3233 = vmatpush1.msra.mxu0 0.0
        %3234 = vmatprep.subr.mxu0 0.0
        %3235 = vmatpush1.msra.mxu0 0.0
        %3236 = vmatprep.subr.mxu0 0.0
        %3237 = vmatpush1.msra.mxu0 0.0
        %3238 = vmatprep.subr.mxu0 0.0
        %3239 = vmatpush1.msra.mxu0 0.0
        %3240 = vmatprep.subr.mxu0 0.0
        %3241 = vmatpush1.msra.mxu0 0.0
        %3242 = vmatprep.subr.mxu0 0.0
        %3243 = vmatpush1.msra.mxu0 0.0
        %3244 = vmatprep.subr.mxu0 0.0
        %3245 = vmatpush1.msra.mxu0 0.0
        %3246 = vmatprep.subr.mxu0 0.0
        %3247 = vmatpush1.msra.mxu0 0.0
        %3248 = vmatprep.subr.mxu0 0.0
        %3249 = vmatpush1.msra.mxu0 0.0
        %3250 = vmatprep.subr.mxu0 0.0
        %3251 = vmatpush1.msra.mxu0 0.0
        %3252 = vmatprep.subr.mxu0 0.0
        %3253 = vmatpush1.msra.mxu0 0.0
        %3254 = vmatprep.subr.mxu0 0.0
        %3255 = vmatpush1.msra.mxu0 0.0
        %3256 = vmatprep.subr.mxu0 0.0
        %3257 = vmatpush1.msra.mxu0 0.0
        %3258 = vmatprep.subr.mxu0 0.0
        %3259 = vmatpush1.msra.mxu0 0.0
        %3260 = vmatprep.subr.mxu0 0.0
        %3261 = vmatpush1.msra.mxu0 0.0
        %3262 = vmatprep.subr.mxu0 0.0
        %3263 = vmatpush1.msra.mxu0 0.0
        %3264 = vmatprep.subr.mxu0 0.0
        %3265 = vmatpush1.msra.mxu0 0.0
        %3266 = vmatprep.subr.mxu0 0.0
        %3267 = vmatpush1.msra.mxu0 0.0
        %3268 = vmatprep.subr.mxu0 0.0
        %3269 = vmatpush1.msra.mxu0 0.0
        %3270 = vmatprep.subr.mxu0 0.0
        %3271 = vmatpush1.msra.mxu0 0.0
        %3272 = vmatprep.subr.mxu0 0.0
        %3273 = vmatpush1.msra.mxu0 0.0
        %3274 = vmatprep.subr.mxu0 0.0
        %3275 = vmatpush1.msra.mxu0 0.0
        %3276 = vmatprep.subr.mxu0 0.0
        %3277 = vmatpush1.msra.mxu0 0.0
        %3278 = vmatprep.mubr.f32.mxu0 0.0
        %3279 = vmatmul.mubr.f32.gmra.mrb[0].mxu0 %v3059
        %v3280 = vpop.f32.mrb[0].mxu0
        %v3281 = vadd.f32 0.0, %v3280
        %v3282 = vpop.f32.mrb[0].mxu0
        %3283 = vmatprep.mubr.f32.mxu0 0.0
        %3284 = vmatmul.mubr.f32.gmra.mrb[0].mxu0 %v3062
        %v3285 = vpop.f32.mrb[0].mxu0
        %v3286 = vadd.f32 0.0, %v3285
        %v3287 = vpop.f32.mrb[0].mxu0
        %3288 = vdwg.mxu0
        %3289 = vmatprep.subr.mxu0 0.0
        %3290 = vmatpush1.msra.mxu0 %v3036
        %3291 = vmatprep.subr.mxu0 0.0
        %3292 = vmatpush1.msra.mxu0 %v3038
        %3293 = vmatprep.subr.mxu0 0.0
        %3294 = vmatpush1.msra.mxu0 0.0
        %3295 = vmatprep.subr.mxu0 0.0
        %3296 = vmatpush1.msra.mxu0 0.0
        %3297 = vmatprep.subr.mxu0 0.0
        %3298 = vmatpush1.msra.mxu0 0.0
        %3299 = vmatprep.subr.mxu0 0.0
        %3300 = vmatpush1.msra.mxu0 0.0
        %3301 = vmatprep.subr.mxu0 0.0
        %3302 = vmatpush1.msra.mxu0 0.0
        %3303 = vmatprep.subr.mxu0 0.0
        %3304 = vmatpush1.msra.mxu0 0.0
        %3305 = vmatprep.subr.mxu0 0.0
        %3306 = vmatpush1.msra.mxu0 0.0
        %3307 = vmatprep.subr.mxu0 0.0
        %3308 = vmatpush1.msra.mxu0 0.0
        %3309 = vmatprep.subr.mxu0 0.0
        %3310 = vmatpush1.msra.mxu0 0.0
        %3311 = vmatprep.subr.mxu0 0.0
        %3312 = vmatpush1.msra.mxu0 0.0
        %3313 = vmatprep.subr.mxu0 0.0
        %3314 = vmatpush1.msra.mxu0 0.0
        %3315 = vmatprep.subr.mxu0 0.0
        %3316 = vmatpush1.msra.mxu0 0.0
        %3317 = vmatprep.subr.mxu0 0.0
        %3318 = vmatpush1.msra.mxu0 0.0
        %3319 = vmatprep.subr.mxu0 0.0
        %3320 = vmatpush1.msra.mxu0 0.0
        %3321 = vmatprep.subr.mxu0 0.0
        %3322 = vmatpush1.msra.mxu0 0.0
        %3323 = vmatprep.subr.mxu0 0.0
        %3324 = vmatpush1.msra.mxu0 0.0
        %3325 = vmatprep.subr.mxu0 0.0
        %3326 = vmatpush1.msra.mxu0 0.0
        %3327 = vmatprep.subr.mxu0 0.0
        %3328 = vmatpush1.msra.mxu0 0.0
        %3329 = vmatprep.subr.mxu0 0.0
        %3330 = vmatpush1.msra.mxu0 0.0
        %3331 = vmatprep.subr.mxu0 0.0
        %3332 = vmatpush1.msra.mxu0 0.0
        %3333 = vmatprep.subr.mxu0 0.0
        %3334 = vmatpush1.msra.mxu0 0.0
        %3335 = vmatprep.subr.mxu0 0.0
        %3336 = vmatpush1.msra.mxu0 0.0
        %3337 = vmatprep.subr.mxu0 0.0
        %3338 = vmatpush1.msra.mxu0 0.0
        %3339 = vmatprep.subr.mxu0 0.0
        %3340 = vmatpush1.msra.mxu0 0.0
        %3341 = vmatprep.subr.mxu0 0.0
        %3342 = vmatpush1.msra.mxu0 0.0
        %3343 = vmatprep.subr.mxu0 0.0
        %3344 = vmatpush1.msra.mxu0 0.0
        %3345 = vmatprep.subr.mxu0 0.0
        %3346 = vmatpush1.msra.mxu0 0.0
        %3347 = vmatprep.subr.mxu0 0.0
        %3348 = vmatpush1.msra.mxu0 0.0
        %3349 = vmatprep.subr.mxu0 0.0
        %3350 = vmatpush1.msra.mxu0 0.0
        %3351 = vmatprep.subr.mxu0 0.0
        %3352 = vmatpush1.msra.mxu0 0.0
        %3353 = vmatprep.mubr.f32.mxu0 0.0
        %3354 = vmatmul.mubr.f32.gmra.mrb[0].mxu0 %v3059
        %v3355 = vpop.f32.mrb[0].mxu0
        %v3356 = vadd.f32 0.0, %v3355
        %v3357 = vpop.f32.mrb[0].mxu0
        %3358 = vmatprep.mubr.f32.mxu0 0.0
        %3359 = vmatmul.mubr.f32.gmra.mrb[0].mxu0 %v3062
        %v3360 = vpop.f32.mrb[0].mxu0
        %v3361 = vadd.f32 0.0, %v3360
        %v3362 = vpop.f32.mrb[0].mxu0
        %3363 = vdwg.mxu0
        %3364 = vmatprep.subr.mxu0 0.0
        %3365 = vmatpush1.msra.mxu0 %v3040
        %3366 = vmatprep.subr.mxu0 0.0
        %3367 = vmatpush1.msra.mxu0 %v3042
        %3368 = vmatprep.subr.mxu0 0.0
        %3369 = vmatpush1.msra.mxu0 0.0
        %3370 = vmatprep.subr.mxu0 0.0
        %3371 = vmatpush1.msra.mxu0 0.0
        %3372 = vmatprep.subr.mxu0 0.0
        %3373 = vmatpush1.msra.mxu0 0.0
        %3374 = vmatprep.subr.mxu0 0.0
        %3375 = vmatpush1.msra.mxu0 0.0
        %3376 = vmatprep.subr.mxu0 0.0
        %3377 = vmatpush1.msra.mxu0 0.0
        %3378 = vmatprep.subr.mxu0 0.0
        %3379 = vmatpush1.msra.mxu0 0.0
        %3380 = vmatprep.subr.mxu0 0.0
        %3381 = vmatpush1.msra.mxu0 0.0
        %3382 = vmatprep.subr.mxu0 0.0
        %3383 = vmatpush1.msra.mxu0 0.0
        %3384 = vmatprep.subr.mxu0 0.0
        %3385 = vmatpush1.msra.mxu0 0.0
        %3386 = vmatprep.subr.mxu0 0.0
        %3387 = vmatpush1.msra.mxu0 0.0
        %3388 = vmatprep.subr.mxu0 0.0
        %3389 = vmatpush1.msra.mxu0 0.0
        %3390 = vmatprep.subr.mxu0 0.0
        %3391 = vmatpush1.msra.mxu0 0.0
        %3392 = vmatprep.subr.mxu0 0.0
        %3393 = vmatpush1.msra.mxu0 0.0
        %3394 = vmatprep.subr.mxu0 0.0
        %3395 = vmatpush1.msra.mxu0 0.0
        %3396 = vmatprep.subr.mxu0 0.0
        %3397 = vmatpush1.msra.mxu0 0.0
        %3398 = vmatprep.subr.mxu0 0.0
        %3399 = vmatpush1.msra.mxu0 0.0
        %3400 = vmatprep.subr.mxu0 0.0
        %3401 = vmatpush1.msra.mxu0 0.0
        %3402 = vmatprep.subr.mxu0 0.0
        %3403 = vmatpush1.msra.mxu0 0.0
        %3404 = vmatprep.subr.mxu0 0.0
        %3405 = vmatpush1.msra.mxu0 0.0
        %3406 = vmatprep.subr.mxu0 0.0
        %3407 = vmatpush1.msra.mxu0 0.0
        %3408 = vmatprep.subr.mxu0 0.0
        %3409 = vmatpush1.msra.mxu0 0.0
        %3410 = vmatprep.subr.mxu0 0.0
        %3411 = vmatpush1.msra.mxu0 0.0
        %3412 = vmatprep.subr.mxu0 0.0
        %3413 = vmatpush1.msra.mxu0 0.0
        %3414 = vmatprep.subr.mxu0 0.0
        %3415 = vmatpush1.msra.mxu0 0.0
        %3416 = vmatprep.subr.mxu0 0.0
        %3417 = vmatpush1.msra.mxu0 0.0
        %3418 = vmatprep.subr.mxu0 0.0
        %3419 = vmatpush1.msra.mxu0 0.0
        %3420 = vmatprep.subr.mxu0 0.0
        %3421 = vmatpush1.msra.mxu0 0.0
        %3422 = vmatprep.subr.mxu0 0.0
        %3423 = vmatpush1.msra.mxu0 0.0
        %3424 = vmatprep.subr.mxu0 0.0
        %3425 = vmatpush1.msra.mxu0 0.0
        %3426 = vmatprep.subr.mxu0 0.0
        %3427 = vmatpush1.msra.mxu0 0.0
        %3428 = vmatprep.mubr.f32.mxu0 0.0
        %3429 = vmatmul.mubr.f32.gmra.mrb[0].mxu0 %v3059
        %v3430 = vpop.f32.mrb[0].mxu0
        %v3431 = vadd.f32 0.0, %v3430
        %v3432 = vpop.f32.mrb[0].mxu0
        %3433 = vmatprep.mubr.f32.mxu0 0.0
        %3434 = vmatmul.mubr.f32.gmra.mrb[0].mxu0 %v3062
        %v3435 = vpop.f32.mrb[0].mxu0
        %v3436 = vadd.f32 0.0, %v3435
        %v3437 = vpop.f32.mrb[0].mxu0
        %3438 = vdwg.mxu0
        %3439 = vmatprep.subr.mxu0 0.0
        %3440 = vmatpush1.msra.mxu0 %v3044
        %3441 = vmatprep.subr.mxu0 0.0
        %3442 = vmatpush1.msra.mxu0 %v3046
        %3443 = vmatprep.subr.mxu0 0.0
        %3444 = vmatpush1.msra.mxu0 0.0
        %3445 = vmatprep.subr.mxu0 0.0
        %3446 = vmatpush1.msra.mxu0 0.0
        %3447 = vmatprep.subr.mxu0 0.0
        %3448 = vmatpush1.msra.mxu0 0.0
        %3449 = vmatprep.subr.mxu0 0.0
        %3450 = vmatpush1.msra.mxu0 0.0
        %3451 = vmatprep.subr.mxu0 0.0
        %3452 = vmatpush1.msra.mxu0 0.0
        %3453 = vmatprep.subr.mxu0 0.0
        %3454 = vmatpush1.msra.mxu0 0.0
        %3455 = vmatprep.subr.mxu0 0.0
        %3456 = vmatpush1.msra.mxu0 0.0
        %3457 = vmatprep.subr.mxu0 0.0
        %3458 = vmatpush1.msra.mxu0 0.0
        %3459 = vmatprep.subr.mxu0 0.0
        %3460 = vmatpush1.msra.mxu0 0.0
        %3461 = vmatprep.subr.mxu0 0.0
        %3462 = vmatpush1.msra.mxu0 0.0
        %3463 = vmatprep.subr.mxu0 0.0
        %3464 = vmatpush1.msra.mxu0 0.0
        %3465 = vmatprep.subr.mxu0 0.0
        %3466 = vmatpush1.msra.mxu0 0.0
        %3467 = vmatprep.subr.mxu0 0.0
        %3468 = vmatpush1.msra.mxu0 0.0
        %3469 = vmatprep.subr.mxu0 0.0
        %3470 = vmatpush1.msra.mxu0 0.0
        %3471 = vmatprep.subr.mxu0 0.0
        %3472 = vmatpush1.msra.mxu0 0.0
        %3473 = vmatprep.subr.mxu0 0.0
        %3474 = vmatpush1.msra.mxu0 0.0
        %3475 = vmatprep.subr.mxu0 0.0
        %3476 = vmatpush1.msra.mxu0 0.0
        %3477 = vmatprep.subr.mxu0 0.0
        %3478 = vmatpush1.msra.mxu0 0.0
        %3479 = vmatprep.subr.mxu0 0.0
        %3480 = vmatpush1.msra.mxu0 0.0
        %3481 = vmatprep.subr.mxu0 0.0
        %3482 = vmatpush1.msra.mxu0 0.0
        %3483 = vmatprep.subr.mxu0 0.0
        %3484 = vmatpush1.msra.mxu0 0.0
        %3485 = vmatprep.subr.mxu0 0.0
        %3486 = vmatpush1.msra.mxu0 0.0
        %3487 = vmatprep.subr.mxu0 0.0
        %3488 = vmatpush1.msra.mxu0 0.0
        %3489 = vmatprep.subr.mxu0 0.0
        %3490 = vmatpush1.msra.mxu0 0.0
        %3491 = vmatprep.subr.mxu0 0.0
        %3492 = vmatpush1.msra.mxu0 0.0
        %3493 = vmatprep.subr.mxu0 0.0
        %3494 = vmatpush1.msra.mxu0 0.0
        %3495 = vmatprep.subr.mxu0 0.0
        %3496 = vmatpush1.msra.mxu0 0.0
        %3497 = vmatprep.subr.mxu0 0.0
        %3498 = vmatpush1.msra.mxu0 0.0
        %3499 = vmatprep.subr.mxu0 0.0
        %3500 = vmatpush1.msra.mxu0 0.0
        %3501 = vmatprep.subr.mxu0 0.0
        %3502 = vmatpush1.msra.mxu0 0.0
        %3503 = vmatprep.mubr.f32.mxu0 0.0
        %3504 = vmatmul.mubr.f32.gmra.mrb[0].mxu0 %v3059
        %v3505 = vpop.f32.mrb[0].mxu0
        %v3506 = vadd.f32 0.0, %v3505
        %v3507 = vpop.f32.mrb[0].mxu0
        %3508 = vmatprep.mubr.f32.mxu0 0.0
        %3509 = vmatmul.mubr.f32.gmra.mrb[0].mxu0 %v3062
        %v3510 = vpop.f32.mrb[0].mxu0
        %v3511 = vadd.f32 0.0, %v3510
        %v3512 = vpop.f32.mrb[0].mxu0
        %3513 = vdwg.mxu0
        %3514 = vmatprep.subr.mxu0 0.0
        %3515 = vmatpush1.msra.mxu0 %v3048
        %3516 = vmatprep.subr.mxu0 0.0
        %3517 = vmatpush1.msra.mxu0 %v3050
        %3518 = vmatprep.subr.mxu0 0.0
        %3519 = vmatpush1.msra.mxu0 0.0
        %3520 = vmatprep.subr.mxu0 0.0
        %3521 = vmatpush1.msra.mxu0 0.0
        %3522 = vmatprep.subr.mxu0 0.0
        %3523 = vmatpush1.msra.mxu0 0.0
        %3524 = vmatprep.subr.mxu0 0.0
        %3525 = vmatpush1.msra.mxu0 0.0
        %3526 = vmatprep.subr.mxu0 0.0
        %3527 = vmatpush1.msra.mxu0 0.0
        %3528 = vmatprep.subr.mxu0 0.0
        %3529 = vmatpush1.msra.mxu0 0.0
        %3530 = vmatprep.subr.mxu0 0.0
        %3531 = vmatpush1.msra.mxu0 0.0
        %3532 = vmatprep.subr.mxu0 0.0
        %3533 = vmatpush1.msra.mxu0 0.0
        %3534 = vmatprep.subr.mxu0 0.0
        %3535 = vmatpush1.msra.mxu0 0.0
        %3536 = vmatprep.subr.mxu0 0.0
        %3537 = vmatpush1.msra.mxu0 0.0
        %3538 = vmatprep.subr.mxu0 0.0
        %3539 = vmatpush1.msra.mxu0 0.0
        %3540 = vmatprep.subr.mxu0 0.0
        %3541 = vmatpush1.msra.mxu0 0.0
        %3542 = vmatprep.subr.mxu0 0.0
        %3543 = vmatpush1.msra.mxu0 0.0
        %3544 = vmatprep.subr.mxu0 0.0
        %3545 = vmatpush1.msra.mxu0 0.0
        %3546 = vmatprep.subr.mxu0 0.0
        %3547 = vmatpush1.msra.mxu0 0.0
        %3548 = vmatprep.subr.mxu0 0.0
        %3549 = vmatpush1.msra.mxu0 0.0
        %3550 = vmatprep.subr.mxu0 0.0
        %3551 = vmatpush1.msra.mxu0 0.0
        %3552 = vmatprep.subr.mxu0 0.0
        %3553 = vmatpush1.msra.mxu0 0.0
        %3554 = vmatprep.subr.mxu0 0.0
        %3555 = vmatpush1.msra.mxu0 0.0
        %3556 = vmatprep.subr.mxu0 0.0
        %3557 = vmatpush1.msra.mxu0 0.0
        %3558 = vmatprep.subr.mxu0 0.0
        %3559 = vmatpush1.msra.mxu0 0.0
        %3560 = vmatprep.subr.mxu0 0.0
        %3561 = vmatpush1.msra.mxu0 0.0
        %3562 = vmatprep.subr.mxu0 0.0
        %3563 = vmatpush1.msra.mxu0 0.0
        %3564 = vmatprep.subr.mxu0 0.0
        %3565 = vmatpush1.msra.mxu0 0.0
        %3566 = vmatprep.subr.mxu0 0.0
        %3567 = vmatpush1.msra.mxu0 0.0
        %3568 = vmatprep.subr.mxu0 0.0
        %3569 = vmatpush1.msra.mxu0 0.0
        %3570 = vmatprep.subr.mxu0 0.0
        %3571 = vmatpush1.msra.mxu0 0.0
        %3572 = vmatprep.subr.mxu0 0.0
        %3573 = vmatpush1.msra.mxu0 0.0
        %3574 = vmatprep.subr.mxu0 0.0
        %3575 = vmatpush1.msra.mxu0 0.0
        %3576 = vmatprep.subr.mxu0 0.0
        %3577 = vmatpush1.msra.mxu0 0.0
        %3578 = vmatprep.mubr.f32.mxu0 0.0
        %3579 = vmatmul.mubr.f32.gmra.mrb[0].mxu0 %v3059
        %v3580 = vpop.f32.mrb[0].mxu0
        %v3581 = vadd.f32 0.0, %v3580
        %v3582 = vpop.f32.mrb[0].mxu0
        %3583 = vmatprep.mubr.f32.mxu0 0.0
        %3584 = vmatmul.mubr.f32.gmra.mrb[0].mxu0 %v3062
        %v3585 = vpop.f32.mrb[0].mxu0
        %v3586 = vadd.f32 0.0, %v3585
        %v3587 = vpop.f32.mrb[0].mxu0
        %3588 = vdwg.mxu0
        %3589 = vmatprep.subr.mxu0 0.0
        %3590 = vmatpush1.msra.mxu0 %v3052
        %3591 = vmatprep.subr.mxu0 0.0
        %3592 = vmatpush1.msra.mxu0 %v3054
        %3593 = vmatprep.subr.mxu0 0.0
        %3594 = vmatpush1.msra.mxu0 0.0
        %3595 = vmatprep.subr.mxu0 0.0
        %3596 = vmatpush1.msra.mxu0 0.0
        %3597 = vmatprep.subr.mxu0 0.0
        %3598 = vmatpush1.msra.mxu0 0.0
        %3599 = vmatprep.subr.mxu0 0.0
        %3600 = vmatpush1.msra.mxu0 0.0
        %3601 = vmatprep.subr.mxu0 0.0
        %3602 = vmatpush1.msra.mxu0 0.0
        %3603 = vmatprep.subr.mxu0 0.0
        %3604 = vmatpush1.msra.mxu0 0.0
        %3605 = vmatprep.subr.mxu0 0.0
        %3606 = vmatpush1.msra.mxu0 0.0
        %3607 = vmatprep.subr.mxu0 0.0
        %3608 = vmatpush1.msra.mxu0 0.0
        %3609 = vmatprep.subr.mxu0 0.0
        %3610 = vmatpush1.msra.mxu0 0.0
        %3611 = vmatprep.subr.mxu0 0.0
        %3612 = vmatpush1.msra.mxu0 0.0
        %3613 = vmatprep.subr.mxu0 0.0
        %3614 = vmatpush1.msra.mxu0 0.0
        %3615 = vmatprep.subr.mxu0 0.0
        %3616 = vmatpush1.msra.mxu0 0.0
        %3617 = vmatprep.subr.mxu0 0.0
        %3618 = vmatpush1.msra.mxu0 0.0
        %3619 = vmatprep.subr.mxu0 0.0
        %3620 = vmatpush1.msra.mxu0 0.0
        %3621 = vmatprep.subr.mxu0 0.0
        %3622 = vmatpush1.msra.mxu0 0.0
        %3623 = vmatprep.subr.mxu0 0.0
        %3624 = vmatpush1.msra.mxu0 0.0
        %3625 = vmatprep.subr.mxu0 0.0
        %3626 = vmatpush1.msra.mxu0 0.0
        %3627 = vmatprep.subr.mxu0 0.0
        %3628 = vmatpush1.msra.mxu0 0.0
        %3629 = vmatprep.subr.mxu0 0.0
        %3630 = vmatpush1.msra.mxu0 0.0
        %3631 = vmatprep.subr.mxu0 0.0
        %3632 = vmatpush1.msra.mxu0 0.0
        %3633 = vmatprep.subr.mxu0 0.0
        %3634 = vmatpush1.msra.mxu0 0.0
        %3635 = vmatprep.subr.mxu0 0.0
        %3636 = vmatpush1.msra.mxu0 0.0
        %3637 = vmatprep.subr.mxu0 0.0
        %3638 = vmatpush1.msra.mxu0 0.0
        %3639 = vmatprep.subr.mxu0 0.0
        %3640 = vmatpush1.msra.mxu0 0.0
        %3641 = vmatprep.subr.mxu0 0.0
        %3642 = vmatpush1.msra.mxu0 0.0
        %3643 = vmatprep.subr.mxu0 0.0
        %3644 = vmatpush1.msra.mxu0 0.0
        %3645 = vmatprep.subr.mxu0 0.0
        %3646 = vmatpush1.msra.mxu0 0.0
        %3647 = vmatprep.subr.mxu0 0.0
        %3648 = vmatpush1.msra.mxu0 0.0
        %3649 = vmatprep.subr.mxu0 0.0
        %3650 = vmatpush1.msra.mxu0 0.0
        %3651 = vmatprep.subr.mxu0 0.0
        %3652 = vmatpush1.msra.mxu0 0.0
        %3653 = vmatprep.mubr.f32.mxu0 0.0
        %3654 = vmatmul.mubr.f32.gmra.mrb[0].mxu0 %v3059
        %v3655 = vpop.f32.mrb[0].mxu0
        %v3656 = vadd.f32 0.0, %v3655
        %v3657 = vpop.f32.mrb[0].mxu0
        %3658 = vmatprep.mubr.f32.mxu0 0.0
        %3659 = vmatmul.mubr.f32.gmra.mrb[0].mxu0 %v3062
        %v3660 = vpop.f32.mrb[0].mxu0
        %v3661 = vadd.f32 0.0, %v3660
        %v3662 = vpop.f32.mrb[0].mxu0
        %3663 = vdwg.mxu0
        %v3664 = vadd.f32 %v3007, %v3131
        %v3665 = vadd.f32 %v3008, %v3136
        %v3666 = vadd.f32 %v3009, %v3206
        %v3667 = vadd.f32 %v3010, %v3211
        %v3668 = vadd.f32 %v3011, %v3281
        %v3669 = vadd.f32 %v3012, %v3286
        %v3670 = vadd.f32 %v3013, %v3356
        %v3671 = vadd.f32 %v3014, %v3361
        %v3672 = vadd.f32 %v3015, %v3431
        %v3673 = vadd.f32 %v3016, %v3436
        %v3674 = vadd.f32 %v3017, %v3506
        %v3675 = vadd.f32 %v3018, %v3511
        %v3676 = vadd.f32 %v3019, %v3581
        %v3677 = vadd.f32 %v3020, %v3586
        %v3678 = vadd.f32 %v3021, %v3656
        %v3679 = vadd.f32 %v3022, %v3661
        %3680 = vrot.lane.b32.xlu0 %v1101, 1
        %v3681 = vpop.permute.xlu0 %3680
        %3682 = vrot.lane.b32.xlu0 %v1102, 1
        %v3683 = vpop.permute.xlu0 %3682
        %3684 = vrot.lane.b32.xlu0 %v1103, 1
        %v3685 = vpop.permute.xlu0 %3684
        %3686 = vrot.lane.b32.xlu0 %v1104, 1
        %v3687 = vpop.permute.xlu0 %3686
        %3688 = vrot.lane.b32.xlu0 %v1105, 1
        %v3689 = vpop.permute.xlu0 %3688
        %3690 = vrot.lane.b32.xlu0 %v1106, 1
        %v3691 = vpop.permute.xlu0 %3690
        %3692 = vrot.lane.b32.xlu0 %v1107, 1
        %v3693 = vpop.permute.xlu0 %3692
        %3694 = vrot.lane.b32.xlu0 %v1108, 1
        %v3695 = vpop.permute.xlu0 %3694
        %3696 = vrot.lane.b32.xlu0 %v1109, 1
        %v3697 = vpop.permute.xlu0 %3696
        %3698 = vrot.lane.b32.xlu0 %v1110, 1
        %v3699 = vpop.permute.xlu0 %3698
        %3700 = vrot.lane.b32.xlu0 %v1111, 1
        %v3701 = vpop.permute.xlu0 %3700
        %3702 = vrot.lane.b32.xlu0 %v1112, 1
        %v3703 = vpop.permute.xlu0 %3702
        %3704 = vrot.lane.b32.xlu0 %v1113, 1
        %v3705 = vpop.permute.xlu0 %3704
        %3706 = vrot.lane.b32.xlu0 %v1114, 1
        %v3707 = vpop.permute.xlu0 %3706
        %3708 = vrot.lane.b32.xlu0 %v1115, 1
        %v3709 = vpop.permute.xlu0 %3708
        %3710 = vrot.lane.b32.xlu0 %v1116, 1
        %v3711 = vpop.permute.xlu0 %3710
        %s3712 = scalar_lea.vmem [#allocation5], 48
        %v3713 = vld [vmem:[%s3712] sm:$0xff]
        %v3714 = vld [vmem:[%s3712 + $0x8] sm:$0xff]
        %v3716 = vsel %vm295, %v3713, 0
        %v3719 = vsel %vm295, %v3714, 0
        %3721 = vmatprep.subr.mxu0 0.0
        %3722 = vmatpush1.msra.mxu0 %v3681
        %3723 = vmatprep.subr.mxu0 0.0
        %3724 = vmatpush1.msra.mxu0 %v3683
        %3725 = vmatprep.subr.mxu0 0.0
        %3726 = vmatpush1.msra.mxu0 0.0
        %3727 = vmatprep.subr.mxu0 0.0
        %3728 = vmatpush1.msra.mxu0 0.0
        %3729 = vmatprep.subr.mxu0 0.0
        %3730 = vmatpush1.msra.mxu0 0.0
        %3731 = vmatprep.subr.mxu0 0.0
        %3732 = vmatpush1.msra.mxu0 0.0
        %3733 = vmatprep.subr.mxu0 0.0
        %3734 = vmatpush1.msra.mxu0 0.0
        %3735 = vmatprep.subr.mxu0 0.0
        %3736 = vmatpush1.msra.mxu0 0.0
        %3737 = vmatprep.subr.mxu0 0.0
        %3738 = vmatpush1.msra.mxu0 0.0
        %3739 = vmatprep.subr.mxu0 0.0
        %3740 = vmatpush1.msra.mxu0 0.0
        %3741 = vmatprep.subr.mxu0 0.0
        %3742 = vmatpush1.msra.mxu0 0.0
        %3743 = vmatprep.subr.mxu0 0.0
        %3744 = vmatpush1.msra.mxu0 0.0
        %3745 = vmatprep.subr.mxu0 0.0
        %3746 = vmatpush1.msra.mxu0 0.0
        %3747 = vmatprep.subr.mxu0 0.0
        %3748 = vmatpush1.msra.mxu0 0.0
        %3749 = vmatprep.subr.mxu0 0.0
        %3750 = vmatpush1.msra.mxu0 0.0
        %3751 = vmatprep.subr.mxu0 0.0
        %3752 = vmatpush1.msra.mxu0 0.0
        %3753 = vmatprep.subr.mxu0 0.0
        %3754 = vmatpush1.msra.mxu0 0.0
        %3755 = vmatprep.subr.mxu0 0.0
        %3756 = vmatpush1.msra.mxu0 0.0
        %3757 = vmatprep.subr.mxu0 0.0
        %3758 = vmatpush1.msra.mxu0 0.0
        %3759 = vmatprep.subr.mxu0 0.0
        %3760 = vmatpush1.msra.mxu0 0.0
        %3761 = vmatprep.subr.mxu0 0.0
        %3762 = vmatpush1.msra.mxu0 0.0
        %3763 = vmatprep.subr.mxu0 0.0
        %3764 = vmatpush1.msra.mxu0 0.0
        %3765 = vmatprep.subr.mxu0 0.0
        %3766 = vmatpush1.msra.mxu0 0.0
        %3767 = vmatprep.subr.mxu0 0.0
        %3768 = vmatpush1.msra.mxu0 0.0
        %3769 = vmatprep.subr.mxu0 0.0
        %3770 = vmatpush1.msra.mxu0 0.0
        %3771 = vmatprep.subr.mxu0 0.0
        %3772 = vmatpush1.msra.mxu0 0.0
        %3773 = vmatprep.subr.mxu0 0.0
        %3774 = vmatpush1.msra.mxu0 0.0
        %3775 = vmatprep.subr.mxu0 0.0
        %3776 = vmatpush1.msra.mxu0 0.0
        %3777 = vmatprep.subr.mxu0 0.0
        %3778 = vmatpush1.msra.mxu0 0.0
        %3779 = vmatprep.subr.mxu0 0.0
        %3780 = vmatpush1.msra.mxu0 0.0
        %3781 = vmatprep.subr.mxu0 0.0
        %3782 = vmatpush1.msra.mxu0 0.0
        %3783 = vmatprep.subr.mxu0 0.0
        %3784 = vmatpush1.msra.mxu0 0.0
        %3785 = vmatprep.mubr.f32.mxu0 0.0
        %3786 = vmatmul.mubr.f32.gmra.mrb[0].mxu0 %v3716
        %v3787 = vpop.f32.mrb[0].mxu0
        %v3788 = vadd.f32 0.0, %v3787
        %v3789 = vpop.f32.mrb[0].mxu0
        %3790 = vmatprep.mubr.f32.mxu0 0.0
        %3791 = vmatmul.mubr.f32.gmra.mrb[0].mxu0 %v3719
        %v3792 = vpop.f32.mrb[0].mxu0
        %v3793 = vadd.f32 0.0, %v3792
        %v3794 = vpop.f32.mrb[0].mxu0
        %3795 = vdwg.mxu0
        %3796 = vmatprep.subr.mxu0 0.0
        %3797 = vmatpush1.msra.mxu0 %v3685
        %3798 = vmatprep.subr.mxu0 0.0
        %3799 = vmatpush1.msra.mxu0 %v3687
        %3800 = vmatprep.subr.mxu0 0.0
        %3801 = vmatpush1.msra.mxu0 0.0
        %3802 = vmatprep.subr.mxu0 0.0
        %3803 = vmatpush1.msra.mxu0 0.0
        %3804 = vmatprep.subr.mxu0 0.0
        %3805 = vmatpush1.msra.mxu0 0.0
        %3806 = vmatprep.subr.mxu0 0.0
        %3807 = vmatpush1.msra.mxu0 0.0
        %3808 = vmatprep.subr.mxu0 0.0
        %3809 = vmatpush1.msra.mxu0 0.0
        %3810 = vmatprep.subr.mxu0 0.0
        %3811 = vmatpush1.msra.mxu0 0.0
        %3812 = vmatprep.subr.mxu0 0.0
        %3813 = vmatpush1.msra.mxu0 0.0
        %3814 = vmatprep.subr.mxu0 0.0
        %3815 = vmatpush1.msra.mxu0 0.0
        %3816 = vmatprep.subr.mxu0 0.0
        %3817 = vmatpush1.msra.mxu0 0.0
        %3818 = vmatprep.subr.mxu0 0.0
        %3819 = vmatpush1.msra.mxu0 0.0
        %3820 = vmatprep.subr.mxu0 0.0
        %3821 = vmatpush1.msra.mxu0 0.0
        %3822 = vmatprep.subr.mxu0 0.0
        %3823 = vmatpush1.msra.mxu0 0.0
        %3824 = vmatprep.subr.mxu0 0.0
        %3825 = vmatpush1.msra.mxu0 0.0
        %3826 = vmatprep.subr.mxu0 0.0
        %3827 = vmatpush1.msra.mxu0 0.0
        %3828 = vmatprep.subr.mxu0 0.0
        %3829 = vmatpush1.msra.mxu0 0.0
        %3830 = vmatprep.subr.mxu0 0.0
        %3831 = vmatpush1.msra.mxu0 0.0
        %3832 = vmatprep.subr.mxu0 0.0
        %3833 = vmatpush1.msra.mxu0 0.0
        %3834 = vmatprep.subr.mxu0 0.0
        %3835 = vmatpush1.msra.mxu0 0.0
        %3836 = vmatprep.subr.mxu0 0.0
        %3837 = vmatpush1.msra.mxu0 0.0
        %3838 = vmatprep.subr.mxu0 0.0
        %3839 = vmatpush1.msra.mxu0 0.0
        %3840 = vmatprep.subr.mxu0 0.0
        %3841 = vmatpush1.msra.mxu0 0.0
        %3842 = vmatprep.subr.mxu0 0.0
        %3843 = vmatpush1.msra.mxu0 0.0
        %3844 = vmatprep.subr.mxu0 0.0
        %3845 = vmatpush1.msra.mxu0 0.0
        %3846 = vmatprep.subr.mxu0 0.0
        %3847 = vmatpush1.msra.mxu0 0.0
        %3848 = vmatprep.subr.mxu0 0.0
        %3849 = vmatpush1.msra.mxu0 0.0
        %3850 = vmatprep.subr.mxu0 0.0
        %3851 = vmatpush1.msra.mxu0 0.0
        %3852 = vmatprep.subr.mxu0 0.0
        %3853 = vmatpush1.msra.mxu0 0.0
        %3854 = vmatprep.subr.mxu0 0.0
        %3855 = vmatpush1.msra.mxu0 0.0
        %3856 = vmatprep.subr.mxu0 0.0
        %3857 = vmatpush1.msra.mxu0 0.0
        %3858 = vmatprep.subr.mxu0 0.0
        %3859 = vmatpush1.msra.mxu0 0.0
        %3860 = vmatprep.mubr.f32.mxu0 0.0
        %3861 = vmatmul.mubr.f32.gmra.mrb[0].mxu0 %v3716
        %v3862 = vpop.f32.mrb[0].mxu0
        %v3863 = vadd.f32 0.0, %v3862
        %v3864 = vpop.f32.mrb[0].mxu0
        %3865 = vmatprep.mubr.f32.mxu0 0.0
        %3866 = vmatmul.mubr.f32.gmra.mrb[0].mxu0 %v3719
        %v3867 = vpop.f32.mrb[0].mxu0
        %v3868 = vadd.f32 0.0, %v3867
        %v3869 = vpop.f32.mrb[0].mxu0
        %3870 = vdwg.mxu0
        %3871 = vmatprep.subr.mxu0 0.0
        %3872 = vmatpush1.msra.mxu0 %v3689
        %3873 = vmatprep.subr.mxu0 0.0
        %3874 = vmatpush1.msra.mxu0 %v3691
        %3875 = vmatprep.subr.mxu0 0.0
        %3876 = vmatpush1.msra.mxu0 0.0
        %3877 = vmatprep.subr.mxu0 0.0
        %3878 = vmatpush1.msra.mxu0 0.0
        %3879 = vmatprep.subr.mxu0 0.0
        %3880 = vmatpush1.msra.mxu0 0.0
        %3881 = vmatprep.subr.mxu0 0.0
        %3882 = vmatpush1.msra.mxu0 0.0
        %3883 = vmatprep.subr.mxu0 0.0
        %3884 = vmatpush1.msra.mxu0 0.0
        %3885 = vmatprep.subr.mxu0 0.0
        %3886 = vmatpush1.msra.mxu0 0.0
        %3887 = vmatprep.subr.mxu0 0.0
        %3888 = vmatpush1.msra.mxu0 0.0
        %3889 = vmatprep.subr.mxu0 0.0
        %3890 = vmatpush1.msra.mxu0 0.0
        %3891 = vmatprep.subr.mxu0 0.0
        %3892 = vmatpush1.msra.mxu0 0.0
        %3893 = vmatprep.subr.mxu0 0.0
        %3894 = vmatpush1.msra.mxu0 0.0
        %3895 = vmatprep.subr.mxu0 0.0
        %3896 = vmatpush1.msra.mxu0 0.0
        %3897 = vmatprep.subr.mxu0 0.0
        %3898 = vmatpush1.msra.mxu0 0.0
        %3899 = vmatprep.subr.mxu0 0.0
        %3900 = vmatpush1.msra.mxu0 0.0
        %3901 = vmatprep.subr.mxu0 0.0
        %3902 = vmatpush1.msra.mxu0 0.0
        %3903 = vmatprep.subr.mxu0 0.0
        %3904 = vmatpush1.msra.mxu0 0.0
        %3905 = vmatprep.subr.mxu0 0.0
        %3906 = vmatpush1.msra.mxu0 0.0
        %3907 = vmatprep.subr.mxu0 0.0
        %3908 = vmatpush1.msra.mxu0 0.0
        %3909 = vmatprep.subr.mxu0 0.0
        %3910 = vmatpush1.msra.mxu0 0.0
        %3911 = vmatprep.subr.mxu0 0.0
        %3912 = vmatpush1.msra.mxu0 0.0
        %3913 = vmatprep.subr.mxu0 0.0
        %3914 = vmatpush1.msra.mxu0 0.0
        %3915 = vmatprep.subr.mxu0 0.0
        %3916 = vmatpush1.msra.mxu0 0.0
        %3917 = vmatprep.subr.mxu0 0.0
        %3918 = vmatpush1.msra.mxu0 0.0
        %3919 = vmatprep.subr.mxu0 0.0
        %3920 = vmatpush1.msra.mxu0 0.0
        %3921 = vmatprep.subr.mxu0 0.0
        %3922 = vmatpush1.msra.mxu0 0.0
        %3923 = vmatprep.subr.mxu0 0.0
        %3924 = vmatpush1.msra.mxu0 0.0
        %3925 = vmatprep.subr.mxu0 0.0
        %3926 = vmatpush1.msra.mxu0 0.0
        %3927 = vmatprep.subr.mxu0 0.0
        %3928 = vmatpush1.msra.mxu0 0.0
        %3929 = vmatprep.subr.mxu0 0.0
        %3930 = vmatpush1.msra.mxu0 0.0
        %3931 = vmatprep.subr.mxu0 0.0
        %3932 = vmatpush1.msra.mxu0 0.0
        %3933 = vmatprep.subr.mxu0 0.0
        %3934 = vmatpush1.msra.mxu0 0.0
        %3935 = vmatprep.mubr.f32.mxu0 0.0
        %3936 = vmatmul.mubr.f32.gmra.mrb[0].mxu0 %v3716
        %v3937 = vpop.f32.mrb[0].mxu0
        %v3938 = vadd.f32 0.0, %v3937
        %v3939 = vpop.f32.mrb[0].mxu0
        %3940 = vmatprep.mubr.f32.mxu0 0.0
        %3941 = vmatmul.mubr.f32.gmra.mrb[0].mxu0 %v3719
        %v3942 = vpop.f32.mrb[0].mxu0
        %v3943 = vadd.f32 0.0, %v3942
        %v3944 = vpop.f32.mrb[0].mxu0
        %3945 = vdwg.mxu0
        %3946 = vmatprep.subr.mxu0 0.0
        %3947 = vmatpush1.msra.mxu0 %v3693
        %3948 = vmatprep.subr.mxu0 0.0
        %3949 = vmatpush1.msra.mxu0 %v3695
        %3950 = vmatprep.subr.mxu0 0.0
        %3951 = vmatpush1.msra.mxu0 0.0
        %3952 = vmatprep.subr.mxu0 0.0
        %3953 = vmatpush1.msra.mxu0 0.0
        %3954 = vmatprep.subr.mxu0 0.0
        %3955 = vmatpush1.msra.mxu0 0.0
        %3956 = vmatprep.subr.mxu0 0.0
        %3957 = vmatpush1.msra.mxu0 0.0
        %3958 = vmatprep.subr.mxu0 0.0
        %3959 = vmatpush1.msra.mxu0 0.0
        %3960 = vmatprep.subr.mxu0 0.0
        %3961 = vmatpush1.msra.mxu0 0.0
        %3962 = vmatprep.subr.mxu0 0.0
        %3963 = vmatpush1.msra.mxu0 0.0
        %3964 = vmatprep.subr.mxu0 0.0
        %3965 = vmatpush1.msra.mxu0 0.0
        %3966 = vmatprep.subr.mxu0 0.0
        %3967 = vmatpush1.msra.mxu0 0.0
        %3968 = vmatprep.subr.mxu0 0.0
        %3969 = vmatpush1.msra.mxu0 0.0
        %3970 = vmatprep.subr.mxu0 0.0
        %3971 = vmatpush1.msra.mxu0 0.0
        %3972 = vmatprep.subr.mxu0 0.0
        %3973 = vmatpush1.msra.mxu0 0.0
        %3974 = vmatprep.subr.mxu0 0.0
        %3975 = vmatpush1.msra.mxu0 0.0
        %3976 = vmatprep.subr.mxu0 0.0
        %3977 = vmatpush1.msra.mxu0 0.0
        %3978 = vmatprep.subr.mxu0 0.0
        %3979 = vmatpush1.msra.mxu0 0.0
        %3980 = vmatprep.subr.mxu0 0.0
        %3981 = vmatpush1.msra.mxu0 0.0
        %3982 = vmatprep.subr.mxu0 0.0
        %3983 = vmatpush1.msra.mxu0 0.0
        %3984 = vmatprep.subr.mxu0 0.0
        %3985 = vmatpush1.msra.mxu0 0.0
        %3986 = vmatprep.subr.mxu0 0.0
        %3987 = vmatpush1.msra.mxu0 0.0
        %3988 = vmatprep.subr.mxu0 0.0
        %3989 = vmatpush1.msra.mxu0 0.0
        %3990 = vmatprep.subr.mxu0 0.0
        %3991 = vmatpush1.msra.mxu0 0.0
        %3992 = vmatprep.subr.mxu0 0.0
        %3993 = vmatpush1.msra.mxu0 0.0
        %3994 = vmatprep.subr.mxu0 0.0
        %3995 = vmatpush1.msra.mxu0 0.0
        %3996 = vmatprep.subr.mxu0 0.0
        %3997 = vmatpush1.msra.mxu0 0.0
        %3998 = vmatprep.subr.mxu0 0.0
        %3999 = vmatpush1.msra.mxu0 0.0
        %4000 = vmatprep.subr.mxu0 0.0
        %4001 = vmatpush1.msra.mxu0 0.0
        %4002 = vmatprep.subr.mxu0 0.0
        %4003 = vmatpush1.msra.mxu0 0.0
        %4004 = vmatprep.subr.mxu0 0.0
        %4005 = vmatpush1.msra.mxu0 0.0
        %4006 = vmatprep.subr.mxu0 0.0
        %4007 = vmatpush1.msra.mxu0 0.0
        %4008 = vmatprep.subr.mxu0 0.0
        %4009 = vmatpush1.msra.mxu0 0.0
        %4010 = vmatprep.mubr.f32.mxu0 0.0
        %4011 = vmatmul.mubr.f32.gmra.mrb[0].mxu0 %v3716
        %v4012 = vpop.f32.mrb[0].mxu0
        %v4013 = vadd.f32 0.0, %v4012
        %v4014 = vpop.f32.mrb[0].mxu0
        %4015 = vmatprep.mubr.f32.mxu0 0.0
        %4016 = vmatmul.mubr.f32.gmra.mrb[0].mxu0 %v3719
        %v4017 = vpop.f32.mrb[0].mxu0
        %v4018 = vadd.f32 0.0, %v4017
        %v4019 = vpop.f32.mrb[0].mxu0
        %4020 = vdwg.mxu0
        %4021 = vmatprep.subr.mxu0 0.0
        %4022 = vmatpush1.msra.mxu0 %v3697
        %4023 = vmatprep.subr.mxu0 0.0
        %4024 = vmatpush1.msra.mxu0 %v3699
        %4025 = vmatprep.subr.mxu0 0.0
        %4026 = vmatpush1.msra.mxu0 0.0
        %4027 = vmatprep.subr.mxu0 0.0
        %4028 = vmatpush1.msra.mxu0 0.0
        %4029 = vmatprep.subr.mxu0 0.0
        %4030 = vmatpush1.msra.mxu0 0.0
        %4031 = vmatprep.subr.mxu0 0.0
        %4032 = vmatpush1.msra.mxu0 0.0
        %4033 = vmatprep.subr.mxu0 0.0
        %4034 = vmatpush1.msra.mxu0 0.0
        %4035 = vmatprep.subr.mxu0 0.0
        %4036 = vmatpush1.msra.mxu0 0.0
        %4037 = vmatprep.subr.mxu0 0.0
        %4038 = vmatpush1.msra.mxu0 0.0
        %4039 = vmatprep.subr.mxu0 0.0
        %4040 = vmatpush1.msra.mxu0 0.0
        %4041 = vmatprep.subr.mxu0 0.0
        %4042 = vmatpush1.msra.mxu0 0.0
        %4043 = vmatprep.subr.mxu0 0.0
        %4044 = vmatpush1.msra.mxu0 0.0
        %4045 = vmatprep.subr.mxu0 0.0
        %4046 = vmatpush1.msra.mxu0 0.0
        %4047 = vmatprep.subr.mxu0 0.0
        %4048 = vmatpush1.msra.mxu0 0.0
        %4049 = vmatprep.subr.mxu0 0.0
        %4050 = vmatpush1.msra.mxu0 0.0
        %4051 = vmatprep.subr.mxu0 0.0
        %4052 = vmatpush1.msra.mxu0 0.0
        %4053 = vmatprep.subr.mxu0 0.0
        %4054 = vmatpush1.msra.mxu0 0.0
        %4055 = vmatprep.subr.mxu0 0.0
        %4056 = vmatpush1.msra.mxu0 0.0
        %4057 = vmatprep.subr.mxu0 0.0
        %4058 = vmatpush1.msra.mxu0 0.0
        %4059 = vmatprep.subr.mxu0 0.0
        %4060 = vmatpush1.msra.mxu0 0.0
        %4061 = vmatprep.subr.mxu0 0.0
        %4062 = vmatpush1.msra.mxu0 0.0
        %4063 = vmatprep.subr.mxu0 0.0
        %4064 = vmatpush1.msra.mxu0 0.0
        %4065 = vmatprep.subr.mxu0 0.0
        %4066 = vmatpush1.msra.mxu0 0.0
        %4067 = vmatprep.subr.mxu0 0.0
        %4068 = vmatpush1.msra.mxu0 0.0
        %4069 = vmatprep.subr.mxu0 0.0
        %4070 = vmatpush1.msra.mxu0 0.0
        %4071 = vmatprep.subr.mxu0 0.0
        %4072 = vmatpush1.msra.mxu0 0.0
        %4073 = vmatprep.subr.mxu0 0.0
        %4074 = vmatpush1.msra.mxu0 0.0
        %4075 = vmatprep.subr.mxu0 0.0
        %4076 = vmatpush1.msra.mxu0 0.0
        %4077 = vmatprep.subr.mxu0 0.0
        %4078 = vmatpush1.msra.mxu0 0.0
        %4079 = vmatprep.subr.mxu0 0.0
        %4080 = vmatpush1.msra.mxu0 0.0
        %4081 = vmatprep.subr.mxu0 0.0
        %4082 = vmatpush1.msra.mxu0 0.0
        %4083 = vmatprep.subr.mxu0 0.0
        %4084 = vmatpush1.msra.mxu0 0.0
        %4085 = vmatprep.mubr.f32.mxu0 0.0
        %4086 = vmatmul.mubr.f32.gmra.mrb[0].mxu0 %v3716
        %v4087 = vpop.f32.mrb[0].mxu0
        %v4088 = vadd.f32 0.0, %v4087
        %v4089 = vpop.f32.mrb[0].mxu0
        %4090 = vmatprep.mubr.f32.mxu0 0.0
        %4091 = vmatmul.mubr.f32.gmra.mrb[0].mxu0 %v3719
        %v4092 = vpop.f32.mrb[0].mxu0
        %v4093 = vadd.f32 0.0, %v4092
        %v4094 = vpop.f32.mrb[0].mxu0
        %4095 = vdwg.mxu0
        %4096 = vmatprep.subr.mxu0 0.0
        %4097 = vmatpush1.msra.mxu0 %v3701
        %4098 = vmatprep.subr.mxu0 0.0
        %4099 = vmatpush1.msra.mxu0 %v3703
        %4100 = vmatprep.subr.mxu0 0.0
        %4101 = vmatpush1.msra.mxu0 0.0
        %4102 = vmatprep.subr.mxu0 0.0
        %4103 = vmatpush1.msra.mxu0 0.0
        %4104 = vmatprep.subr.mxu0 0.0
        %4105 = vmatpush1.msra.mxu0 0.0
        %4106 = vmatprep.subr.mxu0 0.0
        %4107 = vmatpush1.msra.mxu0 0.0
        %4108 = vmatprep.subr.mxu0 0.0
        %4109 = vmatpush1.msra.mxu0 0.0
        %4110 = vmatprep.subr.mxu0 0.0
        %4111 = vmatpush1.msra.mxu0 0.0
        %4112 = vmatprep.subr.mxu0 0.0
        %4113 = vmatpush1.msra.mxu0 0.0
        %4114 = vmatprep.subr.mxu0 0.0
        %4115 = vmatpush1.msra.mxu0 0.0
        %4116 = vmatprep.subr.mxu0 0.0
        %4117 = vmatpush1.msra.mxu0 0.0
        %4118 = vmatprep.subr.mxu0 0.0
        %4119 = vmatpush1.msra.mxu0 0.0
        %4120 = vmatprep.subr.mxu0 0.0
        %4121 = vmatpush1.msra.mxu0 0.0
        %4122 = vmatprep.subr.mxu0 0.0
        %4123 = vmatpush1.msra.mxu0 0.0
        %4124 = vmatprep.subr.mxu0 0.0
        %4125 = vmatpush1.msra.mxu0 0.0
        %4126 = vmatprep.subr.mxu0 0.0
        %4127 = vmatpush1.msra.mxu0 0.0
        %4128 = vmatprep.subr.mxu0 0.0
        %4129 = vmatpush1.msra.mxu0 0.0
        %4130 = vmatprep.subr.mxu0 0.0
        %4131 = vmatpush1.msra.mxu0 0.0
        %4132 = vmatprep.subr.mxu0 0.0
        %4133 = vmatpush1.msra.mxu0 0.0
        %4134 = vmatprep.subr.mxu0 0.0
        %4135 = vmatpush1.msra.mxu0 0.0
        %4136 = vmatprep.subr.mxu0 0.0
        %4137 = vmatpush1.msra.mxu0 0.0
        %4138 = vmatprep.subr.mxu0 0.0
        %4139 = vmatpush1.msra.mxu0 0.0
        %4140 = vmatprep.subr.mxu0 0.0
        %4141 = vmatpush1.msra.mxu0 0.0
        %4142 = vmatprep.subr.mxu0 0.0
        %4143 = vmatpush1.msra.mxu0 0.0
        %4144 = vmatprep.subr.mxu0 0.0
        %4145 = vmatpush1.msra.mxu0 0.0
        %4146 = vmatprep.subr.mxu0 0.0
        %4147 = vmatpush1.msra.mxu0 0.0
        %4148 = vmatprep.subr.mxu0 0.0
        %4149 = vmatpush1.msra.mxu0 0.0
        %4150 = vmatprep.subr.mxu0 0.0
        %4151 = vmatpush1.msra.mxu0 0.0
        %4152 = vmatprep.subr.mxu0 0.0
        %4153 = vmatpush1.msra.mxu0 0.0
        %4154 = vmatprep.subr.mxu0 0.0
        %4155 = vmatpush1.msra.mxu0 0.0
        %4156 = vmatprep.subr.mxu0 0.0
        %4157 = vmatpush1.msra.mxu0 0.0
        %4158 = vmatprep.subr.mxu0 0.0
        %4159 = vmatpush1.msra.mxu0 0.0
        %4160 = vmatprep.mubr.f32.mxu0 0.0
        %4161 = vmatmul.mubr.f32.gmra.mrb[0].mxu0 %v3716
        %v4162 = vpop.f32.mrb[0].mxu0
        %v4163 = vadd.f32 0.0, %v4162
        %v4164 = vpop.f32.mrb[0].mxu0
        %4165 = vmatprep.mubr.f32.mxu0 0.0
        %4166 = vmatmul.mubr.f32.gmra.mrb[0].mxu0 %v3719
        %v4167 = vpop.f32.mrb[0].mxu0
        %v4168 = vadd.f32 0.0, %v4167
        %v4169 = vpop.f32.mrb[0].mxu0
        %4170 = vdwg.mxu0
        %4171 = vmatprep.subr.mxu0 0.0
        %4172 = vmatpush1.msra.mxu0 %v3705
        %4173 = vmatprep.subr.mxu0 0.0
        %4174 = vmatpush1.msra.mxu0 %v3707
        %4175 = vmatprep.subr.mxu0 0.0
        %4176 = vmatpush1.msra.mxu0 0.0
        %4177 = vmatprep.subr.mxu0 0.0
        %4178 = vmatpush1.msra.mxu0 0.0
        %4179 = vmatprep.subr.mxu0 0.0
        %4180 = vmatpush1.msra.mxu0 0.0
        %4181 = vmatprep.subr.mxu0 0.0
        %4182 = vmatpush1.msra.mxu0 0.0
        %4183 = vmatprep.subr.mxu0 0.0
        %4184 = vmatpush1.msra.mxu0 0.0
        %4185 = vmatprep.subr.mxu0 0.0
        %4186 = vmatpush1.msra.mxu0 0.0
        %4187 = vmatprep.subr.mxu0 0.0
        %4188 = vmatpush1.msra.mxu0 0.0
        %4189 = vmatprep.subr.mxu0 0.0
        %4190 = vmatpush1.msra.mxu0 0.0
        %4191 = vmatprep.subr.mxu0 0.0
        %4192 = vmatpush1.msra.mxu0 0.0
        %4193 = vmatprep.subr.mxu0 0.0
        %4194 = vmatpush1.msra.mxu0 0.0
        %4195 = vmatprep.subr.mxu0 0.0
        %4196 = vmatpush1.msra.mxu0 0.0
        %4197 = vmatprep.subr.mxu0 0.0
        %4198 = vmatpush1.msra.mxu0 0.0
        %4199 = vmatprep.subr.mxu0 0.0
        %4200 = vmatpush1.msra.mxu0 0.0
        %4201 = vmatprep.subr.mxu0 0.0
        %4202 = vmatpush1.msra.mxu0 0.0
        %4203 = vmatprep.subr.mxu0 0.0
        %4204 = vmatpush1.msra.mxu0 0.0
        %4205 = vmatprep.subr.mxu0 0.0
        %4206 = vmatpush1.msra.mxu0 0.0
        %4207 = vmatprep.subr.mxu0 0.0
        %4208 = vmatpush1.msra.mxu0 0.0
        %4209 = vmatprep.subr.mxu0 0.0
        %4210 = vmatpush1.msra.mxu0 0.0
        %4211 = vmatprep.subr.mxu0 0.0
        %4212 = vmatpush1.msra.mxu0 0.0
        %4213 = vmatprep.subr.mxu0 0.0
        %4214 = vmatpush1.msra.mxu0 0.0
        %4215 = vmatprep.subr.mxu0 0.0
        %4216 = vmatpush1.msra.mxu0 0.0
        %4217 = vmatprep.subr.mxu0 0.0
        %4218 = vmatpush1.msra.mxu0 0.0
        %4219 = vmatprep.subr.mxu0 0.0
        %4220 = vmatpush1.msra.mxu0 0.0
        %4221 = vmatprep.subr.mxu0 0.0
        %4222 = vmatpush1.msra.mxu0 0.0
        %4223 = vmatprep.subr.mxu0 0.0
        %4224 = vmatpush1.msra.mxu0 0.0
        %4225 = vmatprep.subr.mxu0 0.0
        %4226 = vmatpush1.msra.mxu0 0.0
        %4227 = vmatprep.subr.mxu0 0.0
        %4228 = vmatpush1.msra.mxu0 0.0
        %4229 = vmatprep.subr.mxu0 0.0
        %4230 = vmatpush1.msra.mxu0 0.0
        %4231 = vmatprep.subr.mxu0 0.0
        %4232 = vmatpush1.msra.mxu0 0.0
        %4233 = vmatprep.subr.mxu0 0.0
        %4234 = vmatpush1.msra.mxu0 0.0
        %4235 = vmatprep.mubr.f32.mxu0 0.0
        %4236 = vmatmul.mubr.f32.gmra.mrb[0].mxu0 %v3716
        %v4237 = vpop.f32.mrb[0].mxu0
        %v4238 = vadd.f32 0.0, %v4237
        %v4239 = vpop.f32.mrb[0].mxu0
        %4240 = vmatprep.mubr.f32.mxu0 0.0
        %4241 = vmatmul.mubr.f32.gmra.mrb[0].mxu0 %v3719
        %v4242 = vpop.f32.mrb[0].mxu0
        %v4243 = vadd.f32 0.0, %v4242
        %v4244 = vpop.f32.mrb[0].mxu0
        %4245 = vdwg.mxu0
        %4246 = vmatprep.subr.mxu0 0.0
        %4247 = vmatpush1.msra.mxu0 %v3709
        %4248 = vmatprep.subr.mxu0 0.0
        %4249 = vmatpush1.msra.mxu0 %v3711
        %4250 = vmatprep.subr.mxu0 0.0
        %4251 = vmatpush1.msra.mxu0 0.0
        %4252 = vmatprep.subr.mxu0 0.0
        %4253 = vmatpush1.msra.mxu0 0.0
        %4254 = vmatprep.subr.mxu0 0.0
        %4255 = vmatpush1.msra.mxu0 0.0
        %4256 = vmatprep.subr.mxu0 0.0
        %4257 = vmatpush1.msra.mxu0 0.0
        %4258 = vmatprep.subr.mxu0 0.0
        %4259 = vmatpush1.msra.mxu0 0.0
        %4260 = vmatprep.subr.mxu0 0.0
        %4261 = vmatpush1.msra.mxu0 0.0
        %4262 = vmatprep.subr.mxu0 0.0
        %4263 = vmatpush1.msra.mxu0 0.0
        %4264 = vmatprep.subr.mxu0 0.0
        %4265 = vmatpush1.msra.mxu0 0.0
        %4266 = vmatprep.subr.mxu0 0.0
        %4267 = vmatpush1.msra.mxu0 0.0
        %4268 = vmatprep.subr.mxu0 0.0
        %4269 = vmatpush1.msra.mxu0 0.0
        %4270 = vmatprep.subr.mxu0 0.0
        %4271 = vmatpush1.msra.mxu0 0.0
        %4272 = vmatprep.subr.mxu0 0.0
        %4273 = vmatpush1.msra.mxu0 0.0
        %4274 = vmatprep.subr.mxu0 0.0
        %4275 = vmatpush1.msra.mxu0 0.0
        %4276 = vmatprep.subr.mxu0 0.0
        %4277 = vmatpush1.msra.mxu0 0.0
        %4278 = vmatprep.subr.mxu0 0.0
        %4279 = vmatpush1.msra.mxu0 0.0
        %4280 = vmatprep.subr.mxu0 0.0
        %4281 = vmatpush1.msra.mxu0 0.0
        %4282 = vmatprep.subr.mxu0 0.0
        %4283 = vmatpush1.msra.mxu0 0.0
        %4284 = vmatprep.subr.mxu0 0.0
        %4285 = vmatpush1.msra.mxu0 0.0
        %4286 = vmatprep.subr.mxu0 0.0
        %4287 = vmatpush1.msra.mxu0 0.0
        %4288 = vmatprep.subr.mxu0 0.0
        %4289 = vmatpush1.msra.mxu0 0.0
        %4290 = vmatprep.subr.mxu0 0.0
        %4291 = vmatpush1.msra.mxu0 0.0
        %4292 = vmatprep.subr.mxu0 0.0
        %4293 = vmatpush1.msra.mxu0 0.0
        %4294 = vmatprep.subr.mxu0 0.0
        %4295 = vmatpush1.msra.mxu0 0.0
        %4296 = vmatprep.subr.mxu0 0.0
        %4297 = vmatpush1.msra.mxu0 0.0
        %4298 = vmatprep.subr.mxu0 0.0
        %4299 = vmatpush1.msra.mxu0 0.0
        %4300 = vmatprep.subr.mxu0 0.0
        %4301 = vmatpush1.msra.mxu0 0.0
        %4302 = vmatprep.subr.mxu0 0.0
        %4303 = vmatpush1.msra.mxu0 0.0
        %4304 = vmatprep.subr.mxu0 0.0
        %4305 = vmatpush1.msra.mxu0 0.0
        %4306 = vmatprep.subr.mxu0 0.0
        %4307 = vmatpush1.msra.mxu0 0.0
        %4308 = vmatprep.subr.mxu0 0.0
        %4309 = vmatpush1.msra.mxu0 0.0
        %4310 = vmatprep.mubr.f32.mxu0 0.0
        %4311 = vmatmul.mubr.f32.gmra.mrb[0].mxu0 %v3716
        %v4312 = vpop.f32.mrb[0].mxu0
        %v4313 = vadd.f32 0.0, %v4312
        %v4314 = vpop.f32.mrb[0].mxu0
        %4315 = vmatprep.mubr.f32.mxu0 0.0
        %4316 = vmatmul.mubr.f32.gmra.mrb[0].mxu0 %v3719
        %v4317 = vpop.f32.mrb[0].mxu0
        %v4318 = vadd.f32 0.0, %v4317
        %v4319 = vpop.f32.mrb[0].mxu0
        %4320 = vdwg.mxu0
        %v4321 = vadd.f32 %v3664, %v3788
        %v4322 = vadd.f32 %v3665, %v3793
        %v4323 = vadd.f32 %v3666, %v3863
        %v4324 = vadd.f32 %v3667, %v3868
        %v4325 = vadd.f32 %v3668, %v3938
        %v4326 = vadd.f32 %v3669, %v3943
        %v4327 = vadd.f32 %v3670, %v4013
        %v4328 = vadd.f32 %v3671, %v4018
        %v4329 = vadd.f32 %v3672, %v4088
        %v4330 = vadd.f32 %v3673, %v4093
        %v4331 = vadd.f32 %v3674, %v4163
        %v4332 = vadd.f32 %v3675, %v4168
        %v4333 = vadd.f32 %v3676, %v4238
        %v4334 = vadd.f32 %v3677, %v4243
        %v4335 = vadd.f32 %v3678, %v4313
        %v4336 = vadd.f32 %v3679, %v4318
        %4337 = vrot.lane.b32.xlu0 %v1101, 127
        %v4338 = vpop.permute.xlu0 %4337
        %4339 = vrot.lane.b32.xlu0 %v1102, 127
        %v4340 = vpop.permute.xlu0 %4339
        %4341 = vrot.lane.b32.xlu0 %v1103, 127
        %v4342 = vpop.permute.xlu0 %4341
        %4343 = vrot.lane.b32.xlu0 %v1104, 127
        %v4344 = vpop.permute.xlu0 %4343
        %4345 = vrot.lane.b32.xlu0 %v1105, 127
        %v4346 = vpop.permute.xlu0 %4345
        %4347 = vrot.lane.b32.xlu0 %v1106, 127
        %v4348 = vpop.permute.xlu0 %4347
        %4349 = vrot.lane.b32.xlu0 %v1107, 127
        %v4350 = vpop.permute.xlu0 %4349
        %4351 = vrot.lane.b32.xlu0 %v1108, 127
        %v4352 = vpop.permute.xlu0 %4351
        %4353 = vrot.lane.b32.xlu0 %v1109, 127
        %v4354 = vpop.permute.xlu0 %4353
        %4355 = vrot.lane.b32.xlu0 %v1110, 127
        %v4356 = vpop.permute.xlu0 %4355
        %4357 = vrot.lane.b32.xlu0 %v1111, 127
        %v4358 = vpop.permute.xlu0 %4357
        %4359 = vrot.lane.b32.xlu0 %v1112, 127
        %v4360 = vpop.permute.xlu0 %4359
        %4361 = vrot.lane.b32.xlu0 %v1113, 127
        %v4362 = vpop.permute.xlu0 %4361
        %4363 = vrot.lane.b32.xlu0 %v1114, 127
        %v4364 = vpop.permute.xlu0 %4363
        %4365 = vrot.lane.b32.xlu0 %v1115, 127
        %v4366 = vpop.permute.xlu0 %4365
        %4367 = vrot.lane.b32.xlu0 %v1116, 127
        %v4368 = vpop.permute.xlu0 %4367
        %s4369 = scalar_lea.vmem [#allocation5], 80
        %v4370 = vld [vmem:[%s4369] sm:$0xff]
        %v4371 = vld [vmem:[%s4369 + $0x8] sm:$0xff]
        %v4373 = vsel %vm295, %v4370, 0
        %v4376 = vsel %vm295, %v4371, 0
        %4378 = vmatprep.subr.mxu0 0.0
        %4379 = vmatpush1.msra.mxu0 %v4338
        %4380 = vmatprep.subr.mxu0 0.0
        %4381 = vmatpush1.msra.mxu0 %v4340
        %4382 = vmatprep.subr.mxu0 0.0
        %4383 = vmatpush1.msra.mxu0 0.0
        %4384 = vmatprep.subr.mxu0 0.0
        %4385 = vmatpush1.msra.mxu0 0.0
        %4386 = vmatprep.subr.mxu0 0.0
        %4387 = vmatpush1.msra.mxu0 0.0
        %4388 = vmatprep.subr.mxu0 0.0
        %4389 = vmatpush1.msra.mxu0 0.0
        %4390 = vmatprep.subr.mxu0 0.0
        %4391 = vmatpush1.msra.mxu0 0.0
        %4392 = vmatprep.subr.mxu0 0.0
        %4393 = vmatpush1.msra.mxu0 0.0
        %4394 = vmatprep.subr.mxu0 0.0
        %4395 = vmatpush1.msra.mxu0 0.0
        %4396 = vmatprep.subr.mxu0 0.0
        %4397 = vmatpush1.msra.mxu0 0.0
        %4398 = vmatprep.subr.mxu0 0.0
        %4399 = vmatpush1.msra.mxu0 0.0
        %4400 = vmatprep.subr.mxu0 0.0
        %4401 = vmatpush1.msra.mxu0 0.0
        %4402 = vmatprep.subr.mxu0 0.0
        %4403 = vmatpush1.msra.mxu0 0.0
        %4404 = vmatprep.subr.mxu0 0.0
        %4405 = vmatpush1.msra.mxu0 0.0
        %4406 = vmatprep.subr.mxu0 0.0
        %4407 = vmatpush1.msra.mxu0 0.0
        %4408 = vmatprep.subr.mxu0 0.0
        %4409 = vmatpush1.msra.mxu0 0.0
        %4410 = vmatprep.subr.mxu0 0.0
        %4411 = vmatpush1.msra.mxu0 0.0
        %4412 = vmatprep.subr.mxu0 0.0
        %4413 = vmatpush1.msra.mxu0 0.0
        %4414 = vmatprep.subr.mxu0 0.0
        %4415 = vmatpush1.msra.mxu0 0.0
        %4416 = vmatprep.subr.mxu0 0.0
        %4417 = vmatpush1.msra.mxu0 0.0
        %4418 = vmatprep.subr.mxu0 0.0
        %4419 = vmatpush1.msra.mxu0 0.0
        %4420 = vmatprep.subr.mxu0 0.0
        %4421 = vmatpush1.msra.mxu0 0.0
        %4422 = vmatprep.subr.mxu0 0.0
        %4423 = vmatpush1.msra.mxu0 0.0
        %4424 = vmatprep.subr.mxu0 0.0
        %4425 = vmatpush1.msra.mxu0 0.0
        %4426 = vmatprep.subr.mxu0 0.0
        %4427 = vmatpush1.msra.mxu0 0.0
        %4428 = vmatprep.subr.mxu0 0.0
        %4429 = vmatpush1.msra.mxu0 0.0
        %4430 = vmatprep.subr.mxu0 0.0
        %4431 = vmatpush1.msra.mxu0 0.0
        %4432 = vmatprep.subr.mxu0 0.0
        %4433 = vmatpush1.msra.mxu0 0.0
        %4434 = vmatprep.subr.mxu0 0.0
        %4435 = vmatpush1.msra.mxu0 0.0
        %4436 = vmatprep.subr.mxu0 0.0
        %4437 = vmatpush1.msra.mxu0 0.0
        %4438 = vmatprep.subr.mxu0 0.0
        %4439 = vmatpush1.msra.mxu0 0.0
        %4440 = vmatprep.subr.mxu0 0.0
        %4441 = vmatpush1.msra.mxu0 0.0
        %4442 = vmatprep.mubr.f32.mxu0 0.0
        %4443 = vmatmul.mubr.f32.gmra.mrb[0].mxu0 %v4373
        %v4444 = vpop.f32.mrb[0].mxu0
        %v4445 = vadd.f32 0.0, %v4444
        %v4446 = vpop.f32.mrb[0].mxu0
        %4447 = vmatprep.mubr.f32.mxu0 0.0
        %4448 = vmatmul.mubr.f32.gmra.mrb[0].mxu0 %v4376
        %v4449 = vpop.f32.mrb[0].mxu0
        %v4450 = vadd.f32 0.0, %v4449
        %v4451 = vpop.f32.mrb[0].mxu0
        %4452 = vdwg.mxu0
        %4453 = vmatprep.subr.mxu0 0.0
        %4454 = vmatpush1.msra.mxu0 %v4342
        %4455 = vmatprep.subr.mxu0 0.0
        %4456 = vmatpush1.msra.mxu0 %v4344
        %4457 = vmatprep.subr.mxu0 0.0
        %4458 = vmatpush1.msra.mxu0 0.0
        %4459 = vmatprep.subr.mxu0 0.0
        %4460 = vmatpush1.msra.mxu0 0.0
        %4461 = vmatprep.subr.mxu0 0.0
        %4462 = vmatpush1.msra.mxu0 0.0
        %4463 = vmatprep.subr.mxu0 0.0
        %4464 = vmatpush1.msra.mxu0 0.0
        %4465 = vmatprep.subr.mxu0 0.0
        %4466 = vmatpush1.msra.mxu0 0.0
        %4467 = vmatprep.subr.mxu0 0.0
        %4468 = vmatpush1.msra.mxu0 0.0
        %4469 = vmatprep.subr.mxu0 0.0
        %4470 = vmatpush1.msra.mxu0 0.0
        %4471 = vmatprep.subr.mxu0 0.0
        %4472 = vmatpush1.msra.mxu0 0.0
        %4473 = vmatprep.subr.mxu0 0.0
        %4474 = vmatpush1.msra.mxu0 0.0
        %4475 = vmatprep.subr.mxu0 0.0
        %4476 = vmatpush1.msra.mxu0 0.0
        %4477 = vmatprep.subr.mxu0 0.0
        %4478 = vmatpush1.msra.mxu0 0.0
        %4479 = vmatprep.subr.mxu0 0.0
        %4480 = vmatpush1.msra.mxu0 0.0
        %4481 = vmatprep.subr.mxu0 0.0
        %4482 = vmatpush1.msra.mxu0 0.0
        %4483 = vmatprep.subr.mxu0 0.0
        %4484 = vmatpush1.msra.mxu0 0.0
        %4485 = vmatprep.subr.mxu0 0.0
        %4486 = vmatpush1.msra.mxu0 0.0
        %4487 = vmatprep.subr.mxu0 0.0
        %4488 = vmatpush1.msra.mxu0 0.0
        %4489 = vmatprep.subr.mxu0 0.0
        %4490 = vmatpush1.msra.mxu0 0.0
        %4491 = vmatprep.subr.mxu0 0.0
        %4492 = vmatpush1.msra.mxu0 0.0
        %4493 = vmatprep.subr.mxu0 0.0
        %4494 = vmatpush1.msra.mxu0 0.0
        %4495 = vmatprep.subr.mxu0 0.0
        %4496 = vmatpush1.msra.mxu0 0.0
        %4497 = vmatprep.subr.mxu0 0.0
        %4498 = vmatpush1.msra.mxu0 0.0
        %4499 = vmatprep.subr.mxu0 0.0
        %4500 = vmatpush1.msra.mxu0 0.0
        %4501 = vmatprep.subr.mxu0 0.0
        %4502 = vmatpush1.msra.mxu0 0.0
        %4503 = vmatprep.subr.mxu0 0.0
        %4504 = vmatpush1.msra.mxu0 0.0
        %4505 = vmatprep.subr.mxu0 0.0
        %4506 = vmatpush1.msra.mxu0 0.0
        %4507 = vmatprep.subr.mxu0 0.0
        %4508 = vmatpush1.msra.mxu0 0.0
        %4509 = vmatprep.subr.mxu0 0.0
        %4510 = vmatpush1.msra.mxu0 0.0
        %4511 = vmatprep.subr.mxu0 0.0
        %4512 = vmatpush1.msra.mxu0 0.0
        %4513 = vmatprep.subr.mxu0 0.0
        %4514 = vmatpush1.msra.mxu0 0.0
        %4515 = vmatprep.subr.mxu0 0.0
        %4516 = vmatpush1.msra.mxu0 0.0
        %4517 = vmatprep.mubr.f32.mxu0 0.0
        %4518 = vmatmul.mubr.f32.gmra.mrb[0].mxu0 %v4373
        %v4519 = vpop.f32.mrb[0].mxu0
        %v4520 = vadd.f32 0.0, %v4519
        %v4521 = vpop.f32.mrb[0].mxu0
        %4522 = vmatprep.mubr.f32.mxu0 0.0
        %4523 = vmatmul.mubr.f32.gmra.mrb[0].mxu0 %v4376
        %v4524 = vpop.f32.mrb[0].mxu0
        %v4525 = vadd.f32 0.0, %v4524
        %v4526 = vpop.f32.mrb[0].mxu0
        %4527 = vdwg.mxu0
        %4528 = vmatprep.subr.mxu0 0.0
        %4529 = vmatpush1.msra.mxu0 %v4346
        %4530 = vmatprep.subr.mxu0 0.0
        %4531 = vmatpush1.msra.mxu0 %v4348
        %4532 = vmatprep.subr.mxu0 0.0
        %4533 = vmatpush1.msra.mxu0 0.0
        %4534 = vmatprep.subr.mxu0 0.0
        %4535 = vmatpush1.msra.mxu0 0.0
        %4536 = vmatprep.subr.mxu0 0.0
        %4537 = vmatpush1.msra.mxu0 0.0
        %4538 = vmatprep.subr.mxu0 0.0
        %4539 = vmatpush1.msra.mxu0 0.0
        %4540 = vmatprep.subr.mxu0 0.0
        %4541 = vmatpush1.msra.mxu0 0.0
        %4542 = vmatprep.subr.mxu0 0.0
        %4543 = vmatpush1.msra.mxu0 0.0
        %4544 = vmatprep.subr.mxu0 0.0
        %4545 = vmatpush1.msra.mxu0 0.0
        %4546 = vmatprep.subr.mxu0 0.0
        %4547 = vmatpush1.msra.mxu0 0.0
        %4548 = vmatprep.subr.mxu0 0.0
        %4549 = vmatpush1.msra.mxu0 0.0
        %4550 = vmatprep.subr.mxu0 0.0
        %4551 = vmatpush1.msra.mxu0 0.0
        %4552 = vmatprep.subr.mxu0 0.0
        %4553 = vmatpush1.msra.mxu0 0.0
        %4554 = vmatprep.subr.mxu0 0.0
        %4555 = vmatpush1.msra.mxu0 0.0
        %4556 = vmatprep.subr.mxu0 0.0
        %4557 = vmatpush1.msra.mxu0 0.0
        %4558 = vmatprep.subr.mxu0 0.0
        %4559 = vmatpush1.msra.mxu0 0.0
        %4560 = vmatprep.subr.mxu0 0.0
        %4561 = vmatpush1.msra.mxu0 0.0
        %4562 = vmatprep.subr.mxu0 0.0
        %4563 = vmatpush1.msra.mxu0 0.0
        %4564 = vmatprep.subr.mxu0 0.0
        %4565 = vmatpush1.msra.mxu0 0.0
        %4566 = vmatprep.subr.mxu0 0.0
        %4567 = vmatpush1.msra.mxu0 0.0
        %4568 = vmatprep.subr.mxu0 0.0
        %4569 = vmatpush1.msra.mxu0 0.0
        %4570 = vmatprep.subr.mxu0 0.0
        %4571 = vmatpush1.msra.mxu0 0.0
        %4572 = vmatprep.subr.mxu0 0.0
        %4573 = vmatpush1.msra.mxu0 0.0
        %4574 = vmatprep.subr.mxu0 0.0
        %4575 = vmatpush1.msra.mxu0 0.0
        %4576 = vmatprep.subr.mxu0 0.0
        %4577 = vmatpush1.msra.mxu0 0.0
        %4578 = vmatprep.subr.mxu0 0.0
        %4579 = vmatpush1.msra.mxu0 0.0
        %4580 = vmatprep.subr.mxu0 0.0
        %4581 = vmatpush1.msra.mxu0 0.0
        %4582 = vmatprep.subr.mxu0 0.0
        %4583 = vmatpush1.msra.mxu0 0.0
        %4584 = vmatprep.subr.mxu0 0.0
        %4585 = vmatpush1.msra.mxu0 0.0
        %4586 = vmatprep.subr.mxu0 0.0
        %4587 = vmatpush1.msra.mxu0 0.0
        %4588 = vmatprep.subr.mxu0 0.0
        %4589 = vmatpush1.msra.mxu0 0.0
        %4590 = vmatprep.subr.mxu0 0.0
        %4591 = vmatpush1.msra.mxu0 0.0
        %4592 = vmatprep.mubr.f32.mxu0 0.0
        %4593 = vmatmul.mubr.f32.gmra.mrb[0].mxu0 %v4373
        %v4594 = vpop.f32.mrb[0].mxu0
        %v4595 = vadd.f32 0.0, %v4594
        %v4596 = vpop.f32.mrb[0].mxu0
        %4597 = vmatprep.mubr.f32.mxu0 0.0
        %4598 = vmatmul.mubr.f32.gmra.mrb[0].mxu0 %v4376
        %v4599 = vpop.f32.mrb[0].mxu0
        %v4600 = vadd.f32 0.0, %v4599
        %v4601 = vpop.f32.mrb[0].mxu0
        %4602 = vdwg.mxu0
        %4603 = vmatprep.subr.mxu0 0.0
        %4604 = vmatpush1.msra.mxu0 %v4350
        %4605 = vmatprep.subr.mxu0 0.0
        %4606 = vmatpush1.msra.mxu0 %v4352
        %4607 = vmatprep.subr.mxu0 0.0
        %4608 = vmatpush1.msra.mxu0 0.0
        %4609 = vmatprep.subr.mxu0 0.0
        %4610 = vmatpush1.msra.mxu0 0.0
        %4611 = vmatprep.subr.mxu0 0.0
        %4612 = vmatpush1.msra.mxu0 0.0
        %4613 = vmatprep.subr.mxu0 0.0
        %4614 = vmatpush1.msra.mxu0 0.0
        %4615 = vmatprep.subr.mxu0 0.0
        %4616 = vmatpush1.msra.mxu0 0.0
        %4617 = vmatprep.subr.mxu0 0.0
        %4618 = vmatpush1.msra.mxu0 0.0
        %4619 = vmatprep.subr.mxu0 0.0
        %4620 = vmatpush1.msra.mxu0 0.0
        %4621 = vmatprep.subr.mxu0 0.0
        %4622 = vmatpush1.msra.mxu0 0.0
        %4623 = vmatprep.subr.mxu0 0.0
        %4624 = vmatpush1.msra.mxu0 0.0
        %4625 = vmatprep.subr.mxu0 0.0
        %4626 = vmatpush1.msra.mxu0 0.0
        %4627 = vmatprep.subr.mxu0 0.0
        %4628 = vmatpush1.msra.mxu0 0.0
        %4629 = vmatprep.subr.mxu0 0.0
        %4630 = vmatpush1.msra.mxu0 0.0
        %4631 = vmatprep.subr.mxu0 0.0
        %4632 = vmatpush1.msra.mxu0 0.0
        %4633 = vmatprep.subr.mxu0 0.0
        %4634 = vmatpush1.msra.mxu0 0.0
        %4635 = vmatprep.subr.mxu0 0.0
        %4636 = vmatpush1.msra.mxu0 0.0
        %4637 = vmatprep.subr.mxu0 0.0
        %4638 = vmatpush1.msra.mxu0 0.0
        %4639 = vmatprep.subr.mxu0 0.0
        %4640 = vmatpush1.msra.mxu0 0.0
        %4641 = vmatprep.subr.mxu0 0.0
        %4642 = vmatpush1.msra.mxu0 0.0
        %4643 = vmatprep.subr.mxu0 0.0
        %4644 = vmatpush1.msra.mxu0 0.0
        %4645 = vmatprep.subr.mxu0 0.0
        %4646 = vmatpush1.msra.mxu0 0.0
        %4647 = vmatprep.subr.mxu0 0.0
        %4648 = vmatpush1.msra.mxu0 0.0
        %4649 = vmatprep.subr.mxu0 0.0
        %4650 = vmatpush1.msra.mxu0 0.0
        %4651 = vmatprep.subr.mxu0 0.0
        %4652 = vmatpush1.msra.mxu0 0.0
        %4653 = vmatprep.subr.mxu0 0.0
        %4654 = vmatpush1.msra.mxu0 0.0
        %4655 = vmatprep.subr.mxu0 0.0
        %4656 = vmatpush1.msra.mxu0 0.0
        %4657 = vmatprep.subr.mxu0 0.0
        %4658 = vmatpush1.msra.mxu0 0.0
        %4659 = vmatprep.subr.mxu0 0.0
        %4660 = vmatpush1.msra.mxu0 0.0
        %4661 = vmatprep.subr.mxu0 0.0
        %4662 = vmatpush1.msra.mxu0 0.0
        %4663 = vmatprep.subr.mxu0 0.0
        %4664 = vmatpush1.msra.mxu0 0.0
        %4665 = vmatprep.subr.mxu0 0.0
        %4666 = vmatpush1.msra.mxu0 0.0
        %4667 = vmatprep.mubr.f32.mxu0 0.0
        %4668 = vmatmul.mubr.f32.gmra.mrb[0].mxu0 %v4373
        %v4669 = vpop.f32.mrb[0].mxu0
        %v4670 = vadd.f32 0.0, %v4669
        %v4671 = vpop.f32.mrb[0].mxu0
        %4672 = vmatprep.mubr.f32.mxu0 0.0
        %4673 = vmatmul.mubr.f32.gmra.mrb[0].mxu0 %v4376
        %v4674 = vpop.f32.mrb[0].mxu0
        %v4675 = vadd.f32 0.0, %v4674
        %v4676 = vpop.f32.mrb[0].mxu0
        %4677 = vdwg.mxu0
        %4678 = vmatprep.subr.mxu0 0.0
        %4679 = vmatpush1.msra.mxu0 %v4354
        %4680 = vmatprep.subr.mxu0 0.0
        %4681 = vmatpush1.msra.mxu0 %v4356
        %4682 = vmatprep.subr.mxu0 0.0
        %4683 = vmatpush1.msra.mxu0 0.0
        %4684 = vmatprep.subr.mxu0 0.0
        %4685 = vmatpush1.msra.mxu0 0.0
        %4686 = vmatprep.subr.mxu0 0.0
        %4687 = vmatpush1.msra.mxu0 0.0
        %4688 = vmatprep.subr.mxu0 0.0
        %4689 = vmatpush1.msra.mxu0 0.0
        %4690 = vmatprep.subr.mxu0 0.0
        %4691 = vmatpush1.msra.mxu0 0.0
        %4692 = vmatprep.subr.mxu0 0.0
        %4693 = vmatpush1.msra.mxu0 0.0
        %4694 = vmatprep.subr.mxu0 0.0
        %4695 = vmatpush1.msra.mxu0 0.0
        %4696 = vmatprep.subr.mxu0 0.0
        %4697 = vmatpush1.msra.mxu0 0.0
        %4698 = vmatprep.subr.mxu0 0.0
        %4699 = vmatpush1.msra.mxu0 0.0
        %4700 = vmatprep.subr.mxu0 0.0
        %4701 = vmatpush1.msra.mxu0 0.0
        %4702 = vmatprep.subr.mxu0 0.0
        %4703 = vmatpush1.msra.mxu0 0.0
        %4704 = vmatprep.subr.mxu0 0.0
        %4705 = vmatpush1.msra.mxu0 0.0
        %4706 = vmatprep.subr.mxu0 0.0
        %4707 = vmatpush1.msra.mxu0 0.0
        %4708 = vmatprep.subr.mxu0 0.0
        %4709 = vmatpush1.msra.mxu0 0.0
        %4710 = vmatprep.subr.mxu0 0.0
        %4711 = vmatpush1.msra.mxu0 0.0
        %4712 = vmatprep.subr.mxu0 0.0
        %4713 = vmatpush1.msra.mxu0 0.0
        %4714 = vmatprep.subr.mxu0 0.0
        %4715 = vmatpush1.msra.mxu0 0.0
        %4716 = vmatprep.subr.mxu0 0.0
        %4717 = vmatpush1.msra.mxu0 0.0
        %4718 = vmatprep.subr.mxu0 0.0
        %4719 = vmatpush1.msra.mxu0 0.0
        %4720 = vmatprep.subr.mxu0 0.0
        %4721 = vmatpush1.msra.mxu0 0.0
        %4722 = vmatprep.subr.mxu0 0.0
        %4723 = vmatpush1.msra.mxu0 0.0
        %4724 = vmatprep.subr.mxu0 0.0
        %4725 = vmatpush1.msra.mxu0 0.0
        %4726 = vmatprep.subr.mxu0 0.0
        %4727 = vmatpush1.msra.mxu0 0.0
        %4728 = vmatprep.subr.mxu0 0.0
        %4729 = vmatpush1.msra.mxu0 0.0
        %4730 = vmatprep.subr.mxu0 0.0
        %4731 = vmatpush1.msra.mxu0 0.0
        %4732 = vmatprep.subr.mxu0 0.0
        %4733 = vmatpush1.msra.mxu0 0.0
        %4734 = vmatprep.subr.mxu0 0.0
        %4735 = vmatpush1.msra.mxu0 0.0
        %4736 = vmatprep.subr.mxu0 0.0
        %4737 = vmatpush1.msra.mxu0 0.0
        %4738 = vmatprep.subr.mxu0 0.0
        %4739 = vmatpush1.msra.mxu0 0.0
        %4740 = vmatprep.subr.mxu0 0.0
        %4741 = vmatpush1.msra.mxu0 0.0
        %4742 = vmatprep.mubr.f32.mxu0 0.0
        %4743 = vmatmul.mubr.f32.gmra.mrb[0].mxu0 %v4373
        %v4744 = vpop.f32.mrb[0].mxu0
        %v4745 = vadd.f32 0.0, %v4744
        %v4746 = vpop.f32.mrb[0].mxu0
        %4747 = vmatprep.mubr.f32.mxu0 0.0
        %4748 = vmatmul.mubr.f32.gmra.mrb[0].mxu0 %v4376
        %v4749 = vpop.f32.mrb[0].mxu0
        %v4750 = vadd.f32 0.0, %v4749
        %v4751 = vpop.f32.mrb[0].mxu0
        %4752 = vdwg.mxu0
        %4753 = vmatprep.subr.mxu0 0.0
        %4754 = vmatpush1.msra.mxu0 %v4358
        %4755 = vmatprep.subr.mxu0 0.0
        %4756 = vmatpush1.msra.mxu0 %v4360
        %4757 = vmatprep.subr.mxu0 0.0
        %4758 = vmatpush1.msra.mxu0 0.0
        %4759 = vmatprep.subr.mxu0 0.0
        %4760 = vmatpush1.msra.mxu0 0.0
        %4761 = vmatprep.subr.mxu0 0.0
        %4762 = vmatpush1.msra.mxu0 0.0
        %4763 = vmatprep.subr.mxu0 0.0
        %4764 = vmatpush1.msra.mxu0 0.0
        %4765 = vmatprep.subr.mxu0 0.0
        %4766 = vmatpush1.msra.mxu0 0.0
        %4767 = vmatprep.subr.mxu0 0.0
        %4768 = vmatpush1.msra.mxu0 0.0
        %4769 = vmatprep.subr.mxu0 0.0
        %4770 = vmatpush1.msra.mxu0 0.0
        %4771 = vmatprep.subr.mxu0 0.0
        %4772 = vmatpush1.msra.mxu0 0.0
        %4773 = vmatprep.subr.mxu0 0.0
        %4774 = vmatpush1.msra.mxu0 0.0
        %4775 = vmatprep.subr.mxu0 0.0
        %4776 = vmatpush1.msra.mxu0 0.0
        %4777 = vmatprep.subr.mxu0 0.0
        %4778 = vmatpush1.msra.mxu0 0.0
        %4779 = vmatprep.subr.mxu0 0.0
        %4780 = vmatpush1.msra.mxu0 0.0
        %4781 = vmatprep.subr.mxu0 0.0
        %4782 = vmatpush1.msra.mxu0 0.0
        %4783 = vmatprep.subr.mxu0 0.0
        %4784 = vmatpush1.msra.mxu0 0.0
        %4785 = vmatprep.subr.mxu0 0.0
        %4786 = vmatpush1.msra.mxu0 0.0
        %4787 = vmatprep.subr.mxu0 0.0
        %4788 = vmatpush1.msra.mxu0 0.0
        %4789 = vmatprep.subr.mxu0 0.0
        %4790 = vmatpush1.msra.mxu0 0.0
        %4791 = vmatprep.subr.mxu0 0.0
        %4792 = vmatpush1.msra.mxu0 0.0
        %4793 = vmatprep.subr.mxu0 0.0
        %4794 = vmatpush1.msra.mxu0 0.0
        %4795 = vmatprep.subr.mxu0 0.0
        %4796 = vmatpush1.msra.mxu0 0.0
        %4797 = vmatprep.subr.mxu0 0.0
        %4798 = vmatpush1.msra.mxu0 0.0
        %4799 = vmatprep.subr.mxu0 0.0
        %4800 = vmatpush1.msra.mxu0 0.0
        %4801 = vmatprep.subr.mxu0 0.0
        %4802 = vmatpush1.msra.mxu0 0.0
        %4803 = vmatprep.subr.mxu0 0.0
        %4804 = vmatpush1.msra.mxu0 0.0
        %4805 = vmatprep.subr.mxu0 0.0
        %4806 = vmatpush1.msra.mxu0 0.0
        %4807 = vmatprep.subr.mxu0 0.0
        %4808 = vmatpush1.msra.mxu0 0.0
        %4809 = vmatprep.subr.mxu0 0.0
        %4810 = vmatpush1.msra.mxu0 0.0
        %4811 = vmatprep.subr.mxu0 0.0
        %4812 = vmatpush1.msra.mxu0 0.0
        %4813 = vmatprep.subr.mxu0 0.0
        %4814 = vmatpush1.msra.mxu0 0.0
        %4815 = vmatprep.subr.mxu0 0.0
        %4816 = vmatpush1.msra.mxu0 0.0
        %4817 = vmatprep.mubr.f32.mxu0 0.0
        %4818 = vmatmul.mubr.f32.gmra.mrb[0].mxu0 %v4373
        %v4819 = vpop.f32.mrb[0].mxu0
        %v4820 = vadd.f32 0.0, %v4819
        %v4821 = vpop.f32.mrb[0].mxu0
        %4822 = vmatprep.mubr.f32.mxu0 0.0
        %4823 = vmatmul.mubr.f32.gmra.mrb[0].mxu0 %v4376
        %v4824 = vpop.f32.mrb[0].mxu0
        %v4825 = vadd.f32 0.0, %v4824
        %v4826 = vpop.f32.mrb[0].mxu0
        %4827 = vdwg.mxu0
        %4828 = vmatprep.subr.mxu0 0.0
        %4829 = vmatpush1.msra.mxu0 %v4362
        %4830 = vmatprep.subr.mxu0 0.0
        %4831 = vmatpush1.msra.mxu0 %v4364
        %4832 = vmatprep.subr.mxu0 0.0
        %4833 = vmatpush1.msra.mxu0 0.0
        %4834 = vmatprep.subr.mxu0 0.0
        %4835 = vmatpush1.msra.mxu0 0.0
        %4836 = vmatprep.subr.mxu0 0.0
        %4837 = vmatpush1.msra.mxu0 0.0
        %4838 = vmatprep.subr.mxu0 0.0
        %4839 = vmatpush1.msra.mxu0 0.0
        %4840 = vmatprep.subr.mxu0 0.0
        %4841 = vmatpush1.msra.mxu0 0.0
        %4842 = vmatprep.subr.mxu0 0.0
        %4843 = vmatpush1.msra.mxu0 0.0
        %4844 = vmatprep.subr.mxu0 0.0
        %4845 = vmatpush1.msra.mxu0 0.0
        %4846 = vmatprep.subr.mxu0 0.0
        %4847 = vmatpush1.msra.mxu0 0.0
        %4848 = vmatprep.subr.mxu0 0.0
        %4849 = vmatpush1.msra.mxu0 0.0
        %4850 = vmatprep.subr.mxu0 0.0
        %4851 = vmatpush1.msra.mxu0 0.0
        %4852 = vmatprep.subr.mxu0 0.0
        %4853 = vmatpush1.msra.mxu0 0.0
        %4854 = vmatprep.subr.mxu0 0.0
        %4855 = vmatpush1.msra.mxu0 0.0
        %4856 = vmatprep.subr.mxu0 0.0
        %4857 = vmatpush1.msra.mxu0 0.0
        %4858 = vmatprep.subr.mxu0 0.0
        %4859 = vmatpush1.msra.mxu0 0.0
        %4860 = vmatprep.subr.mxu0 0.0
        %4861 = vmatpush1.msra.mxu0 0.0
        %4862 = vmatprep.subr.mxu0 0.0
        %4863 = vmatpush1.msra.mxu0 0.0
        %4864 = vmatprep.subr.mxu0 0.0
        %4865 = vmatpush1.msra.mxu0 0.0
        %4866 = vmatprep.subr.mxu0 0.0
        %4867 = vmatpush1.msra.mxu0 0.0
        %4868 = vmatprep.subr.mxu0 0.0
        %4869 = vmatpush1.msra.mxu0 0.0
        %4870 = vmatprep.subr.mxu0 0.0
        %4871 = vmatpush1.msra.mxu0 0.0
        %4872 = vmatprep.subr.mxu0 0.0
        %4873 = vmatpush1.msra.mxu0 0.0
        %4874 = vmatprep.subr.mxu0 0.0
        %4875 = vmatpush1.msra.mxu0 0.0
        %4876 = vmatprep.subr.mxu0 0.0
        %4877 = vmatpush1.msra.mxu0 0.0
        %4878 = vmatprep.subr.mxu0 0.0
        %4879 = vmatpush1.msra.mxu0 0.0
        %4880 = vmatprep.subr.mxu0 0.0
        %4881 = vmatpush1.msra.mxu0 0.0
        %4882 = vmatprep.subr.mxu0 0.0
        %4883 = vmatpush1.msra.mxu0 0.0
        %4884 = vmatprep.subr.mxu0 0.0
        %4885 = vmatpush1.msra.mxu0 0.0
        %4886 = vmatprep.subr.mxu0 0.0
        %4887 = vmatpush1.msra.mxu0 0.0
        %4888 = vmatprep.subr.mxu0 0.0
        %4889 = vmatpush1.msra.mxu0 0.0
        %4890 = vmatprep.subr.mxu0 0.0
        %4891 = vmatpush1.msra.mxu0 0.0
        %4892 = vmatprep.mubr.f32.mxu0 0.0
        %4893 = vmatmul.mubr.f32.gmra.mrb[0].mxu0 %v4373
        %v4894 = vpop.f32.mrb[0].mxu0
        %v4895 = vadd.f32 0.0, %v4894
        %v4896 = vpop.f32.mrb[0].mxu0
        %4897 = vmatprep.mubr.f32.mxu0 0.0
        %4898 = vmatmul.mubr.f32.gmra.mrb[0].mxu0 %v4376
        %v4899 = vpop.f32.mrb[0].mxu0
        %v4900 = vadd.f32 0.0, %v4899
        %v4901 = vpop.f32.mrb[0].mxu0
        %4902 = vdwg.mxu0
        %4903 = vmatprep.subr.mxu0 0.0
        %4904 = vmatpush1.msra.mxu0 %v4366
        %4905 = vmatprep.subr.mxu0 0.0
        %4906 = vmatpush1.msra.mxu0 %v4368
        %4907 = vmatprep.subr.mxu0 0.0
        %4908 = vmatpush1.msra.mxu0 0.0
        %4909 = vmatprep.subr.mxu0 0.0
        %4910 = vmatpush1.msra.mxu0 0.0
        %4911 = vmatprep.subr.mxu0 0.0
        %4912 = vmatpush1.msra.mxu0 0.0
        %4913 = vmatprep.subr.mxu0 0.0
        %4914 = vmatpush1.msra.mxu0 0.0
        %4915 = vmatprep.subr.mxu0 0.0
        %4916 = vmatpush1.msra.mxu0 0.0
        %4917 = vmatprep.subr.mxu0 0.0
        %4918 = vmatpush1.msra.mxu0 0.0
        %4919 = vmatprep.subr.mxu0 0.0
        %4920 = vmatpush1.msra.mxu0 0.0
        %4921 = vmatprep.subr.mxu0 0.0
        %4922 = vmatpush1.msra.mxu0 0.0
        %4923 = vmatprep.subr.mxu0 0.0
        %4924 = vmatpush1.msra.mxu0 0.0
        %4925 = vmatprep.subr.mxu0 0.0
        %4926 = vmatpush1.msra.mxu0 0.0
        %4927 = vmatprep.subr.mxu0 0.0
        %4928 = vmatpush1.msra.mxu0 0.0
        %4929 = vmatprep.subr.mxu0 0.0
        %4930 = vmatpush1.msra.mxu0 0.0
        %4931 = vmatprep.subr.mxu0 0.0
        %4932 = vmatpush1.msra.mxu0 0.0
        %4933 = vmatprep.subr.mxu0 0.0
        %4934 = vmatpush1.msra.mxu0 0.0
        %4935 = vmatprep.subr.mxu0 0.0
        %4936 = vmatpush1.msra.mxu0 0.0
        %4937 = vmatprep.subr.mxu0 0.0
        %4938 = vmatpush1.msra.mxu0 0.0
        %4939 = vmatprep.subr.mxu0 0.0
        %4940 = vmatpush1.msra.mxu0 0.0
        %4941 = vmatprep.subr.mxu0 0.0
        %4942 = vmatpush1.msra.mxu0 0.0
        %4943 = vmatprep.subr.mxu0 0.0
        %4944 = vmatpush1.msra.mxu0 0.0
        %4945 = vmatprep.subr.mxu0 0.0
        %4946 = vmatpush1.msra.mxu0 0.0
        %4947 = vmatprep.subr.mxu0 0.0
        %4948 = vmatpush1.msra.mxu0 0.0
        %4949 = vmatprep.subr.mxu0 0.0
        %4950 = vmatpush1.msra.mxu0 0.0
        %4951 = vmatprep.subr.mxu0 0.0
        %4952 = vmatpush1.msra.mxu0 0.0
        %4953 = vmatprep.subr.mxu0 0.0
        %4954 = vmatpush1.msra.mxu0 0.0
        %4955 = vmatprep.subr.mxu0 0.0
        %4956 = vmatpush1.msra.mxu0 0.0
        %4957 = vmatprep.subr.mxu0 0.0
        %4958 = vmatpush1.msra.mxu0 0.0
        %4959 = vmatprep.subr.mxu0 0.0
        %4960 = vmatpush1.msra.mxu0 0.0
        %4961 = vmatprep.subr.mxu0 0.0
        %4962 = vmatpush1.msra.mxu0 0.0
        %4963 = vmatprep.subr.mxu0 0.0
        %4964 = vmatpush1.msra.mxu0 0.0
        %4965 = vmatprep.subr.mxu0 0.0
        %4966 = vmatpush1.msra.mxu0 0.0
        %4967 = vmatprep.mubr.f32.mxu0 0.0
        %4968 = vmatmul.mubr.f32.gmra.mrb[0].mxu0 %v4373
        %v4969 = vpop.f32.mrb[0].mxu0
        %v4970 = vadd.f32 0.0, %v4969
        %v4971 = vpop.f32.mrb[0].mxu0
        %4972 = vmatprep.mubr.f32.mxu0 0.0
        %4973 = vmatmul.mubr.f32.gmra.mrb[0].mxu0 %v4376
        %v4974 = vpop.f32.mrb[0].mxu0
        %v4975 = vadd.f32 0.0, %v4974
        %v4976 = vpop.f32.mrb[0].mxu0
        %4977 = vdwg.mxu0
        %v4978 = vadd.f32 %v4321, %v4445
        %v4979 = vadd.f32 %v4322, %v4450
        %v4980 = vadd.f32 %v4323, %v4520
        %v4981 = vadd.f32 %v4324, %v4525
        %v4982 = vadd.f32 %v4325, %v4595
        %v4983 = vadd.f32 %v4326, %v4600
        %v4984 = vadd.f32 %v4327, %v4670
        %v4985 = vadd.f32 %v4328, %v4675
        %v4986 = vadd.f32 %v4329, %v4745
        %v4987 = vadd.f32 %v4330, %v4750
        %v4988 = vadd.f32 %v4331, %v4820
        %v4989 = vadd.f32 %v4332, %v4825
        %v4990 = vadd.f32 %v4333, %v4895
        %v4991 = vadd.f32 %v4334, %v4900
        %v4992 = vadd.f32 %v4335, %v4970
        %v4993 = vadd.f32 %v4336, %v4975
        %4994 = vrot.lane.b32.xlu0 %v1101, 126
        %v4995 = vpop.permute.xlu0 %4994
        %4996 = vrot.lane.b32.xlu0 %v1102, 126
        %v4997 = vpop.permute.xlu0 %4996
        %4998 = vrot.lane.b32.xlu0 %v1103, 126
        %v4999 = vpop.permute.xlu0 %4998
        %5000 = vrot.lane.b32.xlu0 %v1104, 126
        %v5001 = vpop.permute.xlu0 %5000
        %5002 = vrot.lane.b32.xlu0 %v1105, 126
        %v5003 = vpop.permute.xlu0 %5002
        %5004 = vrot.lane.b32.xlu0 %v1106, 126
        %v5005 = vpop.permute.xlu0 %5004
        %5006 = vrot.lane.b32.xlu0 %v1107, 126
        %v5007 = vpop.permute.xlu0 %5006
        %5008 = vrot.lane.b32.xlu0 %v1108, 126
        %v5009 = vpop.permute.xlu0 %5008
        %5010 = vrot.lane.b32.xlu0 %v1109, 126
        %v5011 = vpop.permute.xlu0 %5010
        %5012 = vrot.lane.b32.xlu0 %v1110, 126
        %v5013 = vpop.permute.xlu0 %5012
        %5014 = vrot.lane.b32.xlu0 %v1111, 126
        %v5015 = vpop.permute.xlu0 %5014
        %5016 = vrot.lane.b32.xlu0 %v1112, 126
        %v5017 = vpop.permute.xlu0 %5016
        %5018 = vrot.lane.b32.xlu0 %v1113, 126
        %v5019 = vpop.permute.xlu0 %5018
        %5020 = vrot.lane.b32.xlu0 %v1114, 126
        %v5021 = vpop.permute.xlu0 %5020
        %5022 = vrot.lane.b32.xlu0 %v1115, 126
        %v5023 = vpop.permute.xlu0 %5022
        %5024 = vrot.lane.b32.xlu0 %v1116, 126
        %v5025 = vpop.permute.xlu0 %5024
        %s5026 = scalar_lea.vmem [#allocation5], 96
        %v5027 = vld [vmem:[%s5026] sm:$0xff]
        %v5028 = vld [vmem:[%s5026 + $0x8] sm:$0xff]
        %v5030 = vsel %vm295, %v5027, 0
        %v5033 = vsel %vm295, %v5028, 0
        %5035 = vmatprep.subr.mxu0 0.0
        %5036 = vmatpush1.msra.mxu0 %v4995
        %5037 = vmatprep.subr.mxu0 0.0
        %5038 = vmatpush1.msra.mxu0 %v4997
        %5039 = vmatprep.subr.mxu0 0.0
        %5040 = vmatpush1.msra.mxu0 0.0
        %5041 = vmatprep.subr.mxu0 0.0
        %5042 = vmatpush1.msra.mxu0 0.0
        %5043 = vmatprep.subr.mxu0 0.0
        %5044 = vmatpush1.msra.mxu0 0.0
        %5045 = vmatprep.subr.mxu0 0.0
        %5046 = vmatpush1.msra.mxu0 0.0
        %5047 = vmatprep.subr.mxu0 0.0
        %5048 = vmatpush1.msra.mxu0 0.0
        %5049 = vmatprep.subr.mxu0 0.0
        %5050 = vmatpush1.msra.mxu0 0.0
        %5051 = vmatprep.subr.mxu0 0.0
        %5052 = vmatpush1.msra.mxu0 0.0
        %5053 = vmatprep.subr.mxu0 0.0
        %5054 = vmatpush1.msra.mxu0 0.0
        %5055 = vmatprep.subr.mxu0 0.0
        %5056 = vmatpush1.msra.mxu0 0.0
        %5057 = vmatprep.subr.mxu0 0.0
        %5058 = vmatpush1.msra.mxu0 0.0
        %5059 = vmatprep.subr.mxu0 0.0
        %5060 = vmatpush1.msra.mxu0 0.0
        %5061 = vmatprep.subr.mxu0 0.0
        %5062 = vmatpush1.msra.mxu0 0.0
        %5063 = vmatprep.subr.mxu0 0.0
        %5064 = vmatpush1.msra.mxu0 0.0
        %5065 = vmatprep.subr.mxu0 0.0
        %5066 = vmatpush1.msra.mxu0 0.0
        %5067 = vmatprep.subr.mxu0 0.0
        %5068 = vmatpush1.msra.mxu0 0.0
        %5069 = vmatprep.subr.mxu0 0.0
        %5070 = vmatpush1.msra.mxu0 0.0
        %5071 = vmatprep.subr.mxu0 0.0
        %5072 = vmatpush1.msra.mxu0 0.0
        %5073 = vmatprep.subr.mxu0 0.0
        %5074 = vmatpush1.msra.mxu0 0.0
        %5075 = vmatprep.subr.mxu0 0.0
        %5076 = vmatpush1.msra.mxu0 0.0
        %5077 = vmatprep.subr.mxu0 0.0
        %5078 = vmatpush1.msra.mxu0 0.0
        %5079 = vmatprep.subr.mxu0 0.0
        %5080 = vmatpush1.msra.mxu0 0.0
        %5081 = vmatprep.subr.mxu0 0.0
        %5082 = vmatpush1.msra.mxu0 0.0
        %5083 = vmatprep.subr.mxu0 0.0
        %5084 = vmatpush1.msra.mxu0 0.0
        %5085 = vmatprep.subr.mxu0 0.0
        %5086 = vmatpush1.msra.mxu0 0.0
        %5087 = vmatprep.subr.mxu0 0.0
        %5088 = vmatpush1.msra.mxu0 0.0
        %5089 = vmatprep.subr.mxu0 0.0
        %5090 = vmatpush1.msra.mxu0 0.0
        %5091 = vmatprep.subr.mxu0 0.0
        %5092 = vmatpush1.msra.mxu0 0.0
        %5093 = vmatprep.subr.mxu0 0.0
        %5094 = vmatpush1.msra.mxu0 0.0
        %5095 = vmatprep.subr.mxu0 0.0
        %5096 = vmatpush1.msra.mxu0 0.0
        %5097 = vmatprep.subr.mxu0 0.0
        %5098 = vmatpush1.msra.mxu0 0.0
        %5099 = vmatprep.mubr.f32.mxu0 0.0
        %5100 = vmatmul.mubr.f32.gmra.mrb[0].mxu0 %v5030
        %v5101 = vpop.f32.mrb[0].mxu0
        %v5102 = vadd.f32 0.0, %v5101
        %v5103 = vpop.f32.mrb[0].mxu0
        %5104 = vmatprep.mubr.f32.mxu0 0.0
        %5105 = vmatmul.mubr.f32.gmra.mrb[0].mxu0 %v5033
        %v5106 = vpop.f32.mrb[0].mxu0
        %v5107 = vadd.f32 0.0, %v5106
        %v5108 = vpop.f32.mrb[0].mxu0
        %5109 = vdwg.mxu0
        %5110 = vmatprep.subr.mxu0 0.0
        %5111 = vmatpush1.msra.mxu0 %v4999
        %5112 = vmatprep.subr.mxu0 0.0
        %5113 = vmatpush1.msra.mxu0 %v5001
        %5114 = vmatprep.subr.mxu0 0.0
        %5115 = vmatpush1.msra.mxu0 0.0
        %5116 = vmatprep.subr.mxu0 0.0
        %5117 = vmatpush1.msra.mxu0 0.0
        %5118 = vmatprep.subr.mxu0 0.0
        %5119 = vmatpush1.msra.mxu0 0.0
        %5120 = vmatprep.subr.mxu0 0.0
        %5121 = vmatpush1.msra.mxu0 0.0
        %5122 = vmatprep.subr.mxu0 0.0
        %5123 = vmatpush1.msra.mxu0 0.0
        %5124 = vmatprep.subr.mxu0 0.0
        %5125 = vmatpush1.msra.mxu0 0.0
        %5126 = vmatprep.subr.mxu0 0.0
        %5127 = vmatpush1.msra.mxu0 0.0
        %5128 = vmatprep.subr.mxu0 0.0
        %5129 = vmatpush1.msra.mxu0 0.0
        %5130 = vmatprep.subr.mxu0 0.0
        %5131 = vmatpush1.msra.mxu0 0.0
        %5132 = vmatprep.subr.mxu0 0.0
        %5133 = vmatpush1.msra.mxu0 0.0
        %5134 = vmatprep.subr.mxu0 0.0
        %5135 = vmatpush1.msra.mxu0 0.0
        %5136 = vmatprep.subr.mxu0 0.0
        %5137 = vmatpush1.msra.mxu0 0.0
        %5138 = vmatprep.subr.mxu0 0.0
        %5139 = vmatpush1.msra.mxu0 0.0
        %5140 = vmatprep.subr.mxu0 0.0
        %5141 = vmatpush1.msra.mxu0 0.0
        %5142 = vmatprep.subr.mxu0 0.0
        %5143 = vmatpush1.msra.mxu0 0.0
        %5144 = vmatprep.subr.mxu0 0.0
        %5145 = vmatpush1.msra.mxu0 0.0
        %5146 = vmatprep.subr.mxu0 0.0
        %5147 = vmatpush1.msra.mxu0 0.0
        %5148 = vmatprep.subr.mxu0 0.0
        %5149 = vmatpush1.msra.mxu0 0.0
        %5150 = vmatprep.subr.mxu0 0.0
        %5151 = vmatpush1.msra.mxu0 0.0
        %5152 = vmatprep.subr.mxu0 0.0
        %5153 = vmatpush1.msra.mxu0 0.0
        %5154 = vmatprep.subr.mxu0 0.0
        %5155 = vmatpush1.msra.mxu0 0.0
        %5156 = vmatprep.subr.mxu0 0.0
        %5157 = vmatpush1.msra.mxu0 0.0
        %5158 = vmatprep.subr.mxu0 0.0
        %5159 = vmatpush1.msra.mxu0 0.0
        %5160 = vmatprep.subr.mxu0 0.0
        %5161 = vmatpush1.msra.mxu0 0.0
        %5162 = vmatprep.subr.mxu0 0.0
        %5163 = vmatpush1.msra.mxu0 0.0
        %5164 = vmatprep.subr.mxu0 0.0
        %5165 = vmatpush1.msra.mxu0 0.0
        %5166 = vmatprep.subr.mxu0 0.0
        %5167 = vmatpush1.msra.mxu0 0.0
        %5168 = vmatprep.subr.mxu0 0.0
        %5169 = vmatpush1.msra.mxu0 0.0
        %5170 = vmatprep.subr.mxu0 0.0
        %5171 = vmatpush1.msra.mxu0 0.0
        %5172 = vmatprep.subr.mxu0 0.0
        %5173 = vmatpush1.msra.mxu0 0.0
        %5174 = vmatprep.mubr.f32.mxu0 0.0
        %5175 = vmatmul.mubr.f32.gmra.mrb[0].mxu0 %v5030
        %v5176 = vpop.f32.mrb[0].mxu0
        %v5177 = vadd.f32 0.0, %v5176
        %v5178 = vpop.f32.mrb[0].mxu0
        %5179 = vmatprep.mubr.f32.mxu0 0.0
        %5180 = vmatmul.mubr.f32.gmra.mrb[0].mxu0 %v5033
        %v5181 = vpop.f32.mrb[0].mxu0
        %v5182 = vadd.f32 0.0, %v5181
        %v5183 = vpop.f32.mrb[0].mxu0
        %5184 = vdwg.mxu0
        %5185 = vmatprep.subr.mxu0 0.0
        %5186 = vmatpush1.msra.mxu0 %v5003
        %5187 = vmatprep.subr.mxu0 0.0
        %5188 = vmatpush1.msra.mxu0 %v5005
        %5189 = vmatprep.subr.mxu0 0.0
        %5190 = vmatpush1.msra.mxu0 0.0
        %5191 = vmatprep.subr.mxu0 0.0
        %5192 = vmatpush1.msra.mxu0 0.0
        %5193 = vmatprep.subr.mxu0 0.0
        %5194 = vmatpush1.msra.mxu0 0.0
        %5195 = vmatprep.subr.mxu0 0.0
        %5196 = vmatpush1.msra.mxu0 0.0
        %5197 = vmatprep.subr.mxu0 0.0
        %5198 = vmatpush1.msra.mxu0 0.0
        %5199 = vmatprep.subr.mxu0 0.0
        %5200 = vmatpush1.msra.mxu0 0.0
        %5201 = vmatprep.subr.mxu0 0.0
        %5202 = vmatpush1.msra.mxu0 0.0
        %5203 = vmatprep.subr.mxu0 0.0
        %5204 = vmatpush1.msra.mxu0 0.0
        %5205 = vmatprep.subr.mxu0 0.0
        %5206 = vmatpush1.msra.mxu0 0.0
        %5207 = vmatprep.subr.mxu0 0.0
        %5208 = vmatpush1.msra.mxu0 0.0
        %5209 = vmatprep.subr.mxu0 0.0
        %5210 = vmatpush1.msra.mxu0 0.0
        %5211 = vmatprep.subr.mxu0 0.0
        %5212 = vmatpush1.msra.mxu0 0.0
        %5213 = vmatprep.subr.mxu0 0.0
        %5214 = vmatpush1.msra.mxu0 0.0
        %5215 = vmatprep.subr.mxu0 0.0
        %5216 = vmatpush1.msra.mxu0 0.0
        %5217 = vmatprep.subr.mxu0 0.0
        %5218 = vmatpush1.msra.mxu0 0.0
        %5219 = vmatprep.subr.mxu0 0.0
        %5220 = vmatpush1.msra.mxu0 0.0
        %5221 = vmatprep.subr.mxu0 0.0
        %5222 = vmatpush1.msra.mxu0 0.0
        %5223 = vmatprep.subr.mxu0 0.0
        %5224 = vmatpush1.msra.mxu0 0.0
        %5225 = vmatprep.subr.mxu0 0.0
        %5226 = vmatpush1.msra.mxu0 0.0
        %5227 = vmatprep.subr.mxu0 0.0
        %5228 = vmatpush1.msra.mxu0 0.0
        %5229 = vmatprep.subr.mxu0 0.0
        %5230 = vmatpush1.msra.mxu0 0.0
        %5231 = vmatprep.subr.mxu0 0.0
        %5232 = vmatpush1.msra.mxu0 0.0
        %5233 = vmatprep.subr.mxu0 0.0
        %5234 = vmatpush1.msra.mxu0 0.0
        %5235 = vmatprep.subr.mxu0 0.0
        %5236 = vmatpush1.msra.mxu0 0.0
        %5237 = vmatprep.subr.mxu0 0.0
        %5238 = vmatpush1.msra.mxu0 0.0
        %5239 = vmatprep.subr.mxu0 0.0
        %5240 = vmatpush1.msra.mxu0 0.0
        %5241 = vmatprep.subr.mxu0 0.0
        %5242 = vmatpush1.msra.mxu0 0.0
        %5243 = vmatprep.subr.mxu0 0.0
        %5244 = vmatpush1.msra.mxu0 0.0
        %5245 = vmatprep.subr.mxu0 0.0
        %5246 = vmatpush1.msra.mxu0 0.0
        %5247 = vmatprep.subr.mxu0 0.0
        %5248 = vmatpush1.msra.mxu0 0.0
        %5249 = vmatprep.mubr.f32.mxu0 0.0
        %5250 = vmatmul.mubr.f32.gmra.mrb[0].mxu0 %v5030
        %v5251 = vpop.f32.mrb[0].mxu0
        %v5252 = vadd.f32 0.0, %v5251
        %v5253 = vpop.f32.mrb[0].mxu0
        %5254 = vmatprep.mubr.f32.mxu0 0.0
        %5255 = vmatmul.mubr.f32.gmra.mrb[0].mxu0 %v5033
        %v5256 = vpop.f32.mrb[0].mxu0
        %v5257 = vadd.f32 0.0, %v5256
        %v5258 = vpop.f32.mrb[0].mxu0
        %5259 = vdwg.mxu0
        %5260 = vmatprep.subr.mxu0 0.0
        %5261 = vmatpush1.msra.mxu0 %v5007
        %5262 = vmatprep.subr.mxu0 0.0
        %5263 = vmatpush1.msra.mxu0 %v5009
        %5264 = vmatprep.subr.mxu0 0.0
        %5265 = vmatpush1.msra.mxu0 0.0
        %5266 = vmatprep.subr.mxu0 0.0
        %5267 = vmatpush1.msra.mxu0 0.0
        %5268 = vmatprep.subr.mxu0 0.0
        %5269 = vmatpush1.msra.mxu0 0.0
        %5270 = vmatprep.subr.mxu0 0.0
        %5271 = vmatpush1.msra.mxu0 0.0
        %5272 = vmatprep.subr.mxu0 0.0
        %5273 = vmatpush1.msra.mxu0 0.0
        %5274 = vmatprep.subr.mxu0 0.0
        %5275 = vmatpush1.msra.mxu0 0.0
        %5276 = vmatprep.subr.mxu0 0.0
        %5277 = vmatpush1.msra.mxu0 0.0
        %5278 = vmatprep.subr.mxu0 0.0
        %5279 = vmatpush1.msra.mxu0 0.0
        %5280 = vmatprep.subr.mxu0 0.0
        %5281 = vmatpush1.msra.mxu0 0.0
        %5282 = vmatprep.subr.mxu0 0.0
        %5283 = vmatpush1.msra.mxu0 0.0
        %5284 = vmatprep.subr.mxu0 0.0
        %5285 = vmatpush1.msra.mxu0 0.0
        %5286 = vmatprep.subr.mxu0 0.0
        %5287 = vmatpush1.msra.mxu0 0.0
        %5288 = vmatprep.subr.mxu0 0.0
        %5289 = vmatpush1.msra.mxu0 0.0
        %5290 = vmatprep.subr.mxu0 0.0
        %5291 = vmatpush1.msra.mxu0 0.0
        %5292 = vmatprep.subr.mxu0 0.0
        %5293 = vmatpush1.msra.mxu0 0.0
        %5294 = vmatprep.subr.mxu0 0.0
        %5295 = vmatpush1.msra.mxu0 0.0
        %5296 = vmatprep.subr.mxu0 0.0
        %5297 = vmatpush1.msra.mxu0 0.0
        %5298 = vmatprep.subr.mxu0 0.0
        %5299 = vmatpush1.msra.mxu0 0.0
        %5300 = vmatprep.subr.mxu0 0.0
        %5301 = vmatpush1.msra.mxu0 0.0
        %5302 = vmatprep.subr.mxu0 0.0
        %5303 = vmatpush1.msra.mxu0 0.0
        %5304 = vmatprep.subr.mxu0 0.0
        %5305 = vmatpush1.msra.mxu0 0.0
        %5306 = vmatprep.subr.mxu0 0.0
        %5307 = vmatpush1.msra.mxu0 0.0
        %5308 = vmatprep.subr.mxu0 0.0
        %5309 = vmatpush1.msra.mxu0 0.0
        %5310 = vmatprep.subr.mxu0 0.0
        %5311 = vmatpush1.msra.mxu0 0.0
        %5312 = vmatprep.subr.mxu0 0.0
        %5313 = vmatpush1.msra.mxu0 0.0
        %5314 = vmatprep.subr.mxu0 0.0
        %5315 = vmatpush1.msra.mxu0 0.0
        %5316 = vmatprep.subr.mxu0 0.0
        %5317 = vmatpush1.msra.mxu0 0.0
        %5318 = vmatprep.subr.mxu0 0.0
        %5319 = vmatpush1.msra.mxu0 0.0
        %5320 = vmatprep.subr.mxu0 0.0
        %5321 = vmatpush1.msra.mxu0 0.0
        %5322 = vmatprep.subr.mxu0 0.0
        %5323 = vmatpush1.msra.mxu0 0.0
        %5324 = vmatprep.mubr.f32.mxu0 0.0
        %5325 = vmatmul.mubr.f32.gmra.mrb[0].mxu0 %v5030
        %v5326 = vpop.f32.mrb[0].mxu0
        %v5327 = vadd.f32 0.0, %v5326
        %v5328 = vpop.f32.mrb[0].mxu0
        %5329 = vmatprep.mubr.f32.mxu0 0.0
        %5330 = vmatmul.mubr.f32.gmra.mrb[0].mxu0 %v5033
        %v5331 = vpop.f32.mrb[0].mxu0
        %v5332 = vadd.f32 0.0, %v5331
        %v5333 = vpop.f32.mrb[0].mxu0
        %5334 = vdwg.mxu0
        %5335 = vmatprep.subr.mxu0 0.0
        %5336 = vmatpush1.msra.mxu0 %v5011
        %5337 = vmatprep.subr.mxu0 0.0
        %5338 = vmatpush1.msra.mxu0 %v5013
        %5339 = vmatprep.subr.mxu0 0.0
        %5340 = vmatpush1.msra.mxu0 0.0
        %5341 = vmatprep.subr.mxu0 0.0
        %5342 = vmatpush1.msra.mxu0 0.0
        %5343 = vmatprep.subr.mxu0 0.0
        %5344 = vmatpush1.msra.mxu0 0.0
        %5345 = vmatprep.subr.mxu0 0.0
        %5346 = vmatpush1.msra.mxu0 0.0
        %5347 = vmatprep.subr.mxu0 0.0
        %5348 = vmatpush1.msra.mxu0 0.0
        %5349 = vmatprep.subr.mxu0 0.0
        %5350 = vmatpush1.msra.mxu0 0.0
        %5351 = vmatprep.subr.mxu0 0.0
        %5352 = vmatpush1.msra.mxu0 0.0
        %5353 = vmatprep.subr.mxu0 0.0
        %5354 = vmatpush1.msra.mxu0 0.0
        %5355 = vmatprep.subr.mxu0 0.0
        %5356 = vmatpush1.msra.mxu0 0.0
        %5357 = vmatprep.subr.mxu0 0.0
        %5358 = vmatpush1.msra.mxu0 0.0
        %5359 = vmatprep.subr.mxu0 0.0
        %5360 = vmatpush1.msra.mxu0 0.0
        %5361 = vmatprep.subr.mxu0 0.0
        %5362 = vmatpush1.msra.mxu0 0.0
        %5363 = vmatprep.subr.mxu0 0.0
        %5364 = vmatpush1.msra.mxu0 0.0
        %5365 = vmatprep.subr.mxu0 0.0
        %5366 = vmatpush1.msra.mxu0 0.0
        %5367 = vmatprep.subr.mxu0 0.0
        %5368 = vmatpush1.msra.mxu0 0.0
        %5369 = vmatprep.subr.mxu0 0.0
        %5370 = vmatpush1.msra.mxu0 0.0
        %5371 = vmatprep.subr.mxu0 0.0
        %5372 = vmatpush1.msra.mxu0 0.0
        %5373 = vmatprep.subr.mxu0 0.0
        %5374 = vmatpush1.msra.mxu0 0.0
        %5375 = vmatprep.subr.mxu0 0.0
        %5376 = vmatpush1.msra.mxu0 0.0
        %5377 = vmatprep.subr.mxu0 0.0
        %5378 = vmatpush1.msra.mxu0 0.0
        %5379 = vmatprep.subr.mxu0 0.0
        %5380 = vmatpush1.msra.mxu0 0.0
        %5381 = vmatprep.subr.mxu0 0.0
        %5382 = vmatpush1.msra.mxu0 0.0
        %5383 = vmatprep.subr.mxu0 0.0
        %5384 = vmatpush1.msra.mxu0 0.0
        %5385 = vmatprep.subr.mxu0 0.0
        %5386 = vmatpush1.msra.mxu0 0.0
        %5387 = vmatprep.subr.mxu0 0.0
        %5388 = vmatpush1.msra.mxu0 0.0
        %5389 = vmatprep.subr.mxu0 0.0
        %5390 = vmatpush1.msra.mxu0 0.0
        %5391 = vmatprep.subr.mxu0 0.0
        %5392 = vmatpush1.msra.mxu0 0.0
        %5393 = vmatprep.subr.mxu0 0.0
        %5394 = vmatpush1.msra.mxu0 0.0
        %5395 = vmatprep.subr.mxu0 0.0
        %5396 = vmatpush1.msra.mxu0 0.0
        %5397 = vmatprep.subr.mxu0 0.0
        %5398 = vmatpush1.msra.mxu0 0.0
        %5399 = vmatprep.mubr.f32.mxu0 0.0
        %5400 = vmatmul.mubr.f32.gmra.mrb[0].mxu0 %v5030
        %v5401 = vpop.f32.mrb[0].mxu0
        %v5402 = vadd.f32 0.0, %v5401
        %v5403 = vpop.f32.mrb[0].mxu0
        %5404 = vmatprep.mubr.f32.mxu0 0.0
        %5405 = vmatmul.mubr.f32.gmra.mrb[0].mxu0 %v5033
        %v5406 = vpop.f32.mrb[0].mxu0
        %v5407 = vadd.f32 0.0, %v5406
        %v5408 = vpop.f32.mrb[0].mxu0
        %5409 = vdwg.mxu0
        %5410 = vmatprep.subr.mxu0 0.0
        %5411 = vmatpush1.msra.mxu0 %v5015
        %5412 = vmatprep.subr.mxu0 0.0
        %5413 = vmatpush1.msra.mxu0 %v5017
        %5414 = vmatprep.subr.mxu0 0.0
        %5415 = vmatpush1.msra.mxu0 0.0
        %5416 = vmatprep.subr.mxu0 0.0
        %5417 = vmatpush1.msra.mxu0 0.0
        %5418 = vmatprep.subr.mxu0 0.0
        %5419 = vmatpush1.msra.mxu0 0.0
        %5420 = vmatprep.subr.mxu0 0.0
        %5421 = vmatpush1.msra.mxu0 0.0
        %5422 = vmatprep.subr.mxu0 0.0
        %5423 = vmatpush1.msra.mxu0 0.0
        %5424 = vmatprep.subr.mxu0 0.0
        %5425 = vmatpush1.msra.mxu0 0.0
        %5426 = vmatprep.subr.mxu0 0.0
        %5427 = vmatpush1.msra.mxu0 0.0
        %5428 = vmatprep.subr.mxu0 0.0
        %5429 = vmatpush1.msra.mxu0 0.0
        %5430 = vmatprep.subr.mxu0 0.0
        %5431 = vmatpush1.msra.mxu0 0.0
        %5432 = vmatprep.subr.mxu0 0.0
        %5433 = vmatpush1.msra.mxu0 0.0
        %5434 = vmatprep.subr.mxu0 0.0
        %5435 = vmatpush1.msra.mxu0 0.0
        %5436 = vmatprep.subr.mxu0 0.0
        %5437 = vmatpush1.msra.mxu0 0.0
        %5438 = vmatprep.subr.mxu0 0.0
        %5439 = vmatpush1.msra.mxu0 0.0
        %5440 = vmatprep.subr.mxu0 0.0
        %5441 = vmatpush1.msra.mxu0 0.0
        %5442 = vmatprep.subr.mxu0 0.0
        %5443 = vmatpush1.msra.mxu0 0.0
        %5444 = vmatprep.subr.mxu0 0.0
        %5445 = vmatpush1.msra.mxu0 0.0
        %5446 = vmatprep.subr.mxu0 0.0
        %5447 = vmatpush1.msra.mxu0 0.0
        %5448 = vmatprep.subr.mxu0 0.0
        %5449 = vmatpush1.msra.mxu0 0.0
        %5450 = vmatprep.subr.mxu0 0.0
        %5451 = vmatpush1.msra.mxu0 0.0
        %5452 = vmatprep.subr.mxu0 0.0
        %5453 = vmatpush1.msra.mxu0 0.0
        %5454 = vmatprep.subr.mxu0 0.0
        %5455 = vmatpush1.msra.mxu0 0.0
        %5456 = vmatprep.subr.mxu0 0.0
        %5457 = vmatpush1.msra.mxu0 0.0
        %5458 = vmatprep.subr.mxu0 0.0
        %5459 = vmatpush1.msra.mxu0 0.0
        %5460 = vmatprep.subr.mxu0 0.0
        %5461 = vmatpush1.msra.mxu0 0.0
        %5462 = vmatprep.subr.mxu0 0.0
        %5463 = vmatpush1.msra.mxu0 0.0
        %5464 = vmatprep.subr.mxu0 0.0
        %5465 = vmatpush1.msra.mxu0 0.0
        %5466 = vmatprep.subr.mxu0 0.0
        %5467 = vmatpush1.msra.mxu0 0.0
        %5468 = vmatprep.subr.mxu0 0.0
        %5469 = vmatpush1.msra.mxu0 0.0
        %5470 = vmatprep.subr.mxu0 0.0
        %5471 = vmatpush1.msra.mxu0 0.0
        %5472 = vmatprep.subr.mxu0 0.0
        %5473 = vmatpush1.msra.mxu0 0.0
        %5474 = vmatprep.mubr.f32.mxu0 0.0
        %5475 = vmatmul.mubr.f32.gmra.mrb[0].mxu0 %v5030
        %v5476 = vpop.f32.mrb[0].mxu0
        %v5477 = vadd.f32 0.0, %v5476
        %v5478 = vpop.f32.mrb[0].mxu0
        %5479 = vmatprep.mubr.f32.mxu0 0.0
        %5480 = vmatmul.mubr.f32.gmra.mrb[0].mxu0 %v5033
        %v5481 = vpop.f32.mrb[0].mxu0
        %v5482 = vadd.f32 0.0, %v5481
        %v5483 = vpop.f32.mrb[0].mxu0
        %5484 = vdwg.mxu0
        %5485 = vmatprep.subr.mxu0 0.0
        %5486 = vmatpush1.msra.mxu0 %v5019
        %5487 = vmatprep.subr.mxu0 0.0
        %5488 = vmatpush1.msra.mxu0 %v5021
        %5489 = vmatprep.subr.mxu0 0.0
        %5490 = vmatpush1.msra.mxu0 0.0
        %5491 = vmatprep.subr.mxu0 0.0
        %5492 = vmatpush1.msra.mxu0 0.0
        %5493 = vmatprep.subr.mxu0 0.0
        %5494 = vmatpush1.msra.mxu0 0.0
        %5495 = vmatprep.subr.mxu0 0.0
        %5496 = vmatpush1.msra.mxu0 0.0
        %5497 = vmatprep.subr.mxu0 0.0
        %5498 = vmatpush1.msra.mxu0 0.0
        %5499 = vmatprep.subr.mxu0 0.0
        %5500 = vmatpush1.msra.mxu0 0.0
        %5501 = vmatprep.subr.mxu0 0.0
        %5502 = vmatpush1.msra.mxu0 0.0
        %5503 = vmatprep.subr.mxu0 0.0
        %5504 = vmatpush1.msra.mxu0 0.0
        %5505 = vmatprep.subr.mxu0 0.0
        %5506 = vmatpush1.msra.mxu0 0.0
        %5507 = vmatprep.subr.mxu0 0.0
        %5508 = vmatpush1.msra.mxu0 0.0
        %5509 = vmatprep.subr.mxu0 0.0
        %5510 = vmatpush1.msra.mxu0 0.0
        %5511 = vmatprep.subr.mxu0 0.0
        %5512 = vmatpush1.msra.mxu0 0.0
        %5513 = vmatprep.subr.mxu0 0.0
        %5514 = vmatpush1.msra.mxu0 0.0
        %5515 = vmatprep.subr.mxu0 0.0
        %5516 = vmatpush1.msra.mxu0 0.0
        %5517 = vmatprep.subr.mxu0 0.0
        %5518 = vmatpush1.msra.mxu0 0.0
        %5519 = vmatprep.subr.mxu0 0.0
        %5520 = vmatpush1.msra.mxu0 0.0
        %5521 = vmatprep.subr.mxu0 0.0
        %5522 = vmatpush1.msra.mxu0 0.0
        %5523 = vmatprep.subr.mxu0 0.0
        %5524 = vmatpush1.msra.mxu0 0.0
        %5525 = vmatprep.subr.mxu0 0.0
        %5526 = vmatpush1.msra.mxu0 0.0
        %5527 = vmatprep.subr.mxu0 0.0
        %5528 = vmatpush1.msra.mxu0 0.0
        %5529 = vmatprep.subr.mxu0 0.0
        %5530 = vmatpush1.msra.mxu0 0.0
        %5531 = vmatprep.subr.mxu0 0.0
        %5532 = vmatpush1.msra.mxu0 0.0
        %5533 = vmatprep.subr.mxu0 0.0
        %5534 = vmatpush1.msra.mxu0 0.0
        %5535 = vmatprep.subr.mxu0 0.0
        %5536 = vmatpush1.msra.mxu0 0.0
        %5537 = vmatprep.subr.mxu0 0.0
        %5538 = vmatpush1.msra.mxu0 0.0
        %5539 = vmatprep.subr.mxu0 0.0
        %5540 = vmatpush1.msra.mxu0 0.0
        %5541 = vmatprep.subr.mxu0 0.0
        %5542 = vmatpush1.msra.mxu0 0.0
        %5543 = vmatprep.subr.mxu0 0.0
        %5544 = vmatpush1.msra.mxu0 0.0
        %5545 = vmatprep.subr.mxu0 0.0
        %5546 = vmatpush1.msra.mxu0 0.0
        %5547 = vmatprep.subr.mxu0 0.0
        %5548 = vmatpush1.msra.mxu0 0.0
        %5549 = vmatprep.mubr.f32.mxu0 0.0
        %5550 = vmatmul.mubr.f32.gmra.mrb[0].mxu0 %v5030
        %v5551 = vpop.f32.mrb[0].mxu0
        %v5552 = vadd.f32 0.0, %v5551
        %v5553 = vpop.f32.mrb[0].mxu0
        %5554 = vmatprep.mubr.f32.mxu0 0.0
        %5555 = vmatmul.mubr.f32.gmra.mrb[0].mxu0 %v5033
        %v5556 = vpop.f32.mrb[0].mxu0
        %v5557 = vadd.f32 0.0, %v5556
        %v5558 = vpop.f32.mrb[0].mxu0
        %5559 = vdwg.mxu0
        %5560 = vmatprep.subr.mxu0 0.0
        %5561 = vmatpush1.msra.mxu0 %v5023
        %5562 = vmatprep.subr.mxu0 0.0
        %5563 = vmatpush1.msra.mxu0 %v5025
        %5564 = vmatprep.subr.mxu0 0.0
        %5565 = vmatpush1.msra.mxu0 0.0
        %5566 = vmatprep.subr.mxu0 0.0
        %5567 = vmatpush1.msra.mxu0 0.0
        %5568 = vmatprep.subr.mxu0 0.0
        %5569 = vmatpush1.msra.mxu0 0.0
        %5570 = vmatprep.subr.mxu0 0.0
        %5571 = vmatpush1.msra.mxu0 0.0
        %5572 = vmatprep.subr.mxu0 0.0
        %5573 = vmatpush1.msra.mxu0 0.0
        %5574 = vmatprep.subr.mxu0 0.0
        %5575 = vmatpush1.msra.mxu0 0.0
        %5576 = vmatprep.subr.mxu0 0.0
        %5577 = vmatpush1.msra.mxu0 0.0
        %5578 = vmatprep.subr.mxu0 0.0
        %5579 = vmatpush1.msra.mxu0 0.0
        %5580 = vmatprep.subr.mxu0 0.0
        %5581 = vmatpush1.msra.mxu0 0.0
        %5582 = vmatprep.subr.mxu0 0.0
        %5583 = vmatpush1.msra.mxu0 0.0
        %5584 = vmatprep.subr.mxu0 0.0
        %5585 = vmatpush1.msra.mxu0 0.0
        %5586 = vmatprep.subr.mxu0 0.0
        %5587 = vmatpush1.msra.mxu0 0.0
        %5588 = vmatprep.subr.mxu0 0.0
        %5589 = vmatpush1.msra.mxu0 0.0
        %5590 = vmatprep.subr.mxu0 0.0
        %5591 = vmatpush1.msra.mxu0 0.0
        %5592 = vmatprep.subr.mxu0 0.0
        %5593 = vmatpush1.msra.mxu0 0.0
        %5594 = vmatprep.subr.mxu0 0.0
        %5595 = vmatpush1.msra.mxu0 0.0
        %5596 = vmatprep.subr.mxu0 0.0
        %5597 = vmatpush1.msra.mxu0 0.0
        %5598 = vmatprep.subr.mxu0 0.0
        %5599 = vmatpush1.msra.mxu0 0.0
        %5600 = vmatprep.subr.mxu0 0.0
        %5601 = vmatpush1.msra.mxu0 0.0
        %5602 = vmatprep.subr.mxu0 0.0
        %5603 = vmatpush1.msra.mxu0 0.0
        %5604 = vmatprep.subr.mxu0 0.0
        %5605 = vmatpush1.msra.mxu0 0.0
        %5606 = vmatprep.subr.mxu0 0.0
        %5607 = vmatpush1.msra.mxu0 0.0
        %5608 = vmatprep.subr.mxu0 0.0
        %5609 = vmatpush1.msra.mxu0 0.0
        %5610 = vmatprep.subr.mxu0 0.0
        %5611 = vmatpush1.msra.mxu0 0.0
        %5612 = vmatprep.subr.mxu0 0.0
        %5613 = vmatpush1.msra.mxu0 0.0
        %5614 = vmatprep.subr.mxu0 0.0
        %5615 = vmatpush1.msra.mxu0 0.0
        %5616 = vmatprep.subr.mxu0 0.0
        %5617 = vmatpush1.msra.mxu0 0.0
        %5618 = vmatprep.subr.mxu0 0.0
        %5619 = vmatpush1.msra.mxu0 0.0
        %5620 = vmatprep.subr.mxu0 0.0
        %5621 = vmatpush1.msra.mxu0 0.0
        %5622 = vmatprep.subr.mxu0 0.0
        %5623 = vmatpush1.msra.mxu0 0.0
        %5624 = vmatprep.mubr.f32.mxu0 0.0
        %5625 = vmatmul.mubr.f32.gmra.mrb[0].mxu0 %v5030
        %v5626 = vpop.f32.mrb[0].mxu0
        %v5627 = vadd.f32 0.0, %v5626
        %v5628 = vpop.f32.mrb[0].mxu0
        %5629 = vmatprep.mubr.f32.mxu0 0.0
        %5630 = vmatmul.mubr.f32.gmra.mrb[0].mxu0 %v5033
        %v5631 = vpop.f32.mrb[0].mxu0
        %v5632 = vadd.f32 0.0, %v5631
        %v5633 = vpop.f32.mrb[0].mxu0
        %5634 = vdwg.mxu0
        %v5635 = vadd.f32 %v4978, %v5102
        %v5636 = vadd.f32 %v4979, %v5107
        %v5637 = vadd.f32 %v4980, %v5177
        %v5638 = vadd.f32 %v4981, %v5182
        %v5639 = vadd.f32 %v4982, %v5252
        %v5640 = vadd.f32 %v4983, %v5257
        %v5641 = vadd.f32 %v4984, %v5327
        %v5642 = vadd.f32 %v4985, %v5332
        %v5643 = vadd.f32 %v4986, %v5402
        %v5644 = vadd.f32 %v4987, %v5407
        %v5645 = vadd.f32 %v4988, %v5477
        %v5646 = vadd.f32 %v4989, %v5482
        %v5647 = vadd.f32 %v4990, %v5552
        %v5648 = vadd.f32 %v4991, %v5557
        %v5649 = vadd.f32 %v4992, %v5627
        %v5650 = vadd.f32 %v4993, %v5632
        %5651 = vrot.lane.b32.xlu0 %v1101, 125
        %v5652 = vpop.permute.xlu0 %5651
        %5653 = vrot.lane.b32.xlu0 %v1102, 125
        %v5654 = vpop.permute.xlu0 %5653
        %5655 = vrot.lane.b32.xlu0 %v1103, 125
        %v5656 = vpop.permute.xlu0 %5655
        %5657 = vrot.lane.b32.xlu0 %v1104, 125
        %v5658 = vpop.permute.xlu0 %5657
        %5659 = vrot.lane.b32.xlu0 %v1105, 125
        %v5660 = vpop.permute.xlu0 %5659
        %5661 = vrot.lane.b32.xlu0 %v1106, 125
        %v5662 = vpop.permute.xlu0 %5661
        %5663 = vrot.lane.b32.xlu0 %v1107, 125
        %v5664 = vpop.permute.xlu0 %5663
        %5665 = vrot.lane.b32.xlu0 %v1108, 125
        %v5666 = vpop.permute.xlu0 %5665
        %5667 = vrot.lane.b32.xlu0 %v1109, 125
        %v5668 = vpop.permute.xlu0 %5667
        %5669 = vrot.lane.b32.xlu0 %v1110, 125
        %v5670 = vpop.permute.xlu0 %5669
        %5671 = vrot.lane.b32.xlu0 %v1111, 125
        %v5672 = vpop.permute.xlu0 %5671
        %5673 = vrot.lane.b32.xlu0 %v1112, 125
        %v5674 = vpop.permute.xlu0 %5673
        %5675 = vrot.lane.b32.xlu0 %v1113, 125
        %v5676 = vpop.permute.xlu0 %5675
        %5677 = vrot.lane.b32.xlu0 %v1114, 125
        %v5678 = vpop.permute.xlu0 %5677
        %5679 = vrot.lane.b32.xlu0 %v1115, 125
        %v5680 = vpop.permute.xlu0 %5679
        %5681 = vrot.lane.b32.xlu0 %v1116, 125
        %v5682 = vpop.permute.xlu0 %5681
        %s5683 = scalar_lea.vmem [#allocation5], 112
        %v5684 = vld [vmem:[%s5683] sm:$0xff]
        %v5685 = vld [vmem:[%s5683 + $0x8] sm:$0xff]
        %v5687 = vsel %vm295, %v5684, 0
        %v5690 = vsel %vm295, %v5685, 0
        %5692 = vmatprep.subr.mxu0 0.0
        %5693 = vmatpush1.msra.mxu0 %v5652
        %5694 = vmatprep.subr.mxu0 0.0
        %5695 = vmatpush1.msra.mxu0 %v5654
        %5696 = vmatprep.subr.mxu0 0.0
        %5697 = vmatpush1.msra.mxu0 0.0
        %5698 = vmatprep.subr.mxu0 0.0
        %5699 = vmatpush1.msra.mxu0 0.0
        %5700 = vmatprep.subr.mxu0 0.0
        %5701 = vmatpush1.msra.mxu0 0.0
        %5702 = vmatprep.subr.mxu0 0.0
        %5703 = vmatpush1.msra.mxu0 0.0
        %5704 = vmatprep.subr.mxu0 0.0
        %5705 = vmatpush1.msra.mxu0 0.0
        %5706 = vmatprep.subr.mxu0 0.0
        %5707 = vmatpush1.msra.mxu0 0.0
        %5708 = vmatprep.subr.mxu0 0.0
        %5709 = vmatpush1.msra.mxu0 0.0
        %5710 = vmatprep.subr.mxu0 0.0
        %5711 = vmatpush1.msra.mxu0 0.0
        %5712 = vmatprep.subr.mxu0 0.0
        %5713 = vmatpush1.msra.mxu0 0.0
        %5714 = vmatprep.subr.mxu0 0.0
        %5715 = vmatpush1.msra.mxu0 0.0
        %5716 = vmatprep.subr.mxu0 0.0
        %5717 = vmatpush1.msra.mxu0 0.0
        %5718 = vmatprep.subr.mxu0 0.0
        %5719 = vmatpush1.msra.mxu0 0.0
        %5720 = vmatprep.subr.mxu0 0.0
        %5721 = vmatpush1.msra.mxu0 0.0
        %5722 = vmatprep.subr.mxu0 0.0
        %5723 = vmatpush1.msra.mxu0 0.0
        %5724 = vmatprep.subr.mxu0 0.0
        %5725 = vmatpush1.msra.mxu0 0.0
        %5726 = vmatprep.subr.mxu0 0.0
        %5727 = vmatpush1.msra.mxu0 0.0
        %5728 = vmatprep.subr.mxu0 0.0
        %5729 = vmatpush1.msra.mxu0 0.0
        %5730 = vmatprep.subr.mxu0 0.0
        %5731 = vmatpush1.msra.mxu0 0.0
        %5732 = vmatprep.subr.mxu0 0.0
        %5733 = vmatpush1.msra.mxu0 0.0
        %5734 = vmatprep.subr.mxu0 0.0
        %5735 = vmatpush1.msra.mxu0 0.0
        %5736 = vmatprep.subr.mxu0 0.0
        %5737 = vmatpush1.msra.mxu0 0.0
        %5738 = vmatprep.subr.mxu0 0.0
        %5739 = vmatpush1.msra.mxu0 0.0
        %5740 = vmatprep.subr.mxu0 0.0
        %5741 = vmatpush1.msra.mxu0 0.0
        %5742 = vmatprep.subr.mxu0 0.0
        %5743 = vmatpush1.msra.mxu0 0.0
        %5744 = vmatprep.subr.mxu0 0.0
        %5745 = vmatpush1.msra.mxu0 0.0
        %5746 = vmatprep.subr.mxu0 0.0
        %5747 = vmatpush1.msra.mxu0 0.0
        %5748 = vmatprep.subr.mxu0 0.0
        %5749 = vmatpush1.msra.mxu0 0.0
        %5750 = vmatprep.subr.mxu0 0.0
        %5751 = vmatpush1.msra.mxu0 0.0
        %5752 = vmatprep.subr.mxu0 0.0
        %5753 = vmatpush1.msra.mxu0 0.0
        %5754 = vmatprep.subr.mxu0 0.0
        %5755 = vmatpush1.msra.mxu0 0.0
        %5756 = vmatprep.mubr.f32.mxu0 0.0
        %5757 = vmatmul.mubr.f32.gmra.mrb[0].mxu0 %v5687
        %v5758 = vpop.f32.mrb[0].mxu0
        %v5759 = vadd.f32 0.0, %v5758
        %v5760 = vpop.f32.mrb[0].mxu0
        %5761 = vmatprep.mubr.f32.mxu0 0.0
        %5762 = vmatmul.mubr.f32.gmra.mrb[0].mxu0 %v5690
        %v5763 = vpop.f32.mrb[0].mxu0
        %v5764 = vadd.f32 0.0, %v5763
        %v5765 = vpop.f32.mrb[0].mxu0
        %5766 = vdwg.mxu0
        %5767 = vmatprep.subr.mxu0 0.0
        %5768 = vmatpush1.msra.mxu0 %v5656
        %5769 = vmatprep.subr.mxu0 0.0
        %5770 = vmatpush1.msra.mxu0 %v5658
        %5771 = vmatprep.subr.mxu0 0.0
        %5772 = vmatpush1.msra.mxu0 0.0
        %5773 = vmatprep.subr.mxu0 0.0
        %5774 = vmatpush1.msra.mxu0 0.0
        %5775 = vmatprep.subr.mxu0 0.0
        %5776 = vmatpush1.msra.mxu0 0.0
        %5777 = vmatprep.subr.mxu0 0.0
        %5778 = vmatpush1.msra.mxu0 0.0
        %5779 = vmatprep.subr.mxu0 0.0
        %5780 = vmatpush1.msra.mxu0 0.0
        %5781 = vmatprep.subr.mxu0 0.0
        %5782 = vmatpush1.msra.mxu0 0.0
        %5783 = vmatprep.subr.mxu0 0.0
        %5784 = vmatpush1.msra.mxu0 0.0
        %5785 = vmatprep.subr.mxu0 0.0
        %5786 = vmatpush1.msra.mxu0 0.0
        %5787 = vmatprep.subr.mxu0 0.0
        %5788 = vmatpush1.msra.mxu0 0.0
        %5789 = vmatprep.subr.mxu0 0.0
        %5790 = vmatpush1.msra.mxu0 0.0
        %5791 = vmatprep.subr.mxu0 0.0
        %5792 = vmatpush1.msra.mxu0 0.0
        %5793 = vmatprep.subr.mxu0 0.0
        %5794 = vmatpush1.msra.mxu0 0.0
        %5795 = vmatprep.subr.mxu0 0.0
        %5796 = vmatpush1.msra.mxu0 0.0
        %5797 = vmatprep.subr.mxu0 0.0
        %5798 = vmatpush1.msra.mxu0 0.0
        %5799 = vmatprep.subr.mxu0 0.0
        %5800 = vmatpush1.msra.mxu0 0.0
        %5801 = vmatprep.subr.mxu0 0.0
        %5802 = vmatpush1.msra.mxu0 0.0
        %5803 = vmatprep.subr.mxu0 0.0
        %5804 = vmatpush1.msra.mxu0 0.0
        %5805 = vmatprep.subr.mxu0 0.0
        %5806 = vmatpush1.msra.mxu0 0.0
        %5807 = vmatprep.subr.mxu0 0.0
        %5808 = vmatpush1.msra.mxu0 0.0
        %5809 = vmatprep.subr.mxu0 0.0
        %5810 = vmatpush1.msra.mxu0 0.0
        %5811 = vmatprep.subr.mxu0 0.0
        %5812 = vmatpush1.msra.mxu0 0.0
        %5813 = vmatprep.subr.mxu0 0.0
        %5814 = vmatpush1.msra.mxu0 0.0
        %5815 = vmatprep.subr.mxu0 0.0
        %5816 = vmatpush1.msra.mxu0 0.0
        %5817 = vmatprep.subr.mxu0 0.0
        %5818 = vmatpush1.msra.mxu0 0.0
        %5819 = vmatprep.subr.mxu0 0.0
        %5820 = vmatpush1.msra.mxu0 0.0
        %5821 = vmatprep.subr.mxu0 0.0
        %5822 = vmatpush1.msra.mxu0 0.0
        %5823 = vmatprep.subr.mxu0 0.0
        %5824 = vmatpush1.msra.mxu0 0.0
        %5825 = vmatprep.subr.mxu0 0.0
        %5826 = vmatpush1.msra.mxu0 0.0
        %5827 = vmatprep.subr.mxu0 0.0
        %5828 = vmatpush1.msra.mxu0 0.0
        %5829 = vmatprep.subr.mxu0 0.0
        %5830 = vmatpush1.msra.mxu0 0.0
        %5831 = vmatprep.mubr.f32.mxu0 0.0
        %5832 = vmatmul.mubr.f32.gmra.mrb[0].mxu0 %v5687
        %v5833 = vpop.f32.mrb[0].mxu0
        %v5834 = vadd.f32 0.0, %v5833
        %v5835 = vpop.f32.mrb[0].mxu0
        %5836 = vmatprep.mubr.f32.mxu0 0.0
        %5837 = vmatmul.mubr.f32.gmra.mrb[0].mxu0 %v5690
        %v5838 = vpop.f32.mrb[0].mxu0
        %v5839 = vadd.f32 0.0, %v5838
        %v5840 = vpop.f32.mrb[0].mxu0
        %5841 = vdwg.mxu0
        %5842 = vmatprep.subr.mxu0 0.0
        %5843 = vmatpush1.msra.mxu0 %v5660
        %5844 = vmatprep.subr.mxu0 0.0
        %5845 = vmatpush1.msra.mxu0 %v5662
        %5846 = vmatprep.subr.mxu0 0.0
        %5847 = vmatpush1.msra.mxu0 0.0
        %5848 = vmatprep.subr.mxu0 0.0
        %5849 = vmatpush1.msra.mxu0 0.0
        %5850 = vmatprep.subr.mxu0 0.0
        %5851 = vmatpush1.msra.mxu0 0.0
        %5852 = vmatprep.subr.mxu0 0.0
        %5853 = vmatpush1.msra.mxu0 0.0
        %5854 = vmatprep.subr.mxu0 0.0
        %5855 = vmatpush1.msra.mxu0 0.0
        %5856 = vmatprep.subr.mxu0 0.0
        %5857 = vmatpush1.msra.mxu0 0.0
        %5858 = vmatprep.subr.mxu0 0.0
        %5859 = vmatpush1.msra.mxu0 0.0
        %5860 = vmatprep.subr.mxu0 0.0
        %5861 = vmatpush1.msra.mxu0 0.0
        %5862 = vmatprep.subr.mxu0 0.0
        %5863 = vmatpush1.msra.mxu0 0.0
        %5864 = vmatprep.subr.mxu0 0.0
        %5865 = vmatpush1.msra.mxu0 0.0
        %5866 = vmatprep.subr.mxu0 0.0
        %5867 = vmatpush1.msra.mxu0 0.0
        %5868 = vmatprep.subr.mxu0 0.0
        %5869 = vmatpush1.msra.mxu0 0.0
        %5870 = vmatprep.subr.mxu0 0.0
        %5871 = vmatpush1.msra.mxu0 0.0
        %5872 = vmatprep.subr.mxu0 0.0
        %5873 = vmatpush1.msra.mxu0 0.0
        %5874 = vmatprep.subr.mxu0 0.0
        %5875 = vmatpush1.msra.mxu0 0.0
        %5876 = vmatprep.subr.mxu0 0.0
        %5877 = vmatpush1.msra.mxu0 0.0
        %5878 = vmatprep.subr.mxu0 0.0
        %5879 = vmatpush1.msra.mxu0 0.0
        %5880 = vmatprep.subr.mxu0 0.0
        %5881 = vmatpush1.msra.mxu0 0.0
        %5882 = vmatprep.subr.mxu0 0.0
        %5883 = vmatpush1.msra.mxu0 0.0
        %5884 = vmatprep.subr.mxu0 0.0
        %5885 = vmatpush1.msra.mxu0 0.0
        %5886 = vmatprep.subr.mxu0 0.0
        %5887 = vmatpush1.msra.mxu0 0.0
        %5888 = vmatprep.subr.mxu0 0.0
        %5889 = vmatpush1.msra.mxu0 0.0
        %5890 = vmatprep.subr.mxu0 0.0
        %5891 = vmatpush1.msra.mxu0 0.0
        %5892 = vmatprep.subr.mxu0 0.0
        %5893 = vmatpush1.msra.mxu0 0.0
        %5894 = vmatprep.subr.mxu0 0.0
        %5895 = vmatpush1.msra.mxu0 0.0
        %5896 = vmatprep.subr.mxu0 0.0
        %5897 = vmatpush1.msra.mxu0 0.0
        %5898 = vmatprep.subr.mxu0 0.0
        %5899 = vmatpush1.msra.mxu0 0.0
        %5900 = vmatprep.subr.mxu0 0.0
        %5901 = vmatpush1.msra.mxu0 0.0
        %5902 = vmatprep.subr.mxu0 0.0
        %5903 = vmatpush1.msra.mxu0 0.0
        %5904 = vmatprep.subr.mxu0 0.0
        %5905 = vmatpush1.msra.mxu0 0.0
        %5906 = vmatprep.mubr.f32.mxu0 0.0
        %5907 = vmatmul.mubr.f32.gmra.mrb[0].mxu0 %v5687
        %v5908 = vpop.f32.mrb[0].mxu0
        %v5909 = vadd.f32 0.0, %v5908
        %v5910 = vpop.f32.mrb[0].mxu0
        %5911 = vmatprep.mubr.f32.mxu0 0.0
        %5912 = vmatmul.mubr.f32.gmra.mrb[0].mxu0 %v5690
        %v5913 = vpop.f32.mrb[0].mxu0
        %v5914 = vadd.f32 0.0, %v5913
        %v5915 = vpop.f32.mrb[0].mxu0
        %5916 = vdwg.mxu0
        %5917 = vmatprep.subr.mxu0 0.0
        %5918 = vmatpush1.msra.mxu0 %v5664
        %5919 = vmatprep.subr.mxu0 0.0
        %5920 = vmatpush1.msra.mxu0 %v5666
        %5921 = vmatprep.subr.mxu0 0.0
        %5922 = vmatpush1.msra.mxu0 0.0
        %5923 = vmatprep.subr.mxu0 0.0
        %5924 = vmatpush1.msra.mxu0 0.0
        %5925 = vmatprep.subr.mxu0 0.0
        %5926 = vmatpush1.msra.mxu0 0.0
        %5927 = vmatprep.subr.mxu0 0.0
        %5928 = vmatpush1.msra.mxu0 0.0
        %5929 = vmatprep.subr.mxu0 0.0
        %5930 = vmatpush1.msra.mxu0 0.0
        %5931 = vmatprep.subr.mxu0 0.0
        %5932 = vmatpush1.msra.mxu0 0.0
        %5933 = vmatprep.subr.mxu0 0.0
        %5934 = vmatpush1.msra.mxu0 0.0
        %5935 = vmatprep.subr.mxu0 0.0
        %5936 = vmatpush1.msra.mxu0 0.0
        %5937 = vmatprep.subr.mxu0 0.0
        %5938 = vmatpush1.msra.mxu0 0.0
        %5939 = vmatprep.subr.mxu0 0.0
        %5940 = vmatpush1.msra.mxu0 0.0
        %5941 = vmatprep.subr.mxu0 0.0
        %5942 = vmatpush1.msra.mxu0 0.0
        %5943 = vmatprep.subr.mxu0 0.0
        %5944 = vmatpush1.msra.mxu0 0.0
        %5945 = vmatprep.subr.mxu0 0.0
        %5946 = vmatpush1.msra.mxu0 0.0
        %5947 = vmatprep.subr.mxu0 0.0
        %5948 = vmatpush1.msra.mxu0 0.0
        %5949 = vmatprep.subr.mxu0 0.0
        %5950 = vmatpush1.msra.mxu0 0.0
        %5951 = vmatprep.subr.mxu0 0.0
        %5952 = vmatpush1.msra.mxu0 0.0
        %5953 = vmatprep.subr.mxu0 0.0
        %5954 = vmatpush1.msra.mxu0 0.0
        %5955 = vmatprep.subr.mxu0 0.0
        %5956 = vmatpush1.msra.mxu0 0.0
        %5957 = vmatprep.subr.mxu0 0.0
        %5958 = vmatpush1.msra.mxu0 0.0
        %5959 = vmatprep.subr.mxu0 0.0
        %5960 = vmatpush1.msra.mxu0 0.0
        %5961 = vmatprep.subr.mxu0 0.0
        %5962 = vmatpush1.msra.mxu0 0.0
        %5963 = vmatprep.subr.mxu0 0.0
        %5964 = vmatpush1.msra.mxu0 0.0
        %5965 = vmatprep.subr.mxu0 0.0
        %5966 = vmatpush1.msra.mxu0 0.0
        %5967 = vmatprep.subr.mxu0 0.0
        %5968 = vmatpush1.msra.mxu0 0.0
        %5969 = vmatprep.subr.mxu0 0.0
        %5970 = vmatpush1.msra.mxu0 0.0
        %5971 = vmatprep.subr.mxu0 0.0
        %5972 = vmatpush1.msra.mxu0 0.0
        %5973 = vmatprep.subr.mxu0 0.0
        %5974 = vmatpush1.msra.mxu0 0.0
        %5975 = vmatprep.subr.mxu0 0.0
        %5976 = vmatpush1.msra.mxu0 0.0
        %5977 = vmatprep.subr.mxu0 0.0
        %5978 = vmatpush1.msra.mxu0 0.0
        %5979 = vmatprep.subr.mxu0 0.0
        %5980 = vmatpush1.msra.mxu0 0.0
        %5981 = vmatprep.mubr.f32.mxu0 0.0
        %5982 = vmatmul.mubr.f32.gmra.mrb[0].mxu0 %v5687
        %v5983 = vpop.f32.mrb[0].mxu0
        %v5984 = vadd.f32 0.0, %v5983
        %v5985 = vpop.f32.mrb[0].mxu0
        %5986 = vmatprep.mubr.f32.mxu0 0.0
        %5987 = vmatmul.mubr.f32.gmra.mrb[0].mxu0 %v5690
        %v5988 = vpop.f32.mrb[0].mxu0
        %v5989 = vadd.f32 0.0, %v5988
        %v5990 = vpop.f32.mrb[0].mxu0
        %5991 = vdwg.mxu0
        %5992 = vmatprep.subr.mxu0 0.0
        %5993 = vmatpush1.msra.mxu0 %v5668
        %5994 = vmatprep.subr.mxu0 0.0
        %5995 = vmatpush1.msra.mxu0 %v5670
        %5996 = vmatprep.subr.mxu0 0.0
        %5997 = vmatpush1.msra.mxu0 0.0
        %5998 = vmatprep.subr.mxu0 0.0
        %5999 = vmatpush1.msra.mxu0 0.0
        %6000 = vmatprep.subr.mxu0 0.0
        %6001 = vmatpush1.msra.mxu0 0.0
        %6002 = vmatprep.subr.mxu0 0.0
        %6003 = vmatpush1.msra.mxu0 0.0
        %6004 = vmatprep.subr.mxu0 0.0
        %6005 = vmatpush1.msra.mxu0 0.0
        %6006 = vmatprep.subr.mxu0 0.0
        %6007 = vmatpush1.msra.mxu0 0.0
        %6008 = vmatprep.subr.mxu0 0.0
        %6009 = vmatpush1.msra.mxu0 0.0
        %6010 = vmatprep.subr.mxu0 0.0
        %6011 = vmatpush1.msra.mxu0 0.0
        %6012 = vmatprep.subr.mxu0 0.0
        %6013 = vmatpush1.msra.mxu0 0.0
        %6014 = vmatprep.subr.mxu0 0.0
        %6015 = vmatpush1.msra.mxu0 0.0
        %6016 = vmatprep.subr.mxu0 0.0
        %6017 = vmatpush1.msra.mxu0 0.0
        %6018 = vmatprep.subr.mxu0 0.0
        %6019 = vmatpush1.msra.mxu0 0.0
        %6020 = vmatprep.subr.mxu0 0.0
        %6021 = vmatpush1.msra.mxu0 0.0
        %6022 = vmatprep.subr.mxu0 0.0
        %6023 = vmatpush1.msra.mxu0 0.0
        %6024 = vmatprep.subr.mxu0 0.0
        %6025 = vmatpush1.msra.mxu0 0.0
        %6026 = vmatprep.subr.mxu0 0.0
        %6027 = vmatpush1.msra.mxu0 0.0
        %6028 = vmatprep.subr.mxu0 0.0
        %6029 = vmatpush1.msra.mxu0 0.0
        %6030 = vmatprep.subr.mxu0 0.0
        %6031 = vmatpush1.msra.mxu0 0.0
        %6032 = vmatprep.subr.mxu0 0.0
        %6033 = vmatpush1.msra.mxu0 0.0
        %6034 = vmatprep.subr.mxu0 0.0
        %6035 = vmatpush1.msra.mxu0 0.0
        %6036 = vmatprep.subr.mxu0 0.0
        %6037 = vmatpush1.msra.mxu0 0.0
        %6038 = vmatprep.subr.mxu0 0.0
        %6039 = vmatpush1.msra.mxu0 0.0
        %6040 = vmatprep.subr.mxu0 0.0
        %6041 = vmatpush1.msra.mxu0 0.0
        %6042 = vmatprep.subr.mxu0 0.0
        %6043 = vmatpush1.msra.mxu0 0.0
        %6044 = vmatprep.subr.mxu0 0.0
        %6045 = vmatpush1.msra.mxu0 0.0
        %6046 = vmatprep.subr.mxu0 0.0
        %6047 = vmatpush1.msra.mxu0 0.0
        %6048 = vmatprep.subr.mxu0 0.0
        %6049 = vmatpush1.msra.mxu0 0.0
        %6050 = vmatprep.subr.mxu0 0.0
        %6051 = vmatpush1.msra.mxu0 0.0
        %6052 = vmatprep.subr.mxu0 0.0
        %6053 = vmatpush1.msra.mxu0 0.0
        %6054 = vmatprep.subr.mxu0 0.0
        %6055 = vmatpush1.msra.mxu0 0.0
        %6056 = vmatprep.mubr.f32.mxu0 0.0
        %6057 = vmatmul.mubr.f32.gmra.mrb[0].mxu0 %v5687
        %v6058 = vpop.f32.mrb[0].mxu0
        %v6059 = vadd.f32 0.0, %v6058
        %v6060 = vpop.f32.mrb[0].mxu0
        %6061 = vmatprep.mubr.f32.mxu0 0.0
        %6062 = vmatmul.mubr.f32.gmra.mrb[0].mxu0 %v5690
        %v6063 = vpop.f32.mrb[0].mxu0
        %v6064 = vadd.f32 0.0, %v6063
        %v6065 = vpop.f32.mrb[0].mxu0
        %6066 = vdwg.mxu0
        %6067 = vmatprep.subr.mxu0 0.0
        %6068 = vmatpush1.msra.mxu0 %v5672
        %6069 = vmatprep.subr.mxu0 0.0
        %6070 = vmatpush1.msra.mxu0 %v5674
        %6071 = vmatprep.subr.mxu0 0.0
        %6072 = vmatpush1.msra.mxu0 0.0
        %6073 = vmatprep.subr.mxu0 0.0
        %6074 = vmatpush1.msra.mxu0 0.0
        %6075 = vmatprep.subr.mxu0 0.0
        %6076 = vmatpush1.msra.mxu0 0.0
        %6077 = vmatprep.subr.mxu0 0.0
        %6078 = vmatpush1.msra.mxu0 0.0
        %6079 = vmatprep.subr.mxu0 0.0
        %6080 = vmatpush1.msra.mxu0 0.0
        %6081 = vmatprep.subr.mxu0 0.0
        %6082 = vmatpush1.msra.mxu0 0.0
        %6083 = vmatprep.subr.mxu0 0.0
        %6084 = vmatpush1.msra.mxu0 0.0
        %6085 = vmatprep.subr.mxu0 0.0
        %6086 = vmatpush1.msra.mxu0 0.0
        %6087 = vmatprep.subr.mxu0 0.0
        %6088 = vmatpush1.msra.mxu0 0.0
        %6089 = vmatprep.subr.mxu0 0.0
        %6090 = vmatpush1.msra.mxu0 0.0
        %6091 = vmatprep.subr.mxu0 0.0
        %6092 = vmatpush1.msra.mxu0 0.0
        %6093 = vmatprep.subr.mxu0 0.0
        %6094 = vmatpush1.msra.mxu0 0.0
        %6095 = vmatprep.subr.mxu0 0.0
        %6096 = vmatpush1.msra.mxu0 0.0
        %6097 = vmatprep.subr.mxu0 0.0
        %6098 = vmatpush1.msra.mxu0 0.0
        %6099 = vmatprep.subr.mxu0 0.0
        %6100 = vmatpush1.msra.mxu0 0.0
        %6101 = vmatprep.subr.mxu0 0.0
        %6102 = vmatpush1.msra.mxu0 0.0
        %6103 = vmatprep.subr.mxu0 0.0
        %6104 = vmatpush1.msra.mxu0 0.0
        %6105 = vmatprep.subr.mxu0 0.0
        %6106 = vmatpush1.msra.mxu0 0.0
        %6107 = vmatprep.subr.mxu0 0.0
        %6108 = vmatpush1.msra.mxu0 0.0
        %6109 = vmatprep.subr.mxu0 0.0
        %6110 = vmatpush1.msra.mxu0 0.0
        %6111 = vmatprep.subr.mxu0 0.0
        %6112 = vmatpush1.msra.mxu0 0.0
        %6113 = vmatprep.subr.mxu0 0.0
        %6114 = vmatpush1.msra.mxu0 0.0
        %6115 = vmatprep.subr.mxu0 0.0
        %6116 = vmatpush1.msra.mxu0 0.0
        %6117 = vmatprep.subr.mxu0 0.0
        %6118 = vmatpush1.msra.mxu0 0.0
        %6119 = vmatprep.subr.mxu0 0.0
        %6120 = vmatpush1.msra.mxu0 0.0
        %6121 = vmatprep.subr.mxu0 0.0
        %6122 = vmatpush1.msra.mxu0 0.0
        %6123 = vmatprep.subr.mxu0 0.0
        %6124 = vmatpush1.msra.mxu0 0.0
        %6125 = vmatprep.subr.mxu0 0.0
        %6126 = vmatpush1.msra.mxu0 0.0
        %6127 = vmatprep.subr.mxu0 0.0
        %6128 = vmatpush1.msra.mxu0 0.0
        %6129 = vmatprep.subr.mxu0 0.0
        %6130 = vmatpush1.msra.mxu0 0.0
        %6131 = vmatprep.mubr.f32.mxu0 0.0
        %6132 = vmatmul.mubr.f32.gmra.mrb[0].mxu0 %v5687
        %v6133 = vpop.f32.mrb[0].mxu0
        %v6134 = vadd.f32 0.0, %v6133
        %v6135 = vpop.f32.mrb[0].mxu0
        %6136 = vmatprep.mubr.f32.mxu0 0.0
        %6137 = vmatmul.mubr.f32.gmra.mrb[0].mxu0 %v5690
        %v6138 = vpop.f32.mrb[0].mxu0
        %v6139 = vadd.f32 0.0, %v6138
        %v6140 = vpop.f32.mrb[0].mxu0
        %6141 = vdwg.mxu0
        %6142 = vmatprep.subr.mxu0 0.0
        %6143 = vmatpush1.msra.mxu0 %v5676
        %6144 = vmatprep.subr.mxu0 0.0
        %6145 = vmatpush1.msra.mxu0 %v5678
        %6146 = vmatprep.subr.mxu0 0.0
        %6147 = vmatpush1.msra.mxu0 0.0
        %6148 = vmatprep.subr.mxu0 0.0
        %6149 = vmatpush1.msra.mxu0 0.0
        %6150 = vmatprep.subr.mxu0 0.0
        %6151 = vmatpush1.msra.mxu0 0.0
        %6152 = vmatprep.subr.mxu0 0.0
        %6153 = vmatpush1.msra.mxu0 0.0
        %6154 = vmatprep.subr.mxu0 0.0
        %6155 = vmatpush1.msra.mxu0 0.0
        %6156 = vmatprep.subr.mxu0 0.0
        %6157 = vmatpush1.msra.mxu0 0.0
        %6158 = vmatprep.subr.mxu0 0.0
        %6159 = vmatpush1.msra.mxu0 0.0
        %6160 = vmatprep.subr.mxu0 0.0
        %6161 = vmatpush1.msra.mxu0 0.0
        %6162 = vmatprep.subr.mxu0 0.0
        %6163 = vmatpush1.msra.mxu0 0.0
        %6164 = vmatprep.subr.mxu0 0.0
        %6165 = vmatpush1.msra.mxu0 0.0
        %6166 = vmatprep.subr.mxu0 0.0
        %6167 = vmatpush1.msra.mxu0 0.0
        %6168 = vmatprep.subr.mxu0 0.0
        %6169 = vmatpush1.msra.mxu0 0.0
        %6170 = vmatprep.subr.mxu0 0.0
        %6171 = vmatpush1.msra.mxu0 0.0
        %6172 = vmatprep.subr.mxu0 0.0
        %6173 = vmatpush1.msra.mxu0 0.0
        %6174 = vmatprep.subr.mxu0 0.0
        %6175 = vmatpush1.msra.mxu0 0.0
        %6176 = vmatprep.subr.mxu0 0.0
        %6177 = vmatpush1.msra.mxu0 0.0
        %6178 = vmatprep.subr.mxu0 0.0
        %6179 = vmatpush1.msra.mxu0 0.0
        %6180 = vmatprep.subr.mxu0 0.0
        %6181 = vmatpush1.msra.mxu0 0.0
        %6182 = vmatprep.subr.mxu0 0.0
        %6183 = vmatpush1.msra.mxu0 0.0
        %6184 = vmatprep.subr.mxu0 0.0
        %6185 = vmatpush1.msra.mxu0 0.0
        %6186 = vmatprep.subr.mxu0 0.0
        %6187 = vmatpush1.msra.mxu0 0.0
        %6188 = vmatprep.subr.mxu0 0.0
        %6189 = vmatpush1.msra.mxu0 0.0
        %6190 = vmatprep.subr.mxu0 0.0
        %6191 = vmatpush1.msra.mxu0 0.0
        %6192 = vmatprep.subr.mxu0 0.0
        %6193 = vmatpush1.msra.mxu0 0.0
        %6194 = vmatprep.subr.mxu0 0.0
        %6195 = vmatpush1.msra.mxu0 0.0
        %6196 = vmatprep.subr.mxu0 0.0
        %6197 = vmatpush1.msra.mxu0 0.0
        %6198 = vmatprep.subr.mxu0 0.0
        %6199 = vmatpush1.msra.mxu0 0.0
        %6200 = vmatprep.subr.mxu0 0.0
        %6201 = vmatpush1.msra.mxu0 0.0
        %6202 = vmatprep.subr.mxu0 0.0
        %6203 = vmatpush1.msra.mxu0 0.0
        %6204 = vmatprep.subr.mxu0 0.0
        %6205 = vmatpush1.msra.mxu0 0.0
        %6206 = vmatprep.mubr.f32.mxu0 0.0
        %6207 = vmatmul.mubr.f32.gmra.mrb[0].mxu0 %v5687
        %v6208 = vpop.f32.mrb[0].mxu0
        %v6209 = vadd.f32 0.0, %v6208
        %v6210 = vpop.f32.mrb[0].mxu0
        %6211 = vmatprep.mubr.f32.mxu0 0.0
        %6212 = vmatmul.mubr.f32.gmra.mrb[0].mxu0 %v5690
        %v6213 = vpop.f32.mrb[0].mxu0
        %v6214 = vadd.f32 0.0, %v6213
        %v6215 = vpop.f32.mrb[0].mxu0
        %6216 = vdwg.mxu0
        %6217 = vmatprep.subr.mxu0 0.0
        %6218 = vmatpush1.msra.mxu0 %v5680
        %6219 = vmatprep.subr.mxu0 0.0
        %6220 = vmatpush1.msra.mxu0 %v5682
        %6221 = vmatprep.subr.mxu0 0.0
        %6222 = vmatpush1.msra.mxu0 0.0
        %6223 = vmatprep.subr.mxu0 0.0
        %6224 = vmatpush1.msra.mxu0 0.0
        %6225 = vmatprep.subr.mxu0 0.0
        %6226 = vmatpush1.msra.mxu0 0.0
        %6227 = vmatprep.subr.mxu0 0.0
        %6228 = vmatpush1.msra.mxu0 0.0
        %6229 = vmatprep.subr.mxu0 0.0
        %6230 = vmatpush1.msra.mxu0 0.0
        %6231 = vmatprep.subr.mxu0 0.0
        %6232 = vmatpush1.msra.mxu0 0.0
        %6233 = vmatprep.subr.mxu0 0.0
        %6234 = vmatpush1.msra.mxu0 0.0
        %6235 = vmatprep.subr.mxu0 0.0
        %6236 = vmatpush1.msra.mxu0 0.0
        %6237 = vmatprep.subr.mxu0 0.0
        %6238 = vmatpush1.msra.mxu0 0.0
        %6239 = vmatprep.subr.mxu0 0.0
        %6240 = vmatpush1.msra.mxu0 0.0
        %6241 = vmatprep.subr.mxu0 0.0
        %6242 = vmatpush1.msra.mxu0 0.0
        %6243 = vmatprep.subr.mxu0 0.0
        %6244 = vmatpush1.msra.mxu0 0.0
        %6245 = vmatprep.subr.mxu0 0.0
        %6246 = vmatpush1.msra.mxu0 0.0
        %6247 = vmatprep.subr.mxu0 0.0
        %6248 = vmatpush1.msra.mxu0 0.0
        %6249 = vmatprep.subr.mxu0 0.0
        %6250 = vmatpush1.msra.mxu0 0.0
        %6251 = vmatprep.subr.mxu0 0.0
        %6252 = vmatpush1.msra.mxu0 0.0
        %6253 = vmatprep.subr.mxu0 0.0
        %6254 = vmatpush1.msra.mxu0 0.0
        %6255 = vmatprep.subr.mxu0 0.0
        %6256 = vmatpush1.msra.mxu0 0.0
        %6257 = vmatprep.subr.mxu0 0.0
        %6258 = vmatpush1.msra.mxu0 0.0
        %6259 = vmatprep.subr.mxu0 0.0
        %6260 = vmatpush1.msra.mxu0 0.0
        %6261 = vmatprep.subr.mxu0 0.0
        %6262 = vmatpush1.msra.mxu0 0.0
        %6263 = vmatprep.subr.mxu0 0.0
        %6264 = vmatpush1.msra.mxu0 0.0
        %6265 = vmatprep.subr.mxu0 0.0
        %6266 = vmatpush1.msra.mxu0 0.0
        %6267 = vmatprep.subr.mxu0 0.0
        %6268 = vmatpush1.msra.mxu0 0.0
        %6269 = vmatprep.subr.mxu0 0.0
        %6270 = vmatpush1.msra.mxu0 0.0
        %6271 = vmatprep.subr.mxu0 0.0
        %6272 = vmatpush1.msra.mxu0 0.0
        %6273 = vmatprep.subr.mxu0 0.0
        %6274 = vmatpush1.msra.mxu0 0.0
        %6275 = vmatprep.subr.mxu0 0.0
        %6276 = vmatpush1.msra.mxu0 0.0
        %6277 = vmatprep.subr.mxu0 0.0
        %6278 = vmatpush1.msra.mxu0 0.0
        %6279 = vmatprep.subr.mxu0 0.0
        %6280 = vmatpush1.msra.mxu0 0.0
        %6281 = vmatprep.mubr.f32.mxu0 0.0
        %6282 = vmatmul.mubr.f32.gmra.mrb[0].mxu0 %v5687
        %v6283 = vpop.f32.mrb[0].mxu0
        %v6284 = vadd.f32 0.0, %v6283
        %v6285 = vpop.f32.mrb[0].mxu0
        %6286 = vmatprep.mubr.f32.mxu0 0.0
        %6287 = vmatmul.mubr.f32.gmra.mrb[0].mxu0 %v5690
        %v6288 = vpop.f32.mrb[0].mxu0
        %v6289 = vadd.f32 0.0, %v6288
        %v6290 = vpop.f32.mrb[0].mxu0
        %6291 = vdwg.mxu0
        %v6292 = vadd.f32 %v5635, %v5759
        %v6293 = vadd.f32 %v5636, %v5764
        %v6294 = vadd.f32 %v5637, %v5834
        %v6295 = vadd.f32 %v5638, %v5839
        %v6296 = vadd.f32 %v5639, %v5909
        %v6297 = vadd.f32 %v5640, %v5914
        %v6298 = vadd.f32 %v5641, %v5984
        %v6299 = vadd.f32 %v5642, %v5989
        %v6300 = vadd.f32 %v5643, %v6059
        %v6301 = vadd.f32 %v5644, %v6064
        %v6302 = vadd.f32 %v5645, %v6134
        %v6303 = vadd.f32 %v5646, %v6139
        %v6304 = vadd.f32 %v5647, %v6209
        %v6305 = vadd.f32 %v5648, %v6214
        %v6306 = vadd.f32 %v5649, %v6284
        %v6307 = vadd.f32 %v5650, %v6289
        %6308 = vrot.lane.b32.xlu0 %v1101, 124
        %v6309 = vpop.permute.xlu0 %6308
        %6310 = vrot.lane.b32.xlu0 %v1102, 124
        %v6311 = vpop.permute.xlu0 %6310
        %6312 = vrot.lane.b32.xlu0 %v1103, 124
        %v6313 = vpop.permute.xlu0 %6312
        %6314 = vrot.lane.b32.xlu0 %v1104, 124
        %v6315 = vpop.permute.xlu0 %6314
        %6316 = vrot.lane.b32.xlu0 %v1105, 124
        %v6317 = vpop.permute.xlu0 %6316
        %6318 = vrot.lane.b32.xlu0 %v1106, 124
        %v6319 = vpop.permute.xlu0 %6318
        %6320 = vrot.lane.b32.xlu0 %v1107, 124
        %v6321 = vpop.permute.xlu0 %6320
        %6322 = vrot.lane.b32.xlu0 %v1108, 124
        %v6323 = vpop.permute.xlu0 %6322
        %6324 = vrot.lane.b32.xlu0 %v1109, 124
        %v6325 = vpop.permute.xlu0 %6324
        %6326 = vrot.lane.b32.xlu0 %v1110, 124
        %v6327 = vpop.permute.xlu0 %6326
        %6328 = vrot.lane.b32.xlu0 %v1111, 124
        %v6329 = vpop.permute.xlu0 %6328
        %6330 = vrot.lane.b32.xlu0 %v1112, 124
        %v6331 = vpop.permute.xlu0 %6330
        %6332 = vrot.lane.b32.xlu0 %v1113, 124
        %v6333 = vpop.permute.xlu0 %6332
        %6334 = vrot.lane.b32.xlu0 %v1114, 124
        %v6335 = vpop.permute.xlu0 %6334
        %6336 = vrot.lane.b32.xlu0 %v1115, 124
        %v6337 = vpop.permute.xlu0 %6336
        %6338 = vrot.lane.b32.xlu0 %v1116, 124
        %v6339 = vpop.permute.xlu0 %6338
        %s6340 = scalar_lea.vmem [#allocation5], 128
        %v6341 = vld [vmem:[%s6340] sm:$0xff]
        %v6342 = vld [vmem:[%s6340 + $0x8] sm:$0xff]
        %v6344 = vsel %vm295, %v6341, 0
        %v6347 = vsel %vm295, %v6342, 0
        %6349 = vmatprep.subr.mxu0 0.0
        %6350 = vmatpush1.msra.mxu0 %v6309
        %6351 = vmatprep.subr.mxu0 0.0
        %6352 = vmatpush1.msra.mxu0 %v6311
        %6353 = vmatprep.subr.mxu0 0.0
        %6354 = vmatpush1.msra.mxu0 0.0
        %6355 = vmatprep.subr.mxu0 0.0
        %6356 = vmatpush1.msra.mxu0 0.0
        %6357 = vmatprep.subr.mxu0 0.0
        %6358 = vmatpush1.msra.mxu0 0.0
        %6359 = vmatprep.subr.mxu0 0.0
        %6360 = vmatpush1.msra.mxu0 0.0
        %6361 = vmatprep.subr.mxu0 0.0
        %6362 = vmatpush1.msra.mxu0 0.0
        %6363 = vmatprep.subr.mxu0 0.0
        %6364 = vmatpush1.msra.mxu0 0.0
        %6365 = vmatprep.subr.mxu0 0.0
        %6366 = vmatpush1.msra.mxu0 0.0
        %6367 = vmatprep.subr.mxu0 0.0
        %6368 = vmatpush1.msra.mxu0 0.0
        %6369 = vmatprep.subr.mxu0 0.0
        %6370 = vmatpush1.msra.mxu0 0.0
        %6371 = vmatprep.subr.mxu0 0.0
        %6372 = vmatpush1.msra.mxu0 0.0
        %6373 = vmatprep.subr.mxu0 0.0
        %6374 = vmatpush1.msra.mxu0 0.0
        %6375 = vmatprep.subr.mxu0 0.0
        %6376 = vmatpush1.msra.mxu0 0.0
        %6377 = vmatprep.subr.mxu0 0.0
        %6378 = vmatpush1.msra.mxu0 0.0
        %6379 = vmatprep.subr.mxu0 0.0
        %6380 = vmatpush1.msra.mxu0 0.0
        %6381 = vmatprep.subr.mxu0 0.0
        %6382 = vmatpush1.msra.mxu0 0.0
        %6383 = vmatprep.subr.mxu0 0.0
        %6384 = vmatpush1.msra.mxu0 0.0
        %6385 = vmatprep.subr.mxu0 0.0
        %6386 = vmatpush1.msra.mxu0 0.0
        %6387 = vmatprep.subr.mxu0 0.0
        %6388 = vmatpush1.msra.mxu0 0.0
        %6389 = vmatprep.subr.mxu0 0.0
        %6390 = vmatpush1.msra.mxu0 0.0
        %6391 = vmatprep.subr.mxu0 0.0
        %6392 = vmatpush1.msra.mxu0 0.0
        %6393 = vmatprep.subr.mxu0 0.0
        %6394 = vmatpush1.msra.mxu0 0.0
        %6395 = vmatprep.subr.mxu0 0.0
        %6396 = vmatpush1.msra.mxu0 0.0
        %6397 = vmatprep.subr.mxu0 0.0
        %6398 = vmatpush1.msra.mxu0 0.0
        %6399 = vmatprep.subr.mxu0 0.0
        %6400 = vmatpush1.msra.mxu0 0.0
        %6401 = vmatprep.subr.mxu0 0.0
        %6402 = vmatpush1.msra.mxu0 0.0
        %6403 = vmatprep.subr.mxu0 0.0
        %6404 = vmatpush1.msra.mxu0 0.0
        %6405 = vmatprep.subr.mxu0 0.0
        %6406 = vmatpush1.msra.mxu0 0.0
        %6407 = vmatprep.subr.mxu0 0.0
        %6408 = vmatpush1.msra.mxu0 0.0
        %6409 = vmatprep.subr.mxu0 0.0
        %6410 = vmatpush1.msra.mxu0 0.0
        %6411 = vmatprep.subr.mxu0 0.0
        %6412 = vmatpush1.msra.mxu0 0.0
        %6413 = vmatprep.mubr.f32.mxu0 0.0
        %6414 = vmatmul.mubr.f32.gmra.mrb[0].mxu0 %v6344
        %v6415 = vpop.f32.mrb[0].mxu0
        %v6416 = vadd.f32 0.0, %v6415
        %v6417 = vpop.f32.mrb[0].mxu0
        %6418 = vmatprep.mubr.f32.mxu0 0.0
        %6419 = vmatmul.mubr.f32.gmra.mrb[0].mxu0 %v6347
        %v6420 = vpop.f32.mrb[0].mxu0
        %v6421 = vadd.f32 0.0, %v6420
        %v6422 = vpop.f32.mrb[0].mxu0
        %6423 = vdwg.mxu0
        %6424 = vmatprep.subr.mxu0 0.0
        %6425 = vmatpush1.msra.mxu0 %v6313
        %6426 = vmatprep.subr.mxu0 0.0
        %6427 = vmatpush1.msra.mxu0 %v6315
        %6428 = vmatprep.subr.mxu0 0.0
        %6429 = vmatpush1.msra.mxu0 0.0
        %6430 = vmatprep.subr.mxu0 0.0
        %6431 = vmatpush1.msra.mxu0 0.0
        %6432 = vmatprep.subr.mxu0 0.0
        %6433 = vmatpush1.msra.mxu0 0.0
        %6434 = vmatprep.subr.mxu0 0.0
        %6435 = vmatpush1.msra.mxu0 0.0
        %6436 = vmatprep.subr.mxu0 0.0
        %6437 = vmatpush1.msra.mxu0 0.0
        %6438 = vmatprep.subr.mxu0 0.0
        %6439 = vmatpush1.msra.mxu0 0.0
        %6440 = vmatprep.subr.mxu0 0.0
        %6441 = vmatpush1.msra.mxu0 0.0
        %6442 = vmatprep.subr.mxu0 0.0
        %6443 = vmatpush1.msra.mxu0 0.0
        %6444 = vmatprep.subr.mxu0 0.0
        %6445 = vmatpush1.msra.mxu0 0.0
        %6446 = vmatprep.subr.mxu0 0.0
        %6447 = vmatpush1.msra.mxu0 0.0
        %6448 = vmatprep.subr.mxu0 0.0
        %6449 = vmatpush1.msra.mxu0 0.0
        %6450 = vmatprep.subr.mxu0 0.0
        %6451 = vmatpush1.msra.mxu0 0.0
        %6452 = vmatprep.subr.mxu0 0.0
        %6453 = vmatpush1.msra.mxu0 0.0
        %6454 = vmatprep.subr.mxu0 0.0
        %6455 = vmatpush1.msra.mxu0 0.0
        %6456 = vmatprep.subr.mxu0 0.0
        %6457 = vmatpush1.msra.mxu0 0.0
        %6458 = vmatprep.subr.mxu0 0.0
        %6459 = vmatpush1.msra.mxu0 0.0
        %6460 = vmatprep.subr.mxu0 0.0
        %6461 = vmatpush1.msra.mxu0 0.0
        %6462 = vmatprep.subr.mxu0 0.0
        %6463 = vmatpush1.msra.mxu0 0.0
        %6464 = vmatprep.subr.mxu0 0.0
        %6465 = vmatpush1.msra.mxu0 0.0
        %6466 = vmatprep.subr.mxu0 0.0
        %6467 = vmatpush1.msra.mxu0 0.0
        %6468 = vmatprep.subr.mxu0 0.0
        %6469 = vmatpush1.msra.mxu0 0.0
        %6470 = vmatprep.subr.mxu0 0.0
        %6471 = vmatpush1.msra.mxu0 0.0
        %6472 = vmatprep.subr.mxu0 0.0
        %6473 = vmatpush1.msra.mxu0 0.0
        %6474 = vmatprep.subr.mxu0 0.0
        %6475 = vmatpush1.msra.mxu0 0.0
        %6476 = vmatprep.subr.mxu0 0.0
        %6477 = vmatpush1.msra.mxu0 0.0
        %6478 = vmatprep.subr.mxu0 0.0
        %6479 = vmatpush1.msra.mxu0 0.0
        %6480 = vmatprep.subr.mxu0 0.0
        %6481 = vmatpush1.msra.mxu0 0.0
        %6482 = vmatprep.subr.mxu0 0.0
        %6483 = vmatpush1.msra.mxu0 0.0
        %6484 = vmatprep.subr.mxu0 0.0
        %6485 = vmatpush1.msra.mxu0 0.0
        %6486 = vmatprep.subr.mxu0 0.0
        %6487 = vmatpush1.msra.mxu0 0.0
        %6488 = vmatprep.mubr.f32.mxu0 0.0
        %6489 = vmatmul.mubr.f32.gmra.mrb[0].mxu0 %v6344
        %v6490 = vpop.f32.mrb[0].mxu0
        %v6491 = vadd.f32 0.0, %v6490
        %v6492 = vpop.f32.mrb[0].mxu0
        %6493 = vmatprep.mubr.f32.mxu0 0.0
        %6494 = vmatmul.mubr.f32.gmra.mrb[0].mxu0 %v6347
        %v6495 = vpop.f32.mrb[0].mxu0
        %v6496 = vadd.f32 0.0, %v6495
        %v6497 = vpop.f32.mrb[0].mxu0
        %6498 = vdwg.mxu0
        %6499 = vmatprep.subr.mxu0 0.0
        %6500 = vmatpush1.msra.mxu0 %v6317
        %6501 = vmatprep.subr.mxu0 0.0
        %6502 = vmatpush1.msra.mxu0 %v6319
        %6503 = vmatprep.subr.mxu0 0.0
        %6504 = vmatpush1.msra.mxu0 0.0
        %6505 = vmatprep.subr.mxu0 0.0
        %6506 = vmatpush1.msra.mxu0 0.0
        %6507 = vmatprep.subr.mxu0 0.0
        %6508 = vmatpush1.msra.mxu0 0.0
        %6509 = vmatprep.subr.mxu0 0.0
        %6510 = vmatpush1.msra.mxu0 0.0
        %6511 = vmatprep.subr.mxu0 0.0
        %6512 = vmatpush1.msra.mxu0 0.0
        %6513 = vmatprep.subr.mxu0 0.0
        %6514 = vmatpush1.msra.mxu0 0.0
        %6515 = vmatprep.subr.mxu0 0.0
        %6516 = vmatpush1.msra.mxu0 0.0
        %6517 = vmatprep.subr.mxu0 0.0
        %6518 = vmatpush1.msra.mxu0 0.0
        %6519 = vmatprep.subr.mxu0 0.0
        %6520 = vmatpush1.msra.mxu0 0.0
        %6521 = vmatprep.subr.mxu0 0.0
        %6522 = vmatpush1.msra.mxu0 0.0
        %6523 = vmatprep.subr.mxu0 0.0
        %6524 = vmatpush1.msra.mxu0 0.0
        %6525 = vmatprep.subr.mxu0 0.0
        %6526 = vmatpush1.msra.mxu0 0.0
        %6527 = vmatprep.subr.mxu0 0.0
        %6528 = vmatpush1.msra.mxu0 0.0
        %6529 = vmatprep.subr.mxu0 0.0
        %6530 = vmatpush1.msra.mxu0 0.0
        %6531 = vmatprep.subr.mxu0 0.0
        %6532 = vmatpush1.msra.mxu0 0.0
        %6533 = vmatprep.subr.mxu0 0.0
        %6534 = vmatpush1.msra.mxu0 0.0
        %6535 = vmatprep.subr.mxu0 0.0
        %6536 = vmatpush1.msra.mxu0 0.0
        %6537 = vmatprep.subr.mxu0 0.0
        %6538 = vmatpush1.msra.mxu0 0.0
        %6539 = vmatprep.subr.mxu0 0.0
        %6540 = vmatpush1.msra.mxu0 0.0
        %6541 = vmatprep.subr.mxu0 0.0
        %6542 = vmatpush1.msra.mxu0 0.0
        %6543 = vmatprep.subr.mxu0 0.0
        %6544 = vmatpush1.msra.mxu0 0.0
        %6545 = vmatprep.subr.mxu0 0.0
        %6546 = vmatpush1.msra.mxu0 0.0
        %6547 = vmatprep.subr.mxu0 0.0
        %6548 = vmatpush1.msra.mxu0 0.0
        %6549 = vmatprep.subr.mxu0 0.0
        %6550 = vmatpush1.msra.mxu0 0.0
        %6551 = vmatprep.subr.mxu0 0.0
        %6552 = vmatpush1.msra.mxu0 0.0
        %6553 = vmatprep.subr.mxu0 0.0
        %6554 = vmatpush1.msra.mxu0 0.0
        %6555 = vmatprep.subr.mxu0 0.0
        %6556 = vmatpush1.msra.mxu0 0.0
        %6557 = vmatprep.subr.mxu0 0.0
        %6558 = vmatpush1.msra.mxu0 0.0
        %6559 = vmatprep.subr.mxu0 0.0
        %6560 = vmatpush1.msra.mxu0 0.0
        %6561 = vmatprep.subr.mxu0 0.0
        %6562 = vmatpush1.msra.mxu0 0.0
        %6563 = vmatprep.mubr.f32.mxu0 0.0
        %6564 = vmatmul.mubr.f32.gmra.mrb[0].mxu0 %v6344
        %v6565 = vpop.f32.mrb[0].mxu0
        %v6566 = vadd.f32 0.0, %v6565
        %v6567 = vpop.f32.mrb[0].mxu0
        %6568 = vmatprep.mubr.f32.mxu0 0.0
        %6569 = vmatmul.mubr.f32.gmra.mrb[0].mxu0 %v6347
        %v6570 = vpop.f32.mrb[0].mxu0
        %v6571 = vadd.f32 0.0, %v6570
        %v6572 = vpop.f32.mrb[0].mxu0
        %6573 = vdwg.mxu0
        %6574 = vmatprep.subr.mxu0 0.0
        %6575 = vmatpush1.msra.mxu0 %v6321
        %6576 = vmatprep.subr.mxu0 0.0
        %6577 = vmatpush1.msra.mxu0 %v6323
        %6578 = vmatprep.subr.mxu0 0.0
        %6579 = vmatpush1.msra.mxu0 0.0
        %6580 = vmatprep.subr.mxu0 0.0
        %6581 = vmatpush1.msra.mxu0 0.0
        %6582 = vmatprep.subr.mxu0 0.0
        %6583 = vmatpush1.msra.mxu0 0.0
        %6584 = vmatprep.subr.mxu0 0.0
        %6585 = vmatpush1.msra.mxu0 0.0
        %6586 = vmatprep.subr.mxu0 0.0
        %6587 = vmatpush1.msra.mxu0 0.0
        %6588 = vmatprep.subr.mxu0 0.0
        %6589 = vmatpush1.msra.mxu0 0.0
        %6590 = vmatprep.subr.mxu0 0.0
        %6591 = vmatpush1.msra.mxu0 0.0
        %6592 = vmatprep.subr.mxu0 0.0
        %6593 = vmatpush1.msra.mxu0 0.0
        %6594 = vmatprep.subr.mxu0 0.0
        %6595 = vmatpush1.msra.mxu0 0.0
        %6596 = vmatprep.subr.mxu0 0.0
        %6597 = vmatpush1.msra.mxu0 0.0
        %6598 = vmatprep.subr.mxu0 0.0
        %6599 = vmatpush1.msra.mxu0 0.0
        %6600 = vmatprep.subr.mxu0 0.0
        %6601 = vmatpush1.msra.mxu0 0.0
        %6602 = vmatprep.subr.mxu0 0.0
        %6603 = vmatpush1.msra.mxu0 0.0
        %6604 = vmatprep.subr.mxu0 0.0
        %6605 = vmatpush1.msra.mxu0 0.0
        %6606 = vmatprep.subr.mxu0 0.0
        %6607 = vmatpush1.msra.mxu0 0.0
        %6608 = vmatprep.subr.mxu0 0.0
        %6609 = vmatpush1.msra.mxu0 0.0
        %6610 = vmatprep.subr.mxu0 0.0
        %6611 = vmatpush1.msra.mxu0 0.0
        %6612 = vmatprep.subr.mxu0 0.0
        %6613 = vmatpush1.msra.mxu0 0.0
        %6614 = vmatprep.subr.mxu0 0.0
        %6615 = vmatpush1.msra.mxu0 0.0
        %6616 = vmatprep.subr.mxu0 0.0
        %6617 = vmatpush1.msra.mxu0 0.0
        %6618 = vmatprep.subr.mxu0 0.0
        %6619 = vmatpush1.msra.mxu0 0.0
        %6620 = vmatprep.subr.mxu0 0.0
        %6621 = vmatpush1.msra.mxu0 0.0
        %6622 = vmatprep.subr.mxu0 0.0
        %6623 = vmatpush1.msra.mxu0 0.0
        %6624 = vmatprep.subr.mxu0 0.0
        %6625 = vmatpush1.msra.mxu0 0.0
        %6626 = vmatprep.subr.mxu0 0.0
        %6627 = vmatpush1.msra.mxu0 0.0
        %6628 = vmatprep.subr.mxu0 0.0
        %6629 = vmatpush1.msra.mxu0 0.0
        %6630 = vmatprep.subr.mxu0 0.0
        %6631 = vmatpush1.msra.mxu0 0.0
        %6632 = vmatprep.subr.mxu0 0.0
        %6633 = vmatpush1.msra.mxu0 0.0
        %6634 = vmatprep.subr.mxu0 0.0
        %6635 = vmatpush1.msra.mxu0 0.0
        %6636 = vmatprep.subr.mxu0 0.0
        %6637 = vmatpush1.msra.mxu0 0.0
        %6638 = vmatprep.mubr.f32.mxu0 0.0
        %6639 = vmatmul.mubr.f32.gmra.mrb[0].mxu0 %v6344
        %v6640 = vpop.f32.mrb[0].mxu0
        %v6641 = vadd.f32 0.0, %v6640
        %v6642 = vpop.f32.mrb[0].mxu0
        %6643 = vmatprep.mubr.f32.mxu0 0.0
        %6644 = vmatmul.mubr.f32.gmra.mrb[0].mxu0 %v6347
        %v6645 = vpop.f32.mrb[0].mxu0
        %v6646 = vadd.f32 0.0, %v6645
        %v6647 = vpop.f32.mrb[0].mxu0
        %6648 = vdwg.mxu0
        %6649 = vmatprep.subr.mxu0 0.0
        %6650 = vmatpush1.msra.mxu0 %v6325
        %6651 = vmatprep.subr.mxu0 0.0
        %6652 = vmatpush1.msra.mxu0 %v6327
        %6653 = vmatprep.subr.mxu0 0.0
        %6654 = vmatpush1.msra.mxu0 0.0
        %6655 = vmatprep.subr.mxu0 0.0
        %6656 = vmatpush1.msra.mxu0 0.0
        %6657 = vmatprep.subr.mxu0 0.0
        %6658 = vmatpush1.msra.mxu0 0.0
        %6659 = vmatprep.subr.mxu0 0.0
        %6660 = vmatpush1.msra.mxu0 0.0
        %6661 = vmatprep.subr.mxu0 0.0
        %6662 = vmatpush1.msra.mxu0 0.0
        %6663 = vmatprep.subr.mxu0 0.0
        %6664 = vmatpush1.msra.mxu0 0.0
        %6665 = vmatprep.subr.mxu0 0.0
        %6666 = vmatpush1.msra.mxu0 0.0
        %6667 = vmatprep.subr.mxu0 0.0
        %6668 = vmatpush1.msra.mxu0 0.0
        %6669 = vmatprep.subr.mxu0 0.0
        %6670 = vmatpush1.msra.mxu0 0.0
        %6671 = vmatprep.subr.mxu0 0.0
        %6672 = vmatpush1.msra.mxu0 0.0
        %6673 = vmatprep.subr.mxu0 0.0
        %6674 = vmatpush1.msra.mxu0 0.0
        %6675 = vmatprep.subr.mxu0 0.0
        %6676 = vmatpush1.msra.mxu0 0.0
        %6677 = vmatprep.subr.mxu0 0.0
        %6678 = vmatpush1.msra.mxu0 0.0
        %6679 = vmatprep.subr.mxu0 0.0
        %6680 = vmatpush1.msra.mxu0 0.0
        %6681 = vmatprep.subr.mxu0 0.0
        %6682 = vmatpush1.msra.mxu0 0.0
        %6683 = vmatprep.subr.mxu0 0.0
        %6684 = vmatpush1.msra.mxu0 0.0
        %6685 = vmatprep.subr.mxu0 0.0
        %6686 = vmatpush1.msra.mxu0 0.0
        %6687 = vmatprep.subr.mxu0 0.0
        %6688 = vmatpush1.msra.mxu0 0.0
        %6689 = vmatprep.subr.mxu0 0.0
        %6690 = vmatpush1.msra.mxu0 0.0
        %6691 = vmatprep.subr.mxu0 0.0
        %6692 = vmatpush1.msra.mxu0 0.0
        %6693 = vmatprep.subr.mxu0 0.0
        %6694 = vmatpush1.msra.mxu0 0.0
        %6695 = vmatprep.subr.mxu0 0.0
        %6696 = vmatpush1.msra.mxu0 0.0
        %6697 = vmatprep.subr.mxu0 0.0
        %6698 = vmatpush1.msra.mxu0 0.0
        %6699 = vmatprep.subr.mxu0 0.0
        %6700 = vmatpush1.msra.mxu0 0.0
        %6701 = vmatprep.subr.mxu0 0.0
        %6702 = vmatpush1.msra.mxu0 0.0
        %6703 = vmatprep.subr.mxu0 0.0
        %6704 = vmatpush1.msra.mxu0 0.0
        %6705 = vmatprep.subr.mxu0 0.0
        %6706 = vmatpush1.msra.mxu0 0.0
        %6707 = vmatprep.subr.mxu0 0.0
        %6708 = vmatpush1.msra.mxu0 0.0
        %6709 = vmatprep.subr.mxu0 0.0
        %6710 = vmatpush1.msra.mxu0 0.0
        %6711 = vmatprep.subr.mxu0 0.0
        %6712 = vmatpush1.msra.mxu0 0.0
        %6713 = vmatprep.mubr.f32.mxu0 0.0
        %6714 = vmatmul.mubr.f32.gmra.mrb[0].mxu0 %v6344
        %v6715 = vpop.f32.mrb[0].mxu0
        %v6716 = vadd.f32 0.0, %v6715
        %v6717 = vpop.f32.mrb[0].mxu0
        %6718 = vmatprep.mubr.f32.mxu0 0.0
        %6719 = vmatmul.mubr.f32.gmra.mrb[0].mxu0 %v6347
        %v6720 = vpop.f32.mrb[0].mxu0
        %v6721 = vadd.f32 0.0, %v6720
        %v6722 = vpop.f32.mrb[0].mxu0
        %6723 = vdwg.mxu0
        %6724 = vmatprep.subr.mxu0 0.0
        %6725 = vmatpush1.msra.mxu0 %v6329
        %6726 = vmatprep.subr.mxu0 0.0
        %6727 = vmatpush1.msra.mxu0 %v6331
        %6728 = vmatprep.subr.mxu0 0.0
        %6729 = vmatpush1.msra.mxu0 0.0
        %6730 = vmatprep.subr.mxu0 0.0
        %6731 = vmatpush1.msra.mxu0 0.0
        %6732 = vmatprep.subr.mxu0 0.0
        %6733 = vmatpush1.msra.mxu0 0.0
        %6734 = vmatprep.subr.mxu0 0.0
        %6735 = vmatpush1.msra.mxu0 0.0
        %6736 = vmatprep.subr.mxu0 0.0
        %6737 = vmatpush1.msra.mxu0 0.0
        %6738 = vmatprep.subr.mxu0 0.0
        %6739 = vmatpush1.msra.mxu0 0.0
        %6740 = vmatprep.subr.mxu0 0.0
        %6741 = vmatpush1.msra.mxu0 0.0
        %6742 = vmatprep.subr.mxu0 0.0
        %6743 = vmatpush1.msra.mxu0 0.0
        %6744 = vmatprep.subr.mxu0 0.0
        %6745 = vmatpush1.msra.mxu0 0.0
        %6746 = vmatprep.subr.mxu0 0.0
        %6747 = vmatpush1.msra.mxu0 0.0
        %6748 = vmatprep.subr.mxu0 0.0
        %6749 = vmatpush1.msra.mxu0 0.0
        %6750 = vmatprep.subr.mxu0 0.0
        %6751 = vmatpush1.msra.mxu0 0.0
        %6752 = vmatprep.subr.mxu0 0.0
        %6753 = vmatpush1.msra.mxu0 0.0
        %6754 = vmatprep.subr.mxu0 0.0
        %6755 = vmatpush1.msra.mxu0 0.0
        %6756 = vmatprep.subr.mxu0 0.0
        %6757 = vmatpush1.msra.mxu0 0.0
        %6758 = vmatprep.subr.mxu0 0.0
        %6759 = vmatpush1.msra.mxu0 0.0
        %6760 = vmatprep.subr.mxu0 0.0
        %6761 = vmatpush1.msra.mxu0 0.0
        %6762 = vmatprep.subr.mxu0 0.0
        %6763 = vmatpush1.msra.mxu0 0.0
        %6764 = vmatprep.subr.mxu0 0.0
        %6765 = vmatpush1.msra.mxu0 0.0
        %6766 = vmatprep.subr.mxu0 0.0
        %6767 = vmatpush1.msra.mxu0 0.0
        %6768 = vmatprep.subr.mxu0 0.0
        %6769 = vmatpush1.msra.mxu0 0.0
        %6770 = vmatprep.subr.mxu0 0.0
        %6771 = vmatpush1.msra.mxu0 0.0
        %6772 = vmatprep.subr.mxu0 0.0
        %6773 = vmatpush1.msra.mxu0 0.0
        %6774 = vmatprep.subr.mxu0 0.0
        %6775 = vmatpush1.msra.mxu0 0.0
        %6776 = vmatprep.subr.mxu0 0.0
        %6777 = vmatpush1.msra.mxu0 0.0
        %6778 = vmatprep.subr.mxu0 0.0
        %6779 = vmatpush1.msra.mxu0 0.0
        %6780 = vmatprep.subr.mxu0 0.0
        %6781 = vmatpush1.msra.mxu0 0.0
        %6782 = vmatprep.subr.mxu0 0.0
        %6783 = vmatpush1.msra.mxu0 0.0
        %6784 = vmatprep.subr.mxu0 0.0
        %6785 = vmatpush1.msra.mxu0 0.0
        %6786 = vmatprep.subr.mxu0 0.0
        %6787 = vmatpush1.msra.mxu0 0.0
        %6788 = vmatprep.mubr.f32.mxu0 0.0
        %6789 = vmatmul.mubr.f32.gmra.mrb[0].mxu0 %v6344
        %v6790 = vpop.f32.mrb[0].mxu0
        %v6791 = vadd.f32 0.0, %v6790
        %v6792 = vpop.f32.mrb[0].mxu0
        %6793 = vmatprep.mubr.f32.mxu0 0.0
        %6794 = vmatmul.mubr.f32.gmra.mrb[0].mxu0 %v6347
        %v6795 = vpop.f32.mrb[0].mxu0
        %v6796 = vadd.f32 0.0, %v6795
        %v6797 = vpop.f32.mrb[0].mxu0
        %6798 = vdwg.mxu0
        %6799 = vmatprep.subr.mxu0 0.0
        %6800 = vmatpush1.msra.mxu0 %v6333
        %6801 = vmatprep.subr.mxu0 0.0
        %6802 = vmatpush1.msra.mxu0 %v6335
        %6803 = vmatprep.subr.mxu0 0.0
        %6804 = vmatpush1.msra.mxu0 0.0
        %6805 = vmatprep.subr.mxu0 0.0
        %6806 = vmatpush1.msra.mxu0 0.0
        %6807 = vmatprep.subr.mxu0 0.0
        %6808 = vmatpush1.msra.mxu0 0.0
        %6809 = vmatprep.subr.mxu0 0.0
        %6810 = vmatpush1.msra.mxu0 0.0
        %6811 = vmatprep.subr.mxu0 0.0
        %6812 = vmatpush1.msra.mxu0 0.0
        %6813 = vmatprep.subr.mxu0 0.0
        %6814 = vmatpush1.msra.mxu0 0.0
        %6815 = vmatprep.subr.mxu0 0.0
        %6816 = vmatpush1.msra.mxu0 0.0
        %6817 = vmatprep.subr.mxu0 0.0
        %6818 = vmatpush1.msra.mxu0 0.0
        %6819 = vmatprep.subr.mxu0 0.0
        %6820 = vmatpush1.msra.mxu0 0.0
        %6821 = vmatprep.subr.mxu0 0.0
        %6822 = vmatpush1.msra.mxu0 0.0
        %6823 = vmatprep.subr.mxu0 0.0
        %6824 = vmatpush1.msra.mxu0 0.0
        %6825 = vmatprep.subr.mxu0 0.0
        %6826 = vmatpush1.msra.mxu0 0.0
        %6827 = vmatprep.subr.mxu0 0.0
        %6828 = vmatpush1.msra.mxu0 0.0
        %6829 = vmatprep.subr.mxu0 0.0
        %6830 = vmatpush1.msra.mxu0 0.0
        %6831 = vmatprep.subr.mxu0 0.0
        %6832 = vmatpush1.msra.mxu0 0.0
        %6833 = vmatprep.subr.mxu0 0.0
        %6834 = vmatpush1.msra.mxu0 0.0
        %6835 = vmatprep.subr.mxu0 0.0
        %6836 = vmatpush1.msra.mxu0 0.0
        %6837 = vmatprep.subr.mxu0 0.0
        %6838 = vmatpush1.msra.mxu0 0.0
        %6839 = vmatprep.subr.mxu0 0.0
        %6840 = vmatpush1.msra.mxu0 0.0
        %6841 = vmatprep.subr.mxu0 0.0
        %6842 = vmatpush1.msra.mxu0 0.0
        %6843 = vmatprep.subr.mxu0 0.0
        %6844 = vmatpush1.msra.mxu0 0.0
        %6845 = vmatprep.subr.mxu0 0.0
        %6846 = vmatpush1.msra.mxu0 0.0
        %6847 = vmatprep.subr.mxu0 0.0
        %6848 = vmatpush1.msra.mxu0 0.0
        %6849 = vmatprep.subr.mxu0 0.0
        %6850 = vmatpush1.msra.mxu0 0.0
        %6851 = vmatprep.subr.mxu0 0.0
        %6852 = vmatpush1.msra.mxu0 0.0
        %6853 = vmatprep.subr.mxu0 0.0
        %6854 = vmatpush1.msra.mxu0 0.0
        %6855 = vmatprep.subr.mxu0 0.0
        %6856 = vmatpush1.msra.mxu0 0.0
        %6857 = vmatprep.subr.mxu0 0.0
        %6858 = vmatpush1.msra.mxu0 0.0
        %6859 = vmatprep.subr.mxu0 0.0
        %6860 = vmatpush1.msra.mxu0 0.0
        %6861 = vmatprep.subr.mxu0 0.0
        %6862 = vmatpush1.msra.mxu0 0.0
        %6863 = vmatprep.mubr.f32.mxu0 0.0
        %6864 = vmatmul.mubr.f32.gmra.mrb[0].mxu0 %v6344
        %v6865 = vpop.f32.mrb[0].mxu0
        %v6866 = vadd.f32 0.0, %v6865
        %v6867 = vpop.f32.mrb[0].mxu0
        %6868 = vmatprep.mubr.f32.mxu0 0.0
        %6869 = vmatmul.mubr.f32.gmra.mrb[0].mxu0 %v6347
        %v6870 = vpop.f32.mrb[0].mxu0
        %v6871 = vadd.f32 0.0, %v6870
        %v6872 = vpop.f32.mrb[0].mxu0
        %6873 = vdwg.mxu0
        %6874 = vmatprep.subr.mxu0 0.0
        %6875 = vmatpush1.msra.mxu0 %v6337
        %6876 = vmatprep.subr.mxu0 0.0
        %6877 = vmatpush1.msra.mxu0 %v6339
        %6878 = vmatprep.subr.mxu0 0.0
        %6879 = vmatpush1.msra.mxu0 0.0
        %6880 = vmatprep.subr.mxu0 0.0
        %6881 = vmatpush1.msra.mxu0 0.0
        %6882 = vmatprep.subr.mxu0 0.0
        %6883 = vmatpush1.msra.mxu0 0.0
        %6884 = vmatprep.subr.mxu0 0.0
        %6885 = vmatpush1.msra.mxu0 0.0
        %6886 = vmatprep.subr.mxu0 0.0
        %6887 = vmatpush1.msra.mxu0 0.0
        %6888 = vmatprep.subr.mxu0 0.0
        %6889 = vmatpush1.msra.mxu0 0.0
        %6890 = vmatprep.subr.mxu0 0.0
        %6891 = vmatpush1.msra.mxu0 0.0
        %6892 = vmatprep.subr.mxu0 0.0
        %6893 = vmatpush1.msra.mxu0 0.0
        %6894 = vmatprep.subr.mxu0 0.0
        %6895 = vmatpush1.msra.mxu0 0.0
        %6896 = vmatprep.subr.mxu0 0.0
        %6897 = vmatpush1.msra.mxu0 0.0
        %6898 = vmatprep.subr.mxu0 0.0
        %6899 = vmatpush1.msra.mxu0 0.0
        %6900 = vmatprep.subr.mxu0 0.0
        %6901 = vmatpush1.msra.mxu0 0.0
        %6902 = vmatprep.subr.mxu0 0.0
        %6903 = vmatpush1.msra.mxu0 0.0
        %6904 = vmatprep.subr.mxu0 0.0
        %6905 = vmatpush1.msra.mxu0 0.0
        %6906 = vmatprep.subr.mxu0 0.0
        %6907 = vmatpush1.msra.mxu0 0.0
        %6908 = vmatprep.subr.mxu0 0.0
        %6909 = vmatpush1.msra.mxu0 0.0
        %6910 = vmatprep.subr.mxu0 0.0
        %6911 = vmatpush1.msra.mxu0 0.0
        %6912 = vmatprep.subr.mxu0 0.0
        %6913 = vmatpush1.msra.mxu0 0.0
        %6914 = vmatprep.subr.mxu0 0.0
        %6915 = vmatpush1.msra.mxu0 0.0
        %6916 = vmatprep.subr.mxu0 0.0
        %6917 = vmatpush1.msra.mxu0 0.0
        %6918 = vmatprep.subr.mxu0 0.0
        %6919 = vmatpush1.msra.mxu0 0.0
        %6920 = vmatprep.subr.mxu0 0.0
        %6921 = vmatpush1.msra.mxu0 0.0
        %6922 = vmatprep.subr.mxu0 0.0
        %6923 = vmatpush1.msra.mxu0 0.0
        %6924 = vmatprep.subr.mxu0 0.0
        %6925 = vmatpush1.msra.mxu0 0.0
        %6926 = vmatprep.subr.mxu0 0.0
        %6927 = vmatpush1.msra.mxu0 0.0
        %6928 = vmatprep.subr.mxu0 0.0
        %6929 = vmatpush1.msra.mxu0 0.0
        %6930 = vmatprep.subr.mxu0 0.0
        %6931 = vmatpush1.msra.mxu0 0.0
        %6932 = vmatprep.subr.mxu0 0.0
        %6933 = vmatpush1.msra.mxu0 0.0
        %6934 = vmatprep.subr.mxu0 0.0
        %6935 = vmatpush1.msra.mxu0 0.0
        %6936 = vmatprep.subr.mxu0 0.0
        %6937 = vmatpush1.msra.mxu0 0.0
        %6938 = vmatprep.mubr.f32.mxu0 0.0
        %6939 = vmatmul.mubr.f32.gmra.mrb[0].mxu0 %v6344
        %v6940 = vpop.f32.mrb[0].mxu0
        %v6941 = vadd.f32 0.0, %v6940
        %v6942 = vpop.f32.mrb[0].mxu0
        %6943 = vmatprep.mubr.f32.mxu0 0.0
        %6944 = vmatmul.mubr.f32.gmra.mrb[0].mxu0 %v6347
        %v6945 = vpop.f32.mrb[0].mxu0
        %v6946 = vadd.f32 0.0, %v6945
        %v6947 = vpop.f32.mrb[0].mxu0
        %6948 = vdwg.mxu0
        %v6949 = vadd.f32 %v6292, %v6416
        %v6950 = vadd.f32 %v6293, %v6421
        %v6951 = vadd.f32 %v6294, %v6491
        %v6952 = vadd.f32 %v6295, %v6496
        %v6953 = vadd.f32 %v6296, %v6566
        %v6954 = vadd.f32 %v6297, %v6571
        %v6955 = vadd.f32 %v6298, %v6641
        %v6956 = vadd.f32 %v6299, %v6646
        %v6957 = vadd.f32 %v6300, %v6716
        %v6958 = vadd.f32 %v6301, %v6721
        %v6959 = vadd.f32 %v6302, %v6791
        %v6960 = vadd.f32 %v6303, %v6796
        %v6961 = vadd.f32 %v6304, %v6866
        %v6962 = vadd.f32 %v6305, %v6871
        %v6963 = vadd.f32 %v6306, %v6941
        %v6964 = vadd.f32 %v6307, %v6946
        %s6965 = scalar_lea.vmem %s4, 32
        %v6966 = vld [vmem:[%s6965] sm:$0xff]
        %v6967 = vld [vmem:[%s6965 + $0x8] sm:$0xff]
        %s6968 = scalar_lea.vmem %s4, 48
        %v6969 = vld [vmem:[%s6968] sm:$0xff]
        %v6970 = vld [vmem:[%s6968 + $0x8] sm:$0xff]
        %6971 = vadd.xlane.f32.xlu0 %v6949
        %v6972 = vpop.xlane.xlu0 %6971
        %6973 = vadd.xlane.f32.xlu0 %v6950
        %v6974 = vpop.xlane.xlu0 %6973
        %6975 = vadd.xlane.f32.xlu0 %v6951
        %v6976 = vpop.xlane.xlu0 %6975
        %6977 = vadd.xlane.f32.xlu0 %v6952
        %v6978 = vpop.xlane.xlu0 %6977
        %6979 = vadd.xlane.f32.xlu0 %v6953
        %v6980 = vpop.xlane.xlu0 %6979
        %6981 = vadd.xlane.f32.xlu0 %v6954
        %v6982 = vpop.xlane.xlu0 %6981
        %6983 = vadd.xlane.f32.xlu0 %v6955
        %v6984 = vpop.xlane.xlu0 %6983
        %6985 = vadd.xlane.f32.xlu0 %v6956
        %v6986 = vpop.xlane.xlu0 %6985
        %6987 = vadd.xlane.f32.xlu0 %v6957
        %v6988 = vpop.xlane.xlu0 %6987
        %6989 = vadd.xlane.f32.xlu0 %v6958
        %v6990 = vpop.xlane.xlu0 %6989
        %6991 = vadd.xlane.f32.xlu0 %v6959
        %v6992 = vpop.xlane.xlu0 %6991
        %6993 = vadd.xlane.f32.xlu0 %v6960
        %v6994 = vpop.xlane.xlu0 %6993
        %6995 = vadd.xlane.f32.xlu0 %v6961
        %v6996 = vpop.xlane.xlu0 %6995
        %6997 = vadd.xlane.f32.xlu0 %v6962
        %v6998 = vpop.xlane.xlu0 %6997
        %6999 = vadd.xlane.f32.xlu0 %v6963
        %v7000 = vpop.xlane.xlu0 %6999
        %7001 = vadd.xlane.f32.xlu0 %v6964
        %v7002 = vpop.xlane.xlu0 %7001
        %v7003 = vmul.f32 %v6949, %v6949
        %v7004 = vmul.f32 %v6950, %v6950
        %v7005 = vmul.f32 %v6951, %v6951
        %v7006 = vmul.f32 %v6952, %v6952
        %v7007 = vmul.f32 %v6953, %v6953
        %v7008 = vmul.f32 %v6954, %v6954
        %v7009 = vmul.f32 %v6955, %v6955
        %v7010 = vmul.f32 %v6956, %v6956
        %v7011 = vmul.f32 %v6957, %v6957
        %v7012 = vmul.f32 %v6958, %v6958
        %v7013 = vmul.f32 %v6959, %v6959
        %v7014 = vmul.f32 %v6960, %v6960
        %v7015 = vmul.f32 %v6961, %v6961
        %v7016 = vmul.f32 %v6962, %v6962
        %v7017 = vmul.f32 %v6963, %v6963
        %v7018 = vmul.f32 %v6964, %v6964
        %7019 = vadd.xlane.f32.xlu0 %v7003
        %v7020 = vpop.xlane.xlu0 %7019
        %7021 = vadd.xlane.f32.xlu0 %v7004
        %v7022 = vpop.xlane.xlu0 %7021
        %7023 = vadd.xlane.f32.xlu0 %v7005
        %v7024 = vpop.xlane.xlu0 %7023
        %7025 = vadd.xlane.f32.xlu0 %v7006
        %v7026 = vpop.xlane.xlu0 %7025
        %7027 = vadd.xlane.f32.xlu0 %v7007
        %v7028 = vpop.xlane.xlu0 %7027
        %7029 = vadd.xlane.f32.xlu0 %v7008
        %v7030 = vpop.xlane.xlu0 %7029
        %7031 = vadd.xlane.f32.xlu0 %v7009
        %v7032 = vpop.xlane.xlu0 %7031
        %7033 = vadd.xlane.f32.xlu0 %v7010
        %v7034 = vpop.xlane.xlu0 %7033
        %7035 = vadd.xlane.f32.xlu0 %v7011
        %v7036 = vpop.xlane.xlu0 %7035
        %7037 = vadd.xlane.f32.xlu0 %v7012
        %v7038 = vpop.xlane.xlu0 %7037
        %7039 = vadd.xlane.f32.xlu0 %v7013
        %v7040 = vpop.xlane.xlu0 %7039
        %7041 = vadd.xlane.f32.xlu0 %v7014
        %v7042 = vpop.xlane.xlu0 %7041
        %7043 = vadd.xlane.f32.xlu0 %v7015
        %v7044 = vpop.xlane.xlu0 %7043
        %7045 = vadd.xlane.f32.xlu0 %v7016
        %v7046 = vpop.xlane.xlu0 %7045
        %7047 = vadd.xlane.f32.xlu0 %v7017
        %v7048 = vpop.xlane.xlu0 %7047
        %7049 = vadd.xlane.f32.xlu0 %v7018
        %v7050 = vpop.xlane.xlu0 %7049
        %v7051 = vadd.f32 %v6972, %v6976
        %v7052 = vadd.f32 %v7051, %v6980
        %v7053 = vadd.f32 %v7052, %v6984
        %v7054 = vadd.f32 %v7053, %v6988
        %v7055 = vadd.f32 %v7054, %v6992
        %v7056 = vadd.f32 %v7055, %v6996
        %v7057 = vadd.f32 %v7056, %v7000
        %v7058 = vadd.f32 %v6974, %v6978
        %v7059 = vadd.f32 %v7058, %v6982
        %v7060 = vadd.f32 %v7059, %v6986
        %v7061 = vadd.f32 %v7060, %v6990
        %v7062 = vadd.f32 %v7061, %v6994
        %v7063 = vadd.f32 %v7062, %v6998
        %v7064 = vadd.f32 %v7063, %v7002
        %v7065 = vadd.f32 %v7020, %v7024
        %v7066 = vadd.f32 %v7065, %v7028
        %v7067 = vadd.f32 %v7066, %v7032
        %v7068 = vadd.f32 %v7067, %v7036
        %v7069 = vadd.f32 %v7068, %v7040
        %v7070 = vadd.f32 %v7069, %v7044
        %v7071 = vadd.f32 %v7070, %v7048
        %v7072 = vadd.f32 %v7022, %v7026
        %v7073 = vadd.f32 %v7072, %v7030
        %v7074 = vadd.f32 %v7073, %v7034
        %v7075 = vadd.f32 %v7074, %v7038
        %v7076 = vadd.f32 %v7075, %v7042
        %v7077 = vadd.f32 %v7076, %v7046
        %v7078 = vadd.f32 %v7077, %v7050
        %v7079 = vmul.f32 %v7057, 0.0009765625
        %v7080 = vmul.f32 %v7064, 0.0009765625
        %v7081 = vmul.f32 %v7071, 0.0009765625
        %v7082 = vmul.f32 %v7078, 0.0009765625
        %v7083 = vmul.f32 %v7079, %v7079
        %v7084 = vmul.f32 %v7080, %v7080
        %v7085 = vsub.f32 %v7081, %v7083
        %v7086 = vsub.f32 %v7082, %v7084
        %v7087 = vadd.f32 %v7085, 1e-05
        %v7088 = vadd.f32 %v7086, 1e-05
        %v7089 = vrsqrt.pop %v7087
        %v7090 = vrsqrt.pop %v7088
        %v7091 = vmul.f32 %v6966, %v7089
        %v7092 = vmul.f32 %v6967, %v7090
        %v7093 = vmul.f32 %v7079, %v7091
        %v7094 = vmul.f32 %v7080, %v7092
        %v7095 = vsub.f32 %v6969, %v7093
        %v7096 = vsub.f32 %v6970, %v7094
        %7098 = vset.pattern.permute.xlu0 0
        %7099 = vperm.xlu0 %7098, %v7091
        %v7100 = vpop.permute.xlu0 %7099
        %7103 = vset.pattern.permute.xlu0 0
        %7104 = vperm.xlu0 %7103, %v7092
        %v7105 = vpop.permute.xlu0 %7104
        %v7107 = vmul.f32 %v6949, %v7100
        %v7108 = vmul.f32 %v6950, %v7105
        %v7109 = vmul.f32 %v6951, %v7100
        %v7110 = vmul.f32 %v6952, %v7105
        %v7111 = vmul.f32 %v6953, %v7100
        %v7112 = vmul.f32 %v6954, %v7105
        %v7113 = vmul.f32 %v6955, %v7100
        %v7114 = vmul.f32 %v6956, %v7105
        %v7115 = vmul.f32 %v6957, %v7100
        %v7116 = vmul.f32 %v6958, %v7105
        %v7117 = vmul.f32 %v6959, %v7100
        %v7118 = vmul.f32 %v6960, %v7105
        %v7119 = vmul.f32 %v6961, %v7100
        %v7120 = vmul.f32 %v6962, %v7105
        %v7121 = vmul.f32 %v6963, %v7100
        %v7122 = vmul.f32 %v6964, %v7105
        %7124 = vset.pattern.permute.xlu0 0
        %7125 = vperm.xlu0 %7124, %v7095
        %v7126 = vpop.permute.xlu0 %7125
        %7129 = vset.pattern.permute.xlu0 0
        %7130 = vperm.xlu0 %7129, %v7096
        %v7131 = vpop.permute.xlu0 %7130
        %v7133 = vadd.f32 %v7107, %v7126
        %v7134 = vadd.f32 %v7108, %v7131
        %v7135 = vadd.f32 %v7109, %v7126
        %v7136 = vadd.f32 %v7110, %v7131
        %v7137 = vadd.f32 %v7111, %v7126
        %v7138 = vadd.f32 %v7112, %v7131
        %v7139 = vadd.f32 %v7113, %v7126
        %v7140 = vadd.f32 %v7114, %v7131
        %v7141 = vadd.f32 %v7115, %v7126
        %v7142 = vadd.f32 %v7116, %v7131
        %v7143 = vadd.f32 %v7117, %v7126
        %v7144 = vadd.f32 %v7118, %v7131
        %v7145 = vadd.f32 %v7119, %v7126
        %v7146 = vadd.f32 %v7120, %v7131
        %v7147 = vadd.f32 %v7121, %v7126
        %v7148 = vadd.f32 %v7122, %v7131
        %v7149 = vmul.f32 %v7133, 0.2
        %v7150 = vmul.f32 %v7134, 0.2
        %v7151 = vmul.f32 %v7135, 0.2
        %v7152 = vmul.f32 %v7136, 0.2
        %v7153 = vmul.f32 %v7137, 0.2
        %v7154 = vmul.f32 %v7138, 0.2
        %v7155 = vmul.f32 %v7139, 0.2
        %v7156 = vmul.f32 %v7140, 0.2
        %v7157 = vmul.f32 %v7141, 0.2
        %v7158 = vmul.f32 %v7142, 0.2
        %v7159 = vmul.f32 %v7143, 0.2
        %v7160 = vmul.f32 %v7144, 0.2
        %v7161 = vmul.f32 %v7145, 0.2
        %v7162 = vmul.f32 %v7146, 0.2
        %v7163 = vmul.f32 %v7147, 0.2
        %v7164 = vmul.f32 %v7148, 0.2
        %v7165 = vmax.f32 %v7133, %v7149
        %v7166 = vmax.f32 %v7134, %v7150
        %v7167 = vmax.f32 %v7135, %v7151
        %v7168 = vmax.f32 %v7136, %v7152
        %v7169 = vmax.f32 %v7137, %v7153
        %v7170 = vmax.f32 %v7138, %v7154
        %v7171 = vmax.f32 %v7139, %v7155
        %v7172 = vmax.f32 %v7140, %v7156
        %v7173 = vmax.f32 %v7141, %v7157
        %v7174 = vmax.f32 %v7142, %v7158
        %v7175 = vmax.f32 %v7143, %v7159
        %v7176 = vmax.f32 %v7144, %v7160
        %v7177 = vmax.f32 %v7145, %v7161
        %v7178 = vmax.f32 %v7146, %v7162
        %v7179 = vmax.f32 %v7147, %v7163
        %v7180 = vmax.f32 %v7148, %v7164
        %v7181 = vadd.f32 %v7165, %v1101
        %v7182 = vadd.f32 %v7166, %v1102
        %v7183 = vadd.f32 %v7167, %v1103
        %v7184 = vadd.f32 %v7168, %v1104
        %v7185 = vadd.f32 %v7169, %v1105
        %v7186 = vadd.f32 %v7170, %v1106
        %v7187 = vadd.f32 %v7171, %v1107
        %v7188 = vadd.f32 %v7172, %v1108
        %v7189 = vadd.f32 %v7173, %v1109
        %v7190 = vadd.f32 %v7174, %v1110
        %v7191 = vadd.f32 %v7175, %v1111
        %v7192 = vadd.f32 %v7176, %v1112
        %v7193 = vadd.f32 %v7177, %v1113
        %v7194 = vadd.f32 %v7178, %v1114
        %v7195 = vadd.f32 %v7179, %v1115
        %v7196 = vadd.f32 %v7180, %v1116
        %v7197 = vmul.f32 %v7181, 0.70710677
        %v7198 = vmul.f32 %v7182, 0.70710677
        %v7199 = vmul.f32 %v7183, 0.70710677
        %v7200 = vmul.f32 %v7184, 0.70710677
        %v7201 = vmul.f32 %v7185, 0.70710677
        %v7202 = vmul.f32 %v7186, 0.70710677
        %v7203 = vmul.f32 %v7187, 0.70710677
        %v7204 = vmul.f32 %v7188, 0.70710677
        %v7205 = vmul.f32 %v7189, 0.70710677
        %v7206 = vmul.f32 %v7190, 0.70710677
        %v7207 = vmul.f32 %v7191, 0.70710677
        %v7208 = vmul.f32 %v7192, 0.70710677
        %v7209 = vmul.f32 %v7193, 0.70710677
        %v7210 = vmul.f32 %v7194, 0.70710677
        %v7211 = vmul.f32 %v7195, 0.70710677
        %v7212 = vmul.f32 %v7196, 0.70710677
        %v7213 = vld [vmem:[%s276] sm:$0xff]
        %v7214 = vlaneseq
        %v7215 = vshrl.u32 %v7214, 7
        %v7216 = vsub.s32 0, %v7215
        %v7217 = vrot.slane %v7213, %v7216
        %7219 = vbcast.lane.b32.xlu0 %v7217, 256
        %v7220 = vpop.permute.xlu0 %7219
        %s7222 = sor.u32 256, 8
        %7223 = vbcast.lane.b32.xlu0 %v7217, %s7222
        %v7224 = vpop.permute.xlu0 %7223
        %v7225 = vlaneseq
        %v7226 = vshrl.u32 %v7225, 7
        %v7227 = vsub.s32 1, %v7226
        %v7228 = vrot.slane %v7213, %v7227
        %7230 = vbcast.lane.b32.xlu0 %v7228, 256
        %v7231 = vpop.permute.xlu0 %7230
        %s7233 = sor.u32 256, 8
        %7234 = vbcast.lane.b32.xlu0 %v7228, %s7233
        %v7235 = vpop.permute.xlu0 %7234
        %v7236 = vlaneseq
        %v7237 = vshrl.u32 %v7236, 7
        %v7238 = vsub.s32 2, %v7237
        %v7239 = vrot.slane %v7213, %v7238
        %7241 = vbcast.lane.b32.xlu0 %v7239, 256
        %v7242 = vpop.permute.xlu0 %7241
        %s7244 = sor.u32 256, 8
        %7245 = vbcast.lane.b32.xlu0 %v7239, %s7244
        %v7246 = vpop.permute.xlu0 %7245
        %v7247 = vlaneseq
        %v7248 = vshrl.u32 %v7247, 7
        %v7249 = vsub.s32 3, %v7248
        %v7250 = vrot.slane %v7213, %v7249
        %7252 = vbcast.lane.b32.xlu0 %v7250, 256
        %v7253 = vpop.permute.xlu0 %7252
        %s7255 = sor.u32 256, 8
        %7256 = vbcast.lane.b32.xlu0 %v7250, %s7255
        %v7257 = vpop.permute.xlu0 %7256
        %v7258 = vlaneseq
        %v7259 = vshrl.u32 %v7258, 7
        %v7260 = vsub.s32 4, %v7259
        %v7261 = vrot.slane %v7213, %v7260
        %7263 = vbcast.lane.b32.xlu0 %v7261, 256
        %v7264 = vpop.permute.xlu0 %7263
        %s7266 = sor.u32 256, 8
        %7267 = vbcast.lane.b32.xlu0 %v7261, %s7266
        %v7268 = vpop.permute.xlu0 %7267
        %v7269 = vlaneseq
        %v7270 = vshrl.u32 %v7269, 7
        %v7271 = vsub.s32 5, %v7270
        %v7272 = vrot.slane %v7213, %v7271
        %7274 = vbcast.lane.b32.xlu0 %v7272, 256
        %v7275 = vpop.permute.xlu0 %7274
        %s7277 = sor.u32 256, 8
        %7278 = vbcast.lane.b32.xlu0 %v7272, %s7277
        %v7279 = vpop.permute.xlu0 %7278
        %v7280 = vlaneseq
        %v7281 = vshrl.u32 %v7280, 7
        %v7282 = vsub.s32 6, %v7281
        %v7283 = vrot.slane %v7213, %v7282
        %7285 = vbcast.lane.b32.xlu0 %v7283, 256
        %v7286 = vpop.permute.xlu0 %7285
        %s7288 = sor.u32 256, 8
        %7289 = vbcast.lane.b32.xlu0 %v7283, %s7288
        %v7290 = vpop.permute.xlu0 %7289
        %v7291 = vlaneseq
        %v7292 = vshrl.u32 %v7291, 7
        %v7293 = vsub.s32 7, %v7292
        %v7294 = vrot.slane %v7213, %v7293
        %7296 = vbcast.lane.b32.xlu0 %v7294, 256
        %v7297 = vpop.permute.xlu0 %7296
        %s7299 = sor.u32 256, 8
        %7300 = vbcast.lane.b32.xlu0 %v7294, %s7299
        %v7301 = vpop.permute.xlu0 %7300
        %v7302 = vmul.f32 %v7197, %v7220
        %v7303 = vmul.f32 %v7198, %v7224
        %v7304 = vmul.f32 %v7199, %v7231
        %v7305 = vmul.f32 %v7200, %v7235
        %v7306 = vmul.f32 %v7201, %v7242
        %v7307 = vmul.f32 %v7202, %v7246
        %v7308 = vmul.f32 %v7203, %v7253
        %v7309 = vmul.f32 %v7204, %v7257
        %v7310 = vmul.f32 %v7205, %v7264
        %v7311 = vmul.f32 %v7206, %v7268
        %v7312 = vmul.f32 %v7207, %v7275
        %v7313 = vmul.f32 %v7208, %v7279
        %v7314 = vmul.f32 %v7209, %v7286
        %v7315 = vmul.f32 %v7210, %v7290
        %v7316 = vmul.f32 %v7211, %v7297
        %v7317 = vmul.f32 %v7212, %v7301
        %v7318 = vadd.f32 %v7302, %v7303
        %v7319 = vrot.slane %v7318, 4
        %v7320 = vadd.f32 %v7318, %v7319
        %v7321 = vrot.slane %v7320, 2
        %v7322 = vadd.f32 %v7320, %v7321
        %v7323 = vrot.slane %v7322, 1
        %v7324 = vadd.f32 %v7322, %v7323
        %v7325 = vadd.f32 %v7304, %v7305
        %v7326 = vrot.slane %v7325, 4
        %v7327 = vadd.f32 %v7325, %v7326
        %v7328 = vrot.slane %v7327, 2
        %v7329 = vadd.f32 %v7327, %v7328
        %v7330 = vrot.slane %v7329, 1
        %v7331 = vadd.f32 %v7329, %v7330
        %v7332 = vadd.f32 %v7306, %v7307
        %v7333 = vrot.slane %v7332, 4
        %v7334 = vadd.f32 %v7332, %v7333
        %v7335 = vrot.slane %v7334, 2
        %v7336 = vadd.f32 %v7334, %v7335
        %v7337 = vrot.slane %v7336, 1
        %v7338 = vadd.f32 %v7336, %v7337
        %v7339 = vadd.f32 %v7308, %v7309
        %v7340 = vrot.slane %v7339, 4
        %v7341 = vadd.f32 %v7339, %v7340
        %v7342 = vrot.slane %v7341, 2
        %v7343 = vadd.f32 %v7341, %v7342
        %v7344 = vrot.slane %v7343, 1
        %v7345 = vadd.f32 %v7343, %v7344
        %v7346 = vadd.f32 %v7310, %v7311
        %v7347 = vrot.slane %v7346, 4
        %v7348 = vadd.f32 %v7346, %v7347
        %v7349 = vrot.slane %v7348, 2
        %v7350 = vadd.f32 %v7348, %v7349
        %v7351 = vrot.slane %v7350, 1
        %v7352 = vadd.f32 %v7350, %v7351
        %v7353 = vadd.f32 %v7312, %v7313
        %v7354 = vrot.slane %v7353, 4
        %v7355 = vadd.f32 %v7353, %v7354
        %v7356 = vrot.slane %v7355, 2
        %v7357 = vadd.f32 %v7355, %v7356
        %v7358 = vrot.slane %v7357, 1
        %v7359 = vadd.f32 %v7357, %v7358
        %v7360 = vadd.f32 %v7314, %v7315
        %v7361 = vrot.slane %v7360, 4
        %v7362 = vadd.f32 %v7360, %v7361
        %v7363 = vrot.slane %v7362, 2
        %v7364 = vadd.f32 %v7362, %v7363
        %v7365 = vrot.slane %v7364, 1
        %v7366 = vadd.f32 %v7364, %v7365
        %v7367 = vadd.f32 %v7316, %v7317
        %v7368 = vrot.slane %v7367, 4
        %v7369 = vadd.f32 %v7367, %v7368
        %v7370 = vrot.slane %v7369, 2
        %v7371 = vadd.f32 %v7369, %v7370
        %v7372 = vrot.slane %v7371, 1
        %v7373 = vadd.f32 %v7371, %v7372
        %7375 = vset.pattern.permute.xlu0 16
        %7376 = vperm.xlu0 %7375, %v7213
        %v7377 = vpop.permute.xlu0 %7376
        %v7378 = vrot.slane %v7377, 1
        %v7379 = vrot.slane %v7377, 2
        %v7380 = vrot.slane %v7377, 3
        %v7381 = vrot.slane %v7377, 4
        %v7382 = vrot.slane %v7377, 5
        %v7383 = vrot.slane %v7377, 6
        %v7384 = vrot.slane %v7377, 7
        %v7393 = vadd.f32 %v7324, %v7377
        %v7394 = vadd.f32 %v7331, %v7378
        %v7395 = vadd.f32 %v7338, %v7379
        %v7396 = vadd.f32 %v7345, %v7380
        %v7397 = vadd.f32 %v7352, %v7381
        %v7398 = vadd.f32 %v7359, %v7382
        %v7399 = vadd.f32 %v7366, %v7383
        %v7400 = vadd.f32 %v7373, %v7384
        %v7409 = vrot.slane %v7394, 7
        %vm7410 = vcmask 1041409
        %v7411 = vsel %vm7410, %v7409, %v7393
        %v7412 = vrot.slane %v7395, 6
        %vm7413 = vcmask 1042434
        %v7414 = vsel %vm7413, %v7412, %v7411
        %v7415 = vrot.slane %v7396, 5
        %vm7416 = vcmask 1043459
        %v7417 = vsel %vm7416, %v7415, %v7414
        %v7418 = vrot.slane %v7397, 4
        %vm7419 = vcmask 1044484
        %v7420 = vsel %vm7419, %v7418, %v7417
        %v7421 = vrot.slane %v7398, 3
        %vm7422 = vcmask 1045509
        %v7423 = vsel %vm7422, %v7421, %v7420
        %v7424 = vrot.slane %v7399, 2
        %vm7425 = vcmask 1046534
        %v7426 = vsel %vm7425, %v7424, %v7423
        %v7427 = vrot.slane %v7400, 1
        %vm7428 = vcmask 1047559
        %v7429 = vsel %vm7428, %v7427, %v7426
        %7431 = vst [vmem:[%s271] sm:$0xff] %v7429
        %s7432 = sand.u32 %s146, 1
        %s7433 = scalar_lea.sflag [#allocation4], %s7432
        %s7434 = sand.u32 %s146, 1
        %s7435 = smul.addr %s7434, 8
        %s7436 = scalar_lea.vmem [#allocation7], %s7435
        // Predicated region
        $region49: #{tpu_custom_call.1} parent=39 // pred_check
          %p7437 = pneg %p156
        $region50: #{tpu_custom_call.1} parent=39 // pred_check_branch
          %7439 = sbr.rel (%p7437) target = $region52
        $region51: #{tpu_custom_call.1} parent=39 // pred_region
          %s7441 = ssub.s32 128, 128
          %7442 = vsyncadd %s7433, %s7441
          %s7443 = smul.addr %s23, 128
          %s7444 = scalar_lea.hbm %s5, %s7443
          %s7446 = sshll.u32 %s7436, 4
          %s7447 = int_to_ptr.vmem [resolvable:$true] %s7446
          %7449 = dma.vmem_to_hbm [thread:$0]  %s7447, 128, %s7444, %s7433
        $region52: #{tpu_custom_call.1} parent=39 // pred_fallthru
          _
      $region40: #{tpu_custom_call.1} parent=5 // pred_fallthru
        _
      %p7450 = scmp.le.s32.totalorder 2, %s18
      // Predicated region
      $region53: #{tpu_custom_call.1} parent=5 // pred_check
        %p7451 = pneg %p7450
      $region54: #{tpu_custom_call.1} parent=5 // pred_check_branch
        %7453 = sbr.rel (%p7451) target = $region56
      $region55: #{tpu_custom_call.1} parent=5 // pred_region
        %s7454 = ssub.s32 %s18, 2
        // Predicated region
        $region57: #{tpu_custom_call.1} parent=55 // pred_check
          %p7455 = pneg %p162
        $region58: #{tpu_custom_call.1} parent=55 // pred_check_branch
          %7457 = sbr.rel (%p7455) target = $region60
        $region59: #{tpu_custom_call.1} parent=55 // pred_region
          %s7458 = sand.u32 %s147, 1
          %s7459 = scalar_lea.sflag [#allocation4], %s7458
          %s7460 = sand.u32 %s147, 1
          %s7461 = smul.addr %s7460, 8
          %s7462 = scalar_lea.vmem [#allocation7], %s7461
          %7463 = dma.done %s7459, 128
        $region60: #{tpu_custom_call.1} parent=55 // pred_fallthru
          _
      $region56: #{tpu_custom_call.1} parent=5 // pred_fallthru
        _
    $region6: #{tpu_custom_call.1} parent=1 // loop_footer
      %s22 = sadd.s32 1, %s18
    $region7: #{tpu_custom_call.1} parent=1 // loop_footer_branch
      %17 = sbr.rel target = $region3
    $region8: #{tpu_custom_call.1} parent=1 // loop_exit
      _
    %7464 = vsyncpa [#allocation3], 1
    %s7465 = scalar_lea.sflag [#allocation3], 1
    %7466 = vsyncpa %s7465, 1
    %7467 = vsyncpa [#allocation6], 1
    %7468 = vsyncpa [#allocation4], 1
    %s7469 = scalar_lea.sflag [#allocation4], 1
    %7470 = vsyncpa %s7469, 1

</llo_original>
